<compile_context>
chip_gen: v6e
topology: v6e:2x2x1
jax: 0.10.0
libtpu: 0.0.40
codegen_flags: <defaults>
</compile_context>

<pallas_src>
import math

import jax
import jax.numpy as jnp
from jax.experimental import pallas as pl
from jax.experimental.pallas import tpu as pltpu

# ---- small synthetic BERT config -------------------------------------------------
VOCAB = 64
HIDDEN = 256            # N_HEADS * HEAD_DIM, HEAD_DIM=128 keeps head slices lane-aligned
N_HEADS = 2
HEAD_DIM = HIDDEN // N_HEADS
INTER = 4 * HIDDEN
N_LAYERS = 2
NUM_CLASSES = 6
CLS_PAD = 128           # lane-dense padded classifier output width
MAX_POS = 32
LN_EPS = 1e-12


def _layernorm(x, g, b):
    mu = jnp.mean(x, axis=-1, keepdims=True)
    var = jnp.mean((x - mu) ** 2, axis=-1, keepdims=True)
    return (x - mu) * jax.lax.rsqrt(var + LN_EPS) * g + b


def _resident_spec(shape):
    """Full-array block that maps every grid step to block 0 (weight stays VMEM-resident)."""
    zeros = (0,) * len(shape)
    return pl.BlockSpec(shape, lambda b, _z=zeros: _z)


# ---------------- single fused forward kernel (one batch row per grid step) ---------
def fused_bert_kernel(emb_ref, mask_ref, eg_ref, eb_ref,
                      wqkv_ref, bqkv_ref, wo_ref, bo_ref, g1_ref, be1_ref,
                      wi_ref, bi_ref, w2_ref, b2_ref, g2_ref, be2_ref,
                      pw_ref, pb_ref, cw_ref, cb_ref,
                      logits_ref, pooled_ref):
    bf16 = jnp.bfloat16

    x = _layernorm(emb_ref[0], eg_ref[...], eb_ref[...])            # (S, H) f32
    attn_bias = (1.0 - mask_ref[0]) * -1e9                          # (1, S) f32 (kept in f32)
    scale = 1.0 / math.sqrt(HEAD_DIM)

    for l in range(N_LAYERS):
        # ---- multi-head self-attention (bf16 MXU inputs, f32 accumulation / softmax) ----
        qkv = jnp.dot(x.astype(bf16), wqkv_ref[l],
                      preferred_element_type=jnp.float32) + bqkv_ref[l]      # (S, 3H) f32
        wo_l = wo_ref[l]                                                     # (H, H) bf16
        attn = jnp.zeros(x.shape, jnp.float32)
        for h in range(N_HEADS):                                             # lane-aligned slices
            qh = qkv[:, h * HEAD_DIM:(h + 1) * HEAD_DIM]
            kh = qkv[:, HIDDEN + h * HEAD_DIM:HIDDEN + (h + 1) * HEAD_DIM]
            vh = qkv[:, 2 * HIDDEN + h * HEAD_DIM:2 * HIDDEN + (h + 1) * HEAD_DIM]
            s = jnp.einsum('qd,kd->qk', qh.astype(bf16), kh.astype(bf16),
                           preferred_element_type=jnp.float32) * scale + attn_bias
            s = s - jnp.max(s, axis=-1, keepdims=True)
            p = jnp.exp(s)
            p = p * pl.reciprocal(jnp.sum(p, axis=-1, keepdims=True), approx=True)
            ctx = jnp.dot(p.astype(bf16), vh.astype(bf16),
                          preferred_element_type=jnp.float32)                # (S, HD)
            # partial output projection: sum_h ctx_h @ Wo[rows of h] == concat(ctx) @ Wo
            attn = attn + jnp.dot(ctx.astype(bf16),
                                  wo_l[h * HEAD_DIM:(h + 1) * HEAD_DIM, :],
                                  preferred_element_type=jnp.float32)
        h1 = _layernorm(x + attn + bo_ref[l], g1_ref[l], be1_ref[l])

        # ---- feed-forward (GELU) ----
        ff = jnp.dot(h1.astype(bf16), wi_ref[l],
                     preferred_element_type=jnp.float32) + bi_ref[l]
        ff = jax.nn.gelu(ff, approximate=True)
        ff2 = jnp.dot(ff.astype(bf16), w2_ref[l],
                      preferred_element_type=jnp.float32) + b2_ref[l]
        x = _layernorm(h1 + ff2, g2_ref[l], be2_ref[l])

    # ---- pooler ([CLS] -> tanh) -> dropout (eval-mode identity) -> classifier ----
    cls_tok = x[0:1, :]                                                      # (1, H)
    pooled = jnp.tanh(jnp.dot(cls_tok.astype(bf16), pw_ref[...],
                              preferred_element_type=jnp.float32) + pb_ref[...])
    logits = jnp.dot(pooled.astype(bf16), cw_ref[...],
                     preferred_element_type=jnp.float32) + cb_ref[...]       # (1, CLS_PAD)
    pooled_ref[...] = pooled[None]
    logits_ref[...] = logits[None]


# ---------------- parameter init (deterministic, synthetic) -------------------------
def init_params(key):
    std = 0.02
    ks = iter(jax.random.split(key, 5 + 4 * N_LAYERS))

    def rnd(shape, dtype):
        return (jax.random.normal(next(ks), shape, jnp.float32) * std).astype(dtype)

    params = {
        'word_emb': rnd((VOCAB, HIDDEN), jnp.float32),
        'pos_emb': rnd((MAX_POS, HIDDEN), jnp.float32),
        'type_emb': rnd((2, HIDDEN), jnp.float32),
        'emb_ln_g': jnp.ones((1, HIDDEN), jnp.float32),
        'emb_ln_b': jnp.zeros((1, HIDDEN), jnp.float32),
        'pool_w': rnd((HIDDEN, HIDDEN), jnp.bfloat16),
        'pool_b': jnp.zeros((1, HIDDEN), jnp.float32),
    }
    cls_w = rnd((HIDDEN, NUM_CLASSES), jnp.bfloat16)
    params['cls_w_pad'] = (jnp.zeros((HIDDEN, CLS_PAD), jnp.bfloat16)
                           .at[:, :NUM_CLASSES].set(cls_w))
    params['cls_b_pad'] = jnp.zeros((1, CLS_PAD), jnp.float32)

    wqkv, wo, wi, w2 = [], [], [], []
    for _ in range(N_LAYERS):
        wqkv.append(rnd((HIDDEN, 3 * HIDDEN), jnp.bfloat16))
        wo.append(rnd((HIDDEN, HIDDEN), jnp.bfloat16))
        wi.append(rnd((HIDDEN, INTER), jnp.bfloat16))
        w2.append(rnd((INTER, HIDDEN), jnp.bfloat16))
    params.update({
        'wqkv': jnp.stack(wqkv), 'bqkv': jnp.zeros((N_LAYERS, 1, 3 * HIDDEN), jnp.float32),
        'wo': jnp.stack(wo),     'bo': jnp.zeros((N_LAYERS, 1, HIDDEN), jnp.float32),
        'ln1_g': jnp.ones((N_LAYERS, 1, HIDDEN), jnp.float32),
        'ln1_b': jnp.zeros((N_LAYERS, 1, HIDDEN), jnp.float32),
        'wi': jnp.stack(wi),     'bi': jnp.zeros((N_LAYERS, 1, INTER), jnp.float32),
        'w2': jnp.stack(w2),     'b2': jnp.zeros((N_LAYERS, 1, HIDDEN), jnp.float32),
        'ln2_g': jnp.ones((N_LAYERS, 1, HIDDEN), jnp.float32),
        'ln2_b': jnp.zeros((N_LAYERS, 1, HIDDEN), jnp.float32),
    })
    return params


# ---------------- full forward (embedding gather is glue; everything else in Pallas) -
def bert_classifier_forward(params, input_id, mask, ret_rep=0):
    B, S = input_id.shape
    emb = (jnp.take(params['word_emb'], input_id, axis=0)
           + params['pos_emb'][None, :S, :]
           + params['type_emb'][0][None, None, :]).astype(jnp.float32)       # (B, S, H)
    mask3 = mask.astype(jnp.float32)[:, None, :]                             # (B, 1, S)

    weight_args = (params['emb_ln_g'], params['emb_ln_b'],
                   params['wqkv'], params['bqkv'], params['wo'], params['bo'],
                   params['ln1_g'], params['ln1_b'],
                   params['wi'], params['bi'], params['w2'], params['b2'],
                   params['ln2_g'], params['ln2_b'],
                   params['pool_w'], params['pool_b'],
                   params['cls_w_pad'], params['cls_b_pad'])

    in_specs = ([pl.BlockSpec((1, S, HIDDEN), lambda b: (b, 0, 0)),
                 pl.BlockSpec((1, 1, S), lambda b: (b, 0, 0))]
                + [_resident_spec(w.shape) for w in weight_args])
    out_specs = (pl.BlockSpec((1, 1, CLS_PAD), lambda b: (b, 0, 0)),
                 pl.BlockSpec((1, 1, HIDDEN), lambda b: (b, 0, 0)))
    out_shape = (jax.ShapeDtypeStruct((B, 1, CLS_PAD), jnp.float32),
                 jax.ShapeDtypeStruct((B, 1, HIDDEN), jnp.float32))

    logits_pad, pooled = pl.pallas_call(
        fused_bert_kernel,
        grid=(B,),
        in_specs=in_specs,
        out_specs=out_specs,
        out_shape=out_shape,
        compiler_params=pltpu.CompilerParams(
            dimension_semantics=("parallel",),        # batch rows -> both TCs on v7x
            vmem_limit_bytes=32 * 1024 * 1024),
    )(emb, mask3, *weight_args)

    logits = logits_pad[:, 0, :NUM_CLASSES]
    if ret_rep == 0:
        return logits
    elif ret_rep == 1:
        return logits, logits
    else:  # ret_rep == 2: pooled representation (pre-dropout), straight from the kernel
        return logits, pooled[:, 0, :]


if __name__ == "__main__":
    key = jax.random.PRNGKey(0)
    k_param, k_ids = jax.random.split(key)
    params = init_params(k_param)

    B, S = 2, 8
    input_id = jax.random.randint(k_ids, (B, S), 0, VOCAB, dtype=jnp.int32)
    mask = jnp.array([[1, 1, 1, 1, 1, 1, 0, 0],
                      [1, 1, 1, 1, 1, 1, 1, 1]], dtype=jnp.int32)

    logits = bert_classifier_forward(params, input_id, mask, ret_rep=0)
    logits = jax.block_until_ready(logits)
    assert logits.shape == (B, NUM_CLASSES)
    assert bool(jnp.all(jnp.isfinite(logits)))

    logits2, pooled = bert_classifier_forward(params, input_id, mask, ret_rep=2)
    jax.block_until_ready((logits2, pooled))
    assert pooled.shape == (B, HIDDEN)
    assert bool(jnp.all(jnp.isfinite(pooled)))

    print("KERNEL_OK")
</pallas_src>

<mosaic_0001>
module attributes {stable_mosaic.version = 11 : i64} {
  func.func @fused_bert_kernel(%arg0: i32, %arg1: memref<1x8x256xf32, #tpu.memory_space<vmem>>, %arg2: memref<1x1x8xf32, #tpu.memory_space<vmem>>, %arg3: memref<1x256xf32, #tpu.memory_space<vmem>>, %arg4: memref<1x256xf32, #tpu.memory_space<vmem>>, %arg5: memref<2x256x768xbf16, #tpu.memory_space<vmem>>, %arg6: memref<2x1x768xf32, #tpu.memory_space<vmem>>, %arg7: memref<2x256x256xbf16, #tpu.memory_space<vmem>>, %arg8: memref<2x1x256xf32, #tpu.memory_space<vmem>>, %arg9: memref<2x1x256xf32, #tpu.memory_space<vmem>>, %arg10: memref<2x1x256xf32, #tpu.memory_space<vmem>>, %arg11: memref<2x256x1024xbf16, #tpu.memory_space<vmem>>, %arg12: memref<2x1x1024xf32, #tpu.memory_space<vmem>>, %arg13: memref<2x1024x256xbf16, #tpu.memory_space<vmem>>, %arg14: memref<2x1x256xf32, #tpu.memory_space<vmem>>, %arg15: memref<2x1x256xf32, #tpu.memory_space<vmem>>, %arg16: memref<2x1x256xf32, #tpu.memory_space<vmem>>, %arg17: memref<256x256xbf16, #tpu.memory_space<vmem>>, %arg18: memref<1x256xf32, #tpu.memory_space<vmem>>, %arg19: memref<256x128xbf16, #tpu.memory_space<vmem>>, %arg20: memref<1x128xf32, #tpu.memory_space<vmem>>, %arg21: memref<1x1x128xf32, #tpu.memory_space<vmem>>, %arg22: memref<1x1x256xf32, #tpu.memory_space<vmem>>) attributes {dimension_semantics = [#tpu.dimension_semantics<parallel>], iteration_bounds = array<i64: 2>, scalar_prefetch = 0 : i64, scratch_operands = 0 : i64, tpu.core_type = #tpu.core_type<tc>, window_params = [{transform_indices = @transform_0, window_bounds = array<i64: 1, 8, 256>}, {transform_indices = @transform_1, window_bounds = array<i64: 1, 1, 8>}, {pipeline_mode = #tpu.pipeline_mode<synchronous>, transform_indices = @transform_2, window_bounds = array<i64: 1, 256>}, {pipeline_mode = #tpu.pipeline_mode<synchronous>, transform_indices = @transform_3, window_bounds = array<i64: 1, 256>}, {pipeline_mode = #tpu.pipeline_mode<synchronous>, transform_indices = @transform_4, window_bounds = array<i64: 2, 256, 768>}, {pipeline_mode = #tpu.pipeline_mode<synchronous>, transform_indices = @transform_5, window_bounds = array<i64: 2, 1, 768>}, {pipeline_mode = #tpu.pipeline_mode<synchronous>, transform_indices = @transform_6, window_bounds = array<i64: 2, 256, 256>}, {pipeline_mode = #tpu.pipeline_mode<synchronous>, transform_indices = @transform_7, window_bounds = array<i64: 2, 1, 256>}, {pipeline_mode = #tpu.pipeline_mode<synchronous>, transform_indices = @transform_8, window_bounds = array<i64: 2, 1, 256>}, {pipeline_mode = #tpu.pipeline_mode<synchronous>, transform_indices = @transform_9, window_bounds = array<i64: 2, 1, 256>}, {pipeline_mode = #tpu.pipeline_mode<synchronous>, transform_indices = @transform_10, window_bounds = array<i64: 2, 256, 1024>}, {pipeline_mode = #tpu.pipeline_mode<synchronous>, transform_indices = @transform_11, window_bounds = array<i64: 2, 1, 1024>}, {pipeline_mode = #tpu.pipeline_mode<synchronous>, transform_indices = @transform_12, window_bounds = array<i64: 2, 1024, 256>}, {pipeline_mode = #tpu.pipeline_mode<synchronous>, transform_indices = @transform_13, window_bounds = array<i64: 2, 1, 256>}, {pipeline_mode = #tpu.pipeline_mode<synchronous>, transform_indices = @transform_14, window_bounds = array<i64: 2, 1, 256>}, {pipeline_mode = #tpu.pipeline_mode<synchronous>, transform_indices = @transform_15, window_bounds = array<i64: 2, 1, 256>}, {pipeline_mode = #tpu.pipeline_mode<synchronous>, transform_indices = @transform_16, window_bounds = array<i64: 256, 256>}, {pipeline_mode = #tpu.pipeline_mode<synchronous>, transform_indices = @transform_17, window_bounds = array<i64: 1, 256>}, {pipeline_mode = #tpu.pipeline_mode<synchronous>, transform_indices = @transform_18, window_bounds = array<i64: 256, 128>}, {pipeline_mode = #tpu.pipeline_mode<synchronous>, transform_indices = @transform_19, window_bounds = array<i64: 1, 128>}, {transform_indices = @transform_20, window_bounds = array<i64: 1, 1, 128>}, {transform_indices = @transform_21, window_bounds = array<i64: 1, 1, 256>}]} {
    %c0 = arith.constant 0 : index
    %c0_0 = arith.constant 0 : index
    %c0_1 = arith.constant 0 : index
    %0 = vector.load %arg1[%c0, %c0_0, %c0_1] : memref<1x8x256xf32, #tpu.memory_space<vmem>>, vector<1x8x256xf32>
    %1 = vector.shape_cast %0 : vector<1x8x256xf32> to vector<8x256xf32>
    %c0_2 = arith.constant 0 : index
    %c0_3 = arith.constant 0 : index
    %2 = vector.load %arg3[%c0_2, %c0_3] : memref<1x256xf32, #tpu.memory_space<vmem>>, vector<1x256xf32>
    %c0_4 = arith.constant 0 : index
    %c0_5 = arith.constant 0 : index
    %3 = vector.load %arg4[%c0_4, %c0_5] : memref<1x256xf32, #tpu.memory_space<vmem>>, vector<1x256xf32>
    %cst = arith.constant dense<0.000000e+00> : vector<8xf32>
    %4 = vector.multi_reduction <add>, %1, %cst [1] : vector<8x256xf32> to vector<8xf32>
    %5 = vector.shape_cast %4 : vector<8xf32> to vector<8x1xf32>
    %cst_6 = arith.constant 2.560000e+02 : f32
    %6 = vector.broadcast %cst_6 : f32 to vector<8x1xf32>
    %7 = arith.divf %5, %6 : vector<8x1xf32>
    %8 = vector.broadcast %7 : vector<8x1xf32> to vector<8x256xf32>
    %9 = arith.subf %1, %8 : vector<8x256xf32>
    %10 = arith.mulf %9, %9 : vector<8x256xf32>
    %cst_7 = arith.constant dense<0.000000e+00> : vector<8xf32>
    %11 = vector.multi_reduction <add>, %10, %cst_7 [1] : vector<8x256xf32> to vector<8xf32>
    %12 = vector.shape_cast %11 : vector<8xf32> to vector<8x1xf32>
    %cst_8 = arith.constant 2.560000e+02 : f32
    %13 = vector.broadcast %cst_8 : f32 to vector<8x1xf32>
    %14 = arith.divf %12, %13 : vector<8x1xf32>
    %15 = vector.broadcast %7 : vector<8x1xf32> to vector<8x256xf32>
    %16 = arith.subf %1, %15 : vector<8x256xf32>
    %cst_9 = arith.constant 9.99999996E-13 : f32
    %17 = vector.broadcast %cst_9 : f32 to vector<8x1xf32>
    %18 = arith.addf %14, %17 : vector<8x1xf32>
    %19 = math.rsqrt %18 : vector<8x1xf32>
    %20 = vector.broadcast %19 : vector<8x1xf32> to vector<8x256xf32>
    %21 = arith.mulf %16, %20 : vector<8x256xf32>
    %22 = vector.broadcast %2 : vector<1x256xf32> to vector<8x256xf32>
    %23 = arith.mulf %21, %22 : vector<8x256xf32>
    %24 = vector.broadcast %3 : vector<1x256xf32> to vector<8x256xf32>
    %25 = arith.addf %23, %24 : vector<8x256xf32>
    %c0_10 = arith.constant 0 : index
    %c0_11 = arith.constant 0 : index
    %c0_12 = arith.constant 0 : index
    %26 = vector.load %arg2[%c0_10, %c0_11, %c0_12] : memref<1x1x8xf32, #tpu.memory_space<vmem>>, vector<1x1x8xf32>
    %27 = vector.shape_cast %26 : vector<1x1x8xf32> to vector<1x8xf32>
    %cst_13 = arith.constant 1.000000e+00 : f32
    %28 = vector.broadcast %cst_13 : f32 to vector<1x8xf32>
    %29 = arith.subf %28, %27 : vector<1x8xf32>
    %cst_14 = arith.constant -1.000000e+09 : f32
    %30 = vector.broadcast %cst_14 : f32 to vector<1x8xf32>
    %31 = arith.mulf %29, %30 : vector<1x8xf32>
    %32 = arith.truncf %25 : vector<8x256xf32> to vector<8x256xbf16>
    %c0_15 = arith.constant 0 : index
    %c0_16 = arith.constant 0 : index
    %c0_17 = arith.constant 0 : index
    %33 = vector.load %arg5[%c0_15, %c0_16, %c0_17] : memref<2x256x768xbf16, #tpu.memory_space<vmem>>, vector<1x256x768xbf16>
    %34 = vector.shape_cast %33 : vector<1x256x768xbf16> to vector<256x768xbf16>
    %cst_18 = arith.constant dense<0.000000e+00> : vector<8x768xf32>
    %35 = tpu.matmul %32, %34, %cst_18 {dimension_numbers = #tpu.dot_dimension_numbers<[1], [0], [0], [1], [0, 0, 1, 1], [], []>} : vector<8x256xbf16>, vector<256x768xbf16>, vector<8x768xf32> -> vector<8x768xf32>
    %c0_19 = arith.constant 0 : index
    %c0_20 = arith.constant 0 : index
    %c0_21 = arith.constant 0 : index
    %36 = vector.load %arg6[%c0_19, %c0_20, %c0_21] : memref<2x1x768xf32, #tpu.memory_space<vmem>>, vector<1x1x768xf32>
    %37 = vector.shape_cast %36 : vector<1x1x768xf32> to vector<1x768xf32>
    %38 = vector.broadcast %37 : vector<1x768xf32> to vector<8x768xf32>
    %39 = arith.addf %35, %38 : vector<8x768xf32>
    %c0_22 = arith.constant 0 : index
    %c0_23 = arith.constant 0 : index
    %c0_24 = arith.constant 0 : index
    %40 = vector.load %arg7[%c0_22, %c0_23, %c0_24] : memref<2x256x256xbf16, #tpu.memory_space<vmem>>, vector<1x256x256xbf16>
    %41 = vector.shape_cast %40 : vector<1x256x256xbf16> to vector<256x256xbf16>
    %cst_25 = arith.constant 0.000000e+00 : f32
    %42 = vector.broadcast %cst_25 : f32 to vector<8x256xf32>
    %43 = vector.extract_strided_slice %39 {offsets = [0, 0], sizes = [8, 128], strides = [1, 1]} : vector<8x768xf32> to vector<8x128xf32>
    %44 = vector.extract_strided_slice %39 {offsets = [0, 256], sizes = [8, 128], strides = [1, 1]} : vector<8x768xf32> to vector<8x128xf32>
    %45 = vector.extract_strided_slice %39 {offsets = [0, 512], sizes = [8, 128], strides = [1, 1]} : vector<8x768xf32> to vector<8x128xf32>
    %46 = arith.truncf %43 : vector<8x128xf32> to vector<8x128xbf16>
    %47 = arith.truncf %44 : vector<8x128xf32> to vector<8x128xbf16>
    "tpu.trace_start"() <{level = 10 : i32, message = "qd,kd->qk"}> : () -> ()
    %cst_26 = arith.constant dense<0.000000e+00> : vector<8x8xf32>
    %48 = tpu.matmul %46, %47, %cst_26 {dimension_numbers = #tpu.dot_dimension_numbers<[1], [1], [0], [0], [0, 0, 1, 0], [], []>} : vector<8x128xbf16>, vector<8x128xbf16>, vector<8x8xf32> -> vector<8x8xf32>
    "tpu.trace_stop"() : () -> ()
    %cst_27 = arith.constant 0.0883883461 : f32
    %49 = vector.broadcast %cst_27 : f32 to vector<8x8xf32>
    %50 = arith.mulf %48, %49 : vector<8x8xf32>
    %51 = vector.broadcast %31 : vector<1x8xf32> to vector<8x8xf32>
    %52 = arith.addf %50, %51 : vector<8x8xf32>
    %cst_28 = arith.constant dense<0xFF800000> : vector<8xf32>
    %53 = vector.multi_reduction <maximumf>, %52, %cst_28 [1] : vector<8x8xf32> to vector<8xf32>
    %54 = vector.shape_cast %53 : vector<8xf32> to vector<8x1xf32>
    %55 = vector.broadcast %54 : vector<8x1xf32> to vector<8x8xf32>
    %56 = arith.subf %52, %55 : vector<8x8xf32>
    %57 = math.exp %56 : vector<8x8xf32>
    %cst_29 = arith.constant dense<0.000000e+00> : vector<8xf32>
    %58 = vector.multi_reduction <add>, %57, %cst_29 [1] : vector<8x8xf32> to vector<8xf32>
    %59 = vector.shape_cast %58 : vector<8xf32> to vector<8x1xf32>
    %60 = tpu.reciprocal %59 {approx = true} : vector<8x1xf32> -> vector<8x1xf32>
    %61 = vector.broadcast %60 : vector<8x1xf32> to vector<8x8xf32>
    %62 = arith.mulf %57, %61 : vector<8x8xf32>
    %63 = arith.truncf %62 : vector<8x8xf32> to vector<8x8xbf16>
    %64 = arith.truncf %45 : vector<8x128xf32> to vector<8x128xbf16>
    %cst_30 = arith.constant dense<0.000000e+00> : vector<8x128xf32>
    %65 = tpu.matmul %63, %64, %cst_30 {dimension_numbers = #tpu.dot_dimension_numbers<[1], [0], [0], [1], [0, 0, 1, 1], [], []>} : vector<8x8xbf16>, vector<8x128xbf16>, vector<8x128xf32> -> vector<8x128xf32>
    %66 = arith.truncf %65 : vector<8x128xf32> to vector<8x128xbf16>
    %67 = vector.extract_strided_slice %41 {offsets = [0, 0], sizes = [128, 256], strides = [1, 1]} : vector<256x256xbf16> to vector<128x256xbf16>
    %cst_31 = arith.constant dense<0.000000e+00> : vector<8x256xf32>
    %68 = tpu.matmul %66, %67, %cst_31 {dimension_numbers = #tpu.dot_dimension_numbers<[1], [0], [0], [1], [0, 0, 1, 1], [], []>} : vector<8x128xbf16>, vector<128x256xbf16>, vector<8x256xf32> -> vector<8x256xf32>
    %69 = arith.addf %42, %68 : vector<8x256xf32>
    %70 = vector.extract_strided_slice %39 {offsets = [0, 128], sizes = [8, 128], strides = [1, 1]} : vector<8x768xf32> to vector<8x128xf32>
    %71 = vector.extract_strided_slice %39 {offsets = [0, 384], sizes = [8, 128], strides = [1, 1]} : vector<8x768xf32> to vector<8x128xf32>
    %72 = vector.extract_strided_slice %39 {offsets = [0, 640], sizes = [8, 128], strides = [1, 1]} : vector<8x768xf32> to vector<8x128xf32>
    %73 = arith.truncf %70 : vector<8x128xf32> to vector<8x128xbf16>
    %74 = arith.truncf %71 : vector<8x128xf32> to vector<8x128xbf16>
    "tpu.trace_start"() <{level = 10 : i32, message = "qd,kd->qk"}> : () -> ()
    %cst_32 = arith.constant dense<0.000000e+00> : vector<8x8xf32>
    %75 = tpu.matmul %73, %74, %cst_32 {dimension_numbers = #tpu.dot_dimension_numbers<[1], [1], [0], [0], [0, 0, 1, 0], [], []>} : vector<8x128xbf16>, vector<8x128xbf16>, vector<8x8xf32> -> vector<8x8xf32>
    "tpu.trace_stop"() : () -> ()
    %cst_33 = arith.constant 0.0883883461 : f32
    %76 = vector.broadcast %cst_33 : f32 to vector<8x8xf32>
    %77 = arith.mulf %75, %76 : vector<8x8xf32>
    %78 = vector.broadcast %31 : vector<1x8xf32> to vector<8x8xf32>
    %79 = arith.addf %77, %78 : vector<8x8xf32>
    %cst_34 = arith.constant dense<0xFF800000> : vector<8xf32>
    %80 = vector.multi_reduction <maximumf>, %79, %cst_34 [1] : vector<8x8xf32> to vector<8xf32>
    %81 = vector.shape_cast %80 : vector<8xf32> to vector<8x1xf32>
    %82 = vector.broadcast %81 : vector<8x1xf32> to vector<8x8xf32>
    %83 = arith.subf %79, %82 : vector<8x8xf32>
    %84 = math.exp %83 : vector<8x8xf32>
    %cst_35 = arith.constant dense<0.000000e+00> : vector<8xf32>
    %85 = vector.multi_reduction <add>, %84, %cst_35 [1] : vector<8x8xf32> to vector<8xf32>
    %86 = vector.shape_cast %85 : vector<8xf32> to vector<8x1xf32>
    %87 = tpu.reciprocal %86 {approx = true} : vector<8x1xf32> -> vector<8x1xf32>
    %88 = vector.broadcast %87 : vector<8x1xf32> to vector<8x8xf32>
    %89 = arith.mulf %84, %88 : vector<8x8xf32>
    %90 = arith.truncf %89 : vector<8x8xf32> to vector<8x8xbf16>
    %91 = arith.truncf %72 : vector<8x128xf32> to vector<8x128xbf16>
    %cst_36 = arith.constant dense<0.000000e+00> : vector<8x128xf32>
    %92 = tpu.matmul %90, %91, %cst_36 {dimension_numbers = #tpu.dot_dimension_numbers<[1], [0], [0], [1], [0, 0, 1, 1], [], []>} : vector<8x8xbf16>, vector<8x128xbf16>, vector<8x128xf32> -> vector<8x128xf32>
    %93 = arith.truncf %92 : vector<8x128xf32> to vector<8x128xbf16>
    %94 = vector.extract_strided_slice %41 {offsets = [128, 0], sizes = [128, 256], strides = [1, 1]} : vector<256x256xbf16> to vector<128x256xbf16>
    %cst_37 = arith.constant dense<0.000000e+00> : vector<8x256xf32>
    %95 = tpu.matmul %93, %94, %cst_37 {dimension_numbers = #tpu.dot_dimension_numbers<[1], [0], [0], [1], [0, 0, 1, 1], [], []>} : vector<8x128xbf16>, vector<128x256xbf16>, vector<8x256xf32> -> vector<8x256xf32>
    %96 = arith.addf %69, %95 : vector<8x256xf32>
    %97 = arith.addf %25, %96 : vector<8x256xf32>
    %c0_38 = arith.constant 0 : index
    %c0_39 = arith.constant 0 : index
    %c0_40 = arith.constant 0 : index
    %98 = vector.load %arg8[%c0_38, %c0_39, %c0_40] : memref<2x1x256xf32, #tpu.memory_space<vmem>>, vector<1x1x256xf32>
    %99 = vector.shape_cast %98 : vector<1x1x256xf32> to vector<1x256xf32>
    %100 = vector.broadcast %99 : vector<1x256xf32> to vector<8x256xf32>
    %101 = arith.addf %97, %100 : vector<8x256xf32>
    %c0_41 = arith.constant 0 : index
    %c0_42 = arith.constant 0 : index
    %c0_43 = arith.constant 0 : index
    %102 = vector.load %arg9[%c0_41, %c0_42, %c0_43] : memref<2x1x256xf32, #tpu.memory_space<vmem>>, vector<1x1x256xf32>
    %103 = vector.shape_cast %102 : vector<1x1x256xf32> to vector<1x256xf32>
    %c0_44 = arith.constant 0 : index
    %c0_45 = arith.constant 0 : index
    %c0_46 = arith.constant 0 : index
    %104 = vector.load %arg10[%c0_44, %c0_45, %c0_46] : memref<2x1x256xf32, #tpu.memory_space<vmem>>, vector<1x1x256xf32>
    %105 = vector.shape_cast %104 : vector<1x1x256xf32> to vector<1x256xf32>
    %cst_47 = arith.constant dense<0.000000e+00> : vector<8xf32>
    %106 = vector.multi_reduction <add>, %101, %cst_47 [1] : vector<8x256xf32> to vector<8xf32>
    %107 = vector.shape_cast %106 : vector<8xf32> to vector<8x1xf32>
    %cst_48 = arith.constant 2.560000e+02 : f32
    %108 = vector.broadcast %cst_48 : f32 to vector<8x1xf32>
    %109 = arith.divf %107, %108 : vector<8x1xf32>
    %110 = vector.broadcast %109 : vector<8x1xf32> to vector<8x256xf32>
    %111 = arith.subf %101, %110 : vector<8x256xf32>
    %112 = arith.mulf %111, %111 : vector<8x256xf32>
    %cst_49 = arith.constant dense<0.000000e+00> : vector<8xf32>
    %113 = vector.multi_reduction <add>, %112, %cst_49 [1] : vector<8x256xf32> to vector<8xf32>
    %114 = vector.shape_cast %113 : vector<8xf32> to vector<8x1xf32>
    %cst_50 = arith.constant 2.560000e+02 : f32
    %115 = vector.broadcast %cst_50 : f32 to vector<8x1xf32>
    %116 = arith.divf %114, %115 : vector<8x1xf32>
    %117 = vector.broadcast %109 : vector<8x1xf32> to vector<8x256xf32>
    %118 = arith.subf %101, %117 : vector<8x256xf32>
    %cst_51 = arith.constant 9.99999996E-13 : f32
    %119 = vector.broadcast %cst_51 : f32 to vector<8x1xf32>
    %120 = arith.addf %116, %119 : vector<8x1xf32>
    %121 = math.rsqrt %120 : vector<8x1xf32>
    %122 = vector.broadcast %121 : vector<8x1xf32> to vector<8x256xf32>
    %123 = arith.mulf %118, %122 : vector<8x256xf32>
    %124 = vector.broadcast %103 : vector<1x256xf32> to vector<8x256xf32>
    %125 = arith.mulf %123, %124 : vector<8x256xf32>
    %126 = vector.broadcast %105 : vector<1x256xf32> to vector<8x256xf32>
    %127 = arith.addf %125, %126 : vector<8x256xf32>
    %128 = arith.truncf %127 : vector<8x256xf32> to vector<8x256xbf16>
    %c0_52 = arith.constant 0 : index
    %c0_53 = arith.constant 0 : index
    %c0_54 = arith.constant 0 : index
    %129 = vector.load %arg11[%c0_52, %c0_53, %c0_54] : memref<2x256x1024xbf16, #tpu.memory_space<vmem>>, vector<1x256x1024xbf16>
    %130 = vector.shape_cast %129 : vector<1x256x1024xbf16> to vector<256x1024xbf16>
    %cst_55 = arith.constant dense<0.000000e+00> : vector<8x1024xf32>
    %131 = tpu.matmul %128, %130, %cst_55 {dimension_numbers = #tpu.dot_dimension_numbers<[1], [0], [0], [1], [0, 0, 1, 1], [], []>} : vector<8x256xbf16>, vector<256x1024xbf16>, vector<8x1024xf32> -> vector<8x1024xf32>
    %c0_56 = arith.constant 0 : index
    %c0_57 = arith.constant 0 : index
    %c0_58 = arith.constant 0 : index
    %132 = vector.load %arg12[%c0_56, %c0_57, %c0_58] : memref<2x1x1024xf32, #tpu.memory_space<vmem>>, vector<1x1x1024xf32>
    %133 = vector.shape_cast %132 : vector<1x1x1024xf32> to vector<1x1024xf32>
    %134 = vector.broadcast %133 : vector<1x1024xf32> to vector<8x1024xf32>
    %135 = arith.addf %131, %134 : vector<8x1024xf32>
    %136 = arith.mulf %135, %135 : vector<8x1024xf32>
    %137 = arith.mulf %135, %136 : vector<8x1024xf32>
    %cst_59 = arith.constant 4.471500e-02 : f32
    %138 = vector.broadcast %cst_59 : f32 to vector<8x1024xf32>
    %139 = arith.mulf %138, %137 : vector<8x1024xf32>
    %140 = arith.addf %135, %139 : vector<8x1024xf32>
    %cst_60 = arith.constant 0.797884583 : f32
    %141 = vector.broadcast %cst_60 : f32 to vector<8x1024xf32>
    %142 = arith.mulf %141, %140 : vector<8x1024xf32>
    %143 = math.tanh %142 : vector<8x1024xf32>
    %cst_61 = arith.constant 1.000000e+00 : f32
    %144 = vector.broadcast %cst_61 : f32 to vector<8x1024xf32>
    %145 = arith.addf %144, %143 : vector<8x1024xf32>
    %cst_62 = arith.constant 5.000000e-01 : f32
    %146 = vector.broadcast %cst_62 : f32 to vector<8x1024xf32>
    %147 = arith.mulf %146, %145 : vector<8x1024xf32>
    %148 = arith.mulf %135, %147 : vector<8x1024xf32>
    %149 = arith.truncf %148 : vector<8x1024xf32> to vector<8x1024xbf16>
    %c0_63 = arith.constant 0 : index
    %c0_64 = arith.constant 0 : index
    %c0_65 = arith.constant 0 : index
    %150 = vector.load %arg13[%c0_63, %c0_64, %c0_65] : memref<2x1024x256xbf16, #tpu.memory_space<vmem>>, vector<1x1024x256xbf16>
    %151 = vector.shape_cast %150 : vector<1x1024x256xbf16> to vector<1024x256xbf16>
    %cst_66 = arith.constant dense<0.000000e+00> : vector<8x256xf32>
    %152 = tpu.matmul %149, %151, %cst_66 {dimension_numbers = #tpu.dot_dimension_numbers<[1], [0], [0], [1], [0, 0, 1, 1], [], []>} : vector<8x1024xbf16>, vector<1024x256xbf16>, vector<8x256xf32> -> vector<8x256xf32>
    %c0_67 = arith.constant 0 : index
    %c0_68 = arith.constant 0 : index
    %c0_69 = arith.constant 0 : index
    %153 = vector.load %arg14[%c0_67, %c0_68, %c0_69] : memref<2x1x256xf32, #tpu.memory_space<vmem>>, vector<1x1x256xf32>
    %154 = vector.shape_cast %153 : vector<1x1x256xf32> to vector<1x256xf32>
    %155 = vector.broadcast %154 : vector<1x256xf32> to vector<8x256xf32>
    %156 = arith.addf %152, %155 : vector<8x256xf32>
    %157 = arith.addf %127, %156 : vector<8x256xf32>
    %c0_70 = arith.constant 0 : index
    %c0_71 = arith.constant 0 : index
    %c0_72 = arith.constant 0 : index
    %158 = vector.load %arg15[%c0_70, %c0_71, %c0_72] : memref<2x1x256xf32, #tpu.memory_space<vmem>>, vector<1x1x256xf32>
    %159 = vector.shape_cast %158 : vector<1x1x256xf32> to vector<1x256xf32>
    %c0_73 = arith.constant 0 : index
    %c0_74 = arith.constant 0 : index
    %c0_75 = arith.constant 0 : index
    %160 = vector.load %arg16[%c0_73, %c0_74, %c0_75] : memref<2x1x256xf32, #tpu.memory_space<vmem>>, vector<1x1x256xf32>
    %161 = vector.shape_cast %160 : vector<1x1x256xf32> to vector<1x256xf32>
    %cst_76 = arith.constant dense<0.000000e+00> : vector<8xf32>
    %162 = vector.multi_reduction <add>, %157, %cst_76 [1] : vector<8x256xf32> to vector<8xf32>
    %163 = vector.shape_cast %162 : vector<8xf32> to vector<8x1xf32>
    %cst_77 = arith.constant 2.560000e+02 : f32
    %164 = vector.broadcast %cst_77 : f32 to vector<8x1xf32>
    %165 = arith.divf %163, %164 : vector<8x1xf32>
    %166 = vector.broadcast %165 : vector<8x1xf32> to vector<8x256xf32>
    %167 = arith.subf %157, %166 : vector<8x256xf32>
    %168 = arith.mulf %167, %167 : vector<8x256xf32>
    %cst_78 = arith.constant dense<0.000000e+00> : vector<8xf32>
    %169 = vector.multi_reduction <add>, %168, %cst_78 [1] : vector<8x256xf32> to vector<8xf32>
    %170 = vector.shape_cast %169 : vector<8xf32> to vector<8x1xf32>
    %cst_79 = arith.constant 2.560000e+02 : f32
    %171 = vector.broadcast %cst_79 : f32 to vector<8x1xf32>
    %172 = arith.divf %170, %171 : vector<8x1xf32>
    %173 = vector.broadcast %165 : vector<8x1xf32> to vector<8x256xf32>
    %174 = arith.subf %157, %173 : vector<8x256xf32>
    %cst_80 = arith.constant 9.99999996E-13 : f32
    %175 = vector.broadcast %cst_80 : f32 to vector<8x1xf32>
    %176 = arith.addf %172, %175 : vector<8x1xf32>
    %177 = math.rsqrt %176 : vector<8x1xf32>
    %178 = vector.broadcast %177 : vector<8x1xf32> to vector<8x256xf32>
    %179 = arith.mulf %174, %178 : vector<8x256xf32>
    %180 = vector.broadcast %159 : vector<1x256xf32> to vector<8x256xf32>
    %181 = arith.mulf %179, %180 : vector<8x256xf32>
    %182 = vector.broadcast %161 : vector<1x256xf32> to vector<8x256xf32>
    %183 = arith.addf %181, %182 : vector<8x256xf32>
    %184 = arith.truncf %183 : vector<8x256xf32> to vector<8x256xbf16>
    %c1 = arith.constant 1 : index
    %c0_81 = arith.constant 0 : index
    %c0_82 = arith.constant 0 : index
    %185 = vector.load %arg5[%c1, %c0_81, %c0_82] : memref<2x256x768xbf16, #tpu.memory_space<vmem>>, vector<1x256x768xbf16>
    %186 = vector.shape_cast %185 : vector<1x256x768xbf16> to vector<256x768xbf16>
    %cst_83 = arith.constant dense<0.000000e+00> : vector<8x768xf32>
    %187 = tpu.matmul %184, %186, %cst_83 {dimension_numbers = #tpu.dot_dimension_numbers<[1], [0], [0], [1], [0, 0, 1, 1], [], []>} : vector<8x256xbf16>, vector<256x768xbf16>, vector<8x768xf32> -> vector<8x768xf32>
    %c1_84 = arith.constant 1 : index
    %c0_85 = arith.constant 0 : index
    %c0_86 = arith.constant 0 : index
    %188 = vector.load %arg6[%c1_84, %c0_85, %c0_86] : memref<2x1x768xf32, #tpu.memory_space<vmem>>, vector<1x1x768xf32>
    %189 = vector.shape_cast %188 : vector<1x1x768xf32> to vector<1x768xf32>
    %190 = vector.broadcast %189 : vector<1x768xf32> to vector<8x768xf32>
    %191 = arith.addf %187, %190 : vector<8x768xf32>
    %c1_87 = arith.constant 1 : index
    %c0_88 = arith.constant 0 : index
    %c0_89 = arith.constant 0 : index
    %192 = vector.load %arg7[%c1_87, %c0_88, %c0_89] : memref<2x256x256xbf16, #tpu.memory_space<vmem>>, vector<1x256x256xbf16>
    %193 = vector.shape_cast %192 : vector<1x256x256xbf16> to vector<256x256xbf16>
    %cst_90 = arith.constant 0.000000e+00 : f32
    %194 = vector.broadcast %cst_90 : f32 to vector<8x256xf32>
    %195 = vector.extract_strided_slice %191 {offsets = [0, 0], sizes = [8, 128], strides = [1, 1]} : vector<8x768xf32> to vector<8x128xf32>
    %196 = vector.extract_strided_slice %191 {offsets = [0, 256], sizes = [8, 128], strides = [1, 1]} : vector<8x768xf32> to vector<8x128xf32>
    %197 = vector.extract_strided_slice %191 {offsets = [0, 512], sizes = [8, 128], strides = [1, 1]} : vector<8x768xf32> to vector<8x128xf32>
    %198 = arith.truncf %195 : vector<8x128xf32> to vector<8x128xbf16>
    %199 = arith.truncf %196 : vector<8x128xf32> to vector<8x128xbf16>
    "tpu.trace_start"() <{level = 10 : i32, message = "qd,kd->qk"}> : () -> ()
    %cst_91 = arith.constant dense<0.000000e+00> : vector<8x8xf32>
    %200 = tpu.matmul %198, %199, %cst_91 {dimension_numbers = #tpu.dot_dimension_numbers<[1], [1], [0], [0], [0, 0, 1, 0], [], []>} : vector<8x128xbf16>, vector<8x128xbf16>, vector<8x8xf32> -> vector<8x8xf32>
    "tpu.trace_stop"() : () -> ()
    %cst_92 = arith.constant 0.0883883461 : f32
    %201 = vector.broadcast %cst_92 : f32 to vector<8x8xf32>
    %202 = arith.mulf %200, %201 : vector<8x8xf32>
    %203 = vector.broadcast %31 : vector<1x8xf32> to vector<8x8xf32>
    %204 = arith.addf %202, %203 : vector<8x8xf32>
    %cst_93 = arith.constant dense<0xFF800000> : vector<8xf32>
    %205 = vector.multi_reduction <maximumf>, %204, %cst_93 [1] : vector<8x8xf32> to vector<8xf32>
    %206 = vector.shape_cast %205 : vector<8xf32> to vector<8x1xf32>
    %207 = vector.broadcast %206 : vector<8x1xf32> to vector<8x8xf32>
    %208 = arith.subf %204, %207 : vector<8x8xf32>
    %209 = math.exp %208 : vector<8x8xf32>
    %cst_94 = arith.constant dense<0.000000e+00> : vector<8xf32>
    %210 = vector.multi_reduction <add>, %209, %cst_94 [1] : vector<8x8xf32> to vector<8xf32>
    %211 = vector.shape_cast %210 : vector<8xf32> to vector<8x1xf32>
    %212 = tpu.reciprocal %211 {approx = true} : vector<8x1xf32> -> vector<8x1xf32>
    %213 = vector.broadcast %212 : vector<8x1xf32> to vector<8x8xf32>
    %214 = arith.mulf %209, %213 : vector<8x8xf32>
    %215 = arith.truncf %214 : vector<8x8xf32> to vector<8x8xbf16>
    %216 = arith.truncf %197 : vector<8x128xf32> to vector<8x128xbf16>
    %cst_95 = arith.constant dense<0.000000e+00> : vector<8x128xf32>
    %217 = tpu.matmul %215, %216, %cst_95 {dimension_numbers = #tpu.dot_dimension_numbers<[1], [0], [0], [1], [0, 0, 1, 1], [], []>} : vector<8x8xbf16>, vector<8x128xbf16>, vector<8x128xf32> -> vector<8x128xf32>
    %218 = arith.truncf %217 : vector<8x128xf32> to vector<8x128xbf16>
    %219 = vector.extract_strided_slice %193 {offsets = [0, 0], sizes = [128, 256], strides = [1, 1]} : vector<256x256xbf16> to vector<128x256xbf16>
    %cst_96 = arith.constant dense<0.000000e+00> : vector<8x256xf32>
    %220 = tpu.matmul %218, %219, %cst_96 {dimension_numbers = #tpu.dot_dimension_numbers<[1], [0], [0], [1], [0, 0, 1, 1], [], []>} : vector<8x128xbf16>, vector<128x256xbf16>, vector<8x256xf32> -> vector<8x256xf32>
    %221 = arith.addf %194, %220 : vector<8x256xf32>
    %222 = vector.extract_strided_slice %191 {offsets = [0, 128], sizes = [8, 128], strides = [1, 1]} : vector<8x768xf32> to vector<8x128xf32>
    %223 = vector.extract_strided_slice %191 {offsets = [0, 384], sizes = [8, 128], strides = [1, 1]} : vector<8x768xf32> to vector<8x128xf32>
    %224 = vector.extract_strided_slice %191 {offsets = [0, 640], sizes = [8, 128], strides = [1, 1]} : vector<8x768xf32> to vector<8x128xf32>
    %225 = arith.truncf %222 : vector<8x128xf32> to vector<8x128xbf16>
    %226 = arith.truncf %223 : vector<8x128xf32> to vector<8x128xbf16>
    "tpu.trace_start"() <{level = 10 : i32, message = "qd,kd->qk"}> : () -> ()
    %cst_97 = arith.constant dense<0.000000e+00> : vector<8x8xf32>
    %227 = tpu.matmul %225, %226, %cst_97 {dimension_numbers = #tpu.dot_dimension_numbers<[1], [1], [0], [0], [0, 0, 1, 0], [], []>} : vector<8x128xbf16>, vector<8x128xbf16>, vector<8x8xf32> -> vector<8x8xf32>
    "tpu.trace_stop"() : () -> ()
    %cst_98 = arith.constant 0.0883883461 : f32
    %228 = vector.broadcast %cst_98 : f32 to vector<8x8xf32>
    %229 = arith.mulf %227, %228 : vector<8x8xf32>
    %230 = vector.broadcast %31 : vector<1x8xf32> to vector<8x8xf32>
    %231 = arith.addf %229, %230 : vector<8x8xf32>
    %cst_99 = arith.constant dense<0xFF800000> : vector<8xf32>
    %232 = vector.multi_reduction <maximumf>, %231, %cst_99 [1] : vector<8x8xf32> to vector<8xf32>
    %233 = vector.shape_cast %232 : vector<8xf32> to vector<8x1xf32>
    %234 = vector.broadcast %233 : vector<8x1xf32> to vector<8x8xf32>
    %235 = arith.subf %231, %234 : vector<8x8xf32>
    %236 = math.exp %235 : vector<8x8xf32>
    %cst_100 = arith.constant dense<0.000000e+00> : vector<8xf32>
    %237 = vector.multi_reduction <add>, %236, %cst_100 [1] : vector<8x8xf32> to vector<8xf32>
    %238 = vector.shape_cast %237 : vector<8xf32> to vector<8x1xf32>
    %239 = tpu.reciprocal %238 {approx = true} : vector<8x1xf32> -> vector<8x1xf32>
    %240 = vector.broadcast %239 : vector<8x1xf32> to vector<8x8xf32>
    %241 = arith.mulf %236, %240 : vector<8x8xf32>
    %242 = arith.truncf %241 : vector<8x8xf32> to vector<8x8xbf16>
    %243 = arith.truncf %224 : vector<8x128xf32> to vector<8x128xbf16>
    %cst_101 = arith.constant dense<0.000000e+00> : vector<8x128xf32>
    %244 = tpu.matmul %242, %243, %cst_101 {dimension_numbers = #tpu.dot_dimension_numbers<[1], [0], [0], [1], [0, 0, 1, 1], [], []>} : vector<8x8xbf16>, vector<8x128xbf16>, vector<8x128xf32> -> vector<8x128xf32>
    %245 = arith.truncf %244 : vector<8x128xf32> to vector<8x128xbf16>
    %246 = vector.extract_strided_slice %193 {offsets = [128, 0], sizes = [128, 256], strides = [1, 1]} : vector<256x256xbf16> to vector<128x256xbf16>
    %cst_102 = arith.constant dense<0.000000e+00> : vector<8x256xf32>
    %247 = tpu.matmul %245, %246, %cst_102 {dimension_numbers = #tpu.dot_dimension_numbers<[1], [0], [0], [1], [0, 0, 1, 1], [], []>} : vector<8x128xbf16>, vector<128x256xbf16>, vector<8x256xf32> -> vector<8x256xf32>
    %248 = arith.addf %221, %247 : vector<8x256xf32>
    %249 = arith.addf %183, %248 : vector<8x256xf32>
    %c1_103 = arith.constant 1 : index
    %c0_104 = arith.constant 0 : index
    %c0_105 = arith.constant 0 : index
    %250 = vector.load %arg8[%c1_103, %c0_104, %c0_105] : memref<2x1x256xf32, #tpu.memory_space<vmem>>, vector<1x1x256xf32>
    %251 = vector.shape_cast %250 : vector<1x1x256xf32> to vector<1x256xf32>
    %252 = vector.broadcast %251 : vector<1x256xf32> to vector<8x256xf32>
    %253 = arith.addf %249, %252 : vector<8x256xf32>
    %c1_106 = arith.constant 1 : index
    %c0_107 = arith.constant 0 : index
    %c0_108 = arith.constant 0 : index
    %254 = vector.load %arg9[%c1_106, %c0_107, %c0_108] : memref<2x1x256xf32, #tpu.memory_space<vmem>>, vector<1x1x256xf32>
    %255 = vector.shape_cast %254 : vector<1x1x256xf32> to vector<1x256xf32>
    %c1_109 = arith.constant 1 : index
    %c0_110 = arith.constant 0 : index
    %c0_111 = arith.constant 0 : index
    %256 = vector.load %arg10[%c1_109, %c0_110, %c0_111] : memref<2x1x256xf32, #tpu.memory_space<vmem>>, vector<1x1x256xf32>
    %257 = vector.shape_cast %256 : vector<1x1x256xf32> to vector<1x256xf32>
    %cst_112 = arith.constant dense<0.000000e+00> : vector<8xf32>
    %258 = vector.multi_reduction <add>, %253, %cst_112 [1] : vector<8x256xf32> to vector<8xf32>
    %259 = vector.shape_cast %258 : vector<8xf32> to vector<8x1xf32>
    %cst_113 = arith.constant 2.560000e+02 : f32
    %260 = vector.broadcast %cst_113 : f32 to vector<8x1xf32>
    %261 = arith.divf %259, %260 : vector<8x1xf32>
    %262 = vector.broadcast %261 : vector<8x1xf32> to vector<8x256xf32>
    %263 = arith.subf %253, %262 : vector<8x256xf32>
    %264 = arith.mulf %263, %263 : vector<8x256xf32>
    %cst_114 = arith.constant dense<0.000000e+00> : vector<8xf32>
    %265 = vector.multi_reduction <add>, %264, %cst_114 [1] : vector<8x256xf32> to vector<8xf32>
    %266 = vector.shape_cast %265 : vector<8xf32> to vector<8x1xf32>
    %cst_115 = arith.constant 2.560000e+02 : f32
    %267 = vector.broadcast %cst_115 : f32 to vector<8x1xf32>
    %268 = arith.divf %266, %267 : vector<8x1xf32>
    %269 = vector.broadcast %261 : vector<8x1xf32> to vector<8x256xf32>
    %270 = arith.subf %253, %269 : vector<8x256xf32>
    %cst_116 = arith.constant 9.99999996E-13 : f32
    %271 = vector.broadcast %cst_116 : f32 to vector<8x1xf32>
    %272 = arith.addf %268, %271 : vector<8x1xf32>
    %273 = math.rsqrt %272 : vector<8x1xf32>
    %274 = vector.broadcast %273 : vector<8x1xf32> to vector<8x256xf32>
    %275 = arith.mulf %270, %274 : vector<8x256xf32>
    %276 = vector.broadcast %255 : vector<1x256xf32> to vector<8x256xf32>
    %277 = arith.mulf %275, %276 : vector<8x256xf32>
    %278 = vector.broadcast %257 : vector<1x256xf32> to vector<8x256xf32>
    %279 = arith.addf %277, %278 : vector<8x256xf32>
    %280 = arith.truncf %279 : vector<8x256xf32> to vector<8x256xbf16>
    %c1_117 = arith.constant 1 : index
    %c0_118 = arith.constant 0 : index
    %c0_119 = arith.constant 0 : index
    %281 = vector.load %arg11[%c1_117, %c0_118, %c0_119] : memref<2x256x1024xbf16, #tpu.memory_space<vmem>>, vector<1x256x1024xbf16>
    %282 = vector.shape_cast %281 : vector<1x256x1024xbf16> to vector<256x1024xbf16>
    %cst_120 = arith.constant dense<0.000000e+00> : vector<8x1024xf32>
    %283 = tpu.matmul %280, %282, %cst_120 {dimension_numbers = #tpu.dot_dimension_numbers<[1], [0], [0], [1], [0, 0, 1, 1], [], []>} : vector<8x256xbf16>, vector<256x1024xbf16>, vector<8x1024xf32> -> vector<8x1024xf32>
    %c1_121 = arith.constant 1 : index
    %c0_122 = arith.constant 0 : index
    %c0_123 = arith.constant 0 : index
    %284 = vector.load %arg12[%c1_121, %c0_122, %c0_123] : memref<2x1x1024xf32, #tpu.memory_space<vmem>>, vector<1x1x1024xf32>
    %285 = vector.shape_cast %284 : vector<1x1x1024xf32> to vector<1x1024xf32>
    %286 = vector.broadcast %285 : vector<1x1024xf32> to vector<8x1024xf32>
    %287 = arith.addf %283, %286 : vector<8x1024xf32>
    %288 = arith.mulf %287, %287 : vector<8x1024xf32>
    %289 = arith.mulf %287, %288 : vector<8x1024xf32>
    %cst_124 = arith.constant 4.471500e-02 : f32
    %290 = vector.broadcast %cst_124 : f32 to vector<8x1024xf32>
    %291 = arith.mulf %290, %289 : vector<8x1024xf32>
    %292 = arith.addf %287, %291 : vector<8x1024xf32>
    %cst_125 = arith.constant 0.797884583 : f32
    %293 = vector.broadcast %cst_125 : f32 to vector<8x1024xf32>
    %294 = arith.mulf %293, %292 : vector<8x1024xf32>
    %295 = math.tanh %294 : vector<8x1024xf32>
    %cst_126 = arith.constant 1.000000e+00 : f32
    %296 = vector.broadcast %cst_126 : f32 to vector<8x1024xf32>
    %297 = arith.addf %296, %295 : vector<8x1024xf32>
    %cst_127 = arith.constant 5.000000e-01 : f32
    %298 = vector.broadcast %cst_127 : f32 to vector<8x1024xf32>
    %299 = arith.mulf %298, %297 : vector<8x1024xf32>
    %300 = arith.mulf %287, %299 : vector<8x1024xf32>
    %301 = arith.truncf %300 : vector<8x1024xf32> to vector<8x1024xbf16>
    %c1_128 = arith.constant 1 : index
    %c0_129 = arith.constant 0 : index
    %c0_130 = arith.constant 0 : index
    %302 = vector.load %arg13[%c1_128, %c0_129, %c0_130] : memref<2x1024x256xbf16, #tpu.memory_space<vmem>>, vector<1x1024x256xbf16>
    %303 = vector.shape_cast %302 : vector<1x1024x256xbf16> to vector<1024x256xbf16>
    %cst_131 = arith.constant dense<0.000000e+00> : vector<8x256xf32>
    %304 = tpu.matmul %301, %303, %cst_131 {dimension_numbers = #tpu.dot_dimension_numbers<[1], [0], [0], [1], [0, 0, 1, 1], [], []>} : vector<8x1024xbf16>, vector<1024x256xbf16>, vector<8x256xf32> -> vector<8x256xf32>
    %c1_132 = arith.constant 1 : index
    %c0_133 = arith.constant 0 : index
    %c0_134 = arith.constant 0 : index
    %305 = vector.load %arg14[%c1_132, %c0_133, %c0_134] : memref<2x1x256xf32, #tpu.memory_space<vmem>>, vector<1x1x256xf32>
    %306 = vector.shape_cast %305 : vector<1x1x256xf32> to vector<1x256xf32>
    %307 = vector.broadcast %306 : vector<1x256xf32> to vector<8x256xf32>
    %308 = arith.addf %304, %307 : vector<8x256xf32>
    %309 = arith.addf %279, %308 : vector<8x256xf32>
    %c1_135 = arith.constant 1 : index
    %c0_136 = arith.constant 0 : index
    %c0_137 = arith.constant 0 : index
    %310 = vector.load %arg15[%c1_135, %c0_136, %c0_137] : memref<2x1x256xf32, #tpu.memory_space<vmem>>, vector<1x1x256xf32>
    %311 = vector.shape_cast %310 : vector<1x1x256xf32> to vector<1x256xf32>
    %c1_138 = arith.constant 1 : index
    %c0_139 = arith.constant 0 : index
    %c0_140 = arith.constant 0 : index
    %312 = vector.load %arg16[%c1_138, %c0_139, %c0_140] : memref<2x1x256xf32, #tpu.memory_space<vmem>>, vector<1x1x256xf32>
    %313 = vector.shape_cast %312 : vector<1x1x256xf32> to vector<1x256xf32>
    %cst_141 = arith.constant dense<0.000000e+00> : vector<8xf32>
    %314 = vector.multi_reduction <add>, %309, %cst_141 [1] : vector<8x256xf32> to vector<8xf32>
    %315 = vector.shape_cast %314 : vector<8xf32> to vector<8x1xf32>
    %cst_142 = arith.constant 2.560000e+02 : f32
    %316 = vector.broadcast %cst_142 : f32 to vector<8x1xf32>
    %317 = arith.divf %315, %316 : vector<8x1xf32>
    %318 = vector.broadcast %317 : vector<8x1xf32> to vector<8x256xf32>
    %319 = arith.subf %309, %318 : vector<8x256xf32>
    %320 = arith.mulf %319, %319 : vector<8x256xf32>
    %cst_143 = arith.constant dense<0.000000e+00> : vector<8xf32>
    %321 = vector.multi_reduction <add>, %320, %cst_143 [1] : vector<8x256xf32> to vector<8xf32>
    %322 = vector.shape_cast %321 : vector<8xf32> to vector<8x1xf32>
    %cst_144 = arith.constant 2.560000e+02 : f32
    %323 = vector.broadcast %cst_144 : f32 to vector<8x1xf32>
    %324 = arith.divf %322, %323 : vector<8x1xf32>
    %325 = vector.broadcast %317 : vector<8x1xf32> to vector<8x256xf32>
    %326 = arith.subf %309, %325 : vector<8x256xf32>
    %cst_145 = arith.constant 9.99999996E-13 : f32
    %327 = vector.broadcast %cst_145 : f32 to vector<8x1xf32>
    %328 = arith.addf %324, %327 : vector<8x1xf32>
    %329 = math.rsqrt %328 : vector<8x1xf32>
    %330 = vector.broadcast %329 : vector<8x1xf32> to vector<8x256xf32>
    %331 = arith.mulf %326, %330 : vector<8x256xf32>
    %332 = vector.broadcast %311 : vector<1x256xf32> to vector<8x256xf32>
    %333 = arith.mulf %331, %332 : vector<8x256xf32>
    %334 = vector.broadcast %313 : vector<1x256xf32> to vector<8x256xf32>
    %335 = arith.addf %333, %334 : vector<8x256xf32>
    %336 = vector.extract_strided_slice %335 {offsets = [0, 0], sizes = [1, 256], strides = [1, 1]} : vector<8x256xf32> to vector<1x256xf32>
    %337 = arith.truncf %336 : vector<1x256xf32> to vector<1x256xbf16>
    %c0_146 = arith.constant 0 : index
    %c0_147 = arith.constant 0 : index
    %338 = vector.load %arg17[%c0_146, %c0_147] : memref<256x256xbf16, #tpu.memory_space<vmem>>, vector<256x256xbf16>
    %cst_148 = arith.constant dense<0.000000e+00> : vector<1x256xf32>
    %339 = tpu.matmul %337, %338, %cst_148 {dimension_numbers = #tpu.dot_dimension_numbers<[1], [0], [0], [1], [0, 0, 1, 1], [], []>} : vector<1x256xbf16>, vector<256x256xbf16>, vector<1x256xf32> -> vector<1x256xf32>
    %c0_149 = arith.constant 0 : index
    %c0_150 = arith.constant 0 : index
    %340 = vector.load %arg18[%c0_149, %c0_150] : memref<1x256xf32, #tpu.memory_space<vmem>>, vector<1x256xf32>
    %341 = arith.addf %339, %340 : vector<1x256xf32>
    %342 = math.tanh %341 : vector<1x256xf32>
    %343 = arith.truncf %342 : vector<1x256xf32> to vector<1x256xbf16>
    %c0_151 = arith.constant 0 : index
    %c0_152 = arith.constant 0 : index
    %344 = vector.load %arg19[%c0_151, %c0_152] : memref<256x128xbf16, #tpu.memory_space<vmem>>, vector<256x128xbf16>
    %cst_153 = arith.constant dense<0.000000e+00> : vector<1x128xf32>
    %345 = tpu.matmul %343, %344, %cst_153 {dimension_numbers = #tpu.dot_dimension_numbers<[1], [0], [0], [1], [0, 0, 1, 1], [], []>} : vector<1x256xbf16>, vector<256x128xbf16>, vector<1x128xf32> -> vector<1x128xf32>
    %c0_154 = arith.constant 0 : index
    %c0_155 = arith.constant 0 : index
    %346 = vector.load %arg20[%c0_154, %c0_155] : memref<1x128xf32, #tpu.memory_space<vmem>>, vector<1x128xf32>
    %347 = arith.addf %345, %346 : vector<1x128xf32>
    %348 = vector.shape_cast %342 : vector<1x256xf32> to vector<1x1x256xf32>
    %c0_156 = arith.constant 0 : index
    %c0_157 = arith.constant 0 : index
    %c0_158 = arith.constant 0 : index
    %349 = vector.load %arg22[%c0_156, %c0_157, %c0_158] : memref<1x1x256xf32, #tpu.memory_space<vmem>>, vector<1x1x256xf32>
    tpu.vector_store %arg22[%c0_156, %c0_157, %c0_158], %348 {strides = array<i32>} : memref<1x1x256xf32, #tpu.memory_space<vmem>>, vector<1x1x256xf32>,
    %350 = vector.shape_cast %347 : vector<1x128xf32> to vector<1x1x128xf32>
    %c0_159 = arith.constant 0 : index
    %c0_160 = arith.constant 0 : index
    %c0_161 = arith.constant 0 : index
    %351 = vector.load %arg21[%c0_159, %c0_160, %c0_161] : memref<1x1x128xf32, #tpu.memory_space<vmem>>, vector<1x1x128xf32>
    tpu.vector_store %arg21[%c0_159, %c0_160, %c0_161], %350 {strides = array<i32>} : memref<1x1x128xf32, #tpu.memory_space<vmem>>, vector<1x1x128xf32>,
    return
  }
  func.func @transform_0(%arg0: i32) -> (i32, i32, i32) {
    %c0_i32 = arith.constant 0 : i32
    %c0_i32_0 = arith.constant 0 : i32
    %c0_i32_1 = arith.constant 0 : i32
    return %arg0, %c0_i32, %c0_i32_0 : i32, i32, i32
  }
  func.func @transform_1(%arg0: i32) -> (i32, i32, i32) {
    %c0_i32 = arith.constant 0 : i32
    %c0_i32_0 = arith.constant 0 : i32
    %c0_i32_1 = arith.constant 0 : i32
    return %arg0, %c0_i32, %c0_i32_0 : i32, i32, i32
  }
  func.func @transform_2(%arg0: i32) -> (i32, i32) {
    %c0_i32 = arith.constant 0 : i32
    %c0_i32_0 = arith.constant 0 : i32
    %c0_i32_1 = arith.constant 0 : i32
    return %c0_i32, %c0_i32_0 : i32, i32
  }
  func.func @transform_3(%arg0: i32) -> (i32, i32) {
    %c0_i32 = arith.constant 0 : i32
    %c0_i32_0 = arith.constant 0 : i32
    %c0_i32_1 = arith.constant 0 : i32
    return %c0_i32, %c0_i32_0 : i32, i32
  }
  func.func @transform_4(%arg0: i32) -> (i32, i32, i32) {
    %c0_i32 = arith.constant 0 : i32
    %c0_i32_0 = arith.constant 0 : i32
    %c0_i32_1 = arith.constant 0 : i32
    %c0_i32_2 = arith.constant 0 : i32
    return %c0_i32, %c0_i32_0, %c0_i32_1 : i32, i32, i32
  }
  func.func @transform_5(%arg0: i32) -> (i32, i32, i32) {
    %c0_i32 = arith.constant 0 : i32
    %c0_i32_0 = arith.constant 0 : i32
    %c0_i32_1 = arith.constant 0 : i32
    %c0_i32_2 = arith.constant 0 : i32
    return %c0_i32, %c0_i32_0, %c0_i32_1 : i32, i32, i32
  }
  func.func @transform_6(%arg0: i32) -> (i32, i32, i32) {
    %c0_i32 = arith.constant 0 : i32
    %c0_i32_0 = arith.constant 0 : i32
    %c0_i32_1 = arith.constant 0 : i32
    %c0_i32_2 = arith.constant 0 : i32
    return %c0_i32, %c0_i32_0, %c0_i32_1 : i32, i32, i32
  }
  func.func @transform_7(%arg0: i32) -> (i32, i32, i32) {
    %c0_i32 = arith.constant 0 : i32
    %c0_i32_0 = arith.constant 0 : i32
    %c0_i32_1 = arith.constant 0 : i32
    %c0_i32_2 = arith.constant 0 : i32
    return %c0_i32, %c0_i32_0, %c0_i32_1 : i32, i32, i32
  }
  func.func @transform_8(%arg0: i32) -> (i32, i32, i32) {
    %c0_i32 = arith.constant 0 : i32
    %c0_i32_0 = arith.constant 0 : i32
    %c0_i32_1 = arith.constant 0 : i32
    %c0_i32_2 = arith.constant 0 : i32
    return %c0_i32, %c0_i32_0, %c0_i32_1 : i32, i32, i32
  }
  func.func @transform_9(%arg0: i32) -> (i32, i32, i32) {
    %c0_i32 = arith.constant 0 : i32
    %c0_i32_0 = arith.constant 0 : i32
    %c0_i32_1 = arith.constant 0 : i32
    %c0_i32_2 = arith.constant 0 : i32
    return %c0_i32, %c0_i32_0, %c0_i32_1 : i32, i32, i32
  }
  func.func @transform_10(%arg0: i32) -> (i32, i32, i32) {
    %c0_i32 = arith.constant 0 : i32
    %c0_i32_0 = arith.constant 0 : i32
    %c0_i32_1 = arith.constant 0 : i32
    %c0_i32_2 = arith.constant 0 : i32
    return %c0_i32, %c0_i32_0, %c0_i32_1 : i32, i32, i32
  }
  func.func @transform_11(%arg0: i32) -> (i32, i32, i32) {
    %c0_i32 = arith.constant 0 : i32
    %c0_i32_0 = arith.constant 0 : i32
    %c0_i32_1 = arith.constant 0 : i32
    %c0_i32_2 = arith.constant 0 : i32
    return %c0_i32, %c0_i32_0, %c0_i32_1 : i32, i32, i32
  }
  func.func @transform_12(%arg0: i32) -> (i32, i32, i32) {
    %c0_i32 = arith.constant 0 : i32
    %c0_i32_0 = arith.constant 0 : i32
    %c0_i32_1 = arith.constant 0 : i32
    %c0_i32_2 = arith.constant 0 : i32
    return %c0_i32, %c0_i32_0, %c0_i32_1 : i32, i32, i32
  }
  func.func @transform_13(%arg0: i32) -> (i32, i32, i32) {
    %c0_i32 = arith.constant 0 : i32
    %c0_i32_0 = arith.constant 0 : i32
    %c0_i32_1 = arith.constant 0 : i32
    %c0_i32_2 = arith.constant 0 : i32
    return %c0_i32, %c0_i32_0, %c0_i32_1 : i32, i32, i32
  }
  func.func @transform_14(%arg0: i32) -> (i32, i32, i32) {
    %c0_i32 = arith.constant 0 : i32
    %c0_i32_0 = arith.constant 0 : i32
    %c0_i32_1 = arith.constant 0 : i32
    %c0_i32_2 = arith.constant 0 : i32
    return %c0_i32, %c0_i32_0, %c0_i32_1 : i32, i32, i32
  }
  func.func @transform_15(%arg0: i32) -> (i32, i32, i32) {
    %c0_i32 = arith.constant 0 : i32
    %c0_i32_0 = arith.constant 0 : i32
    %c0_i32_1 = arith.constant 0 : i32
    %c0_i32_2 = arith.constant 0 : i32
    return %c0_i32, %c0_i32_0, %c0_i32_1 : i32, i32, i32
  }
  func.func @transform_16(%arg0: i32) -> (i32, i32) {
    %c0_i32 = arith.constant 0 : i32
    %c0_i32_0 = arith.constant 0 : i32
    %c0_i32_1 = arith.constant 0 : i32
    return %c0_i32, %c0_i32_0 : i32, i32
  }
  func.func @transform_17(%arg0: i32) -> (i32, i32) {
    %c0_i32 = arith.constant 0 : i32
    %c0_i32_0 = arith.constant 0 : i32
    %c0_i32_1 = arith.constant 0 : i32
    return %c0_i32, %c0_i32_0 : i32, i32
  }
  func.func @transform_18(%arg0: i32) -> (i32, i32) {
    %c0_i32 = arith.constant 0 : i32
    %c0_i32_0 = arith.constant 0 : i32
    %c0_i32_1 = arith.constant 0 : i32
    return %c0_i32, %c0_i32_0 : i32, i32
  }
  func.func @transform_19(%arg0: i32) -> (i32, i32) {
    %c0_i32 = arith.constant 0 : i32
    %c0_i32_0 = arith.constant 0 : i32
    %c0_i32_1 = arith.constant 0 : i32
    return %c0_i32, %c0_i32_0 : i32, i32
  }
  func.func @transform_20(%arg0: i32) -> (i32, i32, i32) {
    %c0_i32 = arith.constant 0 : i32
    %c0_i32_0 = arith.constant 0 : i32
    %c0_i32_1 = arith.constant 0 : i32
    return %arg0, %c0_i32, %c0_i32_0 : i32, i32, i32
  }
  func.func @transform_21(%arg0: i32) -> (i32, i32, i32) {
    %c0_i32 = arith.constant 0 : i32
    %c0_i32_0 = arith.constant 0 : i32
    %c0_i32_1 = arith.constant 0 : i32
    return %arg0, %c0_i32, %c0_i32_0 : i32, i32, i32
  }
}

</mosaic_0001>

<llo_original>
// kernel: tpu_custom_call.1
$region0: #{tpu_custom_call.1}
  #allocation0 [shape = 'u32[]', space=smem, size = 0x4, offset = 0x4, fixed_abs, tag = 'smem constant byte address 0x4 - core index']
  #allocation1 [shape = 'u32[144,128]{1,0:T(1,128)}', space=vmem, size = 0x12000, scoped, tag = 'internal scratch']
  %s0 = inlined_call_operand.hbm [shape: f32[2,8,256], index: 0, kind: input, shape index: {}]
  %s1 = inlined_call_operand.hbm [shape: f32[2,1,8], index: 1, kind: input, shape index: {}]
  %s2 = inlined_call_operand.hbm [shape: f32[1,256], index: 2, kind: input, shape index: {}]
  %s3 = inlined_call_operand.hbm [shape: f32[1,256], index: 3, kind: input, shape index: {}]
  %s4 = inlined_call_operand.hbm [shape: bf16[2,256,768], index: 4, kind: input, shape index: {}]
  %s5 = inlined_call_operand.hbm [shape: f32[2,1,768], index: 5, kind: input, shape index: {}]
  %s6 = inlined_call_operand.hbm [shape: bf16[2,256,256], index: 6, kind: input, shape index: {}]
  %s7 = inlined_call_operand.vmem [shape: f32[2,1,256], index: 7, kind: input, shape index: {}]
  %s8 = inlined_call_operand.hbm [shape: f32[2,1,256], index: 8, kind: input, shape index: {}]
  %s9 = inlined_call_operand.hbm [shape: f32[2,1,256], index: 9, kind: input, shape index: {}]
  %s10 = inlined_call_operand.hbm [shape: bf16[2,256,1024], index: 10, kind: input, shape index: {}]
  %s11 = inlined_call_operand.vmem [shape: f32[2,1,1024], index: 11, kind: input, shape index: {}]
  %s12 = inlined_call_operand.hbm [shape: bf16[2,1024,256], index: 12, kind: input, shape index: {}]
  %s13 = inlined_call_operand.hbm [shape: f32[2,1,256], index: 13, kind: input, shape index: {}]
  %s14 = inlined_call_operand.vmem [shape: f32[2,1,256], index: 14, kind: input, shape index: {}]
  %s15 = inlined_call_operand.hbm [shape: f32[2,1,256], index: 15, kind: input, shape index: {}]
  %s16 = inlined_call_operand.hbm [shape: bf16[256,256], index: 16, kind: input, shape index: {}]
  %s17 = inlined_call_operand.vmem [shape: f32[1,256], index: 17, kind: input, shape index: {}]
  %s18 = inlined_call_operand.hbm [shape: bf16[256,128], index: 18, kind: input, shape index: {}]
  %s19 = inlined_call_operand.vmem [shape: f32[1,128], index: 19, kind: input, shape index: {}]
  %s20 = inlined_call_operand.hbm [shape: f32[2,1,128], index: 20, kind: output, shape index: {0}]
  %s21 = inlined_call_operand.hbm [shape: f32[2,1,256], index: 21, kind: output, shape index: {1}]
  %22 = xla_tuple %s20, %s21
  %s23 = sld [smem:[#allocation0]]
  $region181: #{tpu_custom_call.1} parent=0
    _
  %s25 = ssub.s32 1, %s23
  %s26 = scalar_select 0, %s25, %s23
  $region1: #{tpu_custom_call.1} parent=0
    #allocation2 [shape = 'u8[16384]{0}', space=vmem, size = 0x4000, scoped, tag = 'input window, operand 0']
    #allocation3 [shape = 's32[2]{0}', space=sflag, size = 0x8, scoped, tag = 'scoped memory for tpu_custom_call.1']
    #allocation4 [shape = 's32[2]{0}', space=sflag, size = 0x8, scoped, tag = 'scoped memory for tpu_custom_call.1']
    #allocation5 [shape = 'u8[1024]{0}', space=vmem, size = 0x400, scoped, tag = 'input window, operand 1']
    #allocation6 [shape = 's32[2]{0}', space=sflag, size = 0x8, scoped, tag = 'scoped memory for tpu_custom_call.1']
    #allocation7 [shape = 'u8[1024]{0}', space=vmem, size = 0x400, scoped, tag = 'input window, operand 2, single buffered']
    #allocation8 [shape = 'u8[1024]{0}', space=vmem, size = 0x400, scoped, tag = 'input window, operand 3, single buffered']
    #allocation9 [shape = 's32[1]{0}', space=sflag, size = 0x4, scoped, tag = 'scoped memory for tpu_custom_call.1']
    #allocation10 [shape = 'u8[786432]{0}', space=vmem, size = 0xc0000, scoped, tag = 'input window, operand 4, single buffered']
    #allocation11 [shape = 'u8[6144]{0}', space=vmem, size = 0x1800, scoped, tag = 'input window, operand 5, single buffered']
    #allocation12 [shape = 's32[1]{0}', space=sflag, size = 0x4, scoped, tag = 'scoped memory for tpu_custom_call.1']
    #allocation13 [shape = 'u8[262144]{0}', space=vmem, size = 0x40000, scoped, tag = 'input window, operand 6, single buffered']
    #allocation14 [shape = 'u8[2048]{0}', space=vmem, size = 0x800, scoped, tag = 'input window, operand 8, single buffered']
    #allocation15 [shape = 's32[1]{0}', space=sflag, size = 0x4, scoped, tag = 'scoped memory for tpu_custom_call.1']
    #allocation16 [shape = 'u8[2048]{0}', space=vmem, size = 0x800, scoped, tag = 'input window, operand 9, single buffered']
    #allocation17 [shape = 'u8[1048576]{0}', space=vmem, size = 0x100000, scoped, tag = 'input window, operand 10, single buffered']
    #allocation18 [shape = 's32[1]{0}', space=sflag, size = 0x4, scoped, tag = 'scoped memory for tpu_custom_call.1']
    #allocation19 [shape = 'u8[1048576]{0}', space=vmem, size = 0x100000, scoped, tag = 'input window, operand 12, single buffered']
    #allocation20 [shape = 'u8[2048]{0}', space=vmem, size = 0x800, scoped, tag = 'input window, operand 13, single buffered']
    #allocation21 [shape = 's32[1]{0}', space=sflag, size = 0x4, scoped, tag = 'scoped memory for tpu_custom_call.1']
    #allocation22 [shape = 'u8[2048]{0}', space=vmem, size = 0x800, scoped, tag = 'input window, operand 15, single buffered']
    #allocation23 [shape = 'u8[131072]{0}', space=vmem, size = 0x20000, scoped, tag = 'input window, operand 16, single buffered']
    #allocation24 [shape = 's32[1]{0}', space=sflag, size = 0x4, scoped, tag = 'scoped memory for tpu_custom_call.1']
    #allocation25 [shape = 'u8[65536]{0}', space=vmem, size = 0x10000, scoped, tag = 'input window, operand 18, single buffered']
    #allocation26 [shape = 'u8[1024]{0}', space=vmem, size = 0x400, scoped, tag = 'output window, operand 0']
    #allocation27 [shape = 'u8[2048]{0}', space=vmem, size = 0x800, scoped, tag = 'output window, operand 1']
    #allocation28 [shape = 's32[2]{0}', space=sflag, size = 0x8, scoped, tag = 'scoped memory for tpu_custom_call.1']
    %27 = vsyncpa [#allocation3], 0
    %s28 = scalar_lea.sflag [#allocation3], 1
    %29 = vsyncpa %s28, 0
    %30 = vsyncpa [#allocation6], 0
    %s31 = scalar_lea.sflag [#allocation6], 1
    %32 = vsyncpa %s31, 0
    %33 = vsyncpa [#allocation9], 0
    %34 = vsyncpa [#allocation12], 0
    %35 = vsyncpa [#allocation15], 0
    %36 = vsyncpa [#allocation18], 0
    %37 = vsyncpa [#allocation21], 0
    %38 = vsyncpa [#allocation24], 0
    %39 = vsyncpa [#allocation4], 0
    %s40 = scalar_lea.sflag [#allocation4], 1
    %41 = vsyncpa %s40, 0
    %42 = vsyncpa [#allocation28], 0
    %s43 = scalar_lea.sflag [#allocation28], 1
    %44 = vsyncpa %s43, 0
    loop: start=0, step=1, limit=4
    $region2: #{tpu_custom_call.1} parent=1 // loop_pre_header
      _
    $region3: #{tpu_custom_call.1} parent=1 // loop_header
      %s46 = sphi 0, %s50
      %p47 = scmp.ge.s32.totalorder %s46, 4
      %s56 = sphi 0, %s58
      %s59 = sphi 0, %s56
      %s60 = sphi 0, %s59
      %s76 = sphi 0, %s60
      %s82 = sphi 0, %s84
      %s85 = sphi 0, %s82
      %s86 = sphi 0, %s85
      %s102 = sphi 0, %s86
      %s106 = sphi 0, %s106
      %s108 = sphi 0, %s106
      %s109 = sphi 0, %s108
      %s123 = sphi 0, %s109
      %s127 = sphi 0, %s127
      %s129 = sphi 0, %s127
      %s130 = sphi 0, %s129
      %s144 = sphi 0, %s130
      %s148 = sphi 0, %s148
      %s150 = sphi 0, %s148
      %s151 = sphi 0, %s150
      %s165 = sphi 0, %s151
      %s169 = sphi 0, %s169
      %s171 = sphi 0, %s169
      %s172 = sphi 0, %s171
      %s186 = sphi 0, %s172
      %s190 = sphi 0, %s190
      %s192 = sphi 0, %s190
      %s193 = sphi 0, %s192
      %s207 = sphi 0, %s193
      %s211 = sphi 0, %s211
      %s213 = sphi 0, %s211
      %s214 = sphi 0, %s213
      %s228 = sphi 0, %s214
      %s232 = sphi 0, %s232
      %s234 = sphi 0, %s232
      %s235 = sphi 0, %s234
      %s249 = sphi 0, %s235
      %s253 = sphi 0, %s253
      %s255 = sphi 0, %s253
      %s256 = sphi 0, %s255
      %s270 = sphi 0, %s256
      %s274 = sphi 0, %s274
      %s276 = sphi 0, %s274
      %s277 = sphi 0, %s276
      %s291 = sphi 0, %s277
      %s295 = sphi 0, %s295
      %s297 = sphi 0, %s295
      %s298 = sphi 0, %s297
      %s312 = sphi 0, %s298
      %s316 = sphi 0, %s316
      %s318 = sphi 0, %s316
      %s319 = sphi 0, %s318
      %s333 = sphi 0, %s319
      %s337 = sphi 0, %s337
      %s339 = sphi 0, %s337
      %s340 = sphi 0, %s339
      %s354 = sphi 0, %s340
      %s358 = sphi 0, %s358
      %s360 = sphi 0, %s358
      %s361 = sphi 0, %s360
      %s375 = sphi 0, %s361
      %s379 = sphi 0, %s379
      %s381 = sphi 0, %s379
      %s382 = sphi 0, %s381
      %s396 = sphi 0, %s382
      %s400 = sphi 0, %s400
      %s402 = sphi 0, %s400
      %s403 = sphi 0, %s402
      %s417 = sphi 0, %s403
      %s421 = sphi 0, %s421
      %s423 = sphi 0, %s421
      %s424 = sphi 0, %s423
      %s438 = sphi 0, %s424
      %s442 = sphi 0, %s442
      %s444 = sphi 0, %s442
      %s445 = sphi 0, %s444
      %s459 = sphi 0, %s445
      %s463 = sphi 0, %s463
      %s465 = sphi 0, %s463
      %s466 = sphi 0, %s465
      %s480 = sphi 0, %s466
      %s486 = sphi 0, %s488
      %s489 = sphi 0, %s486
      %s490 = sphi 0, %s489
      %s506 = sphi 0, %s490
      %s512 = sphi 0, %s514
      %s515 = sphi 0, %s512
      %s516 = sphi 0, %s515
      %s532 = sphi 0, %s516
    $region4: #{tpu_custom_call.1} parent=1 // loop_header_branch
      %49 = sbr.rel (%p47) target = $region8
    $region5: #{tpu_custom_call.1} parent=1 // loop_body
      %s51 = ssub.s32 %s46, 1
      %s52 = ssub.s32 %s46, 2
      %s53 = sadd.s32 %s46, 1
      %s54 = ssub.s32 %s46, %s53
      %p55 = scmp.eq.s32.totalorder %s54, 0
      %s57 = sadd.s32 %s56, 1
      %s58 = scalar_select %p55, %s56, %s57
      %p61 = pneg %p55
      %p62 = scmp.eq.s32.totalorder %s46, 1
      %p63 = por %p61, %p62
      %p64 = scmp.ne.s32.totalorder %s56, %s59
      %p65 = scmp.eq.s32.totalorder %s46, 0
      %p66 = por %p64, %p65
      %p67 = scmp.ne.s32.totalorder %s56, %s59
      %p68 = scmp.eq.s32.totalorder %s51, 1
      %p69 = por %p67, %p68
      %p70 = scmp.ne.s32.totalorder %s59, %s60
      %p71 = scmp.eq.s32.totalorder %s51, 0
      %p72 = por %p70, %p71
      %p73 = scmp.ne.s32.totalorder %s59, %s60
      %p74 = scmp.eq.s32.totalorder %s52, 1
      %p75 = por %p73, %p74
      %p77 = scmp.ne.s32.totalorder %s60, %s76
      %p78 = scmp.eq.s32.totalorder %s52, 0
      %p79 = por %p77, %p78
      %s80 = ssub.s32 %s46, %s53
      %p81 = scmp.eq.s32.totalorder %s80, 0
      %s83 = sadd.s32 %s82, 1
      %s84 = scalar_select %p81, %s82, %s83
      %p87 = pneg %p81
      %p88 = scmp.eq.s32.totalorder %s46, 1
      %p89 = por %p87, %p88
      %p90 = scmp.ne.s32.totalorder %s82, %s85
      %p91 = scmp.eq.s32.totalorder %s46, 0
      %p92 = por %p90, %p91
      %p93 = scmp.ne.s32.totalorder %s82, %s85
      %p94 = scmp.eq.s32.totalorder %s51, 1
      %p95 = por %p93, %p94
      %p96 = scmp.ne.s32.totalorder %s85, %s86
      %p97 = scmp.eq.s32.totalorder %s51, 0
      %p98 = por %p96, %p97
      %p99 = scmp.ne.s32.totalorder %s85, %s86
      %p100 = scmp.eq.s32.totalorder %s52, 1
      %p101 = por %p99, %p100
      %p103 = scmp.ne.s32.totalorder %s86, %s102
      %p104 = scmp.eq.s32.totalorder %s52, 0
      %p105 = por %p103, %p104
      %s107 = sadd.s32 %s106, 1
      %p110 = scmp.eq.s32.totalorder %s46, 1
      %p111 = scmp.ne.s32.totalorder %s106, %s108
      %p112 = scmp.eq.s32.totalorder %s46, 0
      %p113 = por %p111, %p112
      %p114 = scmp.ne.s32.totalorder %s106, %s108
      %p115 = scmp.eq.s32.totalorder %s51, 1
      %p116 = por %p114, %p115
      %p117 = scmp.ne.s32.totalorder %s108, %s109
      %p118 = scmp.eq.s32.totalorder %s51, 0
      %p119 = por %p117, %p118
      %p120 = scmp.ne.s32.totalorder %s108, %s109
      %p121 = scmp.eq.s32.totalorder %s52, 1
      %p122 = por %p120, %p121
      %p124 = scmp.ne.s32.totalorder %s109, %s123
      %p125 = scmp.eq.s32.totalorder %s52, 0
      %p126 = por %p124, %p125
      %s128 = sadd.s32 %s127, 1
      %p131 = scmp.eq.s32.totalorder %s46, 1
      %p132 = scmp.ne.s32.totalorder %s127, %s129
      %p133 = scmp.eq.s32.totalorder %s46, 0
      %p134 = por %p132, %p133
      %p135 = scmp.ne.s32.totalorder %s127, %s129
      %p136 = scmp.eq.s32.totalorder %s51, 1
      %p137 = por %p135, %p136
      %p138 = scmp.ne.s32.totalorder %s129, %s130
      %p139 = scmp.eq.s32.totalorder %s51, 0
      %p140 = por %p138, %p139
      %p141 = scmp.ne.s32.totalorder %s129, %s130
      %p142 = scmp.eq.s32.totalorder %s52, 1
      %p143 = por %p141, %p142
      %p145 = scmp.ne.s32.totalorder %s130, %s144
      %p146 = scmp.eq.s32.totalorder %s52, 0
      %p147 = por %p145, %p146
      %s149 = sadd.s32 %s148, 1
      %p152 = scmp.eq.s32.totalorder %s46, 1
      %p153 = scmp.ne.s32.totalorder %s148, %s150
      %p154 = scmp.eq.s32.totalorder %s46, 0
      %p155 = por %p153, %p154
      %p156 = scmp.ne.s32.totalorder %s148, %s150
      %p157 = scmp.eq.s32.totalorder %s51, 1
      %p158 = por %p156, %p157
      %p159 = scmp.ne.s32.totalorder %s150, %s151
      %p160 = scmp.eq.s32.totalorder %s51, 0
      %p161 = por %p159, %p160
      %p162 = scmp.ne.s32.totalorder %s150, %s151
      %p163 = scmp.eq.s32.totalorder %s52, 1
      %p164 = por %p162, %p163
      %p166 = scmp.ne.s32.totalorder %s151, %s165
      %p167 = scmp.eq.s32.totalorder %s52, 0
      %p168 = por %p166, %p167
      %s170 = sadd.s32 %s169, 1
      %p173 = scmp.eq.s32.totalorder %s46, 1
      %p174 = scmp.ne.s32.totalorder %s169, %s171
      %p175 = scmp.eq.s32.totalorder %s46, 0
      %p176 = por %p174, %p175
      %p177 = scmp.ne.s32.totalorder %s169, %s171
      %p178 = scmp.eq.s32.totalorder %s51, 1
      %p179 = por %p177, %p178
      %p180 = scmp.ne.s32.totalorder %s171, %s172
      %p181 = scmp.eq.s32.totalorder %s51, 0
      %p182 = por %p180, %p181
      %p183 = scmp.ne.s32.totalorder %s171, %s172
      %p184 = scmp.eq.s32.totalorder %s52, 1
      %p185 = por %p183, %p184
      %p187 = scmp.ne.s32.totalorder %s172, %s186
      %p188 = scmp.eq.s32.totalorder %s52, 0
      %p189 = por %p187, %p188
      %s191 = sadd.s32 %s190, 1
      %p194 = scmp.eq.s32.totalorder %s46, 1
      %p195 = scmp.ne.s32.totalorder %s190, %s192
      %p196 = scmp.eq.s32.totalorder %s46, 0
      %p197 = por %p195, %p196
      %p198 = scmp.ne.s32.totalorder %s190, %s192
      %p199 = scmp.eq.s32.totalorder %s51, 1
      %p200 = por %p198, %p199
      %p201 = scmp.ne.s32.totalorder %s192, %s193
      %p202 = scmp.eq.s32.totalorder %s51, 0
      %p203 = por %p201, %p202
      %p204 = scmp.ne.s32.totalorder %s192, %s193
      %p205 = scmp.eq.s32.totalorder %s52, 1
      %p206 = por %p204, %p205
      %p208 = scmp.ne.s32.totalorder %s193, %s207
      %p209 = scmp.eq.s32.totalorder %s52, 0
      %p210 = por %p208, %p209
      %s212 = sadd.s32 %s211, 1
      %p215 = scmp.eq.s32.totalorder %s46, 1
      %p216 = scmp.ne.s32.totalorder %s211, %s213
      %p217 = scmp.eq.s32.totalorder %s46, 0
      %p218 = por %p216, %p217
      %p219 = scmp.ne.s32.totalorder %s211, %s213
      %p220 = scmp.eq.s32.totalorder %s51, 1
      %p221 = por %p219, %p220
      %p222 = scmp.ne.s32.totalorder %s213, %s214
      %p223 = scmp.eq.s32.totalorder %s51, 0
      %p224 = por %p222, %p223
      %p225 = scmp.ne.s32.totalorder %s213, %s214
      %p226 = scmp.eq.s32.totalorder %s52, 1
      %p227 = por %p225, %p226
      %p229 = scmp.ne.s32.totalorder %s214, %s228
      %p230 = scmp.eq.s32.totalorder %s52, 0
      %p231 = por %p229, %p230
      %s233 = sadd.s32 %s232, 1
      %p236 = scmp.eq.s32.totalorder %s46, 1
      %p237 = scmp.ne.s32.totalorder %s232, %s234
      %p238 = scmp.eq.s32.totalorder %s46, 0
      %p239 = por %p237, %p238
      %p240 = scmp.ne.s32.totalorder %s232, %s234
      %p241 = scmp.eq.s32.totalorder %s51, 1
      %p242 = por %p240, %p241
      %p243 = scmp.ne.s32.totalorder %s234, %s235
      %p244 = scmp.eq.s32.totalorder %s51, 0
      %p245 = por %p243, %p244
      %p246 = scmp.ne.s32.totalorder %s234, %s235
      %p247 = scmp.eq.s32.totalorder %s52, 1
      %p248 = por %p246, %p247
      %p250 = scmp.ne.s32.totalorder %s235, %s249
      %p251 = scmp.eq.s32.totalorder %s52, 0
      %p252 = por %p250, %p251
      %s254 = sadd.s32 %s253, 1
      %p257 = scmp.eq.s32.totalorder %s46, 1
      %p258 = scmp.ne.s32.totalorder %s253, %s255
      %p259 = scmp.eq.s32.totalorder %s46, 0
      %p260 = por %p258, %p259
      %p261 = scmp.ne.s32.totalorder %s253, %s255
      %p262 = scmp.eq.s32.totalorder %s51, 1
      %p263 = por %p261, %p262
      %p264 = scmp.ne.s32.totalorder %s255, %s256
      %p265 = scmp.eq.s32.totalorder %s51, 0
      %p266 = por %p264, %p265
      %p267 = scmp.ne.s32.totalorder %s255, %s256
      %p268 = scmp.eq.s32.totalorder %s52, 1
      %p269 = por %p267, %p268
      %p271 = scmp.ne.s32.totalorder %s256, %s270
      %p272 = scmp.eq.s32.totalorder %s52, 0
      %p273 = por %p271, %p272
      %s275 = sadd.s32 %s274, 1
      %p278 = scmp.eq.s32.totalorder %s46, 1
      %p279 = scmp.ne.s32.totalorder %s274, %s276
      %p280 = scmp.eq.s32.totalorder %s46, 0
      %p281 = por %p279, %p280
      %p282 = scmp.ne.s32.totalorder %s274, %s276
      %p283 = scmp.eq.s32.totalorder %s51, 1
      %p284 = por %p282, %p283
      %p285 = scmp.ne.s32.totalorder %s276, %s277
      %p286 = scmp.eq.s32.totalorder %s51, 0
      %p287 = por %p285, %p286
      %p288 = scmp.ne.s32.totalorder %s276, %s277
      %p289 = scmp.eq.s32.totalorder %s52, 1
      %p290 = por %p288, %p289
      %p292 = scmp.ne.s32.totalorder %s277, %s291
      %p293 = scmp.eq.s32.totalorder %s52, 0
      %p294 = por %p292, %p293
      %s296 = sadd.s32 %s295, 1
      %p299 = scmp.eq.s32.totalorder %s46, 1
      %p300 = scmp.ne.s32.totalorder %s295, %s297
      %p301 = scmp.eq.s32.totalorder %s46, 0
      %p302 = por %p300, %p301
      %p303 = scmp.ne.s32.totalorder %s295, %s297
      %p304 = scmp.eq.s32.totalorder %s51, 1
      %p305 = por %p303, %p304
      %p306 = scmp.ne.s32.totalorder %s297, %s298
      %p307 = scmp.eq.s32.totalorder %s51, 0
      %p308 = por %p306, %p307
      %p309 = scmp.ne.s32.totalorder %s297, %s298
      %p310 = scmp.eq.s32.totalorder %s52, 1
      %p311 = por %p309, %p310
      %p313 = scmp.ne.s32.totalorder %s298, %s312
      %p314 = scmp.eq.s32.totalorder %s52, 0
      %p315 = por %p313, %p314
      %s317 = sadd.s32 %s316, 1
      %p320 = scmp.eq.s32.totalorder %s46, 1
      %p321 = scmp.ne.s32.totalorder %s316, %s318
      %p322 = scmp.eq.s32.totalorder %s46, 0
      %p323 = por %p321, %p322
      %p324 = scmp.ne.s32.totalorder %s316, %s318
      %p325 = scmp.eq.s32.totalorder %s51, 1
      %p326 = por %p324, %p325
      %p327 = scmp.ne.s32.totalorder %s318, %s319
      %p328 = scmp.eq.s32.totalorder %s51, 0
      %p329 = por %p327, %p328
      %p330 = scmp.ne.s32.totalorder %s318, %s319
      %p331 = scmp.eq.s32.totalorder %s52, 1
      %p332 = por %p330, %p331
      %p334 = scmp.ne.s32.totalorder %s319, %s333
      %p335 = scmp.eq.s32.totalorder %s52, 0
      %p336 = por %p334, %p335
      %s338 = sadd.s32 %s337, 1
      %p341 = scmp.eq.s32.totalorder %s46, 1
      %p342 = scmp.ne.s32.totalorder %s337, %s339
      %p343 = scmp.eq.s32.totalorder %s46, 0
      %p344 = por %p342, %p343
      %p345 = scmp.ne.s32.totalorder %s337, %s339
      %p346 = scmp.eq.s32.totalorder %s51, 1
      %p347 = por %p345, %p346
      %p348 = scmp.ne.s32.totalorder %s339, %s340
      %p349 = scmp.eq.s32.totalorder %s51, 0
      %p350 = por %p348, %p349
      %p351 = scmp.ne.s32.totalorder %s339, %s340
      %p352 = scmp.eq.s32.totalorder %s52, 1
      %p353 = por %p351, %p352
      %p355 = scmp.ne.s32.totalorder %s340, %s354
      %p356 = scmp.eq.s32.totalorder %s52, 0
      %p357 = por %p355, %p356
      %s359 = sadd.s32 %s358, 1
      %p362 = scmp.eq.s32.totalorder %s46, 1
      %p363 = scmp.ne.s32.totalorder %s358, %s360
      %p364 = scmp.eq.s32.totalorder %s46, 0
      %p365 = por %p363, %p364
      %p366 = scmp.ne.s32.totalorder %s358, %s360
      %p367 = scmp.eq.s32.totalorder %s51, 1
      %p368 = por %p366, %p367
      %p369 = scmp.ne.s32.totalorder %s360, %s361
      %p370 = scmp.eq.s32.totalorder %s51, 0
      %p371 = por %p369, %p370
      %p372 = scmp.ne.s32.totalorder %s360, %s361
      %p373 = scmp.eq.s32.totalorder %s52, 1
      %p374 = por %p372, %p373
      %p376 = scmp.ne.s32.totalorder %s361, %s375
      %p377 = scmp.eq.s32.totalorder %s52, 0
      %p378 = por %p376, %p377
      %s380 = sadd.s32 %s379, 1
      %p383 = scmp.eq.s32.totalorder %s46, 1
      %p384 = scmp.ne.s32.totalorder %s379, %s381
      %p385 = scmp.eq.s32.totalorder %s46, 0
      %p386 = por %p384, %p385
      %p387 = scmp.ne.s32.totalorder %s379, %s381
      %p388 = scmp.eq.s32.totalorder %s51, 1
      %p389 = por %p387, %p388
      %p390 = scmp.ne.s32.totalorder %s381, %s382
      %p391 = scmp.eq.s32.totalorder %s51, 0
      %p392 = por %p390, %p391
      %p393 = scmp.ne.s32.totalorder %s381, %s382
      %p394 = scmp.eq.s32.totalorder %s52, 1
      %p395 = por %p393, %p394
      %p397 = scmp.ne.s32.totalorder %s382, %s396
      %p398 = scmp.eq.s32.totalorder %s52, 0
      %p399 = por %p397, %p398
      %s401 = sadd.s32 %s400, 1
      %p404 = scmp.eq.s32.totalorder %s46, 1
      %p405 = scmp.ne.s32.totalorder %s400, %s402
      %p406 = scmp.eq.s32.totalorder %s46, 0
      %p407 = por %p405, %p406
      %p408 = scmp.ne.s32.totalorder %s400, %s402
      %p409 = scmp.eq.s32.totalorder %s51, 1
      %p410 = por %p408, %p409
      %p411 = scmp.ne.s32.totalorder %s402, %s403
      %p412 = scmp.eq.s32.totalorder %s51, 0
      %p413 = por %p411, %p412
      %p414 = scmp.ne.s32.totalorder %s402, %s403
      %p415 = scmp.eq.s32.totalorder %s52, 1
      %p416 = por %p414, %p415
      %p418 = scmp.ne.s32.totalorder %s403, %s417
      %p419 = scmp.eq.s32.totalorder %s52, 0
      %p420 = por %p418, %p419
      %s422 = sadd.s32 %s421, 1
      %p425 = scmp.eq.s32.totalorder %s46, 1
      %p426 = scmp.ne.s32.totalorder %s421, %s423
      %p427 = scmp.eq.s32.totalorder %s46, 0
      %p428 = por %p426, %p427
      %p429 = scmp.ne.s32.totalorder %s421, %s423
      %p430 = scmp.eq.s32.totalorder %s51, 1
      %p431 = por %p429, %p430
      %p432 = scmp.ne.s32.totalorder %s423, %s424
      %p433 = scmp.eq.s32.totalorder %s51, 0
      %p434 = por %p432, %p433
      %p435 = scmp.ne.s32.totalorder %s423, %s424
      %p436 = scmp.eq.s32.totalorder %s52, 1
      %p437 = por %p435, %p436
      %p439 = scmp.ne.s32.totalorder %s424, %s438
      %p440 = scmp.eq.s32.totalorder %s52, 0
      %p441 = por %p439, %p440
      %s443 = sadd.s32 %s442, 1
      %p446 = scmp.eq.s32.totalorder %s46, 1
      %p447 = scmp.ne.s32.totalorder %s442, %s444
      %p448 = scmp.eq.s32.totalorder %s46, 0
      %p449 = por %p447, %p448
      %p450 = scmp.ne.s32.totalorder %s442, %s444
      %p451 = scmp.eq.s32.totalorder %s51, 1
      %p452 = por %p450, %p451
      %p453 = scmp.ne.s32.totalorder %s444, %s445
      %p454 = scmp.eq.s32.totalorder %s51, 0
      %p455 = por %p453, %p454
      %p456 = scmp.ne.s32.totalorder %s444, %s445
      %p457 = scmp.eq.s32.totalorder %s52, 1
      %p458 = por %p456, %p457
      %p460 = scmp.ne.s32.totalorder %s445, %s459
      %p461 = scmp.eq.s32.totalorder %s52, 0
      %p462 = por %p460, %p461
      %s464 = sadd.s32 %s463, 1
      %p467 = scmp.eq.s32.totalorder %s46, 1
      %p468 = scmp.ne.s32.totalorder %s463, %s465
      %p469 = scmp.eq.s32.totalorder %s46, 0
      %p470 = por %p468, %p469
      %p471 = scmp.ne.s32.totalorder %s463, %s465
      %p472 = scmp.eq.s32.totalorder %s51, 1
      %p473 = por %p471, %p472
      %p474 = scmp.ne.s32.totalorder %s465, %s466
      %p475 = scmp.eq.s32.totalorder %s51, 0
      %p476 = por %p474, %p475
      %p477 = scmp.ne.s32.totalorder %s465, %s466
      %p478 = scmp.eq.s32.totalorder %s52, 1
      %p479 = por %p477, %p478
      %p481 = scmp.ne.s32.totalorder %s466, %s480
      %p482 = scmp.eq.s32.totalorder %s52, 0
      %p483 = por %p481, %p482
      %s484 = ssub.s32 %s46, %s53
      %p485 = scmp.eq.s32.totalorder %s484, 0
      %s487 = sadd.s32 %s486, 1
      %s488 = scalar_select %p485, %s486, %s487
      %p491 = pneg %p485
      %p492 = scmp.eq.s32.totalorder %s46, 1
      %p493 = por %p491, %p492
      %p494 = scmp.ne.s32.totalorder %s486, %s489
      %p495 = scmp.eq.s32.totalorder %s46, 0
      %p496 = por %p494, %p495
      %p497 = scmp.ne.s32.totalorder %s486, %s489
      %p498 = scmp.eq.s32.totalorder %s51, 1
      %p499 = por %p497, %p498
      %p500 = scmp.ne.s32.totalorder %s489, %s490
      %p501 = scmp.eq.s32.totalorder %s51, 0
      %p502 = por %p500, %p501
      %p503 = scmp.ne.s32.totalorder %s489, %s490
      %p504 = scmp.eq.s32.totalorder %s52, 1
      %p505 = por %p503, %p504
      %p507 = scmp.ne.s32.totalorder %s490, %s506
      %p508 = scmp.eq.s32.totalorder %s52, 0
      %p509 = por %p507, %p508
      %s510 = ssub.s32 %s46, %s53
      %p511 = scmp.eq.s32.totalorder %s510, 0
      %s513 = sadd.s32 %s512, 1
      %s514 = scalar_select %p511, %s512, %s513
      %p517 = pneg %p511
      %p518 = scmp.eq.s32.totalorder %s46, 1
      %p519 = por %p517, %p518
      %p520 = scmp.ne.s32.totalorder %s512, %s515
      %p521 = scmp.eq.s32.totalorder %s46, 0
      %p522 = por %p520, %p521
      %p523 = scmp.ne.s32.totalorder %s512, %s515
      %p524 = scmp.eq.s32.totalorder %s51, 1
      %p525 = por %p523, %p524
      %p526 = scmp.ne.s32.totalorder %s515, %s516
      %p527 = scmp.eq.s32.totalorder %s51, 0
      %p528 = por %p526, %p527
      %p529 = scmp.ne.s32.totalorder %s515, %s516
      %p530 = scmp.eq.s32.totalorder %s52, 1
      %p531 = por %p529, %p530
      %p533 = scmp.ne.s32.totalorder %s516, %s532
      %p534 = scmp.eq.s32.totalorder %s52, 0
      %p535 = por %p533, %p534
      %p536 = scmp.le.s32.totalorder 1, %s46
      %p537 = scmp.lt.s32.totalorder %s46, 3
      %p538 = pnand %p536, %p537
      %p539 = pneg %p538
      // Predicated region
      $region9: #{tpu_custom_call.1} parent=5 // pred_check
        _
      $region10: #{tpu_custom_call.1} parent=5 // pred_check_branch
        %541 = sbr.rel (%p538) target = $region12
      $region11: #{tpu_custom_call.1} parent=5 // pred_region
        %s542 = ssub.s32 %s46, 1
        // Predicated region
        $region13: #{tpu_custom_call.1} parent=11 // pred_check
          %p543 = pneg %p119
        $region14: #{tpu_custom_call.1} parent=11 // pred_check_branch
          %545 = sbr.rel (%p543) target = $region16
        $region15: #{tpu_custom_call.1} parent=11 // pred_region
          %s547 = ssub.s32 32, 32
          %548 = vsyncadd [#allocation6], %s547
          %s550 = sshll.u32 [#allocation7], 4
          %s551 = int_to_ptr.vmem [resolvable:$true] %s550
          %553 = dma.hbm_to_vmem [thread:$0]  %s2, 32, %s551, [#allocation6]
        $region16: #{tpu_custom_call.1} parent=11 // pred_fallthru
          _
        // Predicated region
        $region17: #{tpu_custom_call.1} parent=11 // pred_check
          %p554 = pneg %p140
        $region18: #{tpu_custom_call.1} parent=11 // pred_check_branch
          %556 = sbr.rel (%p554) target = $region20
        $region19: #{tpu_custom_call.1} parent=11 // pred_region
          %s558 = ssub.s32 32, 32
          %559 = vsyncadd [#allocation9], %s558
          %s561 = sshll.u32 [#allocation8], 4
          %s562 = int_to_ptr.vmem [resolvable:$true] %s561
          %564 = dma.hbm_to_vmem [thread:$0]  %s3, 32, %s562, [#allocation9]
        $region20: #{tpu_custom_call.1} parent=11 // pred_fallthru
          _
        // Predicated region
        $region21: #{tpu_custom_call.1} parent=11 // pred_check
          %p565 = pneg %p161
        $region22: #{tpu_custom_call.1} parent=11 // pred_check_branch
          %567 = sbr.rel (%p565) target = $region24
        $region23: #{tpu_custom_call.1} parent=11 // pred_region
          %s569 = ssub.s32 24576, 24576
          %570 = vsyncadd [#allocation9], %s569
          %s571 = sshll.u32 [#allocation10], 4
          %s572 = int_to_ptr.vmem [resolvable:$true] %s571
          %577 = dma.hbm_to_vmem [thread:$0]  %s4, 24576, %s572, [#allocation9], 384, 384, 24
        $region24: #{tpu_custom_call.1} parent=11 // pred_fallthru
          _
        // Predicated region
        $region25: #{tpu_custom_call.1} parent=11 // pred_check
          %p578 = pneg %p182
        $region26: #{tpu_custom_call.1} parent=11 // pred_check_branch
          %580 = sbr.rel (%p578) target = $region28
        $region27: #{tpu_custom_call.1} parent=11 // pred_region
          %s582 = ssub.s32 192, 192
          %583 = vsyncadd [#allocation12], %s582
          %s584 = sshll.u32 [#allocation11], 4
          %s585 = int_to_ptr.vmem [resolvable:$true] %s584
          %590 = dma.hbm_to_vmem [thread:$0]  %s5, 192, %s585, [#allocation12], 96, 96, 6
        $region28: #{tpu_custom_call.1} parent=11 // pred_fallthru
          _
        // Predicated region
        $region29: #{tpu_custom_call.1} parent=11 // pred_check
          %p591 = pneg %p203
        $region30: #{tpu_custom_call.1} parent=11 // pred_check_branch
          %593 = sbr.rel (%p591) target = $region32
        $region31: #{tpu_custom_call.1} parent=11 // pred_region
          %s595 = ssub.s32 8192, 8192
          %596 = vsyncadd [#allocation12], %s595
          %s597 = sshll.u32 [#allocation13], 4
          %s598 = int_to_ptr.vmem [resolvable:$true] %s597
          %603 = dma.hbm_to_vmem [thread:$0]  %s6, 8192, %s598, [#allocation12], 128, 128, 8
        $region32: #{tpu_custom_call.1} parent=11 // pred_fallthru
          _
        // Predicated region
        $region33: #{tpu_custom_call.1} parent=11 // pred_check
          %p604 = pneg %p224
        $region34: #{tpu_custom_call.1} parent=11 // pred_check_branch
          %606 = sbr.rel (%p604) target = $region36
        $region35: #{tpu_custom_call.1} parent=11 // pred_region
          _
        $region36: #{tpu_custom_call.1} parent=11 // pred_fallthru
          _
        // Predicated region
        $region37: #{tpu_custom_call.1} parent=11 // pred_check
          %p607 = pneg %p245
        $region38: #{tpu_custom_call.1} parent=11 // pred_check_branch
          %609 = sbr.rel (%p607) target = $region40
        $region39: #{tpu_custom_call.1} parent=11 // pred_region
          %s611 = ssub.s32 64, 64
          %612 = vsyncadd [#allocation15], %s611
          %s613 = sshll.u32 [#allocation14], 4
          %s614 = int_to_ptr.vmem [resolvable:$true] %s613
          %619 = dma.hbm_to_vmem [thread:$0]  %s8, 64, %s614, [#allocation15], 32, 32, 2
        $region40: #{tpu_custom_call.1} parent=11 // pred_fallthru
          _
        // Predicated region
        $region41: #{tpu_custom_call.1} parent=11 // pred_check
          %p620 = pneg %p266
        $region42: #{tpu_custom_call.1} parent=11 // pred_check_branch
          %622 = sbr.rel (%p620) target = $region44
        $region43: #{tpu_custom_call.1} parent=11 // pred_region
          %s624 = ssub.s32 64, 64
          %625 = vsyncadd [#allocation15], %s624
          %s626 = sshll.u32 [#allocation16], 4
          %s627 = int_to_ptr.vmem [resolvable:$true] %s626
          %632 = dma.hbm_to_vmem [thread:$0]  %s9, 64, %s627, [#allocation15], 32, 32, 2
        $region44: #{tpu_custom_call.1} parent=11 // pred_fallthru
          _
        // Predicated region
        $region45: #{tpu_custom_call.1} parent=11 // pred_check
          %p633 = pneg %p287
        $region46: #{tpu_custom_call.1} parent=11 // pred_check_branch
          %635 = sbr.rel (%p633) target = $region48
        $region47: #{tpu_custom_call.1} parent=11 // pred_region
          %s637 = ssub.s32 32768, 32768
          %638 = vsyncadd [#allocation18], %s637
          %s639 = sshll.u32 [#allocation17], 4
          %s640 = int_to_ptr.vmem [resolvable:$true] %s639
          %645 = dma.hbm_to_vmem [thread:$0]  %s10, 32768, %s640, [#allocation18], 512, 512, 32
        $region48: #{tpu_custom_call.1} parent=11 // pred_fallthru
          _
        // Predicated region
        $region49: #{tpu_custom_call.1} parent=11 // pred_check
          %p646 = pneg %p308
        $region50: #{tpu_custom_call.1} parent=11 // pred_check_branch
          %648 = sbr.rel (%p646) target = $region52
        $region51: #{tpu_custom_call.1} parent=11 // pred_region
          _
        $region52: #{tpu_custom_call.1} parent=11 // pred_fallthru
          _
        // Predicated region
        $region53: #{tpu_custom_call.1} parent=11 // pred_check
          %p649 = pneg %p329
        $region54: #{tpu_custom_call.1} parent=11 // pred_check_branch
          %651 = sbr.rel (%p649) target = $region56
        $region55: #{tpu_custom_call.1} parent=11 // pred_region
          %s653 = ssub.s32 32768, 32768
          %654 = vsyncadd [#allocation18], %s653
          %s655 = sshll.u32 [#allocation19], 4
          %s656 = int_to_ptr.vmem [resolvable:$true] %s655
          %661 = dma.hbm_to_vmem [thread:$0]  %s12, 32768, %s656, [#allocation18], 128, 128, 8
        $region56: #{tpu_custom_call.1} parent=11 // pred_fallthru
          _
        // Predicated region
        $region57: #{tpu_custom_call.1} parent=11 // pred_check
          %p662 = pneg %p350
        $region58: #{tpu_custom_call.1} parent=11 // pred_check_branch
          %664 = sbr.rel (%p662) target = $region60
        $region59: #{tpu_custom_call.1} parent=11 // pred_region
          %s666 = ssub.s32 64, 64
          %667 = vsyncadd [#allocation21], %s666
          %s668 = sshll.u32 [#allocation20], 4
          %s669 = int_to_ptr.vmem [resolvable:$true] %s668
          %674 = dma.hbm_to_vmem [thread:$0]  %s13, 64, %s669, [#allocation21], 32, 32, 2
        $region60: #{tpu_custom_call.1} parent=11 // pred_fallthru
          _
        // Predicated region
        $region61: #{tpu_custom_call.1} parent=11 // pred_check
          %p675 = pneg %p371
        $region62: #{tpu_custom_call.1} parent=11 // pred_check_branch
          %677 = sbr.rel (%p675) target = $region64
        $region63: #{tpu_custom_call.1} parent=11 // pred_region
          _
        $region64: #{tpu_custom_call.1} parent=11 // pred_fallthru
          _
        // Predicated region
        $region65: #{tpu_custom_call.1} parent=11 // pred_check
          %p678 = pneg %p392
        $region66: #{tpu_custom_call.1} parent=11 // pred_check_branch
          %680 = sbr.rel (%p678) target = $region68
        $region67: #{tpu_custom_call.1} parent=11 // pred_region
          %s682 = ssub.s32 64, 64
          %683 = vsyncadd [#allocation21], %s682
          %s684 = sshll.u32 [#allocation22], 4
          %s685 = int_to_ptr.vmem [resolvable:$true] %s684
          %690 = dma.hbm_to_vmem [thread:$0]  %s15, 64, %s685, [#allocation21], 32, 32, 2
        $region68: #{tpu_custom_call.1} parent=11 // pred_fallthru
          _
        // Predicated region
        $region69: #{tpu_custom_call.1} parent=11 // pred_check
          %p691 = pneg %p413
        $region70: #{tpu_custom_call.1} parent=11 // pred_check_branch
          %693 = sbr.rel (%p691) target = $region72
        $region71: #{tpu_custom_call.1} parent=11 // pred_region
          %s695 = ssub.s32 4096, 4096
          %696 = vsyncadd [#allocation24], %s695
          %s697 = sshll.u32 [#allocation23], 4
          %s698 = int_to_ptr.vmem [resolvable:$true] %s697
          %703 = dma.hbm_to_vmem [thread:$0]  %s16, 4096, %s698, [#allocation24], 128, 128, 8
        $region72: #{tpu_custom_call.1} parent=11 // pred_fallthru
          _
        // Predicated region
        $region73: #{tpu_custom_call.1} parent=11 // pred_check
          %p704 = pneg %p434
        $region74: #{tpu_custom_call.1} parent=11 // pred_check_branch
          %706 = sbr.rel (%p704) target = $region76
        $region75: #{tpu_custom_call.1} parent=11 // pred_region
          _
        $region76: #{tpu_custom_call.1} parent=11 // pred_fallthru
          _
        // Predicated region
        $region77: #{tpu_custom_call.1} parent=11 // pred_check
          %p707 = pneg %p455
        $region78: #{tpu_custom_call.1} parent=11 // pred_check_branch
          %709 = sbr.rel (%p707) target = $region80
        $region79: #{tpu_custom_call.1} parent=11 // pred_region
          %s711 = ssub.s32 2048, 2048
          %712 = vsyncadd [#allocation24], %s711
          %s713 = sshll.u32 [#allocation25], 4
          %s714 = int_to_ptr.vmem [resolvable:$true] %s713
          %719 = dma.hbm_to_vmem [thread:$0]  %s18, 2048, %s714, [#allocation24], 64, 64, 4
        $region80: #{tpu_custom_call.1} parent=11 // pred_fallthru
          _
        // Predicated region
        $region81: #{tpu_custom_call.1} parent=11 // pred_check
          %p720 = pneg %p476
        $region82: #{tpu_custom_call.1} parent=11 // pred_check_branch
          %722 = sbr.rel (%p720) target = $region84
        $region83: #{tpu_custom_call.1} parent=11 // pred_region
          _
        $region84: #{tpu_custom_call.1} parent=11 // pred_fallthru
          _
      $region12: #{tpu_custom_call.1} parent=5 // pred_fallthru
        _
      %p723 = scmp.lt.s32.totalorder %s46, 2
      // Predicated region
      $region85: #{tpu_custom_call.1} parent=5 // pred_check
        %p724 = pneg %p723
      $region86: #{tpu_custom_call.1} parent=5 // pred_check_branch
        %726 = sbr.rel (%p724) target = $region88
      $region87: #{tpu_custom_call.1} parent=5 // pred_region
        // Predicated region
        $region89: #{tpu_custom_call.1} parent=87 // pred_check
          %p727 = pneg %p66
        $region90: #{tpu_custom_call.1} parent=87 // pred_check_branch
          %729 = sbr.rel (%p727) target = $region92
        $region91: #{tpu_custom_call.1} parent=87 // pred_region
          %s730 = sand.u32 %s56, 1
          %s731 = scalar_lea.sflag [#allocation3], %s730
          %s732 = sand.u32 %s56, 1
          %s733 = smul.addr %s732, 16
          %s734 = scalar_lea.vmem [#allocation2], %s733
          %s736 = ssub.s32 256, 256
          %737 = vsyncadd %s731, %s736
          %s738 = smul.addr %s46, 2
          %s739 = smul.addr %s738, 128
          %s740 = scalar_lea.hbm %s0, %s739
          %s742 = sshll.u32 %s734, 4
          %s743 = int_to_ptr.vmem [resolvable:$true] %s742
          %745 = dma.hbm_to_vmem [thread:$0]  %s740, 256, %s743, %s731
        $region92: #{tpu_custom_call.1} parent=87 // pred_fallthru
          _
        // Predicated region
        $region93: #{tpu_custom_call.1} parent=87 // pred_check
          %p746 = pneg %p92
        $region94: #{tpu_custom_call.1} parent=87 // pred_check_branch
          %748 = sbr.rel (%p746) target = $region96
        $region95: #{tpu_custom_call.1} parent=87 // pred_region
          %s749 = sand.u32 %s46, 1
          %s750 = scalar_lea.sflag [#allocation6], %s749
          %s751 = sand.u32 %s82, 1
          %s752 = scalar_lea.vmem [#allocation5], %s751
          %s754 = ssub.s32 16, 16
          %755 = vsyncadd %s750, %s754
          %s756 = smul.addr %s46, 16
          %s757 = scalar_lea.hbm %s1, %s756
          %s759 = sshll.u32 %s752, 4
          %s760 = int_to_ptr.vmem [resolvable:$true] %s759
          %762 = dma.hbm_to_vmem [thread:$0]  %s757, 16, %s760, %s750
        $region96: #{tpu_custom_call.1} parent=87 // pred_fallthru
          _
      $region88: #{tpu_custom_call.1} parent=5 // pred_fallthru
        _
      %p763 = scmp.le.s32.totalorder 1, %s46
      %p764 = scmp.lt.s32.totalorder %s46, 3
      %p765 = pnand %p763, %p764
      %p766 = pneg %p765
      // Predicated region
      $region97: #{tpu_custom_call.1} parent=5 // pred_check
        _
      $region98: #{tpu_custom_call.1} parent=5 // pred_check_branch
        %768 = sbr.rel (%p765) target = $region100
      $region99: #{tpu_custom_call.1} parent=5 // pred_region
        %s769 = ssub.s32 %s46, 1
        %s770 = sand.u32 %s59, 1
        %s771 = scalar_lea.sflag [#allocation3], %s770
        %s772 = sand.u32 %s59, 1
        %s773 = smul.addr %s772, 16
        %s774 = scalar_lea.vmem [#allocation2], %s773
        // Predicated region
        $region101: #{tpu_custom_call.1} parent=99 // pred_check
          %p775 = pneg %p72
        $region102: #{tpu_custom_call.1} parent=99 // pred_check_branch
          %777 = sbr.rel (%p775) target = $region104
        $region103: #{tpu_custom_call.1} parent=99 // pred_region
          %778 = dma.done %s771, 256
        $region104: #{tpu_custom_call.1} parent=99 // pred_fallthru
          _
        %s779 = sand.u32 %s51, 1
        %s780 = scalar_lea.sflag [#allocation6], %s779
        %s781 = sand.u32 %s85, 1
        %s782 = scalar_lea.vmem [#allocation5], %s781
        // Predicated region
        $region105: #{tpu_custom_call.1} parent=99 // pred_check
          %p783 = pneg %p98
        $region106: #{tpu_custom_call.1} parent=99 // pred_check_branch
          %785 = sbr.rel (%p783) target = $region108
        $region107: #{tpu_custom_call.1} parent=99 // pred_region
          %786 = dma.done %s780, 16
        $region108: #{tpu_custom_call.1} parent=99 // pred_fallthru
          _
        // Predicated region
        $region109: #{tpu_custom_call.1} parent=99 // pred_check
          %p787 = pneg %p119
        $region110: #{tpu_custom_call.1} parent=99 // pred_check_branch
          %789 = sbr.rel (%p787) target = $region112
        $region111: #{tpu_custom_call.1} parent=99 // pred_region
          %790 = dma.done [#allocation6], 32
        $region112: #{tpu_custom_call.1} parent=99 // pred_fallthru
          _
        // Predicated region
        $region113: #{tpu_custom_call.1} parent=99 // pred_check
          %p791 = pneg %p140
        $region114: #{tpu_custom_call.1} parent=99 // pred_check_branch
          %793 = sbr.rel (%p791) target = $region116
        $region115: #{tpu_custom_call.1} parent=99 // pred_region
          %794 = dma.done [#allocation9], 32
        $region116: #{tpu_custom_call.1} parent=99 // pred_fallthru
          _
        // Predicated region
        $region117: #{tpu_custom_call.1} parent=99 // pred_check
          %p795 = pneg %p161
        $region118: #{tpu_custom_call.1} parent=99 // pred_check_branch
          %797 = sbr.rel (%p795) target = $region120
        $region119: #{tpu_custom_call.1} parent=99 // pred_region
          %798 = dma.done [#allocation9], 24576
        $region120: #{tpu_custom_call.1} parent=99 // pred_fallthru
          _
        // Predicated region
        $region121: #{tpu_custom_call.1} parent=99 // pred_check
          %p799 = pneg %p182
        $region122: #{tpu_custom_call.1} parent=99 // pred_check_branch
          %801 = sbr.rel (%p799) target = $region124
        $region123: #{tpu_custom_call.1} parent=99 // pred_region
          %802 = dma.done [#allocation12], 192
        $region124: #{tpu_custom_call.1} parent=99 // pred_fallthru
          _
        // Predicated region
        $region125: #{tpu_custom_call.1} parent=99 // pred_check
          %p803 = pneg %p203
        $region126: #{tpu_custom_call.1} parent=99 // pred_check_branch
          %805 = sbr.rel (%p803) target = $region128
        $region127: #{tpu_custom_call.1} parent=99 // pred_region
          %806 = dma.done [#allocation12], 8192
        $region128: #{tpu_custom_call.1} parent=99 // pred_fallthru
          _
        // Predicated region
        $region129: #{tpu_custom_call.1} parent=99 // pred_check
          %p807 = pneg %p245
        $region130: #{tpu_custom_call.1} parent=99 // pred_check_branch
          %809 = sbr.rel (%p807) target = $region132
        $region131: #{tpu_custom_call.1} parent=99 // pred_region
          %810 = dma.done [#allocation15], 64
        $region132: #{tpu_custom_call.1} parent=99 // pred_fallthru
          _
        // Predicated region
        $region133: #{tpu_custom_call.1} parent=99 // pred_check
          %p811 = pneg %p266
        $region134: #{tpu_custom_call.1} parent=99 // pred_check_branch
          %813 = sbr.rel (%p811) target = $region136
        $region135: #{tpu_custom_call.1} parent=99 // pred_region
          %814 = dma.done [#allocation15], 64
        $region136: #{tpu_custom_call.1} parent=99 // pred_fallthru
          _
        // Predicated region
        $region137: #{tpu_custom_call.1} parent=99 // pred_check
          %p815 = pneg %p287
        $region138: #{tpu_custom_call.1} parent=99 // pred_check_branch
          %817 = sbr.rel (%p815) target = $region140
        $region139: #{tpu_custom_call.1} parent=99 // pred_region
          %818 = dma.done [#allocation18], 32768
        $region140: #{tpu_custom_call.1} parent=99 // pred_fallthru
          _
        // Predicated region
        $region141: #{tpu_custom_call.1} parent=99 // pred_check
          %p819 = pneg %p329
        $region142: #{tpu_custom_call.1} parent=99 // pred_check_branch
          %821 = sbr.rel (%p819) target = $region144
        $region143: #{tpu_custom_call.1} parent=99 // pred_region
          %822 = dma.done [#allocation18], 32768
        $region144: #{tpu_custom_call.1} parent=99 // pred_fallthru
          _
        // Predicated region
        $region145: #{tpu_custom_call.1} parent=99 // pred_check
          %p823 = pneg %p350
        $region146: #{tpu_custom_call.1} parent=99 // pred_check_branch
          %825 = sbr.rel (%p823) target = $region148
        $region147: #{tpu_custom_call.1} parent=99 // pred_region
          %826 = dma.done [#allocation21], 64
        $region148: #{tpu_custom_call.1} parent=99 // pred_fallthru
          _
        // Predicated region
        $region149: #{tpu_custom_call.1} parent=99 // pred_check
          %p827 = pneg %p392
        $region150: #{tpu_custom_call.1} parent=99 // pred_check_branch
          %829 = sbr.rel (%p827) target = $region152
        $region151: #{tpu_custom_call.1} parent=99 // pred_region
          %830 = dma.done [#allocation21], 64
        $region152: #{tpu_custom_call.1} parent=99 // pred_fallthru
          _
        // Predicated region
        $region153: #{tpu_custom_call.1} parent=99 // pred_check
          %p831 = pneg %p413
        $region154: #{tpu_custom_call.1} parent=99 // pred_check_branch
          %833 = sbr.rel (%p831) target = $region156
        $region155: #{tpu_custom_call.1} parent=99 // pred_region
          %834 = dma.done [#allocation24], 4096
        $region156: #{tpu_custom_call.1} parent=99 // pred_fallthru
          _
        // Predicated region
        $region157: #{tpu_custom_call.1} parent=99 // pred_check
          %p835 = pneg %p455
        $region158: #{tpu_custom_call.1} parent=99 // pred_check_branch
          %837 = sbr.rel (%p835) target = $region160
        $region159: #{tpu_custom_call.1} parent=99 // pred_region
          %838 = dma.done [#allocation24], 2048
        $region160: #{tpu_custom_call.1} parent=99 // pred_fallthru
          _
        %s839 = sand.u32 %s59, 1
        %s840 = scalar_lea.sflag [#allocation3], %s839
        %s841 = sand.u32 %s59, 1
        %s842 = smul.addr %s841, 16
        %s843 = scalar_lea.vmem [#allocation2], %s842
        %p844 = pneg %p72
        %p845 = pneg %p69
        %s846 = sand.u32 %s51, 1
        %s847 = scalar_lea.sflag [#allocation6], %s846
        %s848 = sand.u32 %s85, 1
        %s849 = scalar_lea.vmem [#allocation5], %s848
        %p850 = pneg %p98
        %p851 = pneg %p95
        %p852 = pneg %p119
        %p853 = pneg %p116
        %p854 = pneg %p140
        %p855 = pneg %p137
        %p856 = pneg %p161
        %p857 = pneg %p158
        %p858 = pneg %p182
        %p859 = pneg %p179
        %p860 = pneg %p203
        %p861 = pneg %p200
        %p862 = pneg %p224
        %p863 = pneg %p221
        %p864 = pneg %p245
        %p865 = pneg %p242
        %p866 = pneg %p266
        %p867 = pneg %p263
        %p868 = pneg %p287
        %p869 = pneg %p284
        %p870 = pneg %p308
        %p871 = pneg %p305
        %p872 = pneg %p329
        %p873 = pneg %p326
        %p874 = pneg %p350
        %p875 = pneg %p347
        %p876 = pneg %p371
        %p877 = pneg %p368
        %p878 = pneg %p392
        %p879 = pneg %p389
        %p880 = pneg %p413
        %p881 = pneg %p410
        %p882 = pneg %p434
        %p883 = pneg %p431
        %p884 = pneg %p455
        %p885 = pneg %p452
        %p886 = pneg %p476
        %p887 = pneg %p473
        %p888 = pneg %p502
        %p889 = pneg %p499
        %s890 = sand.u32 %s489, 1
        %s891 = scalar_lea.sflag [#allocation4], %s890
        %s892 = sand.u32 %s489, 1
        %s893 = scalar_lea.vmem [#allocation26], %s892
        %p894 = pneg %p528
        %p895 = pneg %p525
        %s896 = sand.u32 %s515, 1
        %s897 = scalar_lea.sflag [#allocation28], %s896
        %s898 = sand.u32 %s515, 1
        %s899 = smul.addr %s898, 2
        %s900 = scalar_lea.vmem [#allocation27], %s899
        %v902 = vld [vmem:[%s774] sm:$0xff]
        %v903 = vld [vmem:[%s774 + $0x8] sm:$0xff]
        %v904 = vld [vmem:[#allocation7] sm:$0x3]
        %v905 = vld [vmem:[#allocation8] sm:$0x3]
        %v906 = vadd.f32 %v902, %v903
        %907 = vadd.xlane.f32.xlu0 %v906
        %v908 = vpop.xlane.xlu0 %907
        %v909 = vrcp.pop 256.0
        %v910 = vmul.f32 %v908, %v909
        %v911 = vsub.f32 %v902, %v910
        %v912 = vsub.f32 %v903, %v910
        %v913 = vmul.f32 %v911, %v911
        %v914 = vmul.f32 %v912, %v912
        %v915 = vadd.f32 %v913, %v914
        %916 = vadd.xlane.f32.xlu0 %v915
        %v917 = vpop.xlane.xlu0 %916
        %v918 = vmul.f32 %v917, %v909
        %v919 = vadd.f32 %v918, 1e-12
        %v920 = vrsqrt.pop %v919
        %v921 = vmul.f32 %v911, %v920
        %v922 = vmul.f32 %v912, %v920
        %v924 = vlaneseq
        %v925 = vshrl.u32 %v924, 7
        %v926 = vsub.s32 0, %v925
        %v927 = vrot.slane %v904, %v926
        %v928 = vlaneseq
        %v929 = vshrl.u32 %v928, 7
        %v930 = vsub.s32 1, %v929
        %v931 = vrot.slane %v904, %v930
        %v934 = vmul.f32 %v921, %v927
        %v935 = vmul.f32 %v922, %v931
        %v937 = vlaneseq
        %v938 = vshrl.u32 %v937, 7
        %v939 = vsub.s32 0, %v938
        %v940 = vrot.slane %v905, %v939
        %v941 = vlaneseq
        %v942 = vshrl.u32 %v941, 7
        %v943 = vsub.s32 1, %v942
        %v944 = vrot.slane %v905, %v943
        %v947 = vadd.f32 %v934, %v940
        %v948 = vadd.f32 %v935, %v944
        %v949 = vld [vmem:[%s782] sm:$0x1]
        %v950 = vsub.f32 1.0, %v949
        %v951 = vmul.f32 %v950, -1e+09
        %v952 = vpack.c.bf16 %v947, %v947
        %v953 = vpack.c.bf16 %v948, %v948
        %v954 = vld [vmem:[#allocation10] sm:$0xff]
        %v955 = vld [vmem:[#allocation10 + $0x8] sm:$0xff]
        %v956 = vld [vmem:[#allocation10 + $0x10] sm:$0xff]
        %v957 = vld [vmem:[#allocation10 + $0x18] sm:$0xff]
        %v958 = vld [vmem:[#allocation10 + $0x20] sm:$0xff]
        %v959 = vld [vmem:[#allocation10 + $0x28] sm:$0xff]
        %v960 = vld [vmem:[#allocation10 + $0x30] sm:$0xff]
        %v961 = vld [vmem:[#allocation10 + $0x38] sm:$0xff]
        %v962 = vld [vmem:[#allocation10 + $0x40] sm:$0xff]
        %v963 = vld [vmem:[#allocation10 + $0x48] sm:$0xff]
        %v964 = vld [vmem:[#allocation10 + $0x50] sm:$0xff]
        %v965 = vld [vmem:[#allocation10 + $0x58] sm:$0xff]
        %v966 = vld [vmem:[#allocation10 + $0x60] sm:$0xff]
        %v967 = vld [vmem:[#allocation10 + $0x68] sm:$0xff]
        %v968 = vld [vmem:[#allocation10 + $0x70] sm:$0xff]
        %v969 = vld [vmem:[#allocation10 + $0x78] sm:$0xff]
        %v970 = vld [vmem:[#allocation10 + $0x80] sm:$0xff]
        %v971 = vld [vmem:[#allocation10 + $0x88] sm:$0xff]
        %v972 = vld [vmem:[#allocation10 + $0x90] sm:$0xff]
        %v973 = vld [vmem:[#allocation10 + $0x98] sm:$0xff]
        %v974 = vld [vmem:[#allocation10 + $0xa0] sm:$0xff]
        %v975 = vld [vmem:[#allocation10 + $0xa8] sm:$0xff]
        %v976 = vld [vmem:[#allocation10 + $0xb0] sm:$0xff]
        %v977 = vld [vmem:[#allocation10 + $0xb8] sm:$0xff]
        %v978 = vld [vmem:[#allocation10 + $0xc0] sm:$0xff]
        %v979 = vld [vmem:[#allocation10 + $0xc8] sm:$0xff]
        %v980 = vld [vmem:[#allocation10 + $0xd0] sm:$0xff]
        %v981 = vld [vmem:[#allocation10 + $0xd8] sm:$0xff]
        %v982 = vld [vmem:[#allocation10 + $0xe0] sm:$0xff]
        %v983 = vld [vmem:[#allocation10 + $0xe8] sm:$0xff]
        %v984 = vld [vmem:[#allocation10 + $0xf0] sm:$0xff]
        %v985 = vld [vmem:[#allocation10 + $0xf8] sm:$0xff]
        %v986 = vld [vmem:[#allocation10 + $0x100] sm:$0xff]
        %v987 = vld [vmem:[#allocation10 + $0x108] sm:$0xff]
        %v988 = vld [vmem:[#allocation10 + $0x110] sm:$0xff]
        %v989 = vld [vmem:[#allocation10 + $0x118] sm:$0xff]
        %v990 = vld [vmem:[#allocation10 + $0x120] sm:$0xff]
        %v991 = vld [vmem:[#allocation10 + $0x128] sm:$0xff]
        %v992 = vld [vmem:[#allocation10 + $0x130] sm:$0xff]
        %v993 = vld [vmem:[#allocation10 + $0x138] sm:$0xff]
        %v994 = vld [vmem:[#allocation10 + $0x140] sm:$0xff]
        %v995 = vld [vmem:[#allocation10 + $0x148] sm:$0xff]
        %v996 = vld [vmem:[#allocation10 + $0x150] sm:$0xff]
        %v997 = vld [vmem:[#allocation10 + $0x158] sm:$0xff]
        %v998 = vld [vmem:[#allocation10 + $0x160] sm:$0xff]
        %v999 = vld [vmem:[#allocation10 + $0x168] sm:$0xff]
        %v1000 = vld [vmem:[#allocation10 + $0x170] sm:$0xff]
        %v1001 = vld [vmem:[#allocation10 + $0x178] sm:$0xff]
        %v1002 = vld [vmem:[#allocation10 + $0x180] sm:$0xff]
        %v1003 = vld [vmem:[#allocation10 + $0x188] sm:$0xff]
        %v1004 = vld [vmem:[#allocation10 + $0x190] sm:$0xff]
        %v1005 = vld [vmem:[#allocation10 + $0x198] sm:$0xff]
        %v1006 = vld [vmem:[#allocation10 + $0x1a0] sm:$0xff]
        %v1007 = vld [vmem:[#allocation10 + $0x1a8] sm:$0xff]
        %v1008 = vld [vmem:[#allocation10 + $0x1b0] sm:$0xff]
        %v1009 = vld [vmem:[#allocation10 + $0x1b8] sm:$0xff]
        %v1010 = vld [vmem:[#allocation10 + $0x1c0] sm:$0xff]
        %v1011 = vld [vmem:[#allocation10 + $0x1c8] sm:$0xff]
        %v1012 = vld [vmem:[#allocation10 + $0x1d0] sm:$0xff]
        %v1013 = vld [vmem:[#allocation10 + $0x1d8] sm:$0xff]
        %v1014 = vld [vmem:[#allocation10 + $0x1e0] sm:$0xff]
        %v1015 = vld [vmem:[#allocation10 + $0x1e8] sm:$0xff]
        %v1016 = vld [vmem:[#allocation10 + $0x1f0] sm:$0xff]
        %v1017 = vld [vmem:[#allocation10 + $0x1f8] sm:$0xff]
        %v1018 = vld [vmem:[#allocation10 + $0x200] sm:$0xff]
        %v1019 = vld [vmem:[#allocation10 + $0x208] sm:$0xff]
        %v1020 = vld [vmem:[#allocation10 + $0x210] sm:$0xff]
        %v1021 = vld [vmem:[#allocation10 + $0x218] sm:$0xff]
        %v1022 = vld [vmem:[#allocation10 + $0x220] sm:$0xff]
        %v1023 = vld [vmem:[#allocation10 + $0x228] sm:$0xff]
        %v1024 = vld [vmem:[#allocation10 + $0x230] sm:$0xff]
        %v1025 = vld [vmem:[#allocation10 + $0x238] sm:$0xff]
        %v1026 = vld [vmem:[#allocation10 + $0x240] sm:$0xff]
        %v1027 = vld [vmem:[#allocation10 + $0x248] sm:$0xff]
        %v1028 = vld [vmem:[#allocation10 + $0x250] sm:$0xff]
        %v1029 = vld [vmem:[#allocation10 + $0x258] sm:$0xff]
        %v1030 = vld [vmem:[#allocation10 + $0x260] sm:$0xff]
        %v1031 = vld [vmem:[#allocation10 + $0x268] sm:$0xff]
        %v1032 = vld [vmem:[#allocation10 + $0x270] sm:$0xff]
        %v1033 = vld [vmem:[#allocation10 + $0x278] sm:$0xff]
        %v1034 = vld [vmem:[#allocation10 + $0x280] sm:$0xff]
        %v1035 = vld [vmem:[#allocation10 + $0x288] sm:$0xff]
        %v1036 = vld [vmem:[#allocation10 + $0x290] sm:$0xff]
        %v1037 = vld [vmem:[#allocation10 + $0x298] sm:$0xff]
        %v1038 = vld [vmem:[#allocation10 + $0x2a0] sm:$0xff]
        %v1039 = vld [vmem:[#allocation10 + $0x2a8] sm:$0xff]
        %v1040 = vld [vmem:[#allocation10 + $0x2b0] sm:$0xff]
        %v1041 = vld [vmem:[#allocation10 + $0x2b8] sm:$0xff]
        %v1042 = vld [vmem:[#allocation10 + $0x2c0] sm:$0xff]
        %v1043 = vld [vmem:[#allocation10 + $0x2c8] sm:$0xff]
        %v1044 = vld [vmem:[#allocation10 + $0x2d0] sm:$0xff]
        %v1045 = vld [vmem:[#allocation10 + $0x2d8] sm:$0xff]
        %v1046 = vld [vmem:[#allocation10 + $0x2e0] sm:$0xff]
        %v1047 = vld [vmem:[#allocation10 + $0x2e8] sm:$0xff]
        %v1048 = vld [vmem:[#allocation10 + $0x2f0] sm:$0xff]
        %v1049 = vld [vmem:[#allocation10 + $0x2f8] sm:$0xff]
        %v1050 = vld [vmem:[#allocation11] sm:$0x3f]
        %v1052 = vlaneseq
        %v1053 = vshrl.u32 %v1052, 7
        %v1054 = vsub.s32 0, %v1053
        %v1055 = vrot.slane %v1050, %v1054
        %v1056 = vlaneseq
        %v1057 = vshrl.u32 %v1056, 7
        %v1058 = vsub.s32 1, %v1057
        %v1059 = vrot.slane %v1050, %v1058
        %v1060 = vlaneseq
        %v1061 = vshrl.u32 %v1060, 7
        %v1062 = vsub.s32 2, %v1061
        %v1063 = vrot.slane %v1050, %v1062
        %v1064 = vlaneseq
        %v1065 = vshrl.u32 %v1064, 7
        %v1066 = vsub.s32 3, %v1065
        %v1067 = vrot.slane %v1050, %v1066
        %v1068 = vlaneseq
        %v1069 = vshrl.u32 %v1068, 7
        %v1070 = vsub.s32 4, %v1069
        %v1071 = vrot.slane %v1050, %v1070
        %v1072 = vlaneseq
        %v1073 = vshrl.u32 %v1072, 7
        %v1074 = vsub.s32 5, %v1073
        %v1075 = vrot.slane %v1050, %v1074
        %v1178 = vunpack.c.l.b16 %v954
        %v1179 = vunpack.c.h.b16 %v954
        %v1180 = vunpack.c.l.b16 %v955
        %v1181 = vunpack.c.h.b16 %v955
        %v1182 = vunpack.c.l.b16 %v956
        %v1183 = vunpack.c.h.b16 %v956
        %v1184 = vunpack.c.l.b16 %v957
        %v1185 = vunpack.c.h.b16 %v957
        %v1186 = vunpack.c.l.b16 %v958
        %v1187 = vunpack.c.h.b16 %v958
        %v1188 = vunpack.c.l.b16 %v959
        %v1189 = vunpack.c.h.b16 %v959
        %v1190 = vunpack.c.l.b16 %v960
        %v1191 = vunpack.c.h.b16 %v960
        %v1192 = vunpack.c.l.b16 %v961
        %v1193 = vunpack.c.h.b16 %v961
        %v1194 = vunpack.c.l.b16 %v962
        %v1195 = vunpack.c.h.b16 %v962
        %v1196 = vunpack.c.l.b16 %v963
        %v1197 = vunpack.c.h.b16 %v963
        %v1198 = vunpack.c.l.b16 %v964
        %v1199 = vunpack.c.h.b16 %v964
        %v1200 = vunpack.c.l.b16 %v965
        %v1201 = vunpack.c.h.b16 %v965
        %v1202 = vunpack.c.l.b16 %v966
        %v1203 = vunpack.c.h.b16 %v966
        %v1204 = vunpack.c.l.b16 %v967
        %v1205 = vunpack.c.h.b16 %v967
        %v1206 = vunpack.c.l.b16 %v968
        %v1207 = vunpack.c.h.b16 %v968
        %v1208 = vunpack.c.l.b16 %v969
        %v1209 = vunpack.c.h.b16 %v969
        %v1210 = vunpack.c.l.b16 %v970
        %v1211 = vunpack.c.h.b16 %v970
        %v1212 = vunpack.c.l.b16 %v971
        %v1213 = vunpack.c.h.b16 %v971
        %v1214 = vunpack.c.l.b16 %v972
        %v1215 = vunpack.c.h.b16 %v972
        %v1216 = vunpack.c.l.b16 %v973
        %v1217 = vunpack.c.h.b16 %v973
        %v1218 = vunpack.c.l.b16 %v974
        %v1219 = vunpack.c.h.b16 %v974
        %v1220 = vunpack.c.l.b16 %v975
        %v1221 = vunpack.c.h.b16 %v975
        %v1222 = vunpack.c.l.b16 %v976
        %v1223 = vunpack.c.h.b16 %v976
        %v1224 = vunpack.c.l.b16 %v977
        %v1225 = vunpack.c.h.b16 %v977
        %v1226 = vunpack.c.l.b16 %v978
        %v1227 = vunpack.c.h.b16 %v978
        %v1228 = vunpack.c.l.b16 %v979
        %v1229 = vunpack.c.h.b16 %v979
        %v1230 = vunpack.c.l.b16 %v980
        %v1231 = vunpack.c.h.b16 %v980
        %v1232 = vunpack.c.l.b16 %v981
        %v1233 = vunpack.c.h.b16 %v981
        %v1234 = vunpack.c.l.b16 %v982
        %v1235 = vunpack.c.h.b16 %v982
        %v1236 = vunpack.c.l.b16 %v983
        %v1237 = vunpack.c.h.b16 %v983
        %v1238 = vunpack.c.l.b16 %v984
        %v1239 = vunpack.c.h.b16 %v984
        %v1240 = vunpack.c.l.b16 %v985
        %v1241 = vunpack.c.h.b16 %v985
        %v1242 = vunpack.c.l.b16 %v986
        %v1243 = vunpack.c.h.b16 %v986
        %v1244 = vunpack.c.l.b16 %v987
        %v1245 = vunpack.c.h.b16 %v987
        %v1246 = vunpack.c.l.b16 %v988
        %v1247 = vunpack.c.h.b16 %v988
        %v1248 = vunpack.c.l.b16 %v989
        %v1249 = vunpack.c.h.b16 %v989
        %v1250 = vunpack.c.l.b16 %v990
        %v1251 = vunpack.c.h.b16 %v990
        %v1252 = vunpack.c.l.b16 %v991
        %v1253 = vunpack.c.h.b16 %v991
        %v1254 = vunpack.c.l.b16 %v992
        %v1255 = vunpack.c.h.b16 %v992
        %v1256 = vunpack.c.l.b16 %v993
        %v1257 = vunpack.c.h.b16 %v993
        %v1258 = vunpack.c.l.b16 %v994
        %v1259 = vunpack.c.h.b16 %v994
        %v1260 = vunpack.c.l.b16 %v995
        %v1261 = vunpack.c.h.b16 %v995
        %v1262 = vunpack.c.l.b16 %v996
        %v1263 = vunpack.c.h.b16 %v996
        %v1264 = vunpack.c.l.b16 %v997
        %v1265 = vunpack.c.h.b16 %v997
        %v1266 = vunpack.c.l.b16 %v998
        %v1267 = vunpack.c.h.b16 %v998
        %v1268 = vunpack.c.l.b16 %v999
        %v1269 = vunpack.c.h.b16 %v999
        %v1270 = vunpack.c.l.b16 %v1000
        %v1271 = vunpack.c.h.b16 %v1000
        %v1272 = vunpack.c.l.b16 %v1001
        %v1273 = vunpack.c.h.b16 %v1001
        %v1274 = vunpack.c.l.b16 %v1002
        %v1275 = vunpack.c.h.b16 %v1002
        %v1276 = vunpack.c.l.b16 %v1003
        %v1277 = vunpack.c.h.b16 %v1003
        %v1278 = vunpack.c.l.b16 %v1004
        %v1279 = vunpack.c.h.b16 %v1004
        %v1280 = vunpack.c.l.b16 %v1005
        %v1281 = vunpack.c.h.b16 %v1005
        %v1282 = vunpack.c.l.b16 %v1006
        %v1283 = vunpack.c.h.b16 %v1006
        %v1284 = vunpack.c.l.b16 %v1007
        %v1285 = vunpack.c.h.b16 %v1007
        %v1286 = vunpack.c.l.b16 %v1008
        %v1287 = vunpack.c.h.b16 %v1008
        %v1288 = vunpack.c.l.b16 %v1009
        %v1289 = vunpack.c.h.b16 %v1009
        %v1290 = vunpack.c.l.b16 %v1010
        %v1291 = vunpack.c.h.b16 %v1010
        %v1292 = vunpack.c.l.b16 %v1011
        %v1293 = vunpack.c.h.b16 %v1011
        %v1294 = vunpack.c.l.b16 %v1012
        %v1295 = vunpack.c.h.b16 %v1012
        %v1296 = vunpack.c.l.b16 %v1013
        %v1297 = vunpack.c.h.b16 %v1013
        %v1298 = vunpack.c.l.b16 %v1014
        %v1299 = vunpack.c.h.b16 %v1014
        %v1300 = vunpack.c.l.b16 %v1015
        %v1301 = vunpack.c.h.b16 %v1015
        %v1302 = vunpack.c.l.b16 %v1016
        %v1303 = vunpack.c.h.b16 %v1016
        %v1304 = vunpack.c.l.b16 %v1017
        %v1305 = vunpack.c.h.b16 %v1017
        %v1306 = vunpack.c.l.b16 %v1018
        %v1307 = vunpack.c.h.b16 %v1018
        %v1308 = vunpack.c.l.b16 %v1019
        %v1309 = vunpack.c.h.b16 %v1019
        %v1310 = vunpack.c.l.b16 %v1020
        %v1311 = vunpack.c.h.b16 %v1020
        %v1312 = vunpack.c.l.b16 %v1021
        %v1313 = vunpack.c.h.b16 %v1021
        %v1314 = vunpack.c.l.b16 %v1022
        %v1315 = vunpack.c.h.b16 %v1022
        %v1316 = vunpack.c.l.b16 %v1023
        %v1317 = vunpack.c.h.b16 %v1023
        %v1318 = vunpack.c.l.b16 %v1024
        %v1319 = vunpack.c.h.b16 %v1024
        %v1320 = vunpack.c.l.b16 %v1025
        %v1321 = vunpack.c.h.b16 %v1025
        %v1322 = vunpack.c.l.b16 %v1026
        %v1323 = vunpack.c.h.b16 %v1026
        %v1324 = vunpack.c.l.b16 %v1027
        %v1325 = vunpack.c.h.b16 %v1027
        %v1326 = vunpack.c.l.b16 %v1028
        %v1327 = vunpack.c.h.b16 %v1028
        %v1328 = vunpack.c.l.b16 %v1029
        %v1329 = vunpack.c.h.b16 %v1029
        %v1330 = vunpack.c.l.b16 %v1030
        %v1331 = vunpack.c.h.b16 %v1030
        %v1332 = vunpack.c.l.b16 %v1031
        %v1333 = vunpack.c.h.b16 %v1031
        %v1334 = vunpack.c.l.b16 %v1032
        %v1335 = vunpack.c.h.b16 %v1032
        %v1336 = vunpack.c.l.b16 %v1033
        %v1337 = vunpack.c.h.b16 %v1033
        %v1338 = vunpack.c.l.b16 %v1034
        %v1339 = vunpack.c.h.b16 %v1034
        %v1340 = vunpack.c.l.b16 %v1035
        %v1341 = vunpack.c.h.b16 %v1035
        %v1342 = vunpack.c.l.b16 %v1036
        %v1343 = vunpack.c.h.b16 %v1036
        %v1344 = vunpack.c.l.b16 %v1037
        %v1345 = vunpack.c.h.b16 %v1037
        %v1346 = vunpack.c.l.b16 %v1038
        %v1347 = vunpack.c.h.b16 %v1038
        %v1348 = vunpack.c.l.b16 %v1039
        %v1349 = vunpack.c.h.b16 %v1039
        %v1350 = vunpack.c.l.b16 %v1040
        %v1351 = vunpack.c.h.b16 %v1040
        %v1352 = vunpack.c.l.b16 %v1041
        %v1353 = vunpack.c.h.b16 %v1041
        %v1354 = vunpack.c.l.b16 %v1042
        %v1355 = vunpack.c.h.b16 %v1042
        %v1356 = vunpack.c.l.b16 %v1043
        %v1357 = vunpack.c.h.b16 %v1043
        %v1358 = vunpack.c.l.b16 %v1044
        %v1359 = vunpack.c.h.b16 %v1044
        %v1360 = vunpack.c.l.b16 %v1045
        %v1361 = vunpack.c.h.b16 %v1045
        %v1362 = vunpack.c.l.b16 %v1046
        %v1363 = vunpack.c.h.b16 %v1046
        %v1364 = vunpack.c.l.b16 %v1047
        %v1365 = vunpack.c.h.b16 %v1047
        %v1366 = vunpack.c.l.b16 %v1048
        %v1367 = vunpack.c.h.b16 %v1048
        %v1368 = vunpack.c.l.b16 %v1049
        %v1369 = vunpack.c.h.b16 %v1049
        %v1370 = vpack.c.b16 %v1184, %v1178
        %v1371 = vpack.c.b16 %v1185, %v1179
        %v1372 = vpack.c.b16 %v1186, %v1180
        %v1373 = vpack.c.b16 %v1187, %v1181
        %v1374 = vpack.c.b16 %v1188, %v1182
        %v1375 = vpack.c.b16 %v1189, %v1183
        %v1376 = vpack.c.b16 %v1196, %v1190
        %v1377 = vpack.c.b16 %v1197, %v1191
        %v1378 = vpack.c.b16 %v1198, %v1192
        %v1379 = vpack.c.b16 %v1199, %v1193
        %v1380 = vpack.c.b16 %v1200, %v1194
        %v1381 = vpack.c.b16 %v1201, %v1195
        %v1382 = vpack.c.b16 %v1208, %v1202
        %v1383 = vpack.c.b16 %v1209, %v1203
        %v1384 = vpack.c.b16 %v1210, %v1204
        %v1385 = vpack.c.b16 %v1211, %v1205
        %v1386 = vpack.c.b16 %v1212, %v1206
        %v1387 = vpack.c.b16 %v1213, %v1207
        %v1388 = vpack.c.b16 %v1220, %v1214
        %v1389 = vpack.c.b16 %v1221, %v1215
        %v1390 = vpack.c.b16 %v1222, %v1216
        %v1391 = vpack.c.b16 %v1223, %v1217
        %v1392 = vpack.c.b16 %v1224, %v1218
        %v1393 = vpack.c.b16 %v1225, %v1219
        %v1394 = vpack.c.b16 %v1232, %v1226
        %v1395 = vpack.c.b16 %v1233, %v1227
        %v1396 = vpack.c.b16 %v1234, %v1228
        %v1397 = vpack.c.b16 %v1235, %v1229
        %v1398 = vpack.c.b16 %v1236, %v1230
        %v1399 = vpack.c.b16 %v1237, %v1231
        %v1400 = vpack.c.b16 %v1244, %v1238
        %v1401 = vpack.c.b16 %v1245, %v1239
        %v1402 = vpack.c.b16 %v1246, %v1240
        %v1403 = vpack.c.b16 %v1247, %v1241
        %v1404 = vpack.c.b16 %v1248, %v1242
        %v1405 = vpack.c.b16 %v1249, %v1243
        %v1406 = vpack.c.b16 %v1256, %v1250
        %v1407 = vpack.c.b16 %v1257, %v1251
        %v1408 = vpack.c.b16 %v1258, %v1252
        %v1409 = vpack.c.b16 %v1259, %v1253
        %v1410 = vpack.c.b16 %v1260, %v1254
        %v1411 = vpack.c.b16 %v1261, %v1255
        %v1412 = vpack.c.b16 %v1268, %v1262
        %v1413 = vpack.c.b16 %v1269, %v1263
        %v1414 = vpack.c.b16 %v1270, %v1264
        %v1415 = vpack.c.b16 %v1271, %v1265
        %v1416 = vpack.c.b16 %v1272, %v1266
        %v1417 = vpack.c.b16 %v1273, %v1267
        %v1418 = vpack.c.b16 %v1280, %v1274
        %v1419 = vpack.c.b16 %v1281, %v1275
        %v1420 = vpack.c.b16 %v1282, %v1276
        %v1421 = vpack.c.b16 %v1283, %v1277
        %v1422 = vpack.c.b16 %v1284, %v1278
        %v1423 = vpack.c.b16 %v1285, %v1279
        %v1424 = vpack.c.b16 %v1292, %v1286
        %v1425 = vpack.c.b16 %v1293, %v1287
        %v1426 = vpack.c.b16 %v1294, %v1288
        %v1427 = vpack.c.b16 %v1295, %v1289
        %v1428 = vpack.c.b16 %v1296, %v1290
        %v1429 = vpack.c.b16 %v1297, %v1291
        %v1430 = vpack.c.b16 %v1304, %v1298
        %v1431 = vpack.c.b16 %v1305, %v1299
        %v1432 = vpack.c.b16 %v1306, %v1300
        %v1433 = vpack.c.b16 %v1307, %v1301
        %v1434 = vpack.c.b16 %v1308, %v1302
        %v1435 = vpack.c.b16 %v1309, %v1303
        %v1436 = vpack.c.b16 %v1316, %v1310
        %v1437 = vpack.c.b16 %v1317, %v1311
        %v1438 = vpack.c.b16 %v1318, %v1312
        %v1439 = vpack.c.b16 %v1319, %v1313
        %v1440 = vpack.c.b16 %v1320, %v1314
        %v1441 = vpack.c.b16 %v1321, %v1315
        %v1442 = vpack.c.b16 %v1328, %v1322
        %v1443 = vpack.c.b16 %v1329, %v1323
        %v1444 = vpack.c.b16 %v1330, %v1324
        %v1445 = vpack.c.b16 %v1331, %v1325
        %v1446 = vpack.c.b16 %v1332, %v1326
        %v1447 = vpack.c.b16 %v1333, %v1327
        %v1448 = vpack.c.b16 %v1340, %v1334
        %v1449 = vpack.c.b16 %v1341, %v1335
        %v1450 = vpack.c.b16 %v1342, %v1336
        %v1451 = vpack.c.b16 %v1343, %v1337
        %v1452 = vpack.c.b16 %v1344, %v1338
        %v1453 = vpack.c.b16 %v1345, %v1339
        %v1454 = vpack.c.b16 %v1352, %v1346
        %v1455 = vpack.c.b16 %v1353, %v1347
        %v1456 = vpack.c.b16 %v1354, %v1348
        %v1457 = vpack.c.b16 %v1355, %v1349
        %v1458 = vpack.c.b16 %v1356, %v1350
        %v1459 = vpack.c.b16 %v1357, %v1351
        %v1460 = vpack.c.b16 %v1364, %v1358
        %v1461 = vpack.c.b16 %v1365, %v1359
        %v1462 = vpack.c.b16 %v1366, %v1360
        %v1463 = vpack.c.b16 %v1367, %v1361
        %v1464 = vpack.c.b16 %v1368, %v1362
        %v1465 = vpack.c.b16 %v1369, %v1363
        %1562 = vmatprep.subr.bf16.mxu0 %v1413
        %1563 = vmatpush1.bf16.msra.mxu0 %v1412
        %1564 = vmatprep.subr.bf16.mxu0 %v1407
        %1565 = vmatpush1.bf16.msra.mxu0 %v1406
        %1566 = vmatprep.subr.bf16.mxu0 %v1401
        %1567 = vmatpush1.bf16.msra.mxu0 %v1400
        %1568 = vmatprep.subr.bf16.mxu0 %v1395
        %1569 = vmatpush1.bf16.msra.mxu0 %v1394
        %1570 = vmatprep.subr.bf16.mxu0 %v1389
        %1571 = vmatpush1.bf16.msra.mxu0 %v1388
        %1572 = vmatprep.subr.bf16.mxu0 %v1383
        %1573 = vmatpush1.bf16.msra.mxu0 %v1382
        %1574 = vmatprep.subr.bf16.mxu0 %v1377
        %1575 = vmatpush1.bf16.msra.mxu0 %v1376
        %1576 = vmatprep.subr.bf16.mxu0 %v1371
        %1577 = vmatpush1.bf16.msra.mxu0 %v1370
        %1578 = vmatprep.subr.bf16.mxu0 %v1461
        %1579 = vmatpush2.bf16.msra.mxu0 %v1460
        %1580 = vmatprep.subr.bf16.mxu0 %v1455
        %1581 = vmatpush2.bf16.msra.mxu0 %v1454
        %1582 = vmatprep.subr.bf16.mxu0 %v1449
        %1583 = vmatpush2.bf16.msra.mxu0 %v1448
        %1584 = vmatprep.subr.bf16.mxu0 %v1443
        %1585 = vmatpush2.bf16.msra.mxu0 %v1442
        %1586 = vmatprep.subr.bf16.mxu0 %v1437
        %1587 = vmatpush2.bf16.msra.mxu0 %v1436
        %1588 = vmatprep.subr.bf16.mxu0 %v1431
        %1589 = vmatpush2.bf16.msra.mxu0 %v1430
        %1590 = vmatprep.subr.bf16.mxu0 %v1425
        %1591 = vmatpush2.bf16.msra.mxu0 %v1424
        %1592 = vmatprep.subr.bf16.mxu0 %v1419
        %1593 = vmatpush2.bf16.msra.mxu0 %v1418
        %1594 = vmatprep.mubr.bf16.mxu0 %v953
        %1595 = vmatmul.mubr.bf16.gmra.mxu0 %v952
        %v1596 = vpop.f32.mrf.mxu0
        %v1597 = vadd.f32 %v1055, %v1596
        %v1598 = vpop.f32.mrf.mxu0
        %v1599 = vadd.f32 %v1059, %v1598
        %v1600 = vpop.f32.mrf.mxu0
        %v1601 = vpop.f32.mrf.mxu0
        %1602 = vdwg.mxu0
        %1603 = vmatprep.subr.bf16.mxu0 %v1415
        %1604 = vmatpush1.bf16.msra.mxu0 %v1414
        %1605 = vmatprep.subr.bf16.mxu0 %v1409
        %1606 = vmatpush1.bf16.msra.mxu0 %v1408
        %1607 = vmatprep.subr.bf16.mxu0 %v1403
        %1608 = vmatpush1.bf16.msra.mxu0 %v1402
        %1609 = vmatprep.subr.bf16.mxu0 %v1397
        %1610 = vmatpush1.bf16.msra.mxu0 %v1396
        %1611 = vmatprep.subr.bf16.mxu0 %v1391
        %1612 = vmatpush1.bf16.msra.mxu0 %v1390
        %1613 = vmatprep.subr.bf16.mxu0 %v1385
        %1614 = vmatpush1.bf16.msra.mxu0 %v1384
        %1615 = vmatprep.subr.bf16.mxu0 %v1379
        %1616 = vmatpush1.bf16.msra.mxu0 %v1378
        %1617 = vmatprep.subr.bf16.mxu0 %v1373
        %1618 = vmatpush1.bf16.msra.mxu0 %v1372
        %1619 = vmatprep.subr.bf16.mxu0 %v1463
        %1620 = vmatpush2.bf16.msra.mxu0 %v1462
        %1621 = vmatprep.subr.bf16.mxu0 %v1457
        %1622 = vmatpush2.bf16.msra.mxu0 %v1456
        %1623 = vmatprep.subr.bf16.mxu0 %v1451
        %1624 = vmatpush2.bf16.msra.mxu0 %v1450
        %1625 = vmatprep.subr.bf16.mxu0 %v1445
        %1626 = vmatpush2.bf16.msra.mxu0 %v1444
        %1627 = vmatprep.subr.bf16.mxu0 %v1439
        %1628 = vmatpush2.bf16.msra.mxu0 %v1438
        %1629 = vmatprep.subr.bf16.mxu0 %v1433
        %1630 = vmatpush2.bf16.msra.mxu0 %v1432
        %1631 = vmatprep.subr.bf16.mxu0 %v1427
        %1632 = vmatpush2.bf16.msra.mxu0 %v1426
        %1633 = vmatprep.subr.bf16.mxu0 %v1421
        %1634 = vmatpush2.bf16.msra.mxu0 %v1420
        %1635 = vmatprep.mubr.bf16.mxu0 %v953
        %1636 = vmatmul.mubr.bf16.gmra.mxu0 %v952
        %v1637 = vpop.f32.mrf.mxu0
        %v1638 = vadd.f32 %v1063, %v1637
        %v1639 = vpop.f32.mrf.mxu0
        %v1640 = vadd.f32 %v1067, %v1639
        %v1641 = vpop.f32.mrf.mxu0
        %v1642 = vpop.f32.mrf.mxu0
        %1643 = vdwg.mxu0
        %1644 = vmatprep.subr.bf16.mxu0 %v1417
        %1645 = vmatpush1.bf16.msra.mxu0 %v1416
        %1646 = vmatprep.subr.bf16.mxu0 %v1411
        %1647 = vmatpush1.bf16.msra.mxu0 %v1410
        %1648 = vmatprep.subr.bf16.mxu0 %v1405
        %1649 = vmatpush1.bf16.msra.mxu0 %v1404
        %1650 = vmatprep.subr.bf16.mxu0 %v1399
        %1651 = vmatpush1.bf16.msra.mxu0 %v1398
        %1652 = vmatprep.subr.bf16.mxu0 %v1393
        %1653 = vmatpush1.bf16.msra.mxu0 %v1392
        %1654 = vmatprep.subr.bf16.mxu0 %v1387
        %1655 = vmatpush1.bf16.msra.mxu0 %v1386
        %1656 = vmatprep.subr.bf16.mxu0 %v1381
        %1657 = vmatpush1.bf16.msra.mxu0 %v1380
        %1658 = vmatprep.subr.bf16.mxu0 %v1375
        %1659 = vmatpush1.bf16.msra.mxu0 %v1374
        %1660 = vmatprep.subr.bf16.mxu0 %v1465
        %1661 = vmatpush2.bf16.msra.mxu0 %v1464
        %1662 = vmatprep.subr.bf16.mxu0 %v1459
        %1663 = vmatpush2.bf16.msra.mxu0 %v1458
        %1664 = vmatprep.subr.bf16.mxu0 %v1453
        %1665 = vmatpush2.bf16.msra.mxu0 %v1452
        %1666 = vmatprep.subr.bf16.mxu0 %v1447
        %1667 = vmatpush2.bf16.msra.mxu0 %v1446
        %1668 = vmatprep.subr.bf16.mxu0 %v1441
        %1669 = vmatpush2.bf16.msra.mxu0 %v1440
        %1670 = vmatprep.subr.bf16.mxu0 %v1435
        %1671 = vmatpush2.bf16.msra.mxu0 %v1434
        %1672 = vmatprep.subr.bf16.mxu0 %v1429
        %1673 = vmatpush2.bf16.msra.mxu0 %v1428
        %1674 = vmatprep.subr.bf16.mxu0 %v1423
        %1675 = vmatpush2.bf16.msra.mxu0 %v1422
        %1676 = vmatprep.mubr.bf16.mxu0 %v953
        %1677 = vmatmul.mubr.bf16.gmra.mxu0 %v952
        %v1678 = vpop.f32.mrf.mxu0
        %v1679 = vadd.f32 %v1071, %v1678
        %v1680 = vpop.f32.mrf.mxu0
        %v1681 = vadd.f32 %v1075, %v1680
        %v1682 = vpop.f32.mrf.mxu0
        %v1683 = vpop.f32.mrf.mxu0
        %1684 = vdwg.mxu0
        %v1685 = vld [vmem:[#allocation13] sm:$0xff]
        %v1686 = vld [vmem:[#allocation13 + $0x8] sm:$0xff]
        %v1687 = vld [vmem:[#allocation13 + $0x10] sm:$0xff]
        %v1688 = vld [vmem:[#allocation13 + $0x18] sm:$0xff]
        %v1689 = vld [vmem:[#allocation13 + $0x20] sm:$0xff]
        %v1690 = vld [vmem:[#allocation13 + $0x28] sm:$0xff]
        %v1691 = vld [vmem:[#allocation13 + $0x30] sm:$0xff]
        %v1692 = vld [vmem:[#allocation13 + $0x38] sm:$0xff]
        %v1693 = vld [vmem:[#allocation13 + $0x40] sm:$0xff]
        %v1694 = vld [vmem:[#allocation13 + $0x48] sm:$0xff]
        %v1695 = vld [vmem:[#allocation13 + $0x50] sm:$0xff]
        %v1696 = vld [vmem:[#allocation13 + $0x58] sm:$0xff]
        %v1697 = vld [vmem:[#allocation13 + $0x60] sm:$0xff]
        %v1698 = vld [vmem:[#allocation13 + $0x68] sm:$0xff]
        %v1699 = vld [vmem:[#allocation13 + $0x70] sm:$0xff]
        %v1700 = vld [vmem:[#allocation13 + $0x78] sm:$0xff]
        %v1701 = vld [vmem:[#allocation13 + $0x80] sm:$0xff]
        %v1702 = vld [vmem:[#allocation13 + $0x88] sm:$0xff]
        %v1703 = vld [vmem:[#allocation13 + $0x90] sm:$0xff]
        %v1704 = vld [vmem:[#allocation13 + $0x98] sm:$0xff]
        %v1705 = vld [vmem:[#allocation13 + $0xa0] sm:$0xff]
        %v1706 = vld [vmem:[#allocation13 + $0xa8] sm:$0xff]
        %v1707 = vld [vmem:[#allocation13 + $0xb0] sm:$0xff]
        %v1708 = vld [vmem:[#allocation13 + $0xb8] sm:$0xff]
        %v1709 = vld [vmem:[#allocation13 + $0xc0] sm:$0xff]
        %v1710 = vld [vmem:[#allocation13 + $0xc8] sm:$0xff]
        %v1711 = vld [vmem:[#allocation13 + $0xd0] sm:$0xff]
        %v1712 = vld [vmem:[#allocation13 + $0xd8] sm:$0xff]
        %v1713 = vld [vmem:[#allocation13 + $0xe0] sm:$0xff]
        %v1714 = vld [vmem:[#allocation13 + $0xe8] sm:$0xff]
        %v1715 = vld [vmem:[#allocation13 + $0xf0] sm:$0xff]
        %v1716 = vld [vmem:[#allocation13 + $0xf8] sm:$0xff]
        %v1717 = vpack.c.bf16 %v1597, %v1597
        %v1718 = vpack.c.bf16 %v1638, %v1638
        %1719 = vmatprep.subr.bf16.mxu0 0
        %1720 = vmatpush1.bf16.xpose.msra.mxu0 0
        %1721 = vmatprep.subr.bf16.mxu0 0
        %1722 = vmatpush1.bf16.xpose.msra.mxu0 0
        %1723 = vmatprep.subr.bf16.mxu0 0
        %1724 = vmatpush1.bf16.xpose.msra.mxu0 0
        %1725 = vmatprep.subr.bf16.mxu0 0
        %1726 = vmatpush1.bf16.xpose.msra.mxu0 0
        %1727 = vmatprep.subr.bf16.mxu0 0
        %1728 = vmatpush1.bf16.xpose.msra.mxu0 0
        %1729 = vmatprep.subr.bf16.mxu0 0
        %1730 = vmatpush1.bf16.xpose.msra.mxu0 0
        %1731 = vmatprep.subr.bf16.mxu0 0
        %1732 = vmatpush1.bf16.xpose.msra.mxu0 0
        %1733 = vmatprep.subr.bf16.mxu0 0
        %1734 = vmatpush1.bf16.xpose.msra.mxu0 %v1718
        %1735 = vmatprep.subr.bf16.mxu0 0
        %1736 = vmatpush2.bf16.xpose.msra.mxu0 0
        %1737 = vmatprep.subr.bf16.mxu0 0
        %1738 = vmatpush2.bf16.xpose.msra.mxu0 0
        %1739 = vmatprep.subr.bf16.mxu0 0
        %1740 = vmatpush2.bf16.xpose.msra.mxu0 0
        %1741 = vmatprep.subr.bf16.mxu0 0
        %1742 = vmatpush2.bf16.xpose.msra.mxu0 0
        %1743 = vmatprep.subr.bf16.mxu0 0
        %1744 = vmatpush2.bf16.xpose.msra.mxu0 0
        %1745 = vmatprep.subr.bf16.mxu0 0
        %1746 = vmatpush2.bf16.xpose.msra.mxu0 0
        %1747 = vmatprep.subr.bf16.mxu0 0
        %1748 = vmatpush2.bf16.xpose.msra.mxu0 0
        %1749 = vmatprep.subr.bf16.mxu0 0
        %1750 = vmatpush2.bf16.xpose.msra.mxu0 0
        %1751 = vmatprep.mubr.bf16.mxu0 0
        %1752 = vmatmul.mubr.bf16.gmra.mxu0 %v1717
        %v1753 = vpop.f32.mrf.mxu0
        %v1754 = vadd.f32 0.0, %v1753
        %v1755 = vpop.f32.mrf.mxu0
        %v1756 = vpop.f32.mrf.mxu0
        %v1757 = vpop.f32.mrf.mxu0
        %1758 = vdwg.mxu0
        %v1759 = vmul.f32 %v1754, 0.088388346
        %v1761 = vlaneseq
        %v1762 = vshrl.u32 %v1761, 7
        %v1763 = vsub.s32 0, %v1762
        %v1764 = vrot.slane %v951, %v1763
        %v1766 = vadd.f32 %v1759, %v1764
        %vm1767 = vcmask 64512
        %v1768 = vsel %vm1767, %v1766, -inf
        %1769 = vmax.xlane.f32.xlu0 %v1768
        %v1770 = vpop.xlane.xlu0 %1769
        %v1771 = vsub.f32 %v1766, %v1770
        %v1772 = vmul.f32 %v1771, 1.442695
        %v1773 = vpow.pop %v1772
        %v1774 = vsel %vm1767, %v1773, 0.0
        %1775 = vadd.xlane.f32.xlu0 %v1774
        %v1776 = vpop.xlane.xlu0 %1775
        %v1777 = vrcp.pop %v1776
        %v1778 = vmul.f32 %v1773, %v1777
        %v1779 = vpack.c.bf16 %v1778, %v1778
        %v1780 = vpack.c.bf16 %v1679, %v1679
        %v1782 = vsel %vm1767, %v1779, 0
        %vm1784 = vcmask 1043456
        %v1786 = vsel %vm1784, %v1780, 0
        %1788 = vmatprep.subr.bf16.mxu0 0
        %1789 = vmatpush1.bf16.msra.mxu0 0
        %1790 = vmatprep.subr.bf16.mxu0 0
        %1791 = vmatpush1.bf16.msra.mxu0 0
        %1792 = vmatprep.subr.bf16.mxu0 0
        %1793 = vmatpush1.bf16.msra.mxu0 0
        %1794 = vmatprep.subr.bf16.mxu0 0
        %1795 = vmatpush1.bf16.msra.mxu0 0
        %1796 = vmatprep.subr.bf16.mxu0 0
        %1797 = vmatpush1.bf16.msra.mxu0 0
        %1798 = vmatprep.subr.bf16.mxu0 0
        %1799 = vmatpush1.bf16.msra.mxu0 0
        %1800 = vmatprep.subr.bf16.mxu0 0
        %1801 = vmatpush1.bf16.msra.mxu0 0
        %1802 = vmatprep.subr.bf16.mxu0 0
        %1803 = vmatpush1.bf16.msra.mxu0 %v1786
        %1804 = vmatprep.subr.bf16.mxu0 0
        %1805 = vmatpush2.bf16.msra.mxu0 0
        %1806 = vmatprep.subr.bf16.mxu0 0
        %1807 = vmatpush2.bf16.msra.mxu0 0
        %1808 = vmatprep.subr.bf16.mxu0 0
        %1809 = vmatpush2.bf16.msra.mxu0 0
        %1810 = vmatprep.subr.bf16.mxu0 0
        %1811 = vmatpush2.bf16.msra.mxu0 0
        %1812 = vmatprep.subr.bf16.mxu0 0
        %1813 = vmatpush2.bf16.msra.mxu0 0
        %1814 = vmatprep.subr.bf16.mxu0 0
        %1815 = vmatpush2.bf16.msra.mxu0 0
        %1816 = vmatprep.subr.bf16.mxu0 0
        %1817 = vmatpush2.bf16.msra.mxu0 0
        %1818 = vmatprep.subr.bf16.mxu0 0
        %1819 = vmatpush2.bf16.msra.mxu0 0
        %1820 = vmatprep.mubr.bf16.mxu0 0
        %1821 = vmatmul.mubr.bf16.gmra.mxu0 %v1782
        %v1822 = vpop.f32.mrf.mxu0
        %v1823 = vadd.f32 0.0, %v1822
        %v1824 = vpop.f32.mrf.mxu0
        %v1825 = vpop.f32.mrf.mxu0
        %v1826 = vpop.f32.mrf.mxu0
        %1827 = vdwg.mxu0
        %v1828 = vpack.c.bf16 %v1823, %v1823
        %v1829 = vpack.c.bf16 %v1599, %v1599
        %v1830 = vpack.c.bf16 %v1640, %v1640
        %1831 = vmatprep.subr.bf16.mxu0 0
        %1832 = vmatpush1.bf16.xpose.msra.mxu0 0
        %1833 = vmatprep.subr.bf16.mxu0 0
        %1834 = vmatpush1.bf16.xpose.msra.mxu0 0
        %1835 = vmatprep.subr.bf16.mxu0 0
        %1836 = vmatpush1.bf16.xpose.msra.mxu0 0
        %1837 = vmatprep.subr.bf16.mxu0 0
        %1838 = vmatpush1.bf16.xpose.msra.mxu0 0
        %1839 = vmatprep.subr.bf16.mxu0 0
        %1840 = vmatpush1.bf16.xpose.msra.mxu0 0
        %1841 = vmatprep.subr.bf16.mxu0 0
        %1842 = vmatpush1.bf16.xpose.msra.mxu0 0
        %1843 = vmatprep.subr.bf16.mxu0 0
        %1844 = vmatpush1.bf16.xpose.msra.mxu0 0
        %1845 = vmatprep.subr.bf16.mxu0 0
        %1846 = vmatpush1.bf16.xpose.msra.mxu0 %v1830
        %1847 = vmatprep.subr.bf16.mxu0 0
        %1848 = vmatpush2.bf16.xpose.msra.mxu0 0
        %1849 = vmatprep.subr.bf16.mxu0 0
        %1850 = vmatpush2.bf16.xpose.msra.mxu0 0
        %1851 = vmatprep.subr.bf16.mxu0 0
        %1852 = vmatpush2.bf16.xpose.msra.mxu0 0
        %1853 = vmatprep.subr.bf16.mxu0 0
        %1854 = vmatpush2.bf16.xpose.msra.mxu0 0
        %1855 = vmatprep.subr.bf16.mxu0 0
        %1856 = vmatpush2.bf16.xpose.msra.mxu0 0
        %1857 = vmatprep.subr.bf16.mxu0 0
        %1858 = vmatpush2.bf16.xpose.msra.mxu0 0
        %1859 = vmatprep.subr.bf16.mxu0 0
        %1860 = vmatpush2.bf16.xpose.msra.mxu0 0
        %1861 = vmatprep.subr.bf16.mxu0 0
        %1862 = vmatpush2.bf16.xpose.msra.mxu0 0
        %1863 = vmatprep.mubr.bf16.mxu0 0
        %1864 = vmatmul.mubr.bf16.gmra.mxu0 %v1829
        %v1865 = vpop.f32.mrf.mxu0
        %v1866 = vadd.f32 0.0, %v1865
        %v1867 = vpop.f32.mrf.mxu0
        %v1868 = vpop.f32.mrf.mxu0
        %v1869 = vpop.f32.mrf.mxu0
        %1870 = vdwg.mxu0
        %v1871 = vmul.f32 %v1866, 0.088388346
        %v1872 = vadd.f32 %v1871, %v1764
        %v1873 = vsel %vm1767, %v1872, -inf
        %1874 = vmax.xlane.f32.xlu0 %v1873
        %v1875 = vpop.xlane.xlu0 %1874
        %v1876 = vsub.f32 %v1872, %v1875
        %v1877 = vmul.f32 %v1876, 1.442695
        %v1878 = vpow.pop %v1877
        %v1879 = vsel %vm1767, %v1878, 0.0
        %1880 = vadd.xlane.f32.xlu0 %v1879
        %v1881 = vpop.xlane.xlu0 %1880
        %v1882 = vrcp.pop %v1881
        %v1883 = vmul.f32 %v1878, %v1882
        %v1884 = vpack.c.bf16 %v1883, %v1883
        %v1885 = vpack.c.bf16 %v1681, %v1681
        %v1887 = vsel %vm1767, %v1884, 0
        %v1890 = vsel %vm1784, %v1885, 0
        %1892 = vmatprep.subr.bf16.mxu0 0
        %1893 = vmatpush1.bf16.msra.mxu0 0
        %1894 = vmatprep.subr.bf16.mxu0 0
        %1895 = vmatpush1.bf16.msra.mxu0 0
        %1896 = vmatprep.subr.bf16.mxu0 0
        %1897 = vmatpush1.bf16.msra.mxu0 0
        %1898 = vmatprep.subr.bf16.mxu0 0
        %1899 = vmatpush1.bf16.msra.mxu0 0
        %1900 = vmatprep.subr.bf16.mxu0 0
        %1901 = vmatpush1.bf16.msra.mxu0 0
        %1902 = vmatprep.subr.bf16.mxu0 0
        %1903 = vmatpush1.bf16.msra.mxu0 0
        %1904 = vmatprep.subr.bf16.mxu0 0
        %1905 = vmatpush1.bf16.msra.mxu0 0
        %1906 = vmatprep.subr.bf16.mxu0 0
        %1907 = vmatpush1.bf16.msra.mxu0 %v1890
        %1908 = vmatprep.subr.bf16.mxu0 0
        %1909 = vmatpush2.bf16.msra.mxu0 0
        %1910 = vmatprep.subr.bf16.mxu0 0
        %1911 = vmatpush2.bf16.msra.mxu0 0
        %1912 = vmatprep.subr.bf16.mxu0 0
        %1913 = vmatpush2.bf16.msra.mxu0 0
        %1914 = vmatprep.subr.bf16.mxu0 0
        %1915 = vmatpush2.bf16.msra.mxu0 0
        %1916 = vmatprep.subr.bf16.mxu0 0
        %1917 = vmatpush2.bf16.msra.mxu0 0
        %1918 = vmatprep.subr.bf16.mxu0 0
        %1919 = vmatpush2.bf16.msra.mxu0 0
        %1920 = vmatprep.subr.bf16.mxu0 0
        %1921 = vmatpush2.bf16.msra.mxu0 0
        %1922 = vmatprep.subr.bf16.mxu0 0
        %1923 = vmatpush2.bf16.msra.mxu0 0
        %1924 = vmatprep.mubr.bf16.mxu0 0
        %1925 = vmatmul.mubr.bf16.gmra.mxu0 %v1887
        %v1926 = vpop.f32.mrf.mxu0
        %v1927 = vadd.f32 0.0, %v1926
        %v1928 = vpop.f32.mrf.mxu0
        %v1929 = vpop.f32.mrf.mxu0
        %v1930 = vpop.f32.mrf.mxu0
        %1931 = vdwg.mxu0
        %v1932 = vpack.c.bf16 %v1927, %v1927
        %v1949 = vunpack.c.l.b16 %v1701
        %v1950 = vunpack.c.h.b16 %v1701
        %v1951 = vunpack.c.l.b16 %v1702
        %v1952 = vunpack.c.h.b16 %v1702
        %v1953 = vunpack.c.l.b16 %v1703
        %v1954 = vunpack.c.h.b16 %v1703
        %v1955 = vunpack.c.l.b16 %v1704
        %v1956 = vunpack.c.h.b16 %v1704
        %v1957 = vunpack.c.l.b16 %v1705
        %v1958 = vunpack.c.h.b16 %v1705
        %v1959 = vunpack.c.l.b16 %v1706
        %v1960 = vunpack.c.h.b16 %v1706
        %v1961 = vunpack.c.l.b16 %v1707
        %v1962 = vunpack.c.h.b16 %v1707
        %v1963 = vunpack.c.l.b16 %v1708
        %v1964 = vunpack.c.h.b16 %v1708
        %v1965 = vunpack.c.l.b16 %v1709
        %v1966 = vunpack.c.h.b16 %v1709
        %v1967 = vunpack.c.l.b16 %v1710
        %v1968 = vunpack.c.h.b16 %v1710
        %v1969 = vunpack.c.l.b16 %v1711
        %v1970 = vunpack.c.h.b16 %v1711
        %v1971 = vunpack.c.l.b16 %v1712
        %v1972 = vunpack.c.h.b16 %v1712
        %v1973 = vunpack.c.l.b16 %v1713
        %v1974 = vunpack.c.h.b16 %v1713
        %v1975 = vunpack.c.l.b16 %v1714
        %v1976 = vunpack.c.h.b16 %v1714
        %v1977 = vunpack.c.l.b16 %v1715
        %v1978 = vunpack.c.h.b16 %v1715
        %v1979 = vunpack.c.l.b16 %v1716
        %v1980 = vunpack.c.h.b16 %v1716
        %v1981 = vpack.c.b16 %v1951, %v1949
        %v1982 = vpack.c.b16 %v1952, %v1950
        %v1983 = vpack.c.b16 %v1955, %v1953
        %v1984 = vpack.c.b16 %v1956, %v1954
        %v1985 = vpack.c.b16 %v1959, %v1957
        %v1986 = vpack.c.b16 %v1960, %v1958
        %v1987 = vpack.c.b16 %v1963, %v1961
        %v1988 = vpack.c.b16 %v1964, %v1962
        %v1989 = vpack.c.b16 %v1967, %v1965
        %v1990 = vpack.c.b16 %v1968, %v1966
        %v1991 = vpack.c.b16 %v1971, %v1969
        %v1992 = vpack.c.b16 %v1972, %v1970
        %v1993 = vpack.c.b16 %v1975, %v1973
        %v1994 = vpack.c.b16 %v1976, %v1974
        %v1995 = vpack.c.b16 %v1979, %v1977
        %v1996 = vpack.c.b16 %v1980, %v1978
        %2013 = vmatprep.subr.bf16.mxu0 %v1996
        %2014 = vmatpush1.bf16.msra.mxu0 %v1995
        %2015 = vmatprep.subr.bf16.mxu0 %v1994
        %2016 = vmatpush1.bf16.msra.mxu0 %v1993
        %2017 = vmatprep.subr.bf16.mxu0 %v1992
        %2018 = vmatpush1.bf16.msra.mxu0 %v1991
        %2019 = vmatprep.subr.bf16.mxu0 %v1990
        %2020 = vmatpush1.bf16.msra.mxu0 %v1989
        %2021 = vmatprep.subr.bf16.mxu0 %v1988
        %2022 = vmatpush1.bf16.msra.mxu0 %v1987
        %2023 = vmatprep.subr.bf16.mxu0 %v1986
        %2024 = vmatpush1.bf16.msra.mxu0 %v1985
        %2025 = vmatprep.subr.bf16.mxu0 %v1984
        %2026 = vmatpush1.bf16.msra.mxu0 %v1983
        %2027 = vmatprep.subr.bf16.mxu0 %v1982
        %2028 = vmatpush1.bf16.msra.mxu0 %v1981
        %2029 = vmatprep.subr.bf16.mxu0 0
        %2030 = vmatpush2.bf16.msra.mxu0 0
        %2031 = vmatprep.subr.bf16.mxu0 0
        %2032 = vmatpush2.bf16.msra.mxu0 0
        %2033 = vmatprep.subr.bf16.mxu0 0
        %2034 = vmatpush2.bf16.msra.mxu0 0
        %2035 = vmatprep.subr.bf16.mxu0 0
        %2036 = vmatpush2.bf16.msra.mxu0 0
        %2037 = vmatprep.subr.bf16.mxu0 0
        %2038 = vmatpush2.bf16.msra.mxu0 0
        %2039 = vmatprep.subr.bf16.mxu0 0
        %2040 = vmatpush2.bf16.msra.mxu0 0
        %2041 = vmatprep.subr.bf16.mxu0 0
        %2042 = vmatpush2.bf16.msra.mxu0 0
        %2043 = vmatprep.subr.bf16.mxu0 0
        %2044 = vmatpush2.bf16.msra.mxu0 0
        %2045 = vmatprep.mubr.bf16.mxu0 0
        %2046 = vmatmul.mubr.bf16.gmra.mxu0 %v1932
        %v2047 = vpop.f32.mrf.mxu0
        %v2048 = vadd.f32 0.0, %v2047
        %v2049 = vpop.f32.mrf.mxu0
        %v2050 = vadd.f32 0.0, %v2049
        %v2051 = vpop.f32.mrf.mxu0
        %v2052 = vpop.f32.mrf.mxu0
        %2053 = vdwg.mxu0
        %v2070 = vunpack.c.l.b16 %v1685
        %v2071 = vunpack.c.h.b16 %v1685
        %v2072 = vunpack.c.l.b16 %v1686
        %v2073 = vunpack.c.h.b16 %v1686
        %v2074 = vunpack.c.l.b16 %v1687
        %v2075 = vunpack.c.h.b16 %v1687
        %v2076 = vunpack.c.l.b16 %v1688
        %v2077 = vunpack.c.h.b16 %v1688
        %v2078 = vunpack.c.l.b16 %v1689
        %v2079 = vunpack.c.h.b16 %v1689
        %v2080 = vunpack.c.l.b16 %v1690
        %v2081 = vunpack.c.h.b16 %v1690
        %v2082 = vunpack.c.l.b16 %v1691
        %v2083 = vunpack.c.h.b16 %v1691
        %v2084 = vunpack.c.l.b16 %v1692
        %v2085 = vunpack.c.h.b16 %v1692
        %v2086 = vunpack.c.l.b16 %v1693
        %v2087 = vunpack.c.h.b16 %v1693
        %v2088 = vunpack.c.l.b16 %v1694
        %v2089 = vunpack.c.h.b16 %v1694
        %v2090 = vunpack.c.l.b16 %v1695
        %v2091 = vunpack.c.h.b16 %v1695
        %v2092 = vunpack.c.l.b16 %v1696
        %v2093 = vunpack.c.h.b16 %v1696
        %v2094 = vunpack.c.l.b16 %v1697
        %v2095 = vunpack.c.h.b16 %v1697
        %v2096 = vunpack.c.l.b16 %v1698
        %v2097 = vunpack.c.h.b16 %v1698
        %v2098 = vunpack.c.l.b16 %v1699
        %v2099 = vunpack.c.h.b16 %v1699
        %v2100 = vunpack.c.l.b16 %v1700
        %v2101 = vunpack.c.h.b16 %v1700
        %v2102 = vpack.c.b16 %v2072, %v2070
        %v2103 = vpack.c.b16 %v2073, %v2071
        %v2104 = vpack.c.b16 %v2076, %v2074
        %v2105 = vpack.c.b16 %v2077, %v2075
        %v2106 = vpack.c.b16 %v2080, %v2078
        %v2107 = vpack.c.b16 %v2081, %v2079
        %v2108 = vpack.c.b16 %v2084, %v2082
        %v2109 = vpack.c.b16 %v2085, %v2083
        %v2110 = vpack.c.b16 %v2088, %v2086
        %v2111 = vpack.c.b16 %v2089, %v2087
        %v2112 = vpack.c.b16 %v2092, %v2090
        %v2113 = vpack.c.b16 %v2093, %v2091
        %v2114 = vpack.c.b16 %v2096, %v2094
        %v2115 = vpack.c.b16 %v2097, %v2095
        %v2116 = vpack.c.b16 %v2100, %v2098
        %v2117 = vpack.c.b16 %v2101, %v2099
        %2134 = vmatprep.subr.bf16.mxu0 %v2117
        %2135 = vmatpush1.bf16.msra.mxu0 %v2116
        %2136 = vmatprep.subr.bf16.mxu0 %v2115
        %2137 = vmatpush1.bf16.msra.mxu0 %v2114
        %2138 = vmatprep.subr.bf16.mxu0 %v2113
        %2139 = vmatpush1.bf16.msra.mxu0 %v2112
        %2140 = vmatprep.subr.bf16.mxu0 %v2111
        %2141 = vmatpush1.bf16.msra.mxu0 %v2110
        %2142 = vmatprep.subr.bf16.mxu0 %v2109
        %2143 = vmatpush1.bf16.msra.mxu0 %v2108
        %2144 = vmatprep.subr.bf16.mxu0 %v2107
        %2145 = vmatpush1.bf16.msra.mxu0 %v2106
        %2146 = vmatprep.subr.bf16.mxu0 %v2105
        %2147 = vmatpush1.bf16.msra.mxu0 %v2104
        %2148 = vmatprep.subr.bf16.mxu0 %v2103
        %2149 = vmatpush1.bf16.msra.mxu0 %v2102
        %2150 = vmatprep.subr.bf16.mxu0 0
        %2151 = vmatpush2.bf16.msra.mxu0 0
        %2152 = vmatprep.subr.bf16.mxu0 0
        %2153 = vmatpush2.bf16.msra.mxu0 0
        %2154 = vmatprep.subr.bf16.mxu0 0
        %2155 = vmatpush2.bf16.msra.mxu0 0
        %2156 = vmatprep.subr.bf16.mxu0 0
        %2157 = vmatpush2.bf16.msra.mxu0 0
        %2158 = vmatprep.subr.bf16.mxu0 0
        %2159 = vmatpush2.bf16.msra.mxu0 0
        %2160 = vmatprep.subr.bf16.mxu0 0
        %2161 = vmatpush2.bf16.msra.mxu0 0
        %2162 = vmatprep.subr.bf16.mxu0 0
        %2163 = vmatpush2.bf16.msra.mxu0 0
        %2164 = vmatprep.subr.bf16.mxu0 0
        %2165 = vmatpush2.bf16.msra.mxu0 0
        %2166 = vmatprep.mubr.bf16.mxu0 0
        %2167 = vmatmul.mubr.bf16.gmra.mxu0 %v1828
        %v2168 = vpop.f32.mrf.mxu0
        %v2169 = vadd.f32 %v2048, %v2168
        %v2170 = vpop.f32.mrf.mxu0
        %v2171 = vadd.f32 %v2050, %v2170
        %v2172 = vpop.f32.mrf.mxu0
        %v2173 = vpop.f32.mrf.mxu0
        %2174 = vdwg.mxu0
        %v2175 = vadd.f32 %v947, %v2169
        %v2176 = vadd.f32 %v948, %v2171
        %v2177 = vld [vmem:[%s7] sm:$0x3]
        %v2179 = vlaneseq
        %v2180 = vshrl.u32 %v2179, 7
        %v2181 = vsub.s32 0, %v2180
        %v2182 = vrot.slane %v2177, %v2181
        %v2183 = vlaneseq
        %v2184 = vshrl.u32 %v2183, 7
        %v2185 = vsub.s32 1, %v2184
        %v2186 = vrot.slane %v2177, %v2185
        %v2189 = vadd.f32 %v2175, %v2182
        %v2190 = vadd.f32 %v2176, %v2186
        %v2191 = vld [vmem:[#allocation14] sm:$0x3]
        %v2192 = vld [vmem:[#allocation16] sm:$0x3]
        %v2193 = vadd.f32 %v2189, %v2190
        %2194 = vadd.xlane.f32.xlu0 %v2193
        %v2195 = vpop.xlane.xlu0 %2194
        %v2196 = vmul.f32 %v2195, %v909
        %v2197 = vsub.f32 %v2189, %v2196
        %v2198 = vsub.f32 %v2190, %v2196
        %v2199 = vmul.f32 %v2197, %v2197
        %v2200 = vmul.f32 %v2198, %v2198
        %v2201 = vadd.f32 %v2199, %v2200
        %2202 = vadd.xlane.f32.xlu0 %v2201
        %v2203 = vpop.xlane.xlu0 %2202
        %v2204 = vmul.f32 %v2203, %v909
        %v2205 = vadd.f32 %v2204, 1e-12
        %v2206 = vrsqrt.pop %v2205
        %v2207 = vmul.f32 %v2197, %v2206
        %v2208 = vmul.f32 %v2198, %v2206
        %v2210 = vlaneseq
        %v2211 = vshrl.u32 %v2210, 7
        %v2212 = vsub.s32 0, %v2211
        %v2213 = vrot.slane %v2191, %v2212
        %v2214 = vlaneseq
        %v2215 = vshrl.u32 %v2214, 7
        %v2216 = vsub.s32 1, %v2215
        %v2217 = vrot.slane %v2191, %v2216
        %v2220 = vmul.f32 %v2207, %v2213
        %v2221 = vmul.f32 %v2208, %v2217
        %v2223 = vlaneseq
        %v2224 = vshrl.u32 %v2223, 7
        %v2225 = vsub.s32 0, %v2224
        %v2226 = vrot.slane %v2192, %v2225
        %v2227 = vlaneseq
        %v2228 = vshrl.u32 %v2227, 7
        %v2229 = vsub.s32 1, %v2228
        %v2230 = vrot.slane %v2192, %v2229
        %v2233 = vadd.f32 %v2220, %v2226
        %v2234 = vadd.f32 %v2221, %v2230
        %v2235 = vpack.c.bf16 %v2233, %v2233
        %v2236 = vpack.c.bf16 %v2234, %v2234
        %v2237 = vld [vmem:[#allocation17] sm:$0xff]
        %v2238 = vld [vmem:[#allocation17 + $0x8] sm:$0xff]
        %v2239 = vld [vmem:[#allocation17 + $0x10] sm:$0xff]
        %v2240 = vld [vmem:[#allocation17 + $0x18] sm:$0xff]
        %v2241 = vld [vmem:[#allocation17 + $0x20] sm:$0xff]
        %v2242 = vld [vmem:[#allocation17 + $0x28] sm:$0xff]
        %v2243 = vld [vmem:[#allocation17 + $0x30] sm:$0xff]
        %v2244 = vld [vmem:[#allocation17 + $0x38] sm:$0xff]
        %v2245 = vld [vmem:[#allocation17 + $0x40] sm:$0xff]
        %v2246 = vld [vmem:[#allocation17 + $0x48] sm:$0xff]
        %v2247 = vld [vmem:[#allocation17 + $0x50] sm:$0xff]
        %v2248 = vld [vmem:[#allocation17 + $0x58] sm:$0xff]
        %v2249 = vld [vmem:[#allocation17 + $0x60] sm:$0xff]
        %v2250 = vld [vmem:[#allocation17 + $0x68] sm:$0xff]
        %v2251 = vld [vmem:[#allocation17 + $0x70] sm:$0xff]
        %v2252 = vld [vmem:[#allocation17 + $0x78] sm:$0xff]
        %v2253 = vld [vmem:[#allocation17 + $0x80] sm:$0xff]
        %v2254 = vld [vmem:[#allocation17 + $0x88] sm:$0xff]
        %v2255 = vld [vmem:[#allocation17 + $0x90] sm:$0xff]
        %v2256 = vld [vmem:[#allocation17 + $0x98] sm:$0xff]
        %v2257 = vld [vmem:[#allocation17 + $0xa0] sm:$0xff]
        %v2258 = vld [vmem:[#allocation17 + $0xa8] sm:$0xff]
        %v2259 = vld [vmem:[#allocation17 + $0xb0] sm:$0xff]
        %v2260 = vld [vmem:[#allocation17 + $0xb8] sm:$0xff]
        %v2261 = vld [vmem:[#allocation17 + $0xc0] sm:$0xff]
        %v2262 = vld [vmem:[#allocation17 + $0xc8] sm:$0xff]
        %v2263 = vld [vmem:[#allocation17 + $0xd0] sm:$0xff]
        %v2264 = vld [vmem:[#allocation17 + $0xd8] sm:$0xff]
        %v2265 = vld [vmem:[#allocation17 + $0xe0] sm:$0xff]
        %v2266 = vld [vmem:[#allocation17 + $0xe8] sm:$0xff]
        %v2267 = vld [vmem:[#allocation17 + $0xf0] sm:$0xff]
        %v2268 = vld [vmem:[#allocation17 + $0xf8] sm:$0xff]
        %v2269 = vld [vmem:[#allocation17 + $0x100] sm:$0xff]
        %v2270 = vld [vmem:[#allocation17 + $0x108] sm:$0xff]
        %v2271 = vld [vmem:[#allocation17 + $0x110] sm:$0xff]
        %v2272 = vld [vmem:[#allocation17 + $0x118] sm:$0xff]
        %v2273 = vld [vmem:[#allocation17 + $0x120] sm:$0xff]
        %v2274 = vld [vmem:[#allocation17 + $0x128] sm:$0xff]
        %v2275 = vld [vmem:[#allocation17 + $0x130] sm:$0xff]
        %v2276 = vld [vmem:[#allocation17 + $0x138] sm:$0xff]
        %v2277 = vld [vmem:[#allocation17 + $0x140] sm:$0xff]
        %v2278 = vld [vmem:[#allocation17 + $0x148] sm:$0xff]
        %v2279 = vld [vmem:[#allocation17 + $0x150] sm:$0xff]
        %v2280 = vld [vmem:[#allocation17 + $0x158] sm:$0xff]
        %v2281 = vld [vmem:[#allocation17 + $0x160] sm:$0xff]
        %v2282 = vld [vmem:[#allocation17 + $0x168] sm:$0xff]
        %v2283 = vld [vmem:[#allocation17 + $0x170] sm:$0xff]
        %v2284 = vld [vmem:[#allocation17 + $0x178] sm:$0xff]
        %v2285 = vld [vmem:[#allocation17 + $0x180] sm:$0xff]
        %v2286 = vld [vmem:[#allocation17 + $0x188] sm:$0xff]
        %v2287 = vld [vmem:[#allocation17 + $0x190] sm:$0xff]
        %v2288 = vld [vmem:[#allocation17 + $0x198] sm:$0xff]
        %v2289 = vld [vmem:[#allocation17 + $0x1a0] sm:$0xff]
        %v2290 = vld [vmem:[#allocation17 + $0x1a8] sm:$0xff]
        %v2291 = vld [vmem:[#allocation17 + $0x1b0] sm:$0xff]
        %v2292 = vld [vmem:[#allocation17 + $0x1b8] sm:$0xff]
        %v2293 = vld [vmem:[#allocation17 + $0x1c0] sm:$0xff]
        %v2294 = vld [vmem:[#allocation17 + $0x1c8] sm:$0xff]
        %v2295 = vld [vmem:[#allocation17 + $0x1d0] sm:$0xff]
        %v2296 = vld [vmem:[#allocation17 + $0x1d8] sm:$0xff]
        %v2297 = vld [vmem:[#allocation17 + $0x1e0] sm:$0xff]
        %v2298 = vld [vmem:[#allocation17 + $0x1e8] sm:$0xff]
        %v2299 = vld [vmem:[#allocation17 + $0x1f0] sm:$0xff]
        %v2300 = vld [vmem:[#allocation17 + $0x1f8] sm:$0xff]
        %v2301 = vld [vmem:[#allocation17 + $0x200] sm:$0xff]
        %v2302 = vld [vmem:[#allocation17 + $0x208] sm:$0xff]
        %v2303 = vld [vmem:[#allocation17 + $0x210] sm:$0xff]
        %v2304 = vld [vmem:[#allocation17 + $0x218] sm:$0xff]
        %v2305 = vld [vmem:[#allocation17 + $0x220] sm:$0xff]
        %v2306 = vld [vmem:[#allocation17 + $0x228] sm:$0xff]
        %v2307 = vld [vmem:[#allocation17 + $0x230] sm:$0xff]
        %v2308 = vld [vmem:[#allocation17 + $0x238] sm:$0xff]
        %v2309 = vld [vmem:[#allocation17 + $0x240] sm:$0xff]
        %v2310 = vld [vmem:[#allocation17 + $0x248] sm:$0xff]
        %v2311 = vld [vmem:[#allocation17 + $0x250] sm:$0xff]
        %v2312 = vld [vmem:[#allocation17 + $0x258] sm:$0xff]
        %v2313 = vld [vmem:[#allocation17 + $0x260] sm:$0xff]
        %v2314 = vld [vmem:[#allocation17 + $0x268] sm:$0xff]
        %v2315 = vld [vmem:[#allocation17 + $0x270] sm:$0xff]
        %v2316 = vld [vmem:[#allocation17 + $0x278] sm:$0xff]
        %v2317 = vld [vmem:[#allocation17 + $0x280] sm:$0xff]
        %v2318 = vld [vmem:[#allocation17 + $0x288] sm:$0xff]
        %v2319 = vld [vmem:[#allocation17 + $0x290] sm:$0xff]
        %v2320 = vld [vmem:[#allocation17 + $0x298] sm:$0xff]
        %v2321 = vld [vmem:[#allocation17 + $0x2a0] sm:$0xff]
        %v2322 = vld [vmem:[#allocation17 + $0x2a8] sm:$0xff]
        %v2323 = vld [vmem:[#allocation17 + $0x2b0] sm:$0xff]
        %v2324 = vld [vmem:[#allocation17 + $0x2b8] sm:$0xff]
        %v2325 = vld [vmem:[#allocation17 + $0x2c0] sm:$0xff]
        %v2326 = vld [vmem:[#allocation17 + $0x2c8] sm:$0xff]
        %v2327 = vld [vmem:[#allocation17 + $0x2d0] sm:$0xff]
        %v2328 = vld [vmem:[#allocation17 + $0x2d8] sm:$0xff]
        %v2329 = vld [vmem:[#allocation17 + $0x2e0] sm:$0xff]
        %v2330 = vld [vmem:[#allocation17 + $0x2e8] sm:$0xff]
        %v2331 = vld [vmem:[#allocation17 + $0x2f0] sm:$0xff]
        %v2332 = vld [vmem:[#allocation17 + $0x2f8] sm:$0xff]
        %v2333 = vld [vmem:[#allocation17 + $0x300] sm:$0xff]
        %v2334 = vld [vmem:[#allocation17 + $0x308] sm:$0xff]
        %v2335 = vld [vmem:[#allocation17 + $0x310] sm:$0xff]
        %v2336 = vld [vmem:[#allocation17 + $0x318] sm:$0xff]
        %v2337 = vld [vmem:[#allocation17 + $0x320] sm:$0xff]
        %v2338 = vld [vmem:[#allocation17 + $0x328] sm:$0xff]
        %v2339 = vld [vmem:[#allocation17 + $0x330] sm:$0xff]
        %v2340 = vld [vmem:[#allocation17 + $0x338] sm:$0xff]
        %v2341 = vld [vmem:[#allocation17 + $0x340] sm:$0xff]
        %v2342 = vld [vmem:[#allocation17 + $0x348] sm:$0xff]
        %v2343 = vld [vmem:[#allocation17 + $0x350] sm:$0xff]
        %v2344 = vld [vmem:[#allocation17 + $0x358] sm:$0xff]
        %v2345 = vld [vmem:[#allocation17 + $0x360] sm:$0xff]
        %v2346 = vld [vmem:[#allocation17 + $0x368] sm:$0xff]
        %v2347 = vld [vmem:[#allocation17 + $0x370] sm:$0xff]
        %v2348 = vld [vmem:[#allocation17 + $0x378] sm:$0xff]
        %v2349 = vld [vmem:[#allocation17 + $0x380] sm:$0xff]
        %v2350 = vld [vmem:[#allocation17 + $0x388] sm:$0xff]
        %v2351 = vld [vmem:[#allocation17 + $0x390] sm:$0xff]
        %v2352 = vld [vmem:[#allocation17 + $0x398] sm:$0xff]
        %v2353 = vld [vmem:[#allocation17 + $0x3a0] sm:$0xff]
        %v2354 = vld [vmem:[#allocation17 + $0x3a8] sm:$0xff]
        %v2355 = vld [vmem:[#allocation17 + $0x3b0] sm:$0xff]
        %v2356 = vld [vmem:[#allocation17 + $0x3b8] sm:$0xff]
        %v2357 = vld [vmem:[#allocation17 + $0x3c0] sm:$0xff]
        %v2358 = vld [vmem:[#allocation17 + $0x3c8] sm:$0xff]
        %v2359 = vld [vmem:[#allocation17 + $0x3d0] sm:$0xff]
        %v2360 = vld [vmem:[#allocation17 + $0x3d8] sm:$0xff]
        %v2361 = vld [vmem:[#allocation17 + $0x3e0] sm:$0xff]
        %v2362 = vld [vmem:[#allocation17 + $0x3e8] sm:$0xff]
        %v2363 = vld [vmem:[#allocation17 + $0x3f0] sm:$0xff]
        %v2364 = vld [vmem:[#allocation17 + $0x3f8] sm:$0xff]
        %v2365 = vld [vmem:[%s11] sm:$0xff]
        %v2367 = vlaneseq
        %v2368 = vshrl.u32 %v2367, 7
        %v2369 = vsub.s32 0, %v2368
        %v2370 = vrot.slane %v2365, %v2369
        %v2371 = vlaneseq
        %v2372 = vshrl.u32 %v2371, 7
        %v2373 = vsub.s32 1, %v2372
        %v2374 = vrot.slane %v2365, %v2373
        %v2375 = vlaneseq
        %v2376 = vshrl.u32 %v2375, 7
        %v2377 = vsub.s32 2, %v2376
        %v2378 = vrot.slane %v2365, %v2377
        %v2379 = vlaneseq
        %v2380 = vshrl.u32 %v2379, 7
        %v2381 = vsub.s32 3, %v2380
        %v2382 = vrot.slane %v2365, %v2381
        %v2383 = vlaneseq
        %v2384 = vshrl.u32 %v2383, 7
        %v2385 = vsub.s32 4, %v2384
        %v2386 = vrot.slane %v2365, %v2385
        %v2387 = vlaneseq
        %v2388 = vshrl.u32 %v2387, 7
        %v2389 = vsub.s32 5, %v2388
        %v2390 = vrot.slane %v2365, %v2389
        %v2391 = vlaneseq
        %v2392 = vshrl.u32 %v2391, 7
        %v2393 = vsub.s32 6, %v2392
        %v2394 = vrot.slane %v2365, %v2393
        %v2395 = vlaneseq
        %v2396 = vshrl.u32 %v2395, 7
        %v2397 = vsub.s32 7, %v2396
        %v2398 = vrot.slane %v2365, %v2397
        %v2535 = vunpack.c.l.b16 %v2237
        %v2536 = vunpack.c.h.b16 %v2237
        %v2537 = vunpack.c.l.b16 %v2238
        %v2538 = vunpack.c.h.b16 %v2238
        %v2539 = vunpack.c.l.b16 %v2239
        %v2540 = vunpack.c.h.b16 %v2239
        %v2541 = vunpack.c.l.b16 %v2240
        %v2542 = vunpack.c.h.b16 %v2240
        %v2543 = vunpack.c.l.b16 %v2241
        %v2544 = vunpack.c.h.b16 %v2241
        %v2545 = vunpack.c.l.b16 %v2242
        %v2546 = vunpack.c.h.b16 %v2242
        %v2547 = vunpack.c.l.b16 %v2243
        %v2548 = vunpack.c.h.b16 %v2243
        %v2549 = vunpack.c.l.b16 %v2244
        %v2550 = vunpack.c.h.b16 %v2244
        %v2551 = vunpack.c.l.b16 %v2245
        %v2552 = vunpack.c.h.b16 %v2245
        %v2553 = vunpack.c.l.b16 %v2246
        %v2554 = vunpack.c.h.b16 %v2246
        %v2555 = vunpack.c.l.b16 %v2247
        %v2556 = vunpack.c.h.b16 %v2247
        %v2557 = vunpack.c.l.b16 %v2248
        %v2558 = vunpack.c.h.b16 %v2248
        %v2559 = vunpack.c.l.b16 %v2249
        %v2560 = vunpack.c.h.b16 %v2249
        %v2561 = vunpack.c.l.b16 %v2250
        %v2562 = vunpack.c.h.b16 %v2250
        %v2563 = vunpack.c.l.b16 %v2251
        %v2564 = vunpack.c.h.b16 %v2251
        %v2565 = vunpack.c.l.b16 %v2252
        %v2566 = vunpack.c.h.b16 %v2252
        %v2567 = vunpack.c.l.b16 %v2253
        %v2568 = vunpack.c.h.b16 %v2253
        %v2569 = vunpack.c.l.b16 %v2254
        %v2570 = vunpack.c.h.b16 %v2254
        %v2571 = vunpack.c.l.b16 %v2255
        %v2572 = vunpack.c.h.b16 %v2255
        %v2573 = vunpack.c.l.b16 %v2256
        %v2574 = vunpack.c.h.b16 %v2256
        %v2575 = vunpack.c.l.b16 %v2257
        %v2576 = vunpack.c.h.b16 %v2257
        %v2577 = vunpack.c.l.b16 %v2258
        %v2578 = vunpack.c.h.b16 %v2258
        %v2579 = vunpack.c.l.b16 %v2259
        %v2580 = vunpack.c.h.b16 %v2259
        %v2581 = vunpack.c.l.b16 %v2260
        %v2582 = vunpack.c.h.b16 %v2260
        %v2583 = vunpack.c.l.b16 %v2261
        %v2584 = vunpack.c.h.b16 %v2261
        %v2585 = vunpack.c.l.b16 %v2262
        %v2586 = vunpack.c.h.b16 %v2262
        %v2587 = vunpack.c.l.b16 %v2263
        %v2588 = vunpack.c.h.b16 %v2263
        %v2589 = vunpack.c.l.b16 %v2264
        %v2590 = vunpack.c.h.b16 %v2264
        %v2591 = vunpack.c.l.b16 %v2265
        %v2592 = vunpack.c.h.b16 %v2265
        %v2593 = vunpack.c.l.b16 %v2266
        %v2594 = vunpack.c.h.b16 %v2266
        %v2595 = vunpack.c.l.b16 %v2267
        %v2596 = vunpack.c.h.b16 %v2267
        %v2597 = vunpack.c.l.b16 %v2268
        %v2598 = vunpack.c.h.b16 %v2268
        %v2599 = vunpack.c.l.b16 %v2269
        %v2600 = vunpack.c.h.b16 %v2269
        %v2601 = vunpack.c.l.b16 %v2270
        %v2602 = vunpack.c.h.b16 %v2270
        %v2603 = vunpack.c.l.b16 %v2271
        %v2604 = vunpack.c.h.b16 %v2271
        %v2605 = vunpack.c.l.b16 %v2272
        %v2606 = vunpack.c.h.b16 %v2272
        %v2607 = vunpack.c.l.b16 %v2273
        %v2608 = vunpack.c.h.b16 %v2273
        %v2609 = vunpack.c.l.b16 %v2274
        %v2610 = vunpack.c.h.b16 %v2274
        %v2611 = vunpack.c.l.b16 %v2275
        %v2612 = vunpack.c.h.b16 %v2275
        %v2613 = vunpack.c.l.b16 %v2276
        %v2614 = vunpack.c.h.b16 %v2276
        %v2615 = vunpack.c.l.b16 %v2277
        %v2616 = vunpack.c.h.b16 %v2277
        %v2617 = vunpack.c.l.b16 %v2278
        %v2618 = vunpack.c.h.b16 %v2278
        %v2619 = vunpack.c.l.b16 %v2279
        %v2620 = vunpack.c.h.b16 %v2279
        %v2621 = vunpack.c.l.b16 %v2280
        %v2622 = vunpack.c.h.b16 %v2280
        %v2623 = vunpack.c.l.b16 %v2281
        %v2624 = vunpack.c.h.b16 %v2281
        %v2625 = vunpack.c.l.b16 %v2282
        %v2626 = vunpack.c.h.b16 %v2282
        %v2627 = vunpack.c.l.b16 %v2283
        %v2628 = vunpack.c.h.b16 %v2283
        %v2629 = vunpack.c.l.b16 %v2284
        %v2630 = vunpack.c.h.b16 %v2284
        %v2631 = vunpack.c.l.b16 %v2285
        %v2632 = vunpack.c.h.b16 %v2285
        %v2633 = vunpack.c.l.b16 %v2286
        %v2634 = vunpack.c.h.b16 %v2286
        %v2635 = vunpack.c.l.b16 %v2287
        %v2636 = vunpack.c.h.b16 %v2287
        %v2637 = vunpack.c.l.b16 %v2288
        %v2638 = vunpack.c.h.b16 %v2288
        %v2639 = vunpack.c.l.b16 %v2289
        %v2640 = vunpack.c.h.b16 %v2289
        %v2641 = vunpack.c.l.b16 %v2290
        %v2642 = vunpack.c.h.b16 %v2290
        %v2643 = vunpack.c.l.b16 %v2291
        %v2644 = vunpack.c.h.b16 %v2291
        %v2645 = vunpack.c.l.b16 %v2292
        %v2646 = vunpack.c.h.b16 %v2292
        %v2647 = vunpack.c.l.b16 %v2293
        %v2648 = vunpack.c.h.b16 %v2293
        %v2649 = vunpack.c.l.b16 %v2294
        %v2650 = vunpack.c.h.b16 %v2294
        %v2651 = vunpack.c.l.b16 %v2295
        %v2652 = vunpack.c.h.b16 %v2295
        %v2653 = vunpack.c.l.b16 %v2296
        %v2654 = vunpack.c.h.b16 %v2296
        %v2655 = vunpack.c.l.b16 %v2297
        %v2656 = vunpack.c.h.b16 %v2297
        %v2657 = vunpack.c.l.b16 %v2298
        %v2658 = vunpack.c.h.b16 %v2298
        %v2659 = vunpack.c.l.b16 %v2299
        %v2660 = vunpack.c.h.b16 %v2299
        %v2661 = vunpack.c.l.b16 %v2300
        %v2662 = vunpack.c.h.b16 %v2300
        %v2663 = vunpack.c.l.b16 %v2301
        %v2664 = vunpack.c.h.b16 %v2301
        %v2665 = vunpack.c.l.b16 %v2302
        %v2666 = vunpack.c.h.b16 %v2302
        %v2667 = vunpack.c.l.b16 %v2303
        %v2668 = vunpack.c.h.b16 %v2303
        %v2669 = vunpack.c.l.b16 %v2304
        %v2670 = vunpack.c.h.b16 %v2304
        %v2671 = vunpack.c.l.b16 %v2305
        %v2672 = vunpack.c.h.b16 %v2305
        %v2673 = vunpack.c.l.b16 %v2306
        %v2674 = vunpack.c.h.b16 %v2306
        %v2675 = vunpack.c.l.b16 %v2307
        %v2676 = vunpack.c.h.b16 %v2307
        %v2677 = vunpack.c.l.b16 %v2308
        %v2678 = vunpack.c.h.b16 %v2308
        %v2679 = vunpack.c.l.b16 %v2309
        %v2680 = vunpack.c.h.b16 %v2309
        %v2681 = vunpack.c.l.b16 %v2310
        %v2682 = vunpack.c.h.b16 %v2310
        %v2683 = vunpack.c.l.b16 %v2311
        %v2684 = vunpack.c.h.b16 %v2311
        %v2685 = vunpack.c.l.b16 %v2312
        %v2686 = vunpack.c.h.b16 %v2312
        %v2687 = vunpack.c.l.b16 %v2313
        %v2688 = vunpack.c.h.b16 %v2313
        %v2689 = vunpack.c.l.b16 %v2314
        %v2690 = vunpack.c.h.b16 %v2314
        %v2691 = vunpack.c.l.b16 %v2315
        %v2692 = vunpack.c.h.b16 %v2315
        %v2693 = vunpack.c.l.b16 %v2316
        %v2694 = vunpack.c.h.b16 %v2316
        %v2695 = vunpack.c.l.b16 %v2317
        %v2696 = vunpack.c.h.b16 %v2317
        %v2697 = vunpack.c.l.b16 %v2318
        %v2698 = vunpack.c.h.b16 %v2318
        %v2699 = vunpack.c.l.b16 %v2319
        %v2700 = vunpack.c.h.b16 %v2319
        %v2701 = vunpack.c.l.b16 %v2320
        %v2702 = vunpack.c.h.b16 %v2320
        %v2703 = vunpack.c.l.b16 %v2321
        %v2704 = vunpack.c.h.b16 %v2321
        %v2705 = vunpack.c.l.b16 %v2322
        %v2706 = vunpack.c.h.b16 %v2322
        %v2707 = vunpack.c.l.b16 %v2323
        %v2708 = vunpack.c.h.b16 %v2323
        %v2709 = vunpack.c.l.b16 %v2324
        %v2710 = vunpack.c.h.b16 %v2324
        %v2711 = vunpack.c.l.b16 %v2325
        %v2712 = vunpack.c.h.b16 %v2325
        %v2713 = vunpack.c.l.b16 %v2326
        %v2714 = vunpack.c.h.b16 %v2326
        %v2715 = vunpack.c.l.b16 %v2327
        %v2716 = vunpack.c.h.b16 %v2327
        %v2717 = vunpack.c.l.b16 %v2328
        %v2718 = vunpack.c.h.b16 %v2328
        %v2719 = vunpack.c.l.b16 %v2329
        %v2720 = vunpack.c.h.b16 %v2329
        %v2721 = vunpack.c.l.b16 %v2330
        %v2722 = vunpack.c.h.b16 %v2330
        %v2723 = vunpack.c.l.b16 %v2331
        %v2724 = vunpack.c.h.b16 %v2331
        %v2725 = vunpack.c.l.b16 %v2332
        %v2726 = vunpack.c.h.b16 %v2332
        %v2727 = vunpack.c.l.b16 %v2333
        %v2728 = vunpack.c.h.b16 %v2333
        %v2729 = vunpack.c.l.b16 %v2334
        %v2730 = vunpack.c.h.b16 %v2334
        %v2731 = vunpack.c.l.b16 %v2335
        %v2732 = vunpack.c.h.b16 %v2335
        %v2733 = vunpack.c.l.b16 %v2336
        %v2734 = vunpack.c.h.b16 %v2336
        %v2735 = vunpack.c.l.b16 %v2337
        %v2736 = vunpack.c.h.b16 %v2337
        %v2737 = vunpack.c.l.b16 %v2338
        %v2738 = vunpack.c.h.b16 %v2338
        %v2739 = vunpack.c.l.b16 %v2339
        %v2740 = vunpack.c.h.b16 %v2339
        %v2741 = vunpack.c.l.b16 %v2340
        %v2742 = vunpack.c.h.b16 %v2340
        %v2743 = vunpack.c.l.b16 %v2341
        %v2744 = vunpack.c.h.b16 %v2341
        %v2745 = vunpack.c.l.b16 %v2342
        %v2746 = vunpack.c.h.b16 %v2342
        %v2747 = vunpack.c.l.b16 %v2343
        %v2748 = vunpack.c.h.b16 %v2343
        %v2749 = vunpack.c.l.b16 %v2344
        %v2750 = vunpack.c.h.b16 %v2344
        %v2751 = vunpack.c.l.b16 %v2345
        %v2752 = vunpack.c.h.b16 %v2345
        %v2753 = vunpack.c.l.b16 %v2346
        %v2754 = vunpack.c.h.b16 %v2346
        %v2755 = vunpack.c.l.b16 %v2347
        %v2756 = vunpack.c.h.b16 %v2347
        %v2757 = vunpack.c.l.b16 %v2348
        %v2758 = vunpack.c.h.b16 %v2348
        %v2759 = vunpack.c.l.b16 %v2349
        %v2760 = vunpack.c.h.b16 %v2349
        %v2761 = vunpack.c.l.b16 %v2350
        %v2762 = vunpack.c.h.b16 %v2350
        %v2763 = vunpack.c.l.b16 %v2351
        %v2764 = vunpack.c.h.b16 %v2351
        %v2765 = vunpack.c.l.b16 %v2352
        %v2766 = vunpack.c.h.b16 %v2352
        %v2767 = vunpack.c.l.b16 %v2353
        %v2768 = vunpack.c.h.b16 %v2353
        %v2769 = vunpack.c.l.b16 %v2354
        %v2770 = vunpack.c.h.b16 %v2354
        %v2771 = vunpack.c.l.b16 %v2355
        %v2772 = vunpack.c.h.b16 %v2355
        %v2773 = vunpack.c.l.b16 %v2356
        %v2774 = vunpack.c.h.b16 %v2356
        %v2775 = vunpack.c.l.b16 %v2357
        %v2776 = vunpack.c.h.b16 %v2357
        %v2777 = vunpack.c.l.b16 %v2358
        %v2778 = vunpack.c.h.b16 %v2358
        %v2779 = vunpack.c.l.b16 %v2359
        %v2780 = vunpack.c.h.b16 %v2359
        %v2781 = vunpack.c.l.b16 %v2360
        %v2782 = vunpack.c.h.b16 %v2360
        %v2783 = vunpack.c.l.b16 %v2361
        %v2784 = vunpack.c.h.b16 %v2361
        %v2785 = vunpack.c.l.b16 %v2362
        %v2786 = vunpack.c.h.b16 %v2362
        %v2787 = vunpack.c.l.b16 %v2363
        %v2788 = vunpack.c.h.b16 %v2363
        %v2789 = vunpack.c.l.b16 %v2364
        %v2790 = vunpack.c.h.b16 %v2364
        %v2791 = vpack.c.b16 %v2543, %v2535
        %v2792 = vpack.c.b16 %v2544, %v2536
        %v2793 = vpack.c.b16 %v2545, %v2537
        %v2794 = vpack.c.b16 %v2546, %v2538
        %v2795 = vpack.c.b16 %v2547, %v2539
        %v2796 = vpack.c.b16 %v2548, %v2540
        %v2797 = vpack.c.b16 %v2549, %v2541
        %v2798 = vpack.c.b16 %v2550, %v2542
        %v2799 = vpack.c.b16 %v2559, %v2551
        %v2800 = vpack.c.b16 %v2560, %v2552
        %v2801 = vpack.c.b16 %v2561, %v2553
        %v2802 = vpack.c.b16 %v2562, %v2554
        %v2803 = vpack.c.b16 %v2563, %v2555
        %v2804 = vpack.c.b16 %v2564, %v2556
        %v2805 = vpack.c.b16 %v2565, %v2557
        %v2806 = vpack.c.b16 %v2566, %v2558
        %v2807 = vpack.c.b16 %v2575, %v2567
        %v2808 = vpack.c.b16 %v2576, %v2568
        %v2809 = vpack.c.b16 %v2577, %v2569
        %v2810 = vpack.c.b16 %v2578, %v2570
        %v2811 = vpack.c.b16 %v2579, %v2571
        %v2812 = vpack.c.b16 %v2580, %v2572
        %v2813 = vpack.c.b16 %v2581, %v2573
        %v2814 = vpack.c.b16 %v2582, %v2574
        %v2815 = vpack.c.b16 %v2591, %v2583
        %v2816 = vpack.c.b16 %v2592, %v2584
        %v2817 = vpack.c.b16 %v2593, %v2585
        %v2818 = vpack.c.b16 %v2594, %v2586
        %v2819 = vpack.c.b16 %v2595, %v2587
        %v2820 = vpack.c.b16 %v2596, %v2588
        %v2821 = vpack.c.b16 %v2597, %v2589
        %v2822 = vpack.c.b16 %v2598, %v2590
        %v2823 = vpack.c.b16 %v2607, %v2599
        %v2824 = vpack.c.b16 %v2608, %v2600
        %v2825 = vpack.c.b16 %v2609, %v2601
        %v2826 = vpack.c.b16 %v2610, %v2602
        %v2827 = vpack.c.b16 %v2611, %v2603
        %v2828 = vpack.c.b16 %v2612, %v2604
        %v2829 = vpack.c.b16 %v2613, %v2605
        %v2830 = vpack.c.b16 %v2614, %v2606
        %v2831 = vpack.c.b16 %v2623, %v2615
        %v2832 = vpack.c.b16 %v2624, %v2616
        %v2833 = vpack.c.b16 %v2625, %v2617
        %v2834 = vpack.c.b16 %v2626, %v2618
        %v2835 = vpack.c.b16 %v2627, %v2619
        %v2836 = vpack.c.b16 %v2628, %v2620
        %v2837 = vpack.c.b16 %v2629, %v2621
        %v2838 = vpack.c.b16 %v2630, %v2622
        %v2839 = vpack.c.b16 %v2639, %v2631
        %v2840 = vpack.c.b16 %v2640, %v2632
        %v2841 = vpack.c.b16 %v2641, %v2633
        %v2842 = vpack.c.b16 %v2642, %v2634
        %v2843 = vpack.c.b16 %v2643, %v2635
        %v2844 = vpack.c.b16 %v2644, %v2636
        %v2845 = vpack.c.b16 %v2645, %v2637
        %v2846 = vpack.c.b16 %v2646, %v2638
        %v2847 = vpack.c.b16 %v2655, %v2647
        %v2848 = vpack.c.b16 %v2656, %v2648
        %v2849 = vpack.c.b16 %v2657, %v2649
        %v2850 = vpack.c.b16 %v2658, %v2650
        %v2851 = vpack.c.b16 %v2659, %v2651
        %v2852 = vpack.c.b16 %v2660, %v2652
        %v2853 = vpack.c.b16 %v2661, %v2653
        %v2854 = vpack.c.b16 %v2662, %v2654
        %v2855 = vpack.c.b16 %v2671, %v2663
        %v2856 = vpack.c.b16 %v2672, %v2664
        %v2857 = vpack.c.b16 %v2673, %v2665
        %v2858 = vpack.c.b16 %v2674, %v2666
        %v2859 = vpack.c.b16 %v2675, %v2667
        %v2860 = vpack.c.b16 %v2676, %v2668
        %v2861 = vpack.c.b16 %v2677, %v2669
        %v2862 = vpack.c.b16 %v2678, %v2670
        %v2863 = vpack.c.b16 %v2687, %v2679
        %v2864 = vpack.c.b16 %v2688, %v2680
        %v2865 = vpack.c.b16 %v2689, %v2681
        %v2866 = vpack.c.b16 %v2690, %v2682
        %v2867 = vpack.c.b16 %v2691, %v2683
        %v2868 = vpack.c.b16 %v2692, %v2684
        %v2869 = vpack.c.b16 %v2693, %v2685
        %v2870 = vpack.c.b16 %v2694, %v2686
        %v2871 = vpack.c.b16 %v2703, %v2695
        %v2872 = vpack.c.b16 %v2704, %v2696
        %v2873 = vpack.c.b16 %v2705, %v2697
        %v2874 = vpack.c.b16 %v2706, %v2698
        %v2875 = vpack.c.b16 %v2707, %v2699
        %v2876 = vpack.c.b16 %v2708, %v2700
        %v2877 = vpack.c.b16 %v2709, %v2701
        %v2878 = vpack.c.b16 %v2710, %v2702
        %v2879 = vpack.c.b16 %v2719, %v2711
        %v2880 = vpack.c.b16 %v2720, %v2712
        %v2881 = vpack.c.b16 %v2721, %v2713
        %v2882 = vpack.c.b16 %v2722, %v2714
        %v2883 = vpack.c.b16 %v2723, %v2715
        %v2884 = vpack.c.b16 %v2724, %v2716
        %v2885 = vpack.c.b16 %v2725, %v2717
        %v2886 = vpack.c.b16 %v2726, %v2718
        %v2887 = vpack.c.b16 %v2735, %v2727
        %v2888 = vpack.c.b16 %v2736, %v2728
        %v2889 = vpack.c.b16 %v2737, %v2729
        %v2890 = vpack.c.b16 %v2738, %v2730
        %v2891 = vpack.c.b16 %v2739, %v2731
        %v2892 = vpack.c.b16 %v2740, %v2732
        %v2893 = vpack.c.b16 %v2741, %v2733
        %v2894 = vpack.c.b16 %v2742, %v2734
        %v2895 = vpack.c.b16 %v2751, %v2743
        %v2896 = vpack.c.b16 %v2752, %v2744
        %v2897 = vpack.c.b16 %v2753, %v2745
        %v2898 = vpack.c.b16 %v2754, %v2746
        %v2899 = vpack.c.b16 %v2755, %v2747
        %v2900 = vpack.c.b16 %v2756, %v2748
        %v2901 = vpack.c.b16 %v2757, %v2749
        %v2902 = vpack.c.b16 %v2758, %v2750
        %v2903 = vpack.c.b16 %v2767, %v2759
        %v2904 = vpack.c.b16 %v2768, %v2760
        %v2905 = vpack.c.b16 %v2769, %v2761
        %v2906 = vpack.c.b16 %v2770, %v2762
        %v2907 = vpack.c.b16 %v2771, %v2763
        %v2908 = vpack.c.b16 %v2772, %v2764
        %v2909 = vpack.c.b16 %v2773, %v2765
        %v2910 = vpack.c.b16 %v2774, %v2766
        %v2911 = vpack.c.b16 %v2783, %v2775
        %v2912 = vpack.c.b16 %v2784, %v2776
        %v2913 = vpack.c.b16 %v2785, %v2777
        %v2914 = vpack.c.b16 %v2786, %v2778
        %v2915 = vpack.c.b16 %v2787, %v2779
        %v2916 = vpack.c.b16 %v2788, %v2780
        %v2917 = vpack.c.b16 %v2789, %v2781
        %v2918 = vpack.c.b16 %v2790, %v2782
        %3047 = vmatprep.subr.bf16.mxu0 %v2848
        %3048 = vmatpush1.bf16.msra.mxu0 %v2847
        %3049 = vmatprep.subr.bf16.mxu0 %v2840
        %3050 = vmatpush1.bf16.msra.mxu0 %v2839
        %3051 = vmatprep.subr.bf16.mxu0 %v2832
        %3052 = vmatpush1.bf16.msra.mxu0 %v2831
        %3053 = vmatprep.subr.bf16.mxu0 %v2824
        %3054 = vmatpush1.bf16.msra.mxu0 %v2823
        %3055 = vmatprep.subr.bf16.mxu0 %v2816
        %3056 = vmatpush1.bf16.msra.mxu0 %v2815
        %3057 = vmatprep.subr.bf16.mxu0 %v2808
        %3058 = vmatpush1.bf16.msra.mxu0 %v2807
        %3059 = vmatprep.subr.bf16.mxu0 %v2800
        %3060 = vmatpush1.bf16.msra.mxu0 %v2799
        %3061 = vmatprep.subr.bf16.mxu0 %v2792
        %3062 = vmatpush1.bf16.msra.mxu0 %v2791
        %3063 = vmatprep.subr.bf16.mxu0 %v2912
        %3064 = vmatpush2.bf16.msra.mxu0 %v2911
        %3065 = vmatprep.subr.bf16.mxu0 %v2904
        %3066 = vmatpush2.bf16.msra.mxu0 %v2903
        %3067 = vmatprep.subr.bf16.mxu0 %v2896
        %3068 = vmatpush2.bf16.msra.mxu0 %v2895
        %3069 = vmatprep.subr.bf16.mxu0 %v2888
        %3070 = vmatpush2.bf16.msra.mxu0 %v2887
        %3071 = vmatprep.subr.bf16.mxu0 %v2880
        %3072 = vmatpush2.bf16.msra.mxu0 %v2879
        %3073 = vmatprep.subr.bf16.mxu0 %v2872
        %3074 = vmatpush2.bf16.msra.mxu0 %v2871
        %3075 = vmatprep.subr.bf16.mxu0 %v2864
        %3076 = vmatpush2.bf16.msra.mxu0 %v2863
        %3077 = vmatprep.subr.bf16.mxu0 %v2856
        %3078 = vmatpush2.bf16.msra.mxu0 %v2855
        %3079 = vmatprep.mubr.bf16.mxu0 %v2236
        %3080 = vmatmul.mubr.bf16.gmra.mxu0 %v2235
        %v3081 = vpop.f32.mrf.mxu0
        %v3082 = vadd.f32 %v2370, %v3081
        %v3083 = vpop.f32.mrf.mxu0
        %v3084 = vadd.f32 %v2374, %v3083
        %v3085 = vpop.f32.mrf.mxu0
        %v3086 = vpop.f32.mrf.mxu0
        %3087 = vdwg.mxu0
        %3088 = vmatprep.subr.bf16.mxu0 %v2850
        %3089 = vmatpush1.bf16.msra.mxu0 %v2849
        %3090 = vmatprep.subr.bf16.mxu0 %v2842
        %3091 = vmatpush1.bf16.msra.mxu0 %v2841
        %3092 = vmatprep.subr.bf16.mxu0 %v2834
        %3093 = vmatpush1.bf16.msra.mxu0 %v2833
        %3094 = vmatprep.subr.bf16.mxu0 %v2826
        %3095 = vmatpush1.bf16.msra.mxu0 %v2825
        %3096 = vmatprep.subr.bf16.mxu0 %v2818
        %3097 = vmatpush1.bf16.msra.mxu0 %v2817
        %3098 = vmatprep.subr.bf16.mxu0 %v2810
        %3099 = vmatpush1.bf16.msra.mxu0 %v2809
        %3100 = vmatprep.subr.bf16.mxu0 %v2802
        %3101 = vmatpush1.bf16.msra.mxu0 %v2801
        %3102 = vmatprep.subr.bf16.mxu0 %v2794
        %3103 = vmatpush1.bf16.msra.mxu0 %v2793
        %3104 = vmatprep.subr.bf16.mxu0 %v2914
        %3105 = vmatpush2.bf16.msra.mxu0 %v2913
        %3106 = vmatprep.subr.bf16.mxu0 %v2906
        %3107 = vmatpush2.bf16.msra.mxu0 %v2905
        %3108 = vmatprep.subr.bf16.mxu0 %v2898
        %3109 = vmatpush2.bf16.msra.mxu0 %v2897
        %3110 = vmatprep.subr.bf16.mxu0 %v2890
        %3111 = vmatpush2.bf16.msra.mxu0 %v2889
        %3112 = vmatprep.subr.bf16.mxu0 %v2882
        %3113 = vmatpush2.bf16.msra.mxu0 %v2881
        %3114 = vmatprep.subr.bf16.mxu0 %v2874
        %3115 = vmatpush2.bf16.msra.mxu0 %v2873
        %3116 = vmatprep.subr.bf16.mxu0 %v2866
        %3117 = vmatpush2.bf16.msra.mxu0 %v2865
        %3118 = vmatprep.subr.bf16.mxu0 %v2858
        %3119 = vmatpush2.bf16.msra.mxu0 %v2857
        %3120 = vmatprep.mubr.bf16.mxu0 %v2236
        %3121 = vmatmul.mubr.bf16.gmra.mxu0 %v2235
        %v3122 = vpop.f32.mrf.mxu0
        %v3123 = vadd.f32 %v2378, %v3122
        %v3124 = vpop.f32.mrf.mxu0
        %v3125 = vadd.f32 %v2382, %v3124
        %v3126 = vpop.f32.mrf.mxu0
        %v3127 = vpop.f32.mrf.mxu0
        %3128 = vdwg.mxu0
        %3129 = vmatprep.subr.bf16.mxu0 %v2852
        %3130 = vmatpush1.bf16.msra.mxu0 %v2851
        %3131 = vmatprep.subr.bf16.mxu0 %v2844
        %3132 = vmatpush1.bf16.msra.mxu0 %v2843
        %3133 = vmatprep.subr.bf16.mxu0 %v2836
        %3134 = vmatpush1.bf16.msra.mxu0 %v2835
        %3135 = vmatprep.subr.bf16.mxu0 %v2828
        %3136 = vmatpush1.bf16.msra.mxu0 %v2827
        %3137 = vmatprep.subr.bf16.mxu0 %v2820
        %3138 = vmatpush1.bf16.msra.mxu0 %v2819
        %3139 = vmatprep.subr.bf16.mxu0 %v2812
        %3140 = vmatpush1.bf16.msra.mxu0 %v2811
        %3141 = vmatprep.subr.bf16.mxu0 %v2804
        %3142 = vmatpush1.bf16.msra.mxu0 %v2803
        %3143 = vmatprep.subr.bf16.mxu0 %v2796
        %3144 = vmatpush1.bf16.msra.mxu0 %v2795
        %3145 = vmatprep.subr.bf16.mxu0 %v2916
        %3146 = vmatpush2.bf16.msra.mxu0 %v2915
        %3147 = vmatprep.subr.bf16.mxu0 %v2908
        %3148 = vmatpush2.bf16.msra.mxu0 %v2907
        %3149 = vmatprep.subr.bf16.mxu0 %v2900
        %3150 = vmatpush2.bf16.msra.mxu0 %v2899
        %3151 = vmatprep.subr.bf16.mxu0 %v2892
        %3152 = vmatpush2.bf16.msra.mxu0 %v2891
        %3153 = vmatprep.subr.bf16.mxu0 %v2884
        %3154 = vmatpush2.bf16.msra.mxu0 %v2883
        %3155 = vmatprep.subr.bf16.mxu0 %v2876
        %3156 = vmatpush2.bf16.msra.mxu0 %v2875
        %3157 = vmatprep.subr.bf16.mxu0 %v2868
        %3158 = vmatpush2.bf16.msra.mxu0 %v2867
        %3159 = vmatprep.subr.bf16.mxu0 %v2860
        %3160 = vmatpush2.bf16.msra.mxu0 %v2859
        %3161 = vmatprep.mubr.bf16.mxu0 %v2236
        %3162 = vmatmul.mubr.bf16.gmra.mxu0 %v2235
        %v3163 = vpop.f32.mrf.mxu0
        %v3164 = vadd.f32 %v2386, %v3163
        %v3165 = vpop.f32.mrf.mxu0
        %v3166 = vadd.f32 %v2390, %v3165
        %v3167 = vpop.f32.mrf.mxu0
        %v3168 = vpop.f32.mrf.mxu0
        %3169 = vdwg.mxu0
        %3170 = vmatprep.subr.bf16.mxu0 %v2854
        %3171 = vmatpush1.bf16.msra.mxu0 %v2853
        %3172 = vmatprep.subr.bf16.mxu0 %v2846
        %3173 = vmatpush1.bf16.msra.mxu0 %v2845
        %3174 = vmatprep.subr.bf16.mxu0 %v2838
        %3175 = vmatpush1.bf16.msra.mxu0 %v2837
        %3176 = vmatprep.subr.bf16.mxu0 %v2830
        %3177 = vmatpush1.bf16.msra.mxu0 %v2829
        %3178 = vmatprep.subr.bf16.mxu0 %v2822
        %3179 = vmatpush1.bf16.msra.mxu0 %v2821
        %3180 = vmatprep.subr.bf16.mxu0 %v2814
        %3181 = vmatpush1.bf16.msra.mxu0 %v2813
        %3182 = vmatprep.subr.bf16.mxu0 %v2806
        %3183 = vmatpush1.bf16.msra.mxu0 %v2805
        %3184 = vmatprep.subr.bf16.mxu0 %v2798
        %3185 = vmatpush1.bf16.msra.mxu0 %v2797
        %3186 = vmatprep.subr.bf16.mxu0 %v2918
        %3187 = vmatpush2.bf16.msra.mxu0 %v2917
        %3188 = vmatprep.subr.bf16.mxu0 %v2910
        %3189 = vmatpush2.bf16.msra.mxu0 %v2909
        %3190 = vmatprep.subr.bf16.mxu0 %v2902
        %3191 = vmatpush2.bf16.msra.mxu0 %v2901
        %3192 = vmatprep.subr.bf16.mxu0 %v2894
        %3193 = vmatpush2.bf16.msra.mxu0 %v2893
        %3194 = vmatprep.subr.bf16.mxu0 %v2886
        %3195 = vmatpush2.bf16.msra.mxu0 %v2885
        %3196 = vmatprep.subr.bf16.mxu0 %v2878
        %3197 = vmatpush2.bf16.msra.mxu0 %v2877
        %3198 = vmatprep.subr.bf16.mxu0 %v2870
        %3199 = vmatpush2.bf16.msra.mxu0 %v2869
        %3200 = vmatprep.subr.bf16.mxu0 %v2862
        %3201 = vmatpush2.bf16.msra.mxu0 %v2861
        %3202 = vmatprep.mubr.bf16.mxu0 %v2236
        %3203 = vmatmul.mubr.bf16.gmra.mxu0 %v2235
        %v3204 = vpop.f32.mrf.mxu0
        %v3205 = vadd.f32 %v2394, %v3204
        %v3206 = vpop.f32.mrf.mxu0
        %v3207 = vadd.f32 %v2398, %v3206
        %v3208 = vpop.f32.mrf.mxu0
        %v3209 = vpop.f32.mrf.mxu0
        %3210 = vdwg.mxu0
        %v3211 = vmul.f32 %v3082, %v3082
        %v3212 = vmul.f32 %v3084, %v3084
        %v3213 = vmul.f32 %v3123, %v3123
        %v3214 = vmul.f32 %v3125, %v3125
        %v3215 = vmul.f32 %v3164, %v3164
        %v3216 = vmul.f32 %v3166, %v3166
        %v3217 = vmul.f32 %v3205, %v3205
        %v3218 = vmul.f32 %v3207, %v3207
        %v3219 = vmul.f32 %v3082, %v3211
        %v3220 = vmul.f32 %v3084, %v3212
        %v3221 = vmul.f32 %v3123, %v3213
        %v3222 = vmul.f32 %v3125, %v3214
        %v3223 = vmul.f32 %v3164, %v3215
        %v3224 = vmul.f32 %v3166, %v3216
        %v3225 = vmul.f32 %v3205, %v3217
        %v3226 = vmul.f32 %v3207, %v3218
        %v3227 = vmul.f32 %v3219, 0.044715
        %v3228 = vmul.f32 %v3220, 0.044715
        %v3229 = vmul.f32 %v3221, 0.044715
        %v3230 = vmul.f32 %v3222, 0.044715
        %v3231 = vmul.f32 %v3223, 0.044715
        %v3232 = vmul.f32 %v3224, 0.044715
        %v3233 = vmul.f32 %v3225, 0.044715
        %v3234 = vmul.f32 %v3226, 0.044715
        %v3235 = vadd.f32 %v3082, %v3227
        %v3236 = vadd.f32 %v3084, %v3228
        %v3237 = vadd.f32 %v3123, %v3229
        %v3238 = vadd.f32 %v3125, %v3230
        %v3239 = vadd.f32 %v3164, %v3231
        %v3240 = vadd.f32 %v3166, %v3232
        %v3241 = vadd.f32 %v3205, %v3233
        %v3242 = vadd.f32 %v3207, %v3234
        %v3243 = vmul.f32 %v3235, 0.7978846
        %v3244 = vmul.f32 %v3236, 0.7978846
        %v3245 = vmul.f32 %v3237, 0.7978846
        %v3246 = vmul.f32 %v3238, 0.7978846
        %v3247 = vmul.f32 %v3239, 0.7978846
        %v3248 = vmul.f32 %v3240, 0.7978846
        %v3249 = vmul.f32 %v3241, 0.7978846
        %v3250 = vmul.f32 %v3242, 0.7978846
        %v3251 = vtanh.pop %v3243
        %v3252 = vtanh.pop %v3244
        %v3253 = vtanh.pop %v3245
        %v3254 = vtanh.pop %v3246
        %v3255 = vtanh.pop %v3247
        %v3256 = vtanh.pop %v3248
        %v3257 = vtanh.pop %v3249
        %v3258 = vtanh.pop %v3250
        %v3259 = vadd.f32 %v3251, 1.0
        %v3260 = vadd.f32 %v3252, 1.0
        %v3261 = vadd.f32 %v3253, 1.0
        %v3262 = vadd.f32 %v3254, 1.0
        %v3263 = vadd.f32 %v3255, 1.0
        %v3264 = vadd.f32 %v3256, 1.0
        %v3265 = vadd.f32 %v3257, 1.0
        %v3266 = vadd.f32 %v3258, 1.0
        %v3267 = vmul.f32 %v3259, 0.5
        %v3268 = vmul.f32 %v3260, 0.5
        %v3269 = vmul.f32 %v3261, 0.5
        %v3270 = vmul.f32 %v3262, 0.5
        %v3271 = vmul.f32 %v3263, 0.5
        %v3272 = vmul.f32 %v3264, 0.5
        %v3273 = vmul.f32 %v3265, 0.5
        %v3274 = vmul.f32 %v3266, 0.5
        %v3275 = vmul.f32 %v3082, %v3267
        %v3276 = vmul.f32 %v3084, %v3268
        %v3277 = vmul.f32 %v3123, %v3269
        %v3278 = vmul.f32 %v3125, %v3270
        %v3279 = vmul.f32 %v3164, %v3271
        %v3280 = vmul.f32 %v3166, %v3272
        %v3281 = vmul.f32 %v3205, %v3273
        %v3282 = vmul.f32 %v3207, %v3274
        %v3283 = vpack.c.bf16 %v3275, %v3275
        %v3284 = vpack.c.bf16 %v3276, %v3276
        %v3285 = vpack.c.bf16 %v3277, %v3277
        %v3286 = vpack.c.bf16 %v3278, %v3278
        %v3287 = vpack.c.bf16 %v3279, %v3279
        %v3288 = vpack.c.bf16 %v3280, %v3280
        %v3289 = vpack.c.bf16 %v3281, %v3281
        %v3290 = vpack.c.bf16 %v3282, %v3282
        %v3291 = vld [vmem:[#allocation19] sm:$0xff]
        %v3292 = vld [vmem:[#allocation19 + $0x8] sm:$0xff]
        %v3293 = vld [vmem:[#allocation19 + $0x10] sm:$0xff]
        %v3294 = vld [vmem:[#allocation19 + $0x18] sm:$0xff]
        %v3295 = vld [vmem:[#allocation19 + $0x20] sm:$0xff]
        %v3296 = vld [vmem:[#allocation19 + $0x28] sm:$0xff]
        %v3297 = vld [vmem:[#allocation19 + $0x30] sm:$0xff]
        %v3298 = vld [vmem:[#allocation19 + $0x38] sm:$0xff]
        %v3299 = vld [vmem:[#allocation19 + $0x40] sm:$0xff]
        %v3300 = vld [vmem:[#allocation19 + $0x48] sm:$0xff]
        %v3301 = vld [vmem:[#allocation19 + $0x50] sm:$0xff]
        %v3302 = vld [vmem:[#allocation19 + $0x58] sm:$0xff]
        %v3303 = vld [vmem:[#allocation19 + $0x60] sm:$0xff]
        %v3304 = vld [vmem:[#allocation19 + $0x68] sm:$0xff]
        %v3305 = vld [vmem:[#allocation19 + $0x70] sm:$0xff]
        %v3306 = vld [vmem:[#allocation19 + $0x78] sm:$0xff]
        %v3307 = vld [vmem:[#allocation19 + $0x80] sm:$0xff]
        %v3308 = vld [vmem:[#allocation19 + $0x88] sm:$0xff]
        %v3309 = vld [vmem:[#allocation19 + $0x90] sm:$0xff]
        %v3310 = vld [vmem:[#allocation19 + $0x98] sm:$0xff]
        %v3311 = vld [vmem:[#allocation19 + $0xa0] sm:$0xff]
        %v3312 = vld [vmem:[#allocation19 + $0xa8] sm:$0xff]
        %v3313 = vld [vmem:[#allocation19 + $0xb0] sm:$0xff]
        %v3314 = vld [vmem:[#allocation19 + $0xb8] sm:$0xff]
        %v3315 = vld [vmem:[#allocation19 + $0xc0] sm:$0xff]
        %v3316 = vld [vmem:[#allocation19 + $0xc8] sm:$0xff]
        %v3317 = vld [vmem:[#allocation19 + $0xd0] sm:$0xff]
        %v3318 = vld [vmem:[#allocation19 + $0xd8] sm:$0xff]
        %v3319 = vld [vmem:[#allocation19 + $0xe0] sm:$0xff]
        %v3320 = vld [vmem:[#allocation19 + $0xe8] sm:$0xff]
        %v3321 = vld [vmem:[#allocation19 + $0xf0] sm:$0xff]
        %v3322 = vld [vmem:[#allocation19 + $0xf8] sm:$0xff]
        %v3323 = vld [vmem:[#allocation19 + $0x100] sm:$0xff]
        %v3324 = vld [vmem:[#allocation19 + $0x108] sm:$0xff]
        %v3325 = vld [vmem:[#allocation19 + $0x110] sm:$0xff]
        %v3326 = vld [vmem:[#allocation19 + $0x118] sm:$0xff]
        %v3327 = vld [vmem:[#allocation19 + $0x120] sm:$0xff]
        %v3328 = vld [vmem:[#allocation19 + $0x128] sm:$0xff]
        %v3329 = vld [vmem:[#allocation19 + $0x130] sm:$0xff]
        %v3330 = vld [vmem:[#allocation19 + $0x138] sm:$0xff]
        %v3331 = vld [vmem:[#allocation19 + $0x140] sm:$0xff]
        %v3332 = vld [vmem:[#allocation19 + $0x148] sm:$0xff]
        %v3333 = vld [vmem:[#allocation19 + $0x150] sm:$0xff]
        %v3334 = vld [vmem:[#allocation19 + $0x158] sm:$0xff]
        %v3335 = vld [vmem:[#allocation19 + $0x160] sm:$0xff]
        %v3336 = vld [vmem:[#allocation19 + $0x168] sm:$0xff]
        %v3337 = vld [vmem:[#allocation19 + $0x170] sm:$0xff]
        %v3338 = vld [vmem:[#allocation19 + $0x178] sm:$0xff]
        %v3339 = vld [vmem:[#allocation19 + $0x180] sm:$0xff]
        %v3340 = vld [vmem:[#allocation19 + $0x188] sm:$0xff]
        %v3341 = vld [vmem:[#allocation19 + $0x190] sm:$0xff]
        %v3342 = vld [vmem:[#allocation19 + $0x198] sm:$0xff]
        %v3343 = vld [vmem:[#allocation19 + $0x1a0] sm:$0xff]
        %v3344 = vld [vmem:[#allocation19 + $0x1a8] sm:$0xff]
        %v3345 = vld [vmem:[#allocation19 + $0x1b0] sm:$0xff]
        %v3346 = vld [vmem:[#allocation19 + $0x1b8] sm:$0xff]
        %v3347 = vld [vmem:[#allocation19 + $0x1c0] sm:$0xff]
        %v3348 = vld [vmem:[#allocation19 + $0x1c8] sm:$0xff]
        %v3349 = vld [vmem:[#allocation19 + $0x1d0] sm:$0xff]
        %v3350 = vld [vmem:[#allocation19 + $0x1d8] sm:$0xff]
        %v3351 = vld [vmem:[#allocation19 + $0x1e0] sm:$0xff]
        %v3352 = vld [vmem:[#allocation19 + $0x1e8] sm:$0xff]
        %v3353 = vld [vmem:[#allocation19 + $0x1f0] sm:$0xff]
        %v3354 = vld [vmem:[#allocation19 + $0x1f8] sm:$0xff]
        %v3355 = vld [vmem:[#allocation19 + $0x200] sm:$0xff]
        %v3356 = vld [vmem:[#allocation19 + $0x208] sm:$0xff]
        %v3357 = vld [vmem:[#allocation19 + $0x210] sm:$0xff]
        %v3358 = vld [vmem:[#allocation19 + $0x218] sm:$0xff]
        %v3359 = vld [vmem:[#allocation19 + $0x220] sm:$0xff]
        %v3360 = vld [vmem:[#allocation19 + $0x228] sm:$0xff]
        %v3361 = vld [vmem:[#allocation19 + $0x230] sm:$0xff]
        %v3362 = vld [vmem:[#allocation19 + $0x238] sm:$0xff]
        %v3363 = vld [vmem:[#allocation19 + $0x240] sm:$0xff]
        %v3364 = vld [vmem:[#allocation19 + $0x248] sm:$0xff]
        %v3365 = vld [vmem:[#allocation19 + $0x250] sm:$0xff]
        %v3366 = vld [vmem:[#allocation19 + $0x258] sm:$0xff]
        %v3367 = vld [vmem:[#allocation19 + $0x260] sm:$0xff]
        %v3368 = vld [vmem:[#allocation19 + $0x268] sm:$0xff]
        %v3369 = vld [vmem:[#allocation19 + $0x270] sm:$0xff]
        %v3370 = vld [vmem:[#allocation19 + $0x278] sm:$0xff]
        %v3371 = vld [vmem:[#allocation19 + $0x280] sm:$0xff]
        %v3372 = vld [vmem:[#allocation19 + $0x288] sm:$0xff]
        %v3373 = vld [vmem:[#allocation19 + $0x290] sm:$0xff]
        %v3374 = vld [vmem:[#allocation19 + $0x298] sm:$0xff]
        %v3375 = vld [vmem:[#allocation19 + $0x2a0] sm:$0xff]
        %v3376 = vld [vmem:[#allocation19 + $0x2a8] sm:$0xff]
        %v3377 = vld [vmem:[#allocation19 + $0x2b0] sm:$0xff]
        %v3378 = vld [vmem:[#allocation19 + $0x2b8] sm:$0xff]
        %v3379 = vld [vmem:[#allocation19 + $0x2c0] sm:$0xff]
        %v3380 = vld [vmem:[#allocation19 + $0x2c8] sm:$0xff]
        %v3381 = vld [vmem:[#allocation19 + $0x2d0] sm:$0xff]
        %v3382 = vld [vmem:[#allocation19 + $0x2d8] sm:$0xff]
        %v3383 = vld [vmem:[#allocation19 + $0x2e0] sm:$0xff]
        %v3384 = vld [vmem:[#allocation19 + $0x2e8] sm:$0xff]
        %v3385 = vld [vmem:[#allocation19 + $0x2f0] sm:$0xff]
        %v3386 = vld [vmem:[#allocation19 + $0x2f8] sm:$0xff]
        %v3387 = vld [vmem:[#allocation19 + $0x300] sm:$0xff]
        %v3388 = vld [vmem:[#allocation19 + $0x308] sm:$0xff]
        %v3389 = vld [vmem:[#allocation19 + $0x310] sm:$0xff]
        %v3390 = vld [vmem:[#allocation19 + $0x318] sm:$0xff]
        %v3391 = vld [vmem:[#allocation19 + $0x320] sm:$0xff]
        %v3392 = vld [vmem:[#allocation19 + $0x328] sm:$0xff]
        %v3393 = vld [vmem:[#allocation19 + $0x330] sm:$0xff]
        %v3394 = vld [vmem:[#allocation19 + $0x338] sm:$0xff]
        %v3395 = vld [vmem:[#allocation19 + $0x340] sm:$0xff]
        %v3396 = vld [vmem:[#allocation19 + $0x348] sm:$0xff]
        %v3397 = vld [vmem:[#allocation19 + $0x350] sm:$0xff]
        %v3398 = vld [vmem:[#allocation19 + $0x358] sm:$0xff]
        %v3399 = vld [vmem:[#allocation19 + $0x360] sm:$0xff]
        %v3400 = vld [vmem:[#allocation19 + $0x368] sm:$0xff]
        %v3401 = vld [vmem:[#allocation19 + $0x370] sm:$0xff]
        %v3402 = vld [vmem:[#allocation19 + $0x378] sm:$0xff]
        %v3403 = vld [vmem:[#allocation19 + $0x380] sm:$0xff]
        %v3404 = vld [vmem:[#allocation19 + $0x388] sm:$0xff]
        %v3405 = vld [vmem:[#allocation19 + $0x390] sm:$0xff]
        %v3406 = vld [vmem:[#allocation19 + $0x398] sm:$0xff]
        %v3407 = vld [vmem:[#allocation19 + $0x3a0] sm:$0xff]
        %v3408 = vld [vmem:[#allocation19 + $0x3a8] sm:$0xff]
        %v3409 = vld [vmem:[#allocation19 + $0x3b0] sm:$0xff]
        %v3410 = vld [vmem:[#allocation19 + $0x3b8] sm:$0xff]
        %v3411 = vld [vmem:[#allocation19 + $0x3c0] sm:$0xff]
        %v3412 = vld [vmem:[#allocation19 + $0x3c8] sm:$0xff]
        %v3413 = vld [vmem:[#allocation19 + $0x3d0] sm:$0xff]
        %v3414 = vld [vmem:[#allocation19 + $0x3d8] sm:$0xff]
        %v3415 = vld [vmem:[#allocation19 + $0x3e0] sm:$0xff]
        %v3416 = vld [vmem:[#allocation19 + $0x3e8] sm:$0xff]
        %v3417 = vld [vmem:[#allocation19 + $0x3f0] sm:$0xff]
        %v3418 = vld [vmem:[#allocation19 + $0x3f8] sm:$0xff]
        %v3419 = vld [vmem:[#allocation20] sm:$0x3]
        %v3421 = vlaneseq
        %v3422 = vshrl.u32 %v3421, 7
        %v3423 = vsub.s32 0, %v3422
        %v3424 = vrot.slane %v3419, %v3423
        %v3425 = vlaneseq
        %v3426 = vshrl.u32 %v3425, 7
        %v3427 = vsub.s32 1, %v3426
        %v3428 = vrot.slane %v3419, %v3427
        %v3559 = vunpack.c.l.b16 %v3291
        %v3560 = vunpack.c.h.b16 %v3291
        %v3561 = vunpack.c.l.b16 %v3292
        %v3562 = vunpack.c.h.b16 %v3292
        %v3563 = vunpack.c.l.b16 %v3293
        %v3564 = vunpack.c.h.b16 %v3293
        %v3565 = vunpack.c.l.b16 %v3294
        %v3566 = vunpack.c.h.b16 %v3294
        %v3567 = vunpack.c.l.b16 %v3295
        %v3568 = vunpack.c.h.b16 %v3295
        %v3569 = vunpack.c.l.b16 %v3296
        %v3570 = vunpack.c.h.b16 %v3296
        %v3571 = vunpack.c.l.b16 %v3297
        %v3572 = vunpack.c.h.b16 %v3297
        %v3573 = vunpack.c.l.b16 %v3298
        %v3574 = vunpack.c.h.b16 %v3298
        %v3575 = vunpack.c.l.b16 %v3299
        %v3576 = vunpack.c.h.b16 %v3299
        %v3577 = vunpack.c.l.b16 %v3300
        %v3578 = vunpack.c.h.b16 %v3300
        %v3579 = vunpack.c.l.b16 %v3301
        %v3580 = vunpack.c.h.b16 %v3301
        %v3581 = vunpack.c.l.b16 %v3302
        %v3582 = vunpack.c.h.b16 %v3302
        %v3583 = vunpack.c.l.b16 %v3303
        %v3584 = vunpack.c.h.b16 %v3303
        %v3585 = vunpack.c.l.b16 %v3304
        %v3586 = vunpack.c.h.b16 %v3304
        %v3587 = vunpack.c.l.b16 %v3305
        %v3588 = vunpack.c.h.b16 %v3305
        %v3589 = vunpack.c.l.b16 %v3306
        %v3590 = vunpack.c.h.b16 %v3306
        %v3591 = vunpack.c.l.b16 %v3307
        %v3592 = vunpack.c.h.b16 %v3307
        %v3593 = vunpack.c.l.b16 %v3308
        %v3594 = vunpack.c.h.b16 %v3308
        %v3595 = vunpack.c.l.b16 %v3309
        %v3596 = vunpack.c.h.b16 %v3309
        %v3597 = vunpack.c.l.b16 %v3310
        %v3598 = vunpack.c.h.b16 %v3310
        %v3599 = vunpack.c.l.b16 %v3311
        %v3600 = vunpack.c.h.b16 %v3311
        %v3601 = vunpack.c.l.b16 %v3312
        %v3602 = vunpack.c.h.b16 %v3312
        %v3603 = vunpack.c.l.b16 %v3313
        %v3604 = vunpack.c.h.b16 %v3313
        %v3605 = vunpack.c.l.b16 %v3314
        %v3606 = vunpack.c.h.b16 %v3314
        %v3607 = vunpack.c.l.b16 %v3315
        %v3608 = vunpack.c.h.b16 %v3315
        %v3609 = vunpack.c.l.b16 %v3316
        %v3610 = vunpack.c.h.b16 %v3316
        %v3611 = vunpack.c.l.b16 %v3317
        %v3612 = vunpack.c.h.b16 %v3317
        %v3613 = vunpack.c.l.b16 %v3318
        %v3614 = vunpack.c.h.b16 %v3318
        %v3615 = vunpack.c.l.b16 %v3319
        %v3616 = vunpack.c.h.b16 %v3319
        %v3617 = vunpack.c.l.b16 %v3320
        %v3618 = vunpack.c.h.b16 %v3320
        %v3619 = vunpack.c.l.b16 %v3321
        %v3620 = vunpack.c.h.b16 %v3321
        %v3621 = vunpack.c.l.b16 %v3322
        %v3622 = vunpack.c.h.b16 %v3322
        %v3623 = vunpack.c.l.b16 %v3323
        %v3624 = vunpack.c.h.b16 %v3323
        %v3625 = vunpack.c.l.b16 %v3324
        %v3626 = vunpack.c.h.b16 %v3324
        %v3627 = vunpack.c.l.b16 %v3325
        %v3628 = vunpack.c.h.b16 %v3325
        %v3629 = vunpack.c.l.b16 %v3326
        %v3630 = vunpack.c.h.b16 %v3326
        %v3631 = vunpack.c.l.b16 %v3327
        %v3632 = vunpack.c.h.b16 %v3327
        %v3633 = vunpack.c.l.b16 %v3328
        %v3634 = vunpack.c.h.b16 %v3328
        %v3635 = vunpack.c.l.b16 %v3329
        %v3636 = vunpack.c.h.b16 %v3329
        %v3637 = vunpack.c.l.b16 %v3330
        %v3638 = vunpack.c.h.b16 %v3330
        %v3639 = vunpack.c.l.b16 %v3331
        %v3640 = vunpack.c.h.b16 %v3331
        %v3641 = vunpack.c.l.b16 %v3332
        %v3642 = vunpack.c.h.b16 %v3332
        %v3643 = vunpack.c.l.b16 %v3333
        %v3644 = vunpack.c.h.b16 %v3333
        %v3645 = vunpack.c.l.b16 %v3334
        %v3646 = vunpack.c.h.b16 %v3334
        %v3647 = vunpack.c.l.b16 %v3335
        %v3648 = vunpack.c.h.b16 %v3335
        %v3649 = vunpack.c.l.b16 %v3336
        %v3650 = vunpack.c.h.b16 %v3336
        %v3651 = vunpack.c.l.b16 %v3337
        %v3652 = vunpack.c.h.b16 %v3337
        %v3653 = vunpack.c.l.b16 %v3338
        %v3654 = vunpack.c.h.b16 %v3338
        %v3655 = vunpack.c.l.b16 %v3339
        %v3656 = vunpack.c.h.b16 %v3339
        %v3657 = vunpack.c.l.b16 %v3340
        %v3658 = vunpack.c.h.b16 %v3340
        %v3659 = vunpack.c.l.b16 %v3341
        %v3660 = vunpack.c.h.b16 %v3341
        %v3661 = vunpack.c.l.b16 %v3342
        %v3662 = vunpack.c.h.b16 %v3342
        %v3663 = vunpack.c.l.b16 %v3343
        %v3664 = vunpack.c.h.b16 %v3343
        %v3665 = vunpack.c.l.b16 %v3344
        %v3666 = vunpack.c.h.b16 %v3344
        %v3667 = vunpack.c.l.b16 %v3345
        %v3668 = vunpack.c.h.b16 %v3345
        %v3669 = vunpack.c.l.b16 %v3346
        %v3670 = vunpack.c.h.b16 %v3346
        %v3671 = vunpack.c.l.b16 %v3347
        %v3672 = vunpack.c.h.b16 %v3347
        %v3673 = vunpack.c.l.b16 %v3348
        %v3674 = vunpack.c.h.b16 %v3348
        %v3675 = vunpack.c.l.b16 %v3349
        %v3676 = vunpack.c.h.b16 %v3349
        %v3677 = vunpack.c.l.b16 %v3350
        %v3678 = vunpack.c.h.b16 %v3350
        %v3679 = vunpack.c.l.b16 %v3351
        %v3680 = vunpack.c.h.b16 %v3351
        %v3681 = vunpack.c.l.b16 %v3352
        %v3682 = vunpack.c.h.b16 %v3352
        %v3683 = vunpack.c.l.b16 %v3353
        %v3684 = vunpack.c.h.b16 %v3353
        %v3685 = vunpack.c.l.b16 %v3354
        %v3686 = vunpack.c.h.b16 %v3354
        %v3687 = vunpack.c.l.b16 %v3355
        %v3688 = vunpack.c.h.b16 %v3355
        %v3689 = vunpack.c.l.b16 %v3356
        %v3690 = vunpack.c.h.b16 %v3356
        %v3691 = vunpack.c.l.b16 %v3357
        %v3692 = vunpack.c.h.b16 %v3357
        %v3693 = vunpack.c.l.b16 %v3358
        %v3694 = vunpack.c.h.b16 %v3358
        %v3695 = vunpack.c.l.b16 %v3359
        %v3696 = vunpack.c.h.b16 %v3359
        %v3697 = vunpack.c.l.b16 %v3360
        %v3698 = vunpack.c.h.b16 %v3360
        %v3699 = vunpack.c.l.b16 %v3361
        %v3700 = vunpack.c.h.b16 %v3361
        %v3701 = vunpack.c.l.b16 %v3362
        %v3702 = vunpack.c.h.b16 %v3362
        %v3703 = vunpack.c.l.b16 %v3363
        %v3704 = vunpack.c.h.b16 %v3363
        %v3705 = vunpack.c.l.b16 %v3364
        %v3706 = vunpack.c.h.b16 %v3364
        %v3707 = vunpack.c.l.b16 %v3365
        %v3708 = vunpack.c.h.b16 %v3365
        %v3709 = vunpack.c.l.b16 %v3366
        %v3710 = vunpack.c.h.b16 %v3366
        %v3711 = vunpack.c.l.b16 %v3367
        %v3712 = vunpack.c.h.b16 %v3367
        %v3713 = vunpack.c.l.b16 %v3368
        %v3714 = vunpack.c.h.b16 %v3368
        %v3715 = vunpack.c.l.b16 %v3369
        %v3716 = vunpack.c.h.b16 %v3369
        %v3717 = vunpack.c.l.b16 %v3370
        %v3718 = vunpack.c.h.b16 %v3370
        %v3719 = vunpack.c.l.b16 %v3371
        %v3720 = vunpack.c.h.b16 %v3371
        %v3721 = vunpack.c.l.b16 %v3372
        %v3722 = vunpack.c.h.b16 %v3372
        %v3723 = vunpack.c.l.b16 %v3373
        %v3724 = vunpack.c.h.b16 %v3373
        %v3725 = vunpack.c.l.b16 %v3374
        %v3726 = vunpack.c.h.b16 %v3374
        %v3727 = vunpack.c.l.b16 %v3375
        %v3728 = vunpack.c.h.b16 %v3375
        %v3729 = vunpack.c.l.b16 %v3376
        %v3730 = vunpack.c.h.b16 %v3376
        %v3731 = vunpack.c.l.b16 %v3377
        %v3732 = vunpack.c.h.b16 %v3377
        %v3733 = vunpack.c.l.b16 %v3378
        %v3734 = vunpack.c.h.b16 %v3378
        %v3735 = vunpack.c.l.b16 %v3379
        %v3736 = vunpack.c.h.b16 %v3379
        %v3737 = vunpack.c.l.b16 %v3380
        %v3738 = vunpack.c.h.b16 %v3380
        %v3739 = vunpack.c.l.b16 %v3381
        %v3740 = vunpack.c.h.b16 %v3381
        %v3741 = vunpack.c.l.b16 %v3382
        %v3742 = vunpack.c.h.b16 %v3382
        %v3743 = vunpack.c.l.b16 %v3383
        %v3744 = vunpack.c.h.b16 %v3383
        %v3745 = vunpack.c.l.b16 %v3384
        %v3746 = vunpack.c.h.b16 %v3384
        %v3747 = vunpack.c.l.b16 %v3385
        %v3748 = vunpack.c.h.b16 %v3385
        %v3749 = vunpack.c.l.b16 %v3386
        %v3750 = vunpack.c.h.b16 %v3386
        %v3751 = vunpack.c.l.b16 %v3387
        %v3752 = vunpack.c.h.b16 %v3387
        %v3753 = vunpack.c.l.b16 %v3388
        %v3754 = vunpack.c.h.b16 %v3388
        %v3755 = vunpack.c.l.b16 %v3389
        %v3756 = vunpack.c.h.b16 %v3389
        %v3757 = vunpack.c.l.b16 %v3390
        %v3758 = vunpack.c.h.b16 %v3390
        %v3759 = vunpack.c.l.b16 %v3391
        %v3760 = vunpack.c.h.b16 %v3391
        %v3761 = vunpack.c.l.b16 %v3392
        %v3762 = vunpack.c.h.b16 %v3392
        %v3763 = vunpack.c.l.b16 %v3393
        %v3764 = vunpack.c.h.b16 %v3393
        %v3765 = vunpack.c.l.b16 %v3394
        %v3766 = vunpack.c.h.b16 %v3394
        %v3767 = vunpack.c.l.b16 %v3395
        %v3768 = vunpack.c.h.b16 %v3395
        %v3769 = vunpack.c.l.b16 %v3396
        %v3770 = vunpack.c.h.b16 %v3396
        %v3771 = vunpack.c.l.b16 %v3397
        %v3772 = vunpack.c.h.b16 %v3397
        %v3773 = vunpack.c.l.b16 %v3398
        %v3774 = vunpack.c.h.b16 %v3398
        %v3775 = vunpack.c.l.b16 %v3399
        %v3776 = vunpack.c.h.b16 %v3399
        %v3777 = vunpack.c.l.b16 %v3400
        %v3778 = vunpack.c.h.b16 %v3400
        %v3779 = vunpack.c.l.b16 %v3401
        %v3780 = vunpack.c.h.b16 %v3401
        %v3781 = vunpack.c.l.b16 %v3402
        %v3782 = vunpack.c.h.b16 %v3402
        %v3783 = vunpack.c.l.b16 %v3403
        %v3784 = vunpack.c.h.b16 %v3403
        %v3785 = vunpack.c.l.b16 %v3404
        %v3786 = vunpack.c.h.b16 %v3404
        %v3787 = vunpack.c.l.b16 %v3405
        %v3788 = vunpack.c.h.b16 %v3405
        %v3789 = vunpack.c.l.b16 %v3406
        %v3790 = vunpack.c.h.b16 %v3406
        %v3791 = vunpack.c.l.b16 %v3407
        %v3792 = vunpack.c.h.b16 %v3407
        %v3793 = vunpack.c.l.b16 %v3408
        %v3794 = vunpack.c.h.b16 %v3408
        %v3795 = vunpack.c.l.b16 %v3409
        %v3796 = vunpack.c.h.b16 %v3409
        %v3797 = vunpack.c.l.b16 %v3410
        %v3798 = vunpack.c.h.b16 %v3410
        %v3799 = vunpack.c.l.b16 %v3411
        %v3800 = vunpack.c.h.b16 %v3411
        %v3801 = vunpack.c.l.b16 %v3412
        %v3802 = vunpack.c.h.b16 %v3412
        %v3803 = vunpack.c.l.b16 %v3413
        %v3804 = vunpack.c.h.b16 %v3413
        %v3805 = vunpack.c.l.b16 %v3414
        %v3806 = vunpack.c.h.b16 %v3414
        %v3807 = vunpack.c.l.b16 %v3415
        %v3808 = vunpack.c.h.b16 %v3415
        %v3809 = vunpack.c.l.b16 %v3416
        %v3810 = vunpack.c.h.b16 %v3416
        %v3811 = vunpack.c.l.b16 %v3417
        %v3812 = vunpack.c.h.b16 %v3417
        %v3813 = vunpack.c.l.b16 %v3418
        %v3814 = vunpack.c.h.b16 %v3418
        %v3815 = vpack.c.b16 %v3561, %v3559
        %v3816 = vpack.c.b16 %v3562, %v3560
        %v3817 = vpack.c.b16 %v3565, %v3563
        %v3818 = vpack.c.b16 %v3566, %v3564
        %v3819 = vpack.c.b16 %v3569, %v3567
        %v3820 = vpack.c.b16 %v3570, %v3568
        %v3821 = vpack.c.b16 %v3573, %v3571
        %v3822 = vpack.c.b16 %v3574, %v3572
        %v3823 = vpack.c.b16 %v3577, %v3575
        %v3824 = vpack.c.b16 %v3578, %v3576
        %v3825 = vpack.c.b16 %v3581, %v3579
        %v3826 = vpack.c.b16 %v3582, %v3580
        %v3827 = vpack.c.b16 %v3585, %v3583
        %v3828 = vpack.c.b16 %v3586, %v3584
        %v3829 = vpack.c.b16 %v3589, %v3587
        %v3830 = vpack.c.b16 %v3590, %v3588
        %v3831 = vpack.c.b16 %v3593, %v3591
        %v3832 = vpack.c.b16 %v3594, %v3592
        %v3833 = vpack.c.b16 %v3597, %v3595
        %v3834 = vpack.c.b16 %v3598, %v3596
        %v3835 = vpack.c.b16 %v3601, %v3599
        %v3836 = vpack.c.b16 %v3602, %v3600
        %v3837 = vpack.c.b16 %v3605, %v3603
        %v3838 = vpack.c.b16 %v3606, %v3604
        %v3839 = vpack.c.b16 %v3609, %v3607
        %v3840 = vpack.c.b16 %v3610, %v3608
        %v3841 = vpack.c.b16 %v3613, %v3611
        %v3842 = vpack.c.b16 %v3614, %v3612
        %v3843 = vpack.c.b16 %v3617, %v3615
        %v3844 = vpack.c.b16 %v3618, %v3616
        %v3845 = vpack.c.b16 %v3621, %v3619
        %v3846 = vpack.c.b16 %v3622, %v3620
        %v3847 = vpack.c.b16 %v3625, %v3623
        %v3848 = vpack.c.b16 %v3626, %v3624
        %v3849 = vpack.c.b16 %v3629, %v3627
        %v3850 = vpack.c.b16 %v3630, %v3628
        %v3851 = vpack.c.b16 %v3633, %v3631
        %v3852 = vpack.c.b16 %v3634, %v3632
        %v3853 = vpack.c.b16 %v3637, %v3635
        %v3854 = vpack.c.b16 %v3638, %v3636
        %v3855 = vpack.c.b16 %v3641, %v3639
        %v3856 = vpack.c.b16 %v3642, %v3640
        %v3857 = vpack.c.b16 %v3645, %v3643
        %v3858 = vpack.c.b16 %v3646, %v3644
        %v3859 = vpack.c.b16 %v3649, %v3647
        %v3860 = vpack.c.b16 %v3650, %v3648
        %v3861 = vpack.c.b16 %v3653, %v3651
        %v3862 = vpack.c.b16 %v3654, %v3652
        %v3863 = vpack.c.b16 %v3657, %v3655
        %v3864 = vpack.c.b16 %v3658, %v3656
        %v3865 = vpack.c.b16 %v3661, %v3659
        %v3866 = vpack.c.b16 %v3662, %v3660
        %v3867 = vpack.c.b16 %v3665, %v3663
        %v3868 = vpack.c.b16 %v3666, %v3664
        %v3869 = vpack.c.b16 %v3669, %v3667
        %v3870 = vpack.c.b16 %v3670, %v3668
        %v3871 = vpack.c.b16 %v3673, %v3671
        %v3872 = vpack.c.b16 %v3674, %v3672
        %v3873 = vpack.c.b16 %v3677, %v3675
        %v3874 = vpack.c.b16 %v3678, %v3676
        %v3875 = vpack.c.b16 %v3681, %v3679
        %v3876 = vpack.c.b16 %v3682, %v3680
        %v3877 = vpack.c.b16 %v3685, %v3683
        %v3878 = vpack.c.b16 %v3686, %v3684
        %v3879 = vpack.c.b16 %v3689, %v3687
        %v3880 = vpack.c.b16 %v3690, %v3688
        %v3881 = vpack.c.b16 %v3693, %v3691
        %v3882 = vpack.c.b16 %v3694, %v3692
        %v3883 = vpack.c.b16 %v3697, %v3695
        %v3884 = vpack.c.b16 %v3698, %v3696
        %v3885 = vpack.c.b16 %v3701, %v3699
        %v3886 = vpack.c.b16 %v3702, %v3700
        %v3887 = vpack.c.b16 %v3705, %v3703
        %v3888 = vpack.c.b16 %v3706, %v3704
        %v3889 = vpack.c.b16 %v3709, %v3707
        %v3890 = vpack.c.b16 %v3710, %v3708
        %v3891 = vpack.c.b16 %v3713, %v3711
        %v3892 = vpack.c.b16 %v3714, %v3712
        %v3893 = vpack.c.b16 %v3717, %v3715
        %v3894 = vpack.c.b16 %v3718, %v3716
        %v3895 = vpack.c.b16 %v3721, %v3719
        %v3896 = vpack.c.b16 %v3722, %v3720
        %v3897 = vpack.c.b16 %v3725, %v3723
        %v3898 = vpack.c.b16 %v3726, %v3724
        %v3899 = vpack.c.b16 %v3729, %v3727
        %v3900 = vpack.c.b16 %v3730, %v3728
        %v3901 = vpack.c.b16 %v3733, %v3731
        %v3902 = vpack.c.b16 %v3734, %v3732
        %v3903 = vpack.c.b16 %v3737, %v3735
        %v3904 = vpack.c.b16 %v3738, %v3736
        %v3905 = vpack.c.b16 %v3741, %v3739
        %v3906 = vpack.c.b16 %v3742, %v3740
        %v3907 = vpack.c.b16 %v3745, %v3743
        %v3908 = vpack.c.b16 %v3746, %v3744
        %v3909 = vpack.c.b16 %v3749, %v3747
        %v3910 = vpack.c.b16 %v3750, %v3748
        %v3911 = vpack.c.b16 %v3753, %v3751
        %v3912 = vpack.c.b16 %v3754, %v3752
        %v3913 = vpack.c.b16 %v3757, %v3755
        %v3914 = vpack.c.b16 %v3758, %v3756
        %v3915 = vpack.c.b16 %v3761, %v3759
        %v3916 = vpack.c.b16 %v3762, %v3760
        %v3917 = vpack.c.b16 %v3765, %v3763
        %v3918 = vpack.c.b16 %v3766, %v3764
        %v3919 = vpack.c.b16 %v3769, %v3767
        %v3920 = vpack.c.b16 %v3770, %v3768
        %v3921 = vpack.c.b16 %v3773, %v3771
        %v3922 = vpack.c.b16 %v3774, %v3772
        %v3923 = vpack.c.b16 %v3777, %v3775
        %v3924 = vpack.c.b16 %v3778, %v3776
        %v3925 = vpack.c.b16 %v3781, %v3779
        %v3926 = vpack.c.b16 %v3782, %v3780
        %v3927 = vpack.c.b16 %v3785, %v3783
        %v3928 = vpack.c.b16 %v3786, %v3784
        %v3929 = vpack.c.b16 %v3789, %v3787
        %v3930 = vpack.c.b16 %v3790, %v3788
        %v3931 = vpack.c.b16 %v3793, %v3791
        %v3932 = vpack.c.b16 %v3794, %v3792
        %v3933 = vpack.c.b16 %v3797, %v3795
        %v3934 = vpack.c.b16 %v3798, %v3796
        %v3935 = vpack.c.b16 %v3801, %v3799
        %v3936 = vpack.c.b16 %v3802, %v3800
        %v3937 = vpack.c.b16 %v3805, %v3803
        %v3938 = vpack.c.b16 %v3806, %v3804
        %v3939 = vpack.c.b16 %v3809, %v3807
        %v3940 = vpack.c.b16 %v3810, %v3808
        %v3941 = vpack.c.b16 %v3813, %v3811
        %v3942 = vpack.c.b16 %v3814, %v3812
        %4071 = vmatprep.subr.bf16.mxu0 %v3830
        %4072 = vmatpush1.bf16.msra.mxu0 %v3829
        %4073 = vmatprep.subr.bf16.mxu0 %v3828
        %4074 = vmatpush1.bf16.msra.mxu0 %v3827
        %4075 = vmatprep.subr.bf16.mxu0 %v3826
        %4076 = vmatpush1.bf16.msra.mxu0 %v3825
        %4077 = vmatprep.subr.bf16.mxu0 %v3824
        %4078 = vmatpush1.bf16.msra.mxu0 %v3823
        %4079 = vmatprep.subr.bf16.mxu0 %v3822
        %4080 = vmatpush1.bf16.msra.mxu0 %v3821
        %4081 = vmatprep.subr.bf16.mxu0 %v3820
        %4082 = vmatpush1.bf16.msra.mxu0 %v3819
        %4083 = vmatprep.subr.bf16.mxu0 %v3818
        %4084 = vmatpush1.bf16.msra.mxu0 %v3817
        %4085 = vmatprep.subr.bf16.mxu0 %v3816
        %4086 = vmatpush1.bf16.msra.mxu0 %v3815
        %4087 = vmatprep.subr.bf16.mxu0 %v3846
        %4088 = vmatpush2.bf16.msra.mxu0 %v3845
        %4089 = vmatprep.subr.bf16.mxu0 %v3844
        %4090 = vmatpush2.bf16.msra.mxu0 %v3843
        %4091 = vmatprep.subr.bf16.mxu0 %v3842
        %4092 = vmatpush2.bf16.msra.mxu0 %v3841
        %4093 = vmatprep.subr.bf16.mxu0 %v3840
        %4094 = vmatpush2.bf16.msra.mxu0 %v3839
        %4095 = vmatprep.subr.bf16.mxu0 %v3838
        %4096 = vmatpush2.bf16.msra.mxu0 %v3837
        %4097 = vmatprep.subr.bf16.mxu0 %v3836
        %4098 = vmatpush2.bf16.msra.mxu0 %v3835
        %4099 = vmatprep.subr.bf16.mxu0 %v3834
        %4100 = vmatpush2.bf16.msra.mxu0 %v3833
        %4101 = vmatprep.subr.bf16.mxu0 %v3832
        %4102 = vmatpush2.bf16.msra.mxu0 %v3831
        %4103 = vmatprep.mubr.bf16.mxu0 %v3284
        %4104 = vmatmul.mubr.bf16.gmra.mxu0 %v3283
        %v4105 = vpop.f32.mrf.mxu0
        %v4106 = vadd.f32 %v3424, %v4105
        %v4107 = vpop.f32.mrf.mxu0
        %v4108 = vadd.f32 %v3428, %v4107
        %v4109 = vpop.f32.mrf.mxu0
        %v4110 = vpop.f32.mrf.mxu0
        %4111 = vdwg.mxu0
        %4112 = vmatprep.subr.bf16.mxu0 %v3862
        %4113 = vmatpush1.bf16.msra.mxu0 %v3861
        %4114 = vmatprep.subr.bf16.mxu0 %v3860
        %4115 = vmatpush1.bf16.msra.mxu0 %v3859
        %4116 = vmatprep.subr.bf16.mxu0 %v3858
        %4117 = vmatpush1.bf16.msra.mxu0 %v3857
        %4118 = vmatprep.subr.bf16.mxu0 %v3856
        %4119 = vmatpush1.bf16.msra.mxu0 %v3855
        %4120 = vmatprep.subr.bf16.mxu0 %v3854
        %4121 = vmatpush1.bf16.msra.mxu0 %v3853
        %4122 = vmatprep.subr.bf16.mxu0 %v3852
        %4123 = vmatpush1.bf16.msra.mxu0 %v3851
        %4124 = vmatprep.subr.bf16.mxu0 %v3850
        %4125 = vmatpush1.bf16.msra.mxu0 %v3849
        %4126 = vmatprep.subr.bf16.mxu0 %v3848
        %4127 = vmatpush1.bf16.msra.mxu0 %v3847
        %4128 = vmatprep.subr.bf16.mxu0 %v3878
        %4129 = vmatpush2.bf16.msra.mxu0 %v3877
        %4130 = vmatprep.subr.bf16.mxu0 %v3876
        %4131 = vmatpush2.bf16.msra.mxu0 %v3875
        %4132 = vmatprep.subr.bf16.mxu0 %v3874
        %4133 = vmatpush2.bf16.msra.mxu0 %v3873
        %4134 = vmatprep.subr.bf16.mxu0 %v3872
        %4135 = vmatpush2.bf16.msra.mxu0 %v3871
        %4136 = vmatprep.subr.bf16.mxu0 %v3870
        %4137 = vmatpush2.bf16.msra.mxu0 %v3869
        %4138 = vmatprep.subr.bf16.mxu0 %v3868
        %4139 = vmatpush2.bf16.msra.mxu0 %v3867
        %4140 = vmatprep.subr.bf16.mxu0 %v3866
        %4141 = vmatpush2.bf16.msra.mxu0 %v3865
        %4142 = vmatprep.subr.bf16.mxu0 %v3864
        %4143 = vmatpush2.bf16.msra.mxu0 %v3863
        %4144 = vmatprep.mubr.bf16.mxu0 %v3286
        %4145 = vmatmul.mubr.bf16.gmra.mxu0 %v3285
        %v4146 = vpop.f32.mrf.mxu0
        %v4147 = vadd.f32 %v4106, %v4146
        %v4148 = vpop.f32.mrf.mxu0
        %v4149 = vadd.f32 %v4108, %v4148
        %v4150 = vpop.f32.mrf.mxu0
        %v4151 = vpop.f32.mrf.mxu0
        %4152 = vdwg.mxu0
        %4153 = vmatprep.subr.bf16.mxu0 %v3894
        %4154 = vmatpush1.bf16.msra.mxu0 %v3893
        %4155 = vmatprep.subr.bf16.mxu0 %v3892
        %4156 = vmatpush1.bf16.msra.mxu0 %v3891
        %4157 = vmatprep.subr.bf16.mxu0 %v3890
        %4158 = vmatpush1.bf16.msra.mxu0 %v3889
        %4159 = vmatprep.subr.bf16.mxu0 %v3888
        %4160 = vmatpush1.bf16.msra.mxu0 %v3887
        %4161 = vmatprep.subr.bf16.mxu0 %v3886
        %4162 = vmatpush1.bf16.msra.mxu0 %v3885
        %4163 = vmatprep.subr.bf16.mxu0 %v3884
        %4164 = vmatpush1.bf16.msra.mxu0 %v3883
        %4165 = vmatprep.subr.bf16.mxu0 %v3882
        %4166 = vmatpush1.bf16.msra.mxu0 %v3881
        %4167 = vmatprep.subr.bf16.mxu0 %v3880
        %4168 = vmatpush1.bf16.msra.mxu0 %v3879
        %4169 = vmatprep.subr.bf16.mxu0 %v3910
        %4170 = vmatpush2.bf16.msra.mxu0 %v3909
        %4171 = vmatprep.subr.bf16.mxu0 %v3908
        %4172 = vmatpush2.bf16.msra.mxu0 %v3907
        %4173 = vmatprep.subr.bf16.mxu0 %v3906
        %4174 = vmatpush2.bf16.msra.mxu0 %v3905
        %4175 = vmatprep.subr.bf16.mxu0 %v3904
        %4176 = vmatpush2.bf16.msra.mxu0 %v3903
        %4177 = vmatprep.subr.bf16.mxu0 %v3902
        %4178 = vmatpush2.bf16.msra.mxu0 %v3901
        %4179 = vmatprep.subr.bf16.mxu0 %v3900
        %4180 = vmatpush2.bf16.msra.mxu0 %v3899
        %4181 = vmatprep.subr.bf16.mxu0 %v3898
        %4182 = vmatpush2.bf16.msra.mxu0 %v3897
        %4183 = vmatprep.subr.bf16.mxu0 %v3896
        %4184 = vmatpush2.bf16.msra.mxu0 %v3895
        %4185 = vmatprep.mubr.bf16.mxu0 %v3288
        %4186 = vmatmul.mubr.bf16.gmra.mxu0 %v3287
        %v4187 = vpop.f32.mrf.mxu0
        %v4188 = vadd.f32 %v4147, %v4187
        %v4189 = vpop.f32.mrf.mxu0
        %v4190 = vadd.f32 %v4149, %v4189
        %v4191 = vpop.f32.mrf.mxu0
        %v4192 = vpop.f32.mrf.mxu0
        %4193 = vdwg.mxu0
        %4194 = vmatprep.subr.bf16.mxu0 %v3926
        %4195 = vmatpush1.bf16.msra.mxu0 %v3925
        %4196 = vmatprep.subr.bf16.mxu0 %v3924
        %4197 = vmatpush1.bf16.msra.mxu0 %v3923
        %4198 = vmatprep.subr.bf16.mxu0 %v3922
        %4199 = vmatpush1.bf16.msra.mxu0 %v3921
        %4200 = vmatprep.subr.bf16.mxu0 %v3920
        %4201 = vmatpush1.bf16.msra.mxu0 %v3919
        %4202 = vmatprep.subr.bf16.mxu0 %v3918
        %4203 = vmatpush1.bf16.msra.mxu0 %v3917
        %4204 = vmatprep.subr.bf16.mxu0 %v3916
        %4205 = vmatpush1.bf16.msra.mxu0 %v3915
        %4206 = vmatprep.subr.bf16.mxu0 %v3914
        %4207 = vmatpush1.bf16.msra.mxu0 %v3913
        %4208 = vmatprep.subr.bf16.mxu0 %v3912
        %4209 = vmatpush1.bf16.msra.mxu0 %v3911
        %4210 = vmatprep.subr.bf16.mxu0 %v3942
        %4211 = vmatpush2.bf16.msra.mxu0 %v3941
        %4212 = vmatprep.subr.bf16.mxu0 %v3940
        %4213 = vmatpush2.bf16.msra.mxu0 %v3939
        %4214 = vmatprep.subr.bf16.mxu0 %v3938
        %4215 = vmatpush2.bf16.msra.mxu0 %v3937
        %4216 = vmatprep.subr.bf16.mxu0 %v3936
        %4217 = vmatpush2.bf16.msra.mxu0 %v3935
        %4218 = vmatprep.subr.bf16.mxu0 %v3934
        %4219 = vmatpush2.bf16.msra.mxu0 %v3933
        %4220 = vmatprep.subr.bf16.mxu0 %v3932
        %4221 = vmatpush2.bf16.msra.mxu0 %v3931
        %4222 = vmatprep.subr.bf16.mxu0 %v3930
        %4223 = vmatpush2.bf16.msra.mxu0 %v3929
        %4224 = vmatprep.subr.bf16.mxu0 %v3928
        %4225 = vmatpush2.bf16.msra.mxu0 %v3927
        %4226 = vmatprep.mubr.bf16.mxu0 %v3290
        %4227 = vmatmul.mubr.bf16.gmra.mxu0 %v3289
        %v4228 = vpop.f32.mrf.mxu0
        %v4229 = vadd.f32 %v4188, %v4228
        %v4230 = vpop.f32.mrf.mxu0
        %v4231 = vadd.f32 %v4190, %v4230
        %v4232 = vpop.f32.mrf.mxu0
        %v4233 = vpop.f32.mrf.mxu0
        %4234 = vdwg.mxu0
        %v4235 = vadd.f32 %v2233, %v4229
        %v4236 = vadd.f32 %v2234, %v4231
        %v4237 = vld [vmem:[%s14] sm:$0x3]
        %v4238 = vld [vmem:[#allocation22] sm:$0x3]
        %v4239 = vadd.f32 %v4235, %v4236
        %4240 = vadd.xlane.f32.xlu0 %v4239
        %v4241 = vpop.xlane.xlu0 %4240
        %v4242 = vmul.f32 %v4241, %v909
        %v4243 = vsub.f32 %v4235, %v4242
        %v4244 = vsub.f32 %v4236, %v4242
        %v4245 = vmul.f32 %v4243, %v4243
        %v4246 = vmul.f32 %v4244, %v4244
        %v4247 = vadd.f32 %v4245, %v4246
        %4248 = vadd.xlane.f32.xlu0 %v4247
        %v4249 = vpop.xlane.xlu0 %4248
        %v4250 = vmul.f32 %v4249, %v909
        %v4251 = vadd.f32 %v4250, 1e-12
        %v4252 = vrsqrt.pop %v4251
        %v4253 = vmul.f32 %v4243, %v4252
        %v4254 = vmul.f32 %v4244, %v4252
        %v4256 = vlaneseq
        %v4257 = vshrl.u32 %v4256, 7
        %v4258 = vsub.s32 0, %v4257
        %v4259 = vrot.slane %v4237, %v4258
        %v4260 = vlaneseq
        %v4261 = vshrl.u32 %v4260, 7
        %v4262 = vsub.s32 1, %v4261
        %v4263 = vrot.slane %v4237, %v4262
        %v4266 = vmul.f32 %v4253, %v4259
        %v4267 = vmul.f32 %v4254, %v4263
        %v4269 = vlaneseq
        %v4270 = vshrl.u32 %v4269, 7
        %v4271 = vsub.s32 0, %v4270
        %v4272 = vrot.slane %v4238, %v4271
        %v4273 = vlaneseq
        %v4274 = vshrl.u32 %v4273, 7
        %v4275 = vsub.s32 1, %v4274
        %v4276 = vrot.slane %v4238, %v4275
        %v4279 = vadd.f32 %v4266, %v4272
        %v4280 = vadd.f32 %v4267, %v4276
        %v4281 = vpack.c.bf16 %v4279, %v4279
        %v4282 = vpack.c.bf16 %v4280, %v4280
        %s4283 = scalar_lea.vmem [#allocation10], 768
        %v4284 = vld [vmem:[%s4283] sm:$0xff]
        %v4285 = vld [vmem:[%s4283 + $0x8] sm:$0xff]
        %v4286 = vld [vmem:[%s4283 + $0x10] sm:$0xff]
        %v4287 = vld [vmem:[%s4283 + $0x18] sm:$0xff]
        %v4288 = vld [vmem:[%s4283 + $0x20] sm:$0xff]
        %v4289 = vld [vmem:[%s4283 + $0x28] sm:$0xff]
        %v4290 = vld [vmem:[%s4283 + $0x30] sm:$0xff]
        %v4291 = vld [vmem:[%s4283 + $0x38] sm:$0xff]
        %v4292 = vld [vmem:[%s4283 + $0x40] sm:$0xff]
        %v4293 = vld [vmem:[%s4283 + $0x48] sm:$0xff]
        %v4294 = vld [vmem:[%s4283 + $0x50] sm:$0xff]
        %v4295 = vld [vmem:[%s4283 + $0x58] sm:$0xff]
        %v4296 = vld [vmem:[%s4283 + $0x60] sm:$0xff]
        %v4297 = vld [vmem:[%s4283 + $0x68] sm:$0xff]
        %v4298 = vld [vmem:[%s4283 + $0x70] sm:$0xff]
        %v4299 = vld [vmem:[%s4283 + $0x78] sm:$0xff]
        %v4300 = vld [vmem:[%s4283 + $0x80] sm:$0xff]
        %v4301 = vld [vmem:[%s4283 + $0x88] sm:$0xff]
        %v4302 = vld [vmem:[%s4283 + $0x90] sm:$0xff]
        %v4303 = vld [vmem:[%s4283 + $0x98] sm:$0xff]
        %v4304 = vld [vmem:[%s4283 + $0xa0] sm:$0xff]
        %v4305 = vld [vmem:[%s4283 + $0xa8] sm:$0xff]
        %v4306 = vld [vmem:[%s4283 + $0xb0] sm:$0xff]
        %v4307 = vld [vmem:[%s4283 + $0xb8] sm:$0xff]
        %v4308 = vld [vmem:[%s4283 + $0xc0] sm:$0xff]
        %v4309 = vld [vmem:[%s4283 + $0xc8] sm:$0xff]
        %v4310 = vld [vmem:[%s4283 + $0xd0] sm:$0xff]
        %v4311 = vld [vmem:[%s4283 + $0xd8] sm:$0xff]
        %v4312 = vld [vmem:[%s4283 + $0xe0] sm:$0xff]
        %v4313 = vld [vmem:[%s4283 + $0xe8] sm:$0xff]
        %v4314 = vld [vmem:[%s4283 + $0xf0] sm:$0xff]
        %v4315 = vld [vmem:[%s4283 + $0xf8] sm:$0xff]
        %v4316 = vld [vmem:[%s4283 + $0x100] sm:$0xff]
        %v4317 = vld [vmem:[%s4283 + $0x108] sm:$0xff]
        %v4318 = vld [vmem:[%s4283 + $0x110] sm:$0xff]
        %v4319 = vld [vmem:[%s4283 + $0x118] sm:$0xff]
        %v4320 = vld [vmem:[%s4283 + $0x120] sm:$0xff]
        %v4321 = vld [vmem:[%s4283 + $0x128] sm:$0xff]
        %v4322 = vld [vmem:[%s4283 + $0x130] sm:$0xff]
        %v4323 = vld [vmem:[%s4283 + $0x138] sm:$0xff]
        %v4324 = vld [vmem:[%s4283 + $0x140] sm:$0xff]
        %v4325 = vld [vmem:[%s4283 + $0x148] sm:$0xff]
        %v4326 = vld [vmem:[%s4283 + $0x150] sm:$0xff]
        %v4327 = vld [vmem:[%s4283 + $0x158] sm:$0xff]
        %v4328 = vld [vmem:[%s4283 + $0x160] sm:$0xff]
        %v4329 = vld [vmem:[%s4283 + $0x168] sm:$0xff]
        %v4330 = vld [vmem:[%s4283 + $0x170] sm:$0xff]
        %v4331 = vld [vmem:[%s4283 + $0x178] sm:$0xff]
        %v4332 = vld [vmem:[%s4283 + $0x180] sm:$0xff]
        %v4333 = vld [vmem:[%s4283 + $0x188] sm:$0xff]
        %v4334 = vld [vmem:[%s4283 + $0x190] sm:$0xff]
        %v4335 = vld [vmem:[%s4283 + $0x198] sm:$0xff]
        %v4336 = vld [vmem:[%s4283 + $0x1a0] sm:$0xff]
        %v4337 = vld [vmem:[%s4283 + $0x1a8] sm:$0xff]
        %v4338 = vld [vmem:[%s4283 + $0x1b0] sm:$0xff]
        %v4339 = vld [vmem:[%s4283 + $0x1b8] sm:$0xff]
        %v4340 = vld [vmem:[%s4283 + $0x1c0] sm:$0xff]
        %v4341 = vld [vmem:[%s4283 + $0x1c8] sm:$0xff]
        %v4342 = vld [vmem:[%s4283 + $0x1d0] sm:$0xff]
        %v4343 = vld [vmem:[%s4283 + $0x1d8] sm:$0xff]
        %v4344 = vld [vmem:[%s4283 + $0x1e0] sm:$0xff]
        %v4345 = vld [vmem:[%s4283 + $0x1e8] sm:$0xff]
        %v4346 = vld [vmem:[%s4283 + $0x1f0] sm:$0xff]
        %v4347 = vld [vmem:[%s4283 + $0x1f8] sm:$0xff]
        %v4348 = vld [vmem:[%s4283 + $0x200] sm:$0xff]
        %v4349 = vld [vmem:[%s4283 + $0x208] sm:$0xff]
        %v4350 = vld [vmem:[%s4283 + $0x210] sm:$0xff]
        %v4351 = vld [vmem:[%s4283 + $0x218] sm:$0xff]
        %v4352 = vld [vmem:[%s4283 + $0x220] sm:$0xff]
        %v4353 = vld [vmem:[%s4283 + $0x228] sm:$0xff]
        %v4354 = vld [vmem:[%s4283 + $0x230] sm:$0xff]
        %v4355 = vld [vmem:[%s4283 + $0x238] sm:$0xff]
        %v4356 = vld [vmem:[%s4283 + $0x240] sm:$0xff]
        %v4357 = vld [vmem:[%s4283 + $0x248] sm:$0xff]
        %v4358 = vld [vmem:[%s4283 + $0x250] sm:$0xff]
        %v4359 = vld [vmem:[%s4283 + $0x258] sm:$0xff]
        %v4360 = vld [vmem:[%s4283 + $0x260] sm:$0xff]
        %v4361 = vld [vmem:[%s4283 + $0x268] sm:$0xff]
        %v4362 = vld [vmem:[%s4283 + $0x270] sm:$0xff]
        %v4363 = vld [vmem:[%s4283 + $0x278] sm:$0xff]
        %v4364 = vld [vmem:[%s4283 + $0x280] sm:$0xff]
        %v4365 = vld [vmem:[%s4283 + $0x288] sm:$0xff]
        %v4366 = vld [vmem:[%s4283 + $0x290] sm:$0xff]
        %v4367 = vld [vmem:[%s4283 + $0x298] sm:$0xff]
        %v4368 = vld [vmem:[%s4283 + $0x2a0] sm:$0xff]
        %v4369 = vld [vmem:[%s4283 + $0x2a8] sm:$0xff]
        %v4370 = vld [vmem:[%s4283 + $0x2b0] sm:$0xff]
        %v4371 = vld [vmem:[%s4283 + $0x2b8] sm:$0xff]
        %v4372 = vld [vmem:[%s4283 + $0x2c0] sm:$0xff]
        %v4373 = vld [vmem:[%s4283 + $0x2c8] sm:$0xff]
        %v4374 = vld [vmem:[%s4283 + $0x2d0] sm:$0xff]
        %v4375 = vld [vmem:[%s4283 + $0x2d8] sm:$0xff]
        %v4376 = vld [vmem:[%s4283 + $0x2e0] sm:$0xff]
        %v4377 = vld [vmem:[%s4283 + $0x2e8] sm:$0xff]
        %v4378 = vld [vmem:[%s4283 + $0x2f0] sm:$0xff]
        %v4379 = vld [vmem:[%s4283 + $0x2f8] sm:$0xff]
        %s4380 = scalar_lea.vmem [#allocation11], 6
        %v4381 = vld [vmem:[%s4380] sm:$0x3f]
        %v4383 = vlaneseq
        %v4384 = vshrl.u32 %v4383, 7
        %v4385 = vsub.s32 0, %v4384
        %v4386 = vrot.slane %v4381, %v4385
        %v4387 = vlaneseq
        %v4388 = vshrl.u32 %v4387, 7
        %v4389 = vsub.s32 1, %v4388
        %v4390 = vrot.slane %v4381, %v4389
        %v4391 = vlaneseq
        %v4392 = vshrl.u32 %v4391, 7
        %v4393 = vsub.s32 2, %v4392
        %v4394 = vrot.slane %v4381, %v4393
        %v4395 = vlaneseq
        %v4396 = vshrl.u32 %v4395, 7
        %v4397 = vsub.s32 3, %v4396
        %v4398 = vrot.slane %v4381, %v4397
        %v4399 = vlaneseq
        %v4400 = vshrl.u32 %v4399, 7
        %v4401 = vsub.s32 4, %v4400
        %v4402 = vrot.slane %v4381, %v4401
        %v4403 = vlaneseq
        %v4404 = vshrl.u32 %v4403, 7
        %v4405 = vsub.s32 5, %v4404
        %v4406 = vrot.slane %v4381, %v4405
        %v4509 = vunpack.c.l.b16 %v4284
        %v4510 = vunpack.c.h.b16 %v4284
        %v4511 = vunpack.c.l.b16 %v4285
        %v4512 = vunpack.c.h.b16 %v4285
        %v4513 = vunpack.c.l.b16 %v4286
        %v4514 = vunpack.c.h.b16 %v4286
        %v4515 = vunpack.c.l.b16 %v4287
        %v4516 = vunpack.c.h.b16 %v4287
        %v4517 = vunpack.c.l.b16 %v4288
        %v4518 = vunpack.c.h.b16 %v4288
        %v4519 = vunpack.c.l.b16 %v4289
        %v4520 = vunpack.c.h.b16 %v4289
        %v4521 = vunpack.c.l.b16 %v4290
        %v4522 = vunpack.c.h.b16 %v4290
        %v4523 = vunpack.c.l.b16 %v4291
        %v4524 = vunpack.c.h.b16 %v4291
        %v4525 = vunpack.c.l.b16 %v4292
        %v4526 = vunpack.c.h.b16 %v4292
        %v4527 = vunpack.c.l.b16 %v4293
        %v4528 = vunpack.c.h.b16 %v4293
        %v4529 = vunpack.c.l.b16 %v4294
        %v4530 = vunpack.c.h.b16 %v4294
        %v4531 = vunpack.c.l.b16 %v4295
        %v4532 = vunpack.c.h.b16 %v4295
        %v4533 = vunpack.c.l.b16 %v4296
        %v4534 = vunpack.c.h.b16 %v4296
        %v4535 = vunpack.c.l.b16 %v4297
        %v4536 = vunpack.c.h.b16 %v4297
        %v4537 = vunpack.c.l.b16 %v4298
        %v4538 = vunpack.c.h.b16 %v4298
        %v4539 = vunpack.c.l.b16 %v4299
        %v4540 = vunpack.c.h.b16 %v4299
        %v4541 = vunpack.c.l.b16 %v4300
        %v4542 = vunpack.c.h.b16 %v4300
        %v4543 = vunpack.c.l.b16 %v4301
        %v4544 = vunpack.c.h.b16 %v4301
        %v4545 = vunpack.c.l.b16 %v4302
        %v4546 = vunpack.c.h.b16 %v4302
        %v4547 = vunpack.c.l.b16 %v4303
        %v4548 = vunpack.c.h.b16 %v4303
        %v4549 = vunpack.c.l.b16 %v4304
        %v4550 = vunpack.c.h.b16 %v4304
        %v4551 = vunpack.c.l.b16 %v4305
        %v4552 = vunpack.c.h.b16 %v4305
        %v4553 = vunpack.c.l.b16 %v4306
        %v4554 = vunpack.c.h.b16 %v4306
        %v4555 = vunpack.c.l.b16 %v4307
        %v4556 = vunpack.c.h.b16 %v4307
        %v4557 = vunpack.c.l.b16 %v4308
        %v4558 = vunpack.c.h.b16 %v4308
        %v4559 = vunpack.c.l.b16 %v4309
        %v4560 = vunpack.c.h.b16 %v4309
        %v4561 = vunpack.c.l.b16 %v4310
        %v4562 = vunpack.c.h.b16 %v4310
        %v4563 = vunpack.c.l.b16 %v4311
        %v4564 = vunpack.c.h.b16 %v4311
        %v4565 = vunpack.c.l.b16 %v4312
        %v4566 = vunpack.c.h.b16 %v4312
        %v4567 = vunpack.c.l.b16 %v4313
        %v4568 = vunpack.c.h.b16 %v4313
        %v4569 = vunpack.c.l.b16 %v4314
        %v4570 = vunpack.c.h.b16 %v4314
        %v4571 = vunpack.c.l.b16 %v4315
        %v4572 = vunpack.c.h.b16 %v4315
        %v4573 = vunpack.c.l.b16 %v4316
        %v4574 = vunpack.c.h.b16 %v4316
        %v4575 = vunpack.c.l.b16 %v4317
        %v4576 = vunpack.c.h.b16 %v4317
        %v4577 = vunpack.c.l.b16 %v4318
        %v4578 = vunpack.c.h.b16 %v4318
        %v4579 = vunpack.c.l.b16 %v4319
        %v4580 = vunpack.c.h.b16 %v4319
        %v4581 = vunpack.c.l.b16 %v4320
        %v4582 = vunpack.c.h.b16 %v4320
        %v4583 = vunpack.c.l.b16 %v4321
        %v4584 = vunpack.c.h.b16 %v4321
        %v4585 = vunpack.c.l.b16 %v4322
        %v4586 = vunpack.c.h.b16 %v4322
        %v4587 = vunpack.c.l.b16 %v4323
        %v4588 = vunpack.c.h.b16 %v4323
        %v4589 = vunpack.c.l.b16 %v4324
        %v4590 = vunpack.c.h.b16 %v4324
        %v4591 = vunpack.c.l.b16 %v4325
        %v4592 = vunpack.c.h.b16 %v4325
        %v4593 = vunpack.c.l.b16 %v4326
        %v4594 = vunpack.c.h.b16 %v4326
        %v4595 = vunpack.c.l.b16 %v4327
        %v4596 = vunpack.c.h.b16 %v4327
        %v4597 = vunpack.c.l.b16 %v4328
        %v4598 = vunpack.c.h.b16 %v4328
        %v4599 = vunpack.c.l.b16 %v4329
        %v4600 = vunpack.c.h.b16 %v4329
        %v4601 = vunpack.c.l.b16 %v4330
        %v4602 = vunpack.c.h.b16 %v4330
        %v4603 = vunpack.c.l.b16 %v4331
        %v4604 = vunpack.c.h.b16 %v4331
        %v4605 = vunpack.c.l.b16 %v4332
        %v4606 = vunpack.c.h.b16 %v4332
        %v4607 = vunpack.c.l.b16 %v4333
        %v4608 = vunpack.c.h.b16 %v4333
        %v4609 = vunpack.c.l.b16 %v4334
        %v4610 = vunpack.c.h.b16 %v4334
        %v4611 = vunpack.c.l.b16 %v4335
        %v4612 = vunpack.c.h.b16 %v4335
        %v4613 = vunpack.c.l.b16 %v4336
        %v4614 = vunpack.c.h.b16 %v4336
        %v4615 = vunpack.c.l.b16 %v4337
        %v4616 = vunpack.c.h.b16 %v4337
        %v4617 = vunpack.c.l.b16 %v4338
        %v4618 = vunpack.c.h.b16 %v4338
        %v4619 = vunpack.c.l.b16 %v4339
        %v4620 = vunpack.c.h.b16 %v4339
        %v4621 = vunpack.c.l.b16 %v4340
        %v4622 = vunpack.c.h.b16 %v4340
        %v4623 = vunpack.c.l.b16 %v4341
        %v4624 = vunpack.c.h.b16 %v4341
        %v4625 = vunpack.c.l.b16 %v4342
        %v4626 = vunpack.c.h.b16 %v4342
        %v4627 = vunpack.c.l.b16 %v4343
        %v4628 = vunpack.c.h.b16 %v4343
        %v4629 = vunpack.c.l.b16 %v4344
        %v4630 = vunpack.c.h.b16 %v4344
        %v4631 = vunpack.c.l.b16 %v4345
        %v4632 = vunpack.c.h.b16 %v4345
        %v4633 = vunpack.c.l.b16 %v4346
        %v4634 = vunpack.c.h.b16 %v4346
        %v4635 = vunpack.c.l.b16 %v4347
        %v4636 = vunpack.c.h.b16 %v4347
        %v4637 = vunpack.c.l.b16 %v4348
        %v4638 = vunpack.c.h.b16 %v4348
        %v4639 = vunpack.c.l.b16 %v4349
        %v4640 = vunpack.c.h.b16 %v4349
        %v4641 = vunpack.c.l.b16 %v4350
        %v4642 = vunpack.c.h.b16 %v4350
        %v4643 = vunpack.c.l.b16 %v4351
        %v4644 = vunpack.c.h.b16 %v4351
        %v4645 = vunpack.c.l.b16 %v4352
        %v4646 = vunpack.c.h.b16 %v4352
        %v4647 = vunpack.c.l.b16 %v4353
        %v4648 = vunpack.c.h.b16 %v4353
        %v4649 = vunpack.c.l.b16 %v4354
        %v4650 = vunpack.c.h.b16 %v4354
        %v4651 = vunpack.c.l.b16 %v4355
        %v4652 = vunpack.c.h.b16 %v4355
        %v4653 = vunpack.c.l.b16 %v4356
        %v4654 = vunpack.c.h.b16 %v4356
        %v4655 = vunpack.c.l.b16 %v4357
        %v4656 = vunpack.c.h.b16 %v4357
        %v4657 = vunpack.c.l.b16 %v4358
        %v4658 = vunpack.c.h.b16 %v4358
        %v4659 = vunpack.c.l.b16 %v4359
        %v4660 = vunpack.c.h.b16 %v4359
        %v4661 = vunpack.c.l.b16 %v4360
        %v4662 = vunpack.c.h.b16 %v4360
        %v4663 = vunpack.c.l.b16 %v4361
        %v4664 = vunpack.c.h.b16 %v4361
        %v4665 = vunpack.c.l.b16 %v4362
        %v4666 = vunpack.c.h.b16 %v4362
        %v4667 = vunpack.c.l.b16 %v4363
        %v4668 = vunpack.c.h.b16 %v4363
        %v4669 = vunpack.c.l.b16 %v4364
        %v4670 = vunpack.c.h.b16 %v4364
        %v4671 = vunpack.c.l.b16 %v4365
        %v4672 = vunpack.c.h.b16 %v4365
        %v4673 = vunpack.c.l.b16 %v4366
        %v4674 = vunpack.c.h.b16 %v4366
        %v4675 = vunpack.c.l.b16 %v4367
        %v4676 = vunpack.c.h.b16 %v4367
        %v4677 = vunpack.c.l.b16 %v4368
        %v4678 = vunpack.c.h.b16 %v4368
        %v4679 = vunpack.c.l.b16 %v4369
        %v4680 = vunpack.c.h.b16 %v4369
        %v4681 = vunpack.c.l.b16 %v4370
        %v4682 = vunpack.c.h.b16 %v4370
        %v4683 = vunpack.c.l.b16 %v4371
        %v4684 = vunpack.c.h.b16 %v4371
        %v4685 = vunpack.c.l.b16 %v4372
        %v4686 = vunpack.c.h.b16 %v4372
        %v4687 = vunpack.c.l.b16 %v4373
        %v4688 = vunpack.c.h.b16 %v4373
        %v4689 = vunpack.c.l.b16 %v4374
        %v4690 = vunpack.c.h.b16 %v4374
        %v4691 = vunpack.c.l.b16 %v4375
        %v4692 = vunpack.c.h.b16 %v4375
        %v4693 = vunpack.c.l.b16 %v4376
        %v4694 = vunpack.c.h.b16 %v4376
        %v4695 = vunpack.c.l.b16 %v4377
        %v4696 = vunpack.c.h.b16 %v4377
        %v4697 = vunpack.c.l.b16 %v4378
        %v4698 = vunpack.c.h.b16 %v4378
        %v4699 = vunpack.c.l.b16 %v4379
        %v4700 = vunpack.c.h.b16 %v4379
        %v4701 = vpack.c.b16 %v4515, %v4509
        %v4702 = vpack.c.b16 %v4516, %v4510
        %v4703 = vpack.c.b16 %v4517, %v4511
        %v4704 = vpack.c.b16 %v4518, %v4512
        %v4705 = vpack.c.b16 %v4519, %v4513
        %v4706 = vpack.c.b16 %v4520, %v4514
        %v4707 = vpack.c.b16 %v4527, %v4521
        %v4708 = vpack.c.b16 %v4528, %v4522
        %v4709 = vpack.c.b16 %v4529, %v4523
        %v4710 = vpack.c.b16 %v4530, %v4524
        %v4711 = vpack.c.b16 %v4531, %v4525
        %v4712 = vpack.c.b16 %v4532, %v4526
        %v4713 = vpack.c.b16 %v4539, %v4533
        %v4714 = vpack.c.b16 %v4540, %v4534
        %v4715 = vpack.c.b16 %v4541, %v4535
        %v4716 = vpack.c.b16 %v4542, %v4536
        %v4717 = vpack.c.b16 %v4543, %v4537
        %v4718 = vpack.c.b16 %v4544, %v4538
        %v4719 = vpack.c.b16 %v4551, %v4545
        %v4720 = vpack.c.b16 %v4552, %v4546
        %v4721 = vpack.c.b16 %v4553, %v4547
        %v4722 = vpack.c.b16 %v4554, %v4548
        %v4723 = vpack.c.b16 %v4555, %v4549
        %v4724 = vpack.c.b16 %v4556, %v4550
        %v4725 = vpack.c.b16 %v4563, %v4557
        %v4726 = vpack.c.b16 %v4564, %v4558
        %v4727 = vpack.c.b16 %v4565, %v4559
        %v4728 = vpack.c.b16 %v4566, %v4560
        %v4729 = vpack.c.b16 %v4567, %v4561
        %v4730 = vpack.c.b16 %v4568, %v4562
        %v4731 = vpack.c.b16 %v4575, %v4569
        %v4732 = vpack.c.b16 %v4576, %v4570
        %v4733 = vpack.c.b16 %v4577, %v4571
        %v4734 = vpack.c.b16 %v4578, %v4572
        %v4735 = vpack.c.b16 %v4579, %v4573
        %v4736 = vpack.c.b16 %v4580, %v4574
        %v4737 = vpack.c.b16 %v4587, %v4581
        %v4738 = vpack.c.b16 %v4588, %v4582
        %v4739 = vpack.c.b16 %v4589, %v4583
        %v4740 = vpack.c.b16 %v4590, %v4584
        %v4741 = vpack.c.b16 %v4591, %v4585
        %v4742 = vpack.c.b16 %v4592, %v4586
        %v4743 = vpack.c.b16 %v4599, %v4593
        %v4744 = vpack.c.b16 %v4600, %v4594
        %v4745 = vpack.c.b16 %v4601, %v4595
        %v4746 = vpack.c.b16 %v4602, %v4596
        %v4747 = vpack.c.b16 %v4603, %v4597
        %v4748 = vpack.c.b16 %v4604, %v4598
        %v4749 = vpack.c.b16 %v4611, %v4605
        %v4750 = vpack.c.b16 %v4612, %v4606
        %v4751 = vpack.c.b16 %v4613, %v4607
        %v4752 = vpack.c.b16 %v4614, %v4608
        %v4753 = vpack.c.b16 %v4615, %v4609
        %v4754 = vpack.c.b16 %v4616, %v4610
        %v4755 = vpack.c.b16 %v4623, %v4617
        %v4756 = vpack.c.b16 %v4624, %v4618
        %v4757 = vpack.c.b16 %v4625, %v4619
        %v4758 = vpack.c.b16 %v4626, %v4620
        %v4759 = vpack.c.b16 %v4627, %v4621
        %v4760 = vpack.c.b16 %v4628, %v4622
        %v4761 = vpack.c.b16 %v4635, %v4629
        %v4762 = vpack.c.b16 %v4636, %v4630
        %v4763 = vpack.c.b16 %v4637, %v4631
        %v4764 = vpack.c.b16 %v4638, %v4632
        %v4765 = vpack.c.b16 %v4639, %v4633
        %v4766 = vpack.c.b16 %v4640, %v4634
        %v4767 = vpack.c.b16 %v4647, %v4641
        %v4768 = vpack.c.b16 %v4648, %v4642
        %v4769 = vpack.c.b16 %v4649, %v4643
        %v4770 = vpack.c.b16 %v4650, %v4644
        %v4771 = vpack.c.b16 %v4651, %v4645
        %v4772 = vpack.c.b16 %v4652, %v4646
        %v4773 = vpack.c.b16 %v4659, %v4653
        %v4774 = vpack.c.b16 %v4660, %v4654
        %v4775 = vpack.c.b16 %v4661, %v4655
        %v4776 = vpack.c.b16 %v4662, %v4656
        %v4777 = vpack.c.b16 %v4663, %v4657
        %v4778 = vpack.c.b16 %v4664, %v4658
        %v4779 = vpack.c.b16 %v4671, %v4665
        %v4780 = vpack.c.b16 %v4672, %v4666
        %v4781 = vpack.c.b16 %v4673, %v4667
        %v4782 = vpack.c.b16 %v4674, %v4668
        %v4783 = vpack.c.b16 %v4675, %v4669
        %v4784 = vpack.c.b16 %v4676, %v4670
        %v4785 = vpack.c.b16 %v4683, %v4677
        %v4786 = vpack.c.b16 %v4684, %v4678
        %v4787 = vpack.c.b16 %v4685, %v4679
        %v4788 = vpack.c.b16 %v4686, %v4680
        %v4789 = vpack.c.b16 %v4687, %v4681
        %v4790 = vpack.c.b16 %v4688, %v4682
        %v4791 = vpack.c.b16 %v4695, %v4689
        %v4792 = vpack.c.b16 %v4696, %v4690
        %v4793 = vpack.c.b16 %v4697, %v4691
        %v4794 = vpack.c.b16 %v4698, %v4692
        %v4795 = vpack.c.b16 %v4699, %v4693
        %v4796 = vpack.c.b16 %v4700, %v4694
        %4893 = vmatprep.subr.bf16.mxu0 %v4744
        %4894 = vmatpush1.bf16.msra.mxu0 %v4743
        %4895 = vmatprep.subr.bf16.mxu0 %v4738
        %4896 = vmatpush1.bf16.msra.mxu0 %v4737
        %4897 = vmatprep.subr.bf16.mxu0 %v4732
        %4898 = vmatpush1.bf16.msra.mxu0 %v4731
        %4899 = vmatprep.subr.bf16.mxu0 %v4726
        %4900 = vmatpush1.bf16.msra.mxu0 %v4725
        %4901 = vmatprep.subr.bf16.mxu0 %v4720
        %4902 = vmatpush1.bf16.msra.mxu0 %v4719
        %4903 = vmatprep.subr.bf16.mxu0 %v4714
        %4904 = vmatpush1.bf16.msra.mxu0 %v4713
        %4905 = vmatprep.subr.bf16.mxu0 %v4708
        %4906 = vmatpush1.bf16.msra.mxu0 %v4707
        %4907 = vmatprep.subr.bf16.mxu0 %v4702
        %4908 = vmatpush1.bf16.msra.mxu0 %v4701
        %4909 = vmatprep.subr.bf16.mxu0 %v4792
        %4910 = vmatpush2.bf16.msra.mxu0 %v4791
        %4911 = vmatprep.subr.bf16.mxu0 %v4786
        %4912 = vmatpush2.bf16.msra.mxu0 %v4785
        %4913 = vmatprep.subr.bf16.mxu0 %v4780
        %4914 = vmatpush2.bf16.msra.mxu0 %v4779
        %4915 = vmatprep.subr.bf16.mxu0 %v4774
        %4916 = vmatpush2.bf16.msra.mxu0 %v4773
        %4917 = vmatprep.subr.bf16.mxu0 %v4768
        %4918 = vmatpush2.bf16.msra.mxu0 %v4767
        %4919 = vmatprep.subr.bf16.mxu0 %v4762
        %4920 = vmatpush2.bf16.msra.mxu0 %v4761
        %4921 = vmatprep.subr.bf16.mxu0 %v4756
        %4922 = vmatpush2.bf16.msra.mxu0 %v4755
        %4923 = vmatprep.subr.bf16.mxu0 %v4750
        %4924 = vmatpush2.bf16.msra.mxu0 %v4749
        %4925 = vmatprep.mubr.bf16.mxu0 %v4282
        %4926 = vmatmul.mubr.bf16.gmra.mxu0 %v4281
        %v4927 = vpop.f32.mrf.mxu0
        %v4928 = vadd.f32 %v4386, %v4927
        %v4929 = vpop.f32.mrf.mxu0
        %v4930 = vadd.f32 %v4390, %v4929
        %v4931 = vpop.f32.mrf.mxu0
        %v4932 = vpop.f32.mrf.mxu0
        %4933 = vdwg.mxu0
        %4934 = vmatprep.subr.bf16.mxu0 %v4746
        %4935 = vmatpush1.bf16.msra.mxu0 %v4745
        %4936 = vmatprep.subr.bf16.mxu0 %v4740
        %4937 = vmatpush1.bf16.msra.mxu0 %v4739
        %4938 = vmatprep.subr.bf16.mxu0 %v4734
        %4939 = vmatpush1.bf16.msra.mxu0 %v4733
        %4940 = vmatprep.subr.bf16.mxu0 %v4728
        %4941 = vmatpush1.bf16.msra.mxu0 %v4727
        %4942 = vmatprep.subr.bf16.mxu0 %v4722
        %4943 = vmatpush1.bf16.msra.mxu0 %v4721
        %4944 = vmatprep.subr.bf16.mxu0 %v4716
        %4945 = vmatpush1.bf16.msra.mxu0 %v4715
        %4946 = vmatprep.subr.bf16.mxu0 %v4710
        %4947 = vmatpush1.bf16.msra.mxu0 %v4709
        %4948 = vmatprep.subr.bf16.mxu0 %v4704
        %4949 = vmatpush1.bf16.msra.mxu0 %v4703
        %4950 = vmatprep.subr.bf16.mxu0 %v4794
        %4951 = vmatpush2.bf16.msra.mxu0 %v4793
        %4952 = vmatprep.subr.bf16.mxu0 %v4788
        %4953 = vmatpush2.bf16.msra.mxu0 %v4787
        %4954 = vmatprep.subr.bf16.mxu0 %v4782
        %4955 = vmatpush2.bf16.msra.mxu0 %v4781
        %4956 = vmatprep.subr.bf16.mxu0 %v4776
        %4957 = vmatpush2.bf16.msra.mxu0 %v4775
        %4958 = vmatprep.subr.bf16.mxu0 %v4770
        %4959 = vmatpush2.bf16.msra.mxu0 %v4769
        %4960 = vmatprep.subr.bf16.mxu0 %v4764
        %4961 = vmatpush2.bf16.msra.mxu0 %v4763
        %4962 = vmatprep.subr.bf16.mxu0 %v4758
        %4963 = vmatpush2.bf16.msra.mxu0 %v4757
        %4964 = vmatprep.subr.bf16.mxu0 %v4752
        %4965 = vmatpush2.bf16.msra.mxu0 %v4751
        %4966 = vmatprep.mubr.bf16.mxu0 %v4282
        %4967 = vmatmul.mubr.bf16.gmra.mxu0 %v4281
        %v4968 = vpop.f32.mrf.mxu0
        %v4969 = vadd.f32 %v4394, %v4968
        %v4970 = vpop.f32.mrf.mxu0
        %v4971 = vadd.f32 %v4398, %v4970
        %v4972 = vpop.f32.mrf.mxu0
        %v4973 = vpop.f32.mrf.mxu0
        %4974 = vdwg.mxu0
        %4975 = vmatprep.subr.bf16.mxu0 %v4748
        %4976 = vmatpush1.bf16.msra.mxu0 %v4747
        %4977 = vmatprep.subr.bf16.mxu0 %v4742
        %4978 = vmatpush1.bf16.msra.mxu0 %v4741
        %4979 = vmatprep.subr.bf16.mxu0 %v4736
        %4980 = vmatpush1.bf16.msra.mxu0 %v4735
        %4981 = vmatprep.subr.bf16.mxu0 %v4730
        %4982 = vmatpush1.bf16.msra.mxu0 %v4729
        %4983 = vmatprep.subr.bf16.mxu0 %v4724
        %4984 = vmatpush1.bf16.msra.mxu0 %v4723
        %4985 = vmatprep.subr.bf16.mxu0 %v4718
        %4986 = vmatpush1.bf16.msra.mxu0 %v4717
        %4987 = vmatprep.subr.bf16.mxu0 %v4712
        %4988 = vmatpush1.bf16.msra.mxu0 %v4711
        %4989 = vmatprep.subr.bf16.mxu0 %v4706
        %4990 = vmatpush1.bf16.msra.mxu0 %v4705
        %4991 = vmatprep.subr.bf16.mxu0 %v4796
        %4992 = vmatpush2.bf16.msra.mxu0 %v4795
        %4993 = vmatprep.subr.bf16.mxu0 %v4790
        %4994 = vmatpush2.bf16.msra.mxu0 %v4789
        %4995 = vmatprep.subr.bf16.mxu0 %v4784
        %4996 = vmatpush2.bf16.msra.mxu0 %v4783
        %4997 = vmatprep.subr.bf16.mxu0 %v4778
        %4998 = vmatpush2.bf16.msra.mxu0 %v4777
        %4999 = vmatprep.subr.bf16.mxu0 %v4772
        %5000 = vmatpush2.bf16.msra.mxu0 %v4771
        %5001 = vmatprep.subr.bf16.mxu0 %v4766
        %5002 = vmatpush2.bf16.msra.mxu0 %v4765
        %5003 = vmatprep.subr.bf16.mxu0 %v4760
        %5004 = vmatpush2.bf16.msra.mxu0 %v4759
        %5005 = vmatprep.subr.bf16.mxu0 %v4754
        %5006 = vmatpush2.bf16.msra.mxu0 %v4753
        %5007 = vmatprep.mubr.bf16.mxu0 %v4282
        %5008 = vmatmul.mubr.bf16.gmra.mxu0 %v4281
        %v5009 = vpop.f32.mrf.mxu0
        %v5010 = vadd.f32 %v4402, %v5009
        %v5011 = vpop.f32.mrf.mxu0
        %v5012 = vadd.f32 %v4406, %v5011
        %v5013 = vpop.f32.mrf.mxu0
        %v5014 = vpop.f32.mrf.mxu0
        %5015 = vdwg.mxu0
        %s5016 = scalar_lea.vmem [#allocation13], 256
        %v5017 = vld [vmem:[%s5016] sm:$0xff]
        %v5018 = vld [vmem:[%s5016 + $0x8] sm:$0xff]
        %v5019 = vld [vmem:[%s5016 + $0x10] sm:$0xff]
        %v5020 = vld [vmem:[%s5016 + $0x18] sm:$0xff]
        %v5021 = vld [vmem:[%s5016 + $0x20] sm:$0xff]
        %v5022 = vld [vmem:[%s5016 + $0x28] sm:$0xff]
        %v5023 = vld [vmem:[%s5016 + $0x30] sm:$0xff]
        %v5024 = vld [vmem:[%s5016 + $0x38] sm:$0xff]
        %v5025 = vld [vmem:[%s5016 + $0x40] sm:$0xff]
        %v5026 = vld [vmem:[%s5016 + $0x48] sm:$0xff]
        %v5027 = vld [vmem:[%s5016 + $0x50] sm:$0xff]
        %v5028 = vld [vmem:[%s5016 + $0x58] sm:$0xff]
        %v5029 = vld [vmem:[%s5016 + $0x60] sm:$0xff]
        %v5030 = vld [vmem:[%s5016 + $0x68] sm:$0xff]
        %v5031 = vld [vmem:[%s5016 + $0x70] sm:$0xff]
        %v5032 = vld [vmem:[%s5016 + $0x78] sm:$0xff]
        %v5033 = vld [vmem:[%s5016 + $0x80] sm:$0xff]
        %v5034 = vld [vmem:[%s5016 + $0x88] sm:$0xff]
        %v5035 = vld [vmem:[%s5016 + $0x90] sm:$0xff]
        %v5036 = vld [vmem:[%s5016 + $0x98] sm:$0xff]
        %v5037 = vld [vmem:[%s5016 + $0xa0] sm:$0xff]
        %v5038 = vld [vmem:[%s5016 + $0xa8] sm:$0xff]
        %v5039 = vld [vmem:[%s5016 + $0xb0] sm:$0xff]
        %v5040 = vld [vmem:[%s5016 + $0xb8] sm:$0xff]
        %v5041 = vld [vmem:[%s5016 + $0xc0] sm:$0xff]
        %v5042 = vld [vmem:[%s5016 + $0xc8] sm:$0xff]
        %v5043 = vld [vmem:[%s5016 + $0xd0] sm:$0xff]
        %v5044 = vld [vmem:[%s5016 + $0xd8] sm:$0xff]
        %v5045 = vld [vmem:[%s5016 + $0xe0] sm:$0xff]
        %v5046 = vld [vmem:[%s5016 + $0xe8] sm:$0xff]
        %v5047 = vld [vmem:[%s5016 + $0xf0] sm:$0xff]
        %v5048 = vld [vmem:[%s5016 + $0xf8] sm:$0xff]
        %v5049 = vpack.c.bf16 %v4928, %v4928
        %v5050 = vpack.c.bf16 %v4969, %v4969
        %5051 = vmatprep.subr.bf16.mxu0 0
        %5052 = vmatpush1.bf16.xpose.msra.mxu0 0
        %5053 = vmatprep.subr.bf16.mxu0 0
        %5054 = vmatpush1.bf16.xpose.msra.mxu0 0
        %5055 = vmatprep.subr.bf16.mxu0 0
        %5056 = vmatpush1.bf16.xpose.msra.mxu0 0
        %5057 = vmatprep.subr.bf16.mxu0 0
        %5058 = vmatpush1.bf16.xpose.msra.mxu0 0
        %5059 = vmatprep.subr.bf16.mxu0 0
        %5060 = vmatpush1.bf16.xpose.msra.mxu0 0
        %5061 = vmatprep.subr.bf16.mxu0 0
        %5062 = vmatpush1.bf16.xpose.msra.mxu0 0
        %5063 = vmatprep.subr.bf16.mxu0 0
        %5064 = vmatpush1.bf16.xpose.msra.mxu0 0
        %5065 = vmatprep.subr.bf16.mxu0 0
        %5066 = vmatpush1.bf16.xpose.msra.mxu0 %v5050
        %5067 = vmatprep.subr.bf16.mxu0 0
        %5068 = vmatpush2.bf16.xpose.msra.mxu0 0
        %5069 = vmatprep.subr.bf16.mxu0 0
        %5070 = vmatpush2.bf16.xpose.msra.mxu0 0
        %5071 = vmatprep.subr.bf16.mxu0 0
        %5072 = vmatpush2.bf16.xpose.msra.mxu0 0
        %5073 = vmatprep.subr.bf16.mxu0 0
        %5074 = vmatpush2.bf16.xpose.msra.mxu0 0
        %5075 = vmatprep.subr.bf16.mxu0 0
        %5076 = vmatpush2.bf16.xpose.msra.mxu0 0
        %5077 = vmatprep.subr.bf16.mxu0 0
        %5078 = vmatpush2.bf16.xpose.msra.mxu0 0
        %5079 = vmatprep.subr.bf16.mxu0 0
        %5080 = vmatpush2.bf16.xpose.msra.mxu0 0
        %5081 = vmatprep.subr.bf16.mxu0 0
        %5082 = vmatpush2.bf16.xpose.msra.mxu0 0
        %5083 = vmatprep.mubr.bf16.mxu0 0
        %5084 = vmatmul.mubr.bf16.gmra.mxu0 %v5049
        %v5085 = vpop.f32.mrf.mxu0
        %v5086 = vadd.f32 0.0, %v5085
        %v5087 = vpop.f32.mrf.mxu0
        %v5088 = vpop.f32.mrf.mxu0
        %v5089 = vpop.f32.mrf.mxu0
        %5090 = vdwg.mxu0
        %v5091 = vmul.f32 %v5086, 0.088388346
        %v5092 = vadd.f32 %v5091, %v1764
        %v5093 = vsel %vm1767, %v5092, -inf
        %5094 = vmax.xlane.f32.xlu0 %v5093
        %v5095 = vpop.xlane.xlu0 %5094
        %v5096 = vsub.f32 %v5092, %v5095
        %v5097 = vmul.f32 %v5096, 1.442695
        %v5098 = vpow.pop %v5097
        %v5099 = vsel %vm1767, %v5098, 0.0
        %5100 = vadd.xlane.f32.xlu0 %v5099
        %v5101 = vpop.xlane.xlu0 %5100
        %v5102 = vrcp.pop %v5101
        %v5103 = vmul.f32 %v5098, %v5102
        %v5104 = vpack.c.bf16 %v5103, %v5103
        %v5105 = vpack.c.bf16 %v5010, %v5010
        %v5107 = vsel %vm1767, %v5104, 0
        %v5110 = vsel %vm1784, %v5105, 0
        %5112 = vmatprep.subr.bf16.mxu0 0
        %5113 = vmatpush1.bf16.msra.mxu0 0
        %5114 = vmatprep.subr.bf16.mxu0 0
        %5115 = vmatpush1.bf16.msra.mxu0 0
        %5116 = vmatprep.subr.bf16.mxu0 0
        %5117 = vmatpush1.bf16.msra.mxu0 0
        %5118 = vmatprep.subr.bf16.mxu0 0
        %5119 = vmatpush1.bf16.msra.mxu0 0
        %5120 = vmatprep.subr.bf16.mxu0 0
        %5121 = vmatpush1.bf16.msra.mxu0 0
        %5122 = vmatprep.subr.bf16.mxu0 0
        %5123 = vmatpush1.bf16.msra.mxu0 0
        %5124 = vmatprep.subr.bf16.mxu0 0
        %5125 = vmatpush1.bf16.msra.mxu0 0
        %5126 = vmatprep.subr.bf16.mxu0 0
        %5127 = vmatpush1.bf16.msra.mxu0 %v5110
        %5128 = vmatprep.subr.bf16.mxu0 0
        %5129 = vmatpush2.bf16.msra.mxu0 0
        %5130 = vmatprep.subr.bf16.mxu0 0
        %5131 = vmatpush2.bf16.msra.mxu0 0
        %5132 = vmatprep.subr.bf16.mxu0 0
        %5133 = vmatpush2.bf16.msra.mxu0 0
        %5134 = vmatprep.subr.bf16.mxu0 0
        %5135 = vmatpush2.bf16.msra.mxu0 0
        %5136 = vmatprep.subr.bf16.mxu0 0
        %5137 = vmatpush2.bf16.msra.mxu0 0
        %5138 = vmatprep.subr.bf16.mxu0 0
        %5139 = vmatpush2.bf16.msra.mxu0 0
        %5140 = vmatprep.subr.bf16.mxu0 0
        %5141 = vmatpush2.bf16.msra.mxu0 0
        %5142 = vmatprep.subr.bf16.mxu0 0
        %5143 = vmatpush2.bf16.msra.mxu0 0
        %5144 = vmatprep.mubr.bf16.mxu0 0
        %5145 = vmatmul.mubr.bf16.gmra.mxu0 %v5107
        %v5146 = vpop.f32.mrf.mxu0
        %v5147 = vadd.f32 0.0, %v5146
        %v5148 = vpop.f32.mrf.mxu0
        %v5149 = vpop.f32.mrf.mxu0
        %v5150 = vpop.f32.mrf.mxu0
        %5151 = vdwg.mxu0
        %v5152 = vpack.c.bf16 %v5147, %v5147
        %v5153 = vpack.c.bf16 %v4930, %v4930
        %v5154 = vpack.c.bf16 %v4971, %v4971
        %5155 = vmatprep.subr.bf16.mxu0 0
        %5156 = vmatpush1.bf16.xpose.msra.mxu0 0
        %5157 = vmatprep.subr.bf16.mxu0 0
        %5158 = vmatpush1.bf16.xpose.msra.mxu0 0
        %5159 = vmatprep.subr.bf16.mxu0 0
        %5160 = vmatpush1.bf16.xpose.msra.mxu0 0
        %5161 = vmatprep.subr.bf16.mxu0 0
        %5162 = vmatpush1.bf16.xpose.msra.mxu0 0
        %5163 = vmatprep.subr.bf16.mxu0 0
        %5164 = vmatpush1.bf16.xpose.msra.mxu0 0
        %5165 = vmatprep.subr.bf16.mxu0 0
        %5166 = vmatpush1.bf16.xpose.msra.mxu0 0
        %5167 = vmatprep.subr.bf16.mxu0 0
        %5168 = vmatpush1.bf16.xpose.msra.mxu0 0
        %5169 = vmatprep.subr.bf16.mxu0 0
        %5170 = vmatpush1.bf16.xpose.msra.mxu0 %v5154
        %5171 = vmatprep.subr.bf16.mxu0 0
        %5172 = vmatpush2.bf16.xpose.msra.mxu0 0
        %5173 = vmatprep.subr.bf16.mxu0 0
        %5174 = vmatpush2.bf16.xpose.msra.mxu0 0
        %5175 = vmatprep.subr.bf16.mxu0 0
        %5176 = vmatpush2.bf16.xpose.msra.mxu0 0
        %5177 = vmatprep.subr.bf16.mxu0 0
        %5178 = vmatpush2.bf16.xpose.msra.mxu0 0
        %5179 = vmatprep.subr.bf16.mxu0 0
        %5180 = vmatpush2.bf16.xpose.msra.mxu0 0
        %5181 = vmatprep.subr.bf16.mxu0 0
        %5182 = vmatpush2.bf16.xpose.msra.mxu0 0
        %5183 = vmatprep.subr.bf16.mxu0 0
        %5184 = vmatpush2.bf16.xpose.msra.mxu0 0
        %5185 = vmatprep.subr.bf16.mxu0 0
        %5186 = vmatpush2.bf16.xpose.msra.mxu0 0
        %5187 = vmatprep.mubr.bf16.mxu0 0
        %5188 = vmatmul.mubr.bf16.gmra.mxu0 %v5153
        %v5189 = vpop.f32.mrf.mxu0
        %v5190 = vadd.f32 0.0, %v5189
        %v5191 = vpop.f32.mrf.mxu0
        %v5192 = vpop.f32.mrf.mxu0
        %v5193 = vpop.f32.mrf.mxu0
        %5194 = vdwg.mxu0
        %v5195 = vmul.f32 %v5190, 0.088388346
        %v5196 = vadd.f32 %v5195, %v1764
        %v5197 = vsel %vm1767, %v5196, -inf
        %5198 = vmax.xlane.f32.xlu0 %v5197
        %v5199 = vpop.xlane.xlu0 %5198
        %v5200 = vsub.f32 %v5196, %v5199
        %v5201 = vmul.f32 %v5200, 1.442695
        %v5202 = vpow.pop %v5201
        %v5203 = vsel %vm1767, %v5202, 0.0
        %5204 = vadd.xlane.f32.xlu0 %v5203
        %v5205 = vpop.xlane.xlu0 %5204
        %v5206 = vrcp.pop %v5205
        %v5207 = vmul.f32 %v5202, %v5206
        %v5208 = vpack.c.bf16 %v5207, %v5207
        %v5209 = vpack.c.bf16 %v5012, %v5012
        %v5211 = vsel %vm1767, %v5208, 0
        %v5214 = vsel %vm1784, %v5209, 0
        %5216 = vmatprep.subr.bf16.mxu0 0
        %5217 = vmatpush1.bf16.msra.mxu0 0
        %5218 = vmatprep.subr.bf16.mxu0 0
        %5219 = vmatpush1.bf16.msra.mxu0 0
        %5220 = vmatprep.subr.bf16.mxu0 0
        %5221 = vmatpush1.bf16.msra.mxu0 0
        %5222 = vmatprep.subr.bf16.mxu0 0
        %5223 = vmatpush1.bf16.msra.mxu0 0
        %5224 = vmatprep.subr.bf16.mxu0 0
        %5225 = vmatpush1.bf16.msra.mxu0 0
        %5226 = vmatprep.subr.bf16.mxu0 0
        %5227 = vmatpush1.bf16.msra.mxu0 0
        %5228 = vmatprep.subr.bf16.mxu0 0
        %5229 = vmatpush1.bf16.msra.mxu0 0
        %5230 = vmatprep.subr.bf16.mxu0 0
        %5231 = vmatpush1.bf16.msra.mxu0 %v5214
        %5232 = vmatprep.subr.bf16.mxu0 0
        %5233 = vmatpush2.bf16.msra.mxu0 0
        %5234 = vmatprep.subr.bf16.mxu0 0
        %5235 = vmatpush2.bf16.msra.mxu0 0
        %5236 = vmatprep.subr.bf16.mxu0 0
        %5237 = vmatpush2.bf16.msra.mxu0 0
        %5238 = vmatprep.subr.bf16.mxu0 0
        %5239 = vmatpush2.bf16.msra.mxu0 0
        %5240 = vmatprep.subr.bf16.mxu0 0
        %5241 = vmatpush2.bf16.msra.mxu0 0
        %5242 = vmatprep.subr.bf16.mxu0 0
        %5243 = vmatpush2.bf16.msra.mxu0 0
        %5244 = vmatprep.subr.bf16.mxu0 0
        %5245 = vmatpush2.bf16.msra.mxu0 0
        %5246 = vmatprep.subr.bf16.mxu0 0
        %5247 = vmatpush2.bf16.msra.mxu0 0
        %5248 = vmatprep.mubr.bf16.mxu0 0
        %5249 = vmatmul.mubr.bf16.gmra.mxu0 %v5211
        %v5250 = vpop.f32.mrf.mxu0
        %v5251 = vadd.f32 0.0, %v5250
        %v5252 = vpop.f32.mrf.mxu0
        %v5253 = vpop.f32.mrf.mxu0
        %v5254 = vpop.f32.mrf.mxu0
        %5255 = vdwg.mxu0
        %v5256 = vpack.c.bf16 %v5251, %v5251
        %v5273 = vunpack.c.l.b16 %v5033
        %v5274 = vunpack.c.h.b16 %v5033
        %v5275 = vunpack.c.l.b16 %v5034
        %v5276 = vunpack.c.h.b16 %v5034
        %v5277 = vunpack.c.l.b16 %v5035
        %v5278 = vunpack.c.h.b16 %v5035
        %v5279 = vunpack.c.l.b16 %v5036
        %v5280 = vunpack.c.h.b16 %v5036
        %v5281 = vunpack.c.l.b16 %v5037
        %v5282 = vunpack.c.h.b16 %v5037
        %v5283 = vunpack.c.l.b16 %v5038
        %v5284 = vunpack.c.h.b16 %v5038
        %v5285 = vunpack.c.l.b16 %v5039
        %v5286 = vunpack.c.h.b16 %v5039
        %v5287 = vunpack.c.l.b16 %v5040
        %v5288 = vunpack.c.h.b16 %v5040
        %v5289 = vunpack.c.l.b16 %v5041
        %v5290 = vunpack.c.h.b16 %v5041
        %v5291 = vunpack.c.l.b16 %v5042
        %v5292 = vunpack.c.h.b16 %v5042
        %v5293 = vunpack.c.l.b16 %v5043
        %v5294 = vunpack.c.h.b16 %v5043
        %v5295 = vunpack.c.l.b16 %v5044
        %v5296 = vunpack.c.h.b16 %v5044
        %v5297 = vunpack.c.l.b16 %v5045
        %v5298 = vunpack.c.h.b16 %v5045
        %v5299 = vunpack.c.l.b16 %v5046
        %v5300 = vunpack.c.h.b16 %v5046
        %v5301 = vunpack.c.l.b16 %v5047
        %v5302 = vunpack.c.h.b16 %v5047
        %v5303 = vunpack.c.l.b16 %v5048
        %v5304 = vunpack.c.h.b16 %v5048
        %v5305 = vpack.c.b16 %v5275, %v5273
        %v5306 = vpack.c.b16 %v5276, %v5274
        %v5307 = vpack.c.b16 %v5279, %v5277
        %v5308 = vpack.c.b16 %v5280, %v5278
        %v5309 = vpack.c.b16 %v5283, %v5281
        %v5310 = vpack.c.b16 %v5284, %v5282
        %v5311 = vpack.c.b16 %v5287, %v5285
        %v5312 = vpack.c.b16 %v5288, %v5286
        %v5313 = vpack.c.b16 %v5291, %v5289
        %v5314 = vpack.c.b16 %v5292, %v5290
        %v5315 = vpack.c.b16 %v5295, %v5293
        %v5316 = vpack.c.b16 %v5296, %v5294
        %v5317 = vpack.c.b16 %v5299, %v5297
        %v5318 = vpack.c.b16 %v5300, %v5298
        %v5319 = vpack.c.b16 %v5303, %v5301
        %v5320 = vpack.c.b16 %v5304, %v5302
        %5337 = vmatprep.subr.bf16.mxu0 %v5320
        %5338 = vmatpush1.bf16.msra.mxu0 %v5319
        %5339 = vmatprep.subr.bf16.mxu0 %v5318
        %5340 = vmatpush1.bf16.msra.mxu0 %v5317
        %5341 = vmatprep.subr.bf16.mxu0 %v5316
        %5342 = vmatpush1.bf16.msra.mxu0 %v5315
        %5343 = vmatprep.subr.bf16.mxu0 %v5314
        %5344 = vmatpush1.bf16.msra.mxu0 %v5313
        %5345 = vmatprep.subr.bf16.mxu0 %v5312
        %5346 = vmatpush1.bf16.msra.mxu0 %v5311
        %5347 = vmatprep.subr.bf16.mxu0 %v5310
        %5348 = vmatpush1.bf16.msra.mxu0 %v5309
        %5349 = vmatprep.subr.bf16.mxu0 %v5308
        %5350 = vmatpush1.bf16.msra.mxu0 %v5307
        %5351 = vmatprep.subr.bf16.mxu0 %v5306
        %5352 = vmatpush1.bf16.msra.mxu0 %v5305
        %5353 = vmatprep.subr.bf16.mxu0 0
        %5354 = vmatpush2.bf16.msra.mxu0 0
        %5355 = vmatprep.subr.bf16.mxu0 0
        %5356 = vmatpush2.bf16.msra.mxu0 0
        %5357 = vmatprep.subr.bf16.mxu0 0
        %5358 = vmatpush2.bf16.msra.mxu0 0
        %5359 = vmatprep.subr.bf16.mxu0 0
        %5360 = vmatpush2.bf16.msra.mxu0 0
        %5361 = vmatprep.subr.bf16.mxu0 0
        %5362 = vmatpush2.bf16.msra.mxu0 0
        %5363 = vmatprep.subr.bf16.mxu0 0
        %5364 = vmatpush2.bf16.msra.mxu0 0
        %5365 = vmatprep.subr.bf16.mxu0 0
        %5366 = vmatpush2.bf16.msra.mxu0 0
        %5367 = vmatprep.subr.bf16.mxu0 0
        %5368 = vmatpush2.bf16.msra.mxu0 0
        %5369 = vmatprep.mubr.bf16.mxu0 0
        %5370 = vmatmul.mubr.bf16.gmra.mxu0 %v5256
        %v5371 = vpop.f32.mrf.mxu0
        %v5372 = vadd.f32 0.0, %v5371
        %v5373 = vpop.f32.mrf.mxu0
        %v5374 = vadd.f32 0.0, %v5373
        %v5375 = vpop.f32.mrf.mxu0
        %v5376 = vpop.f32.mrf.mxu0
        %5377 = vdwg.mxu0
        %v5394 = vunpack.c.l.b16 %v5017
        %v5395 = vunpack.c.h.b16 %v5017
        %v5396 = vunpack.c.l.b16 %v5018
        %v5397 = vunpack.c.h.b16 %v5018
        %v5398 = vunpack.c.l.b16 %v5019
        %v5399 = vunpack.c.h.b16 %v5019
        %v5400 = vunpack.c.l.b16 %v5020
        %v5401 = vunpack.c.h.b16 %v5020
        %v5402 = vunpack.c.l.b16 %v5021
        %v5403 = vunpack.c.h.b16 %v5021
        %v5404 = vunpack.c.l.b16 %v5022
        %v5405 = vunpack.c.h.b16 %v5022
        %v5406 = vunpack.c.l.b16 %v5023
        %v5407 = vunpack.c.h.b16 %v5023
        %v5408 = vunpack.c.l.b16 %v5024
        %v5409 = vunpack.c.h.b16 %v5024
        %v5410 = vunpack.c.l.b16 %v5025
        %v5411 = vunpack.c.h.b16 %v5025
        %v5412 = vunpack.c.l.b16 %v5026
        %v5413 = vunpack.c.h.b16 %v5026
        %v5414 = vunpack.c.l.b16 %v5027
        %v5415 = vunpack.c.h.b16 %v5027
        %v5416 = vunpack.c.l.b16 %v5028
        %v5417 = vunpack.c.h.b16 %v5028
        %v5418 = vunpack.c.l.b16 %v5029
        %v5419 = vunpack.c.h.b16 %v5029
        %v5420 = vunpack.c.l.b16 %v5030
        %v5421 = vunpack.c.h.b16 %v5030
        %v5422 = vunpack.c.l.b16 %v5031
        %v5423 = vunpack.c.h.b16 %v5031
        %v5424 = vunpack.c.l.b16 %v5032
        %v5425 = vunpack.c.h.b16 %v5032
        %v5426 = vpack.c.b16 %v5396, %v5394
        %v5427 = vpack.c.b16 %v5397, %v5395
        %v5428 = vpack.c.b16 %v5400, %v5398
        %v5429 = vpack.c.b16 %v5401, %v5399
        %v5430 = vpack.c.b16 %v5404, %v5402
        %v5431 = vpack.c.b16 %v5405, %v5403
        %v5432 = vpack.c.b16 %v5408, %v5406
        %v5433 = vpack.c.b16 %v5409, %v5407
        %v5434 = vpack.c.b16 %v5412, %v5410
        %v5435 = vpack.c.b16 %v5413, %v5411
        %v5436 = vpack.c.b16 %v5416, %v5414
        %v5437 = vpack.c.b16 %v5417, %v5415
        %v5438 = vpack.c.b16 %v5420, %v5418
        %v5439 = vpack.c.b16 %v5421, %v5419
        %v5440 = vpack.c.b16 %v5424, %v5422
        %v5441 = vpack.c.b16 %v5425, %v5423
        %5458 = vmatprep.subr.bf16.mxu0 %v5441
        %5459 = vmatpush1.bf16.msra.mxu0 %v5440
        %5460 = vmatprep.subr.bf16.mxu0 %v5439
        %5461 = vmatpush1.bf16.msra.mxu0 %v5438
        %5462 = vmatprep.subr.bf16.mxu0 %v5437
        %5463 = vmatpush1.bf16.msra.mxu0 %v5436
        %5464 = vmatprep.subr.bf16.mxu0 %v5435
        %5465 = vmatpush1.bf16.msra.mxu0 %v5434
        %5466 = vmatprep.subr.bf16.mxu0 %v5433
        %5467 = vmatpush1.bf16.msra.mxu0 %v5432
        %5468 = vmatprep.subr.bf16.mxu0 %v5431
        %5469 = vmatpush1.bf16.msra.mxu0 %v5430
        %5470 = vmatprep.subr.bf16.mxu0 %v5429
        %5471 = vmatpush1.bf16.msra.mxu0 %v5428
        %5472 = vmatprep.subr.bf16.mxu0 %v5427
        %5473 = vmatpush1.bf16.msra.mxu0 %v5426
        %5474 = vmatprep.subr.bf16.mxu0 0
        %5475 = vmatpush2.bf16.msra.mxu0 0
        %5476 = vmatprep.subr.bf16.mxu0 0
        %5477 = vmatpush2.bf16.msra.mxu0 0
        %5478 = vmatprep.subr.bf16.mxu0 0
        %5479 = vmatpush2.bf16.msra.mxu0 0
        %5480 = vmatprep.subr.bf16.mxu0 0
        %5481 = vmatpush2.bf16.msra.mxu0 0
        %5482 = vmatprep.subr.bf16.mxu0 0
        %5483 = vmatpush2.bf16.msra.mxu0 0
        %5484 = vmatprep.subr.bf16.mxu0 0
        %5485 = vmatpush2.bf16.msra.mxu0 0
        %5486 = vmatprep.subr.bf16.mxu0 0
        %5487 = vmatpush2.bf16.msra.mxu0 0
        %5488 = vmatprep.subr.bf16.mxu0 0
        %5489 = vmatpush2.bf16.msra.mxu0 0
        %5490 = vmatprep.mubr.bf16.mxu0 0
        %5491 = vmatmul.mubr.bf16.gmra.mxu0 %v5152
        %v5492 = vpop.f32.mrf.mxu0
        %v5493 = vadd.f32 %v5372, %v5492
        %v5494 = vpop.f32.mrf.mxu0
        %v5495 = vadd.f32 %v5374, %v5494
        %v5496 = vpop.f32.mrf.mxu0
        %v5497 = vpop.f32.mrf.mxu0
        %5498 = vdwg.mxu0
        %v5499 = vadd.f32 %v4279, %v5493
        %v5500 = vadd.f32 %v4280, %v5495
        %s5501 = scalar_lea.vmem %s7, 2
        %v5502 = vld [vmem:[%s5501] sm:$0x3]
        %v5504 = vlaneseq
        %v5505 = vshrl.u32 %v5504, 7
        %v5506 = vsub.s32 0, %v5505
        %v5507 = vrot.slane %v5502, %v5506
        %v5508 = vlaneseq
        %v5509 = vshrl.u32 %v5508, 7
        %v5510 = vsub.s32 1, %v5509
        %v5511 = vrot.slane %v5502, %v5510
        %v5514 = vadd.f32 %v5499, %v5507
        %v5515 = vadd.f32 %v5500, %v5511
        %s5516 = scalar_lea.vmem [#allocation14], 2
        %v5517 = vld [vmem:[%s5516] sm:$0x3]
        %s5518 = scalar_lea.vmem [#allocation16], 2
        %v5519 = vld [vmem:[%s5518] sm:$0x3]
        %v5520 = vadd.f32 %v5514, %v5515
        %5521 = vadd.xlane.f32.xlu0 %v5520
        %v5522 = vpop.xlane.xlu0 %5521
        %v5523 = vmul.f32 %v5522, %v909
        %v5524 = vsub.f32 %v5514, %v5523
        %v5525 = vsub.f32 %v5515, %v5523
        %v5526 = vmul.f32 %v5524, %v5524
        %v5527 = vmul.f32 %v5525, %v5525
        %v5528 = vadd.f32 %v5526, %v5527
        %5529 = vadd.xlane.f32.xlu0 %v5528
        %v5530 = vpop.xlane.xlu0 %5529
        %v5531 = vmul.f32 %v5530, %v909
        %v5532 = vadd.f32 %v5531, 1e-12
        %v5533 = vrsqrt.pop %v5532
        %v5534 = vmul.f32 %v5524, %v5533
        %v5535 = vmul.f32 %v5525, %v5533
        %v5537 = vlaneseq
        %v5538 = vshrl.u32 %v5537, 7
        %v5539 = vsub.s32 0, %v5538
        %v5540 = vrot.slane %v5517, %v5539
        %v5541 = vlaneseq
        %v5542 = vshrl.u32 %v5541, 7
        %v5543 = vsub.s32 1, %v5542
        %v5544 = vrot.slane %v5517, %v5543
        %v5547 = vmul.f32 %v5534, %v5540
        %v5548 = vmul.f32 %v5535, %v5544
        %v5550 = vlaneseq
        %v5551 = vshrl.u32 %v5550, 7
        %v5552 = vsub.s32 0, %v5551
        %v5553 = vrot.slane %v5519, %v5552
        %v5554 = vlaneseq
        %v5555 = vshrl.u32 %v5554, 7
        %v5556 = vsub.s32 1, %v5555
        %v5557 = vrot.slane %v5519, %v5556
        %v5560 = vadd.f32 %v5547, %v5553
        %v5561 = vadd.f32 %v5548, %v5557
        %v5562 = vpack.c.bf16 %v5560, %v5560
        %v5563 = vpack.c.bf16 %v5561, %v5561
        %s5564 = scalar_lea.vmem [#allocation17], 1024
        %v5565 = vld [vmem:[%s5564] sm:$0xff]
        %v5566 = vld [vmem:[%s5564 + $0x8] sm:$0xff]
        %v5567 = vld [vmem:[%s5564 + $0x10] sm:$0xff]
        %v5568 = vld [vmem:[%s5564 + $0x18] sm:$0xff]
        %v5569 = vld [vmem:[%s5564 + $0x20] sm:$0xff]
        %v5570 = vld [vmem:[%s5564 + $0x28] sm:$0xff]
        %v5571 = vld [vmem:[%s5564 + $0x30] sm:$0xff]
        %v5572 = vld [vmem:[%s5564 + $0x38] sm:$0xff]
        %v5573 = vld [vmem:[%s5564 + $0x40] sm:$0xff]
        %v5574 = vld [vmem:[%s5564 + $0x48] sm:$0xff]
        %v5575 = vld [vmem:[%s5564 + $0x50] sm:$0xff]
        %v5576 = vld [vmem:[%s5564 + $0x58] sm:$0xff]
        %v5577 = vld [vmem:[%s5564 + $0x60] sm:$0xff]
        %v5578 = vld [vmem:[%s5564 + $0x68] sm:$0xff]
        %v5579 = vld [vmem:[%s5564 + $0x70] sm:$0xff]
        %v5580 = vld [vmem:[%s5564 + $0x78] sm:$0xff]
        %v5581 = vld [vmem:[%s5564 + $0x80] sm:$0xff]
        %v5582 = vld [vmem:[%s5564 + $0x88] sm:$0xff]
        %v5583 = vld [vmem:[%s5564 + $0x90] sm:$0xff]
        %v5584 = vld [vmem:[%s5564 + $0x98] sm:$0xff]
        %v5585 = vld [vmem:[%s5564 + $0xa0] sm:$0xff]
        %v5586 = vld [vmem:[%s5564 + $0xa8] sm:$0xff]
        %v5587 = vld [vmem:[%s5564 + $0xb0] sm:$0xff]
        %v5588 = vld [vmem:[%s5564 + $0xb8] sm:$0xff]
        %v5589 = vld [vmem:[%s5564 + $0xc0] sm:$0xff]
        %v5590 = vld [vmem:[%s5564 + $0xc8] sm:$0xff]
        %v5591 = vld [vmem:[%s5564 + $0xd0] sm:$0xff]
        %v5592 = vld [vmem:[%s5564 + $0xd8] sm:$0xff]
        %v5593 = vld [vmem:[%s5564 + $0xe0] sm:$0xff]
        %v5594 = vld [vmem:[%s5564 + $0xe8] sm:$0xff]
        %v5595 = vld [vmem:[%s5564 + $0xf0] sm:$0xff]
        %v5596 = vld [vmem:[%s5564 + $0xf8] sm:$0xff]
        %v5597 = vld [vmem:[%s5564 + $0x100] sm:$0xff]
        %v5598 = vld [vmem:[%s5564 + $0x108] sm:$0xff]
        %v5599 = vld [vmem:[%s5564 + $0x110] sm:$0xff]
        %v5600 = vld [vmem:[%s5564 + $0x118] sm:$0xff]
        %v5601 = vld [vmem:[%s5564 + $0x120] sm:$0xff]
        %v5602 = vld [vmem:[%s5564 + $0x128] sm:$0xff]
        %v5603 = vld [vmem:[%s5564 + $0x130] sm:$0xff]
        %v5604 = vld [vmem:[%s5564 + $0x138] sm:$0xff]
        %v5605 = vld [vmem:[%s5564 + $0x140] sm:$0xff]
        %v5606 = vld [vmem:[%s5564 + $0x148] sm:$0xff]
        %v5607 = vld [vmem:[%s5564 + $0x150] sm:$0xff]
        %v5608 = vld [vmem:[%s5564 + $0x158] sm:$0xff]
        %v5609 = vld [vmem:[%s5564 + $0x160] sm:$0xff]
        %v5610 = vld [vmem:[%s5564 + $0x168] sm:$0xff]
        %v5611 = vld [vmem:[%s5564 + $0x170] sm:$0xff]
        %v5612 = vld [vmem:[%s5564 + $0x178] sm:$0xff]
        %v5613 = vld [vmem:[%s5564 + $0x180] sm:$0xff]
        %v5614 = vld [vmem:[%s5564 + $0x188] sm:$0xff]
        %v5615 = vld [vmem:[%s5564 + $0x190] sm:$0xff]
        %v5616 = vld [vmem:[%s5564 + $0x198] sm:$0xff]
        %v5617 = vld [vmem:[%s5564 + $0x1a0] sm:$0xff]
        %v5618 = vld [vmem:[%s5564 + $0x1a8] sm:$0xff]
        %v5619 = vld [vmem:[%s5564 + $0x1b0] sm:$0xff]
        %v5620 = vld [vmem:[%s5564 + $0x1b8] sm:$0xff]
        %v5621 = vld [vmem:[%s5564 + $0x1c0] sm:$0xff]
        %v5622 = vld [vmem:[%s5564 + $0x1c8] sm:$0xff]
        %v5623 = vld [vmem:[%s5564 + $0x1d0] sm:$0xff]
        %v5624 = vld [vmem:[%s5564 + $0x1d8] sm:$0xff]
        %v5625 = vld [vmem:[%s5564 + $0x1e0] sm:$0xff]
        %v5626 = vld [vmem:[%s5564 + $0x1e8] sm:$0xff]
        %v5627 = vld [vmem:[%s5564 + $0x1f0] sm:$0xff]
        %v5628 = vld [vmem:[%s5564 + $0x1f8] sm:$0xff]
        %v5629 = vld [vmem:[%s5564 + $0x200] sm:$0xff]
        %v5630 = vld [vmem:[%s5564 + $0x208] sm:$0xff]
        %v5631 = vld [vmem:[%s5564 + $0x210] sm:$0xff]
        %v5632 = vld [vmem:[%s5564 + $0x218] sm:$0xff]
        %v5633 = vld [vmem:[%s5564 + $0x220] sm:$0xff]
        %v5634 = vld [vmem:[%s5564 + $0x228] sm:$0xff]
        %v5635 = vld [vmem:[%s5564 + $0x230] sm:$0xff]
        %v5636 = vld [vmem:[%s5564 + $0x238] sm:$0xff]
        %v5637 = vld [vmem:[%s5564 + $0x240] sm:$0xff]
        %v5638 = vld [vmem:[%s5564 + $0x248] sm:$0xff]
        %v5639 = vld [vmem:[%s5564 + $0x250] sm:$0xff]
        %v5640 = vld [vmem:[%s5564 + $0x258] sm:$0xff]
        %v5641 = vld [vmem:[%s5564 + $0x260] sm:$0xff]
        %v5642 = vld [vmem:[%s5564 + $0x268] sm:$0xff]
        %v5643 = vld [vmem:[%s5564 + $0x270] sm:$0xff]
        %v5644 = vld [vmem:[%s5564 + $0x278] sm:$0xff]
        %v5645 = vld [vmem:[%s5564 + $0x280] sm:$0xff]
        %v5646 = vld [vmem:[%s5564 + $0x288] sm:$0xff]
        %v5647 = vld [vmem:[%s5564 + $0x290] sm:$0xff]
        %v5648 = vld [vmem:[%s5564 + $0x298] sm:$0xff]
        %v5649 = vld [vmem:[%s5564 + $0x2a0] sm:$0xff]
        %v5650 = vld [vmem:[%s5564 + $0x2a8] sm:$0xff]
        %v5651 = vld [vmem:[%s5564 + $0x2b0] sm:$0xff]
        %v5652 = vld [vmem:[%s5564 + $0x2b8] sm:$0xff]
        %v5653 = vld [vmem:[%s5564 + $0x2c0] sm:$0xff]
        %v5654 = vld [vmem:[%s5564 + $0x2c8] sm:$0xff]
        %v5655 = vld [vmem:[%s5564 + $0x2d0] sm:$0xff]
        %v5656 = vld [vmem:[%s5564 + $0x2d8] sm:$0xff]
        %v5657 = vld [vmem:[%s5564 + $0x2e0] sm:$0xff]
        %v5658 = vld [vmem:[%s5564 + $0x2e8] sm:$0xff]
        %v5659 = vld [vmem:[%s5564 + $0x2f0] sm:$0xff]
        %v5660 = vld [vmem:[%s5564 + $0x2f8] sm:$0xff]
        %v5661 = vld [vmem:[%s5564 + $0x300] sm:$0xff]
        %v5662 = vld [vmem:[%s5564 + $0x308] sm:$0xff]
        %v5663 = vld [vmem:[%s5564 + $0x310] sm:$0xff]
        %v5664 = vld [vmem:[%s5564 + $0x318] sm:$0xff]
        %v5665 = vld [vmem:[%s5564 + $0x320] sm:$0xff]
        %v5666 = vld [vmem:[%s5564 + $0x328] sm:$0xff]
        %v5667 = vld [vmem:[%s5564 + $0x330] sm:$0xff]
        %v5668 = vld [vmem:[%s5564 + $0x338] sm:$0xff]
        %v5669 = vld [vmem:[%s5564 + $0x340] sm:$0xff]
        %v5670 = vld [vmem:[%s5564 + $0x348] sm:$0xff]
        %v5671 = vld [vmem:[%s5564 + $0x350] sm:$0xff]
        %v5672 = vld [vmem:[%s5564 + $0x358] sm:$0xff]
        %v5673 = vld [vmem:[%s5564 + $0x360] sm:$0xff]
        %v5674 = vld [vmem:[%s5564 + $0x368] sm:$0xff]
        %v5675 = vld [vmem:[%s5564 + $0x370] sm:$0xff]
        %v5676 = vld [vmem:[%s5564 + $0x378] sm:$0xff]
        %v5677 = vld [vmem:[%s5564 + $0x380] sm:$0xff]
        %v5678 = vld [vmem:[%s5564 + $0x388] sm:$0xff]
        %v5679 = vld [vmem:[%s5564 + $0x390] sm:$0xff]
        %v5680 = vld [vmem:[%s5564 + $0x398] sm:$0xff]
        %v5681 = vld [vmem:[%s5564 + $0x3a0] sm:$0xff]
        %v5682 = vld [vmem:[%s5564 + $0x3a8] sm:$0xff]
        %v5683 = vld [vmem:[%s5564 + $0x3b0] sm:$0xff]
        %v5684 = vld [vmem:[%s5564 + $0x3b8] sm:$0xff]
        %v5685 = vld [vmem:[%s5564 + $0x3c0] sm:$0xff]
        %v5686 = vld [vmem:[%s5564 + $0x3c8] sm:$0xff]
        %v5687 = vld [vmem:[%s5564 + $0x3d0] sm:$0xff]
        %v5688 = vld [vmem:[%s5564 + $0x3d8] sm:$0xff]
        %v5689 = vld [vmem:[%s5564 + $0x3e0] sm:$0xff]
        %v5690 = vld [vmem:[%s5564 + $0x3e8] sm:$0xff]
        %v5691 = vld [vmem:[%s5564 + $0x3f0] sm:$0xff]
        %v5692 = vld [vmem:[%s5564 + $0x3f8] sm:$0xff]
        %s5693 = scalar_lea.vmem %s11, 8
        %v5694 = vld [vmem:[%s5693] sm:$0xff]
        %v5696 = vlaneseq
        %v5697 = vshrl.u32 %v5696, 7
        %v5698 = vsub.s32 0, %v5697
        %v5699 = vrot.slane %v5694, %v5698
        %v5700 = vlaneseq
        %v5701 = vshrl.u32 %v5700, 7
        %v5702 = vsub.s32 1, %v5701
        %v5703 = vrot.slane %v5694, %v5702
        %v5704 = vlaneseq
        %v5705 = vshrl.u32 %v5704, 7
        %v5706 = vsub.s32 2, %v5705
        %v5707 = vrot.slane %v5694, %v5706
        %v5708 = vlaneseq
        %v5709 = vshrl.u32 %v5708, 7
        %v5710 = vsub.s32 3, %v5709
        %v5711 = vrot.slane %v5694, %v5710
        %v5712 = vlaneseq
        %v5713 = vshrl.u32 %v5712, 7
        %v5714 = vsub.s32 4, %v5713
        %v5715 = vrot.slane %v5694, %v5714
        %v5716 = vlaneseq
        %v5717 = vshrl.u32 %v5716, 7
        %v5718 = vsub.s32 5, %v5717
        %v5719 = vrot.slane %v5694, %v5718
        %v5720 = vlaneseq
        %v5721 = vshrl.u32 %v5720, 7
        %v5722 = vsub.s32 6, %v5721
        %v5723 = vrot.slane %v5694, %v5722
        %v5724 = vlaneseq
        %v5725 = vshrl.u32 %v5724, 7
        %v5726 = vsub.s32 7, %v5725
        %v5727 = vrot.slane %v5694, %v5726
        %v5864 = vunpack.c.l.b16 %v5565
        %v5865 = vunpack.c.h.b16 %v5565
        %v5866 = vunpack.c.l.b16 %v5566
        %v5867 = vunpack.c.h.b16 %v5566
        %v5868 = vunpack.c.l.b16 %v5567
        %v5869 = vunpack.c.h.b16 %v5567
        %v5870 = vunpack.c.l.b16 %v5568
        %v5871 = vunpack.c.h.b16 %v5568
        %v5872 = vunpack.c.l.b16 %v5569
        %v5873 = vunpack.c.h.b16 %v5569
        %v5874 = vunpack.c.l.b16 %v5570
        %v5875 = vunpack.c.h.b16 %v5570
        %v5876 = vunpack.c.l.b16 %v5571
        %v5877 = vunpack.c.h.b16 %v5571
        %v5878 = vunpack.c.l.b16 %v5572
        %v5879 = vunpack.c.h.b16 %v5572
        %v5880 = vunpack.c.l.b16 %v5573
        %v5881 = vunpack.c.h.b16 %v5573
        %v5882 = vunpack.c.l.b16 %v5574
        %v5883 = vunpack.c.h.b16 %v5574
        %v5884 = vunpack.c.l.b16 %v5575
        %v5885 = vunpack.c.h.b16 %v5575
        %v5886 = vunpack.c.l.b16 %v5576
        %v5887 = vunpack.c.h.b16 %v5576
        %v5888 = vunpack.c.l.b16 %v5577
        %v5889 = vunpack.c.h.b16 %v5577
        %v5890 = vunpack.c.l.b16 %v5578
        %v5891 = vunpack.c.h.b16 %v5578
        %v5892 = vunpack.c.l.b16 %v5579
        %v5893 = vunpack.c.h.b16 %v5579
        %v5894 = vunpack.c.l.b16 %v5580
        %v5895 = vunpack.c.h.b16 %v5580
        %v5896 = vunpack.c.l.b16 %v5581
        %v5897 = vunpack.c.h.b16 %v5581
        %v5898 = vunpack.c.l.b16 %v5582
        %v5899 = vunpack.c.h.b16 %v5582
        %v5900 = vunpack.c.l.b16 %v5583
        %v5901 = vunpack.c.h.b16 %v5583
        %v5902 = vunpack.c.l.b16 %v5584
        %v5903 = vunpack.c.h.b16 %v5584
        %v5904 = vunpack.c.l.b16 %v5585
        %v5905 = vunpack.c.h.b16 %v5585
        %v5906 = vunpack.c.l.b16 %v5586
        %v5907 = vunpack.c.h.b16 %v5586
        %v5908 = vunpack.c.l.b16 %v5587
        %v5909 = vunpack.c.h.b16 %v5587
        %v5910 = vunpack.c.l.b16 %v5588
        %v5911 = vunpack.c.h.b16 %v5588
        %v5912 = vunpack.c.l.b16 %v5589
        %v5913 = vunpack.c.h.b16 %v5589
        %v5914 = vunpack.c.l.b16 %v5590
        %v5915 = vunpack.c.h.b16 %v5590
        %v5916 = vunpack.c.l.b16 %v5591
        %v5917 = vunpack.c.h.b16 %v5591
        %v5918 = vunpack.c.l.b16 %v5592
        %v5919 = vunpack.c.h.b16 %v5592
        %v5920 = vunpack.c.l.b16 %v5593
        %v5921 = vunpack.c.h.b16 %v5593
        %v5922 = vunpack.c.l.b16 %v5594
        %v5923 = vunpack.c.h.b16 %v5594
        %v5924 = vunpack.c.l.b16 %v5595
        %v5925 = vunpack.c.h.b16 %v5595
        %v5926 = vunpack.c.l.b16 %v5596
        %v5927 = vunpack.c.h.b16 %v5596
        %v5928 = vunpack.c.l.b16 %v5597
        %v5929 = vunpack.c.h.b16 %v5597
        %v5930 = vunpack.c.l.b16 %v5598
        %v5931 = vunpack.c.h.b16 %v5598
        %v5932 = vunpack.c.l.b16 %v5599
        %v5933 = vunpack.c.h.b16 %v5599
        %v5934 = vunpack.c.l.b16 %v5600
        %v5935 = vunpack.c.h.b16 %v5600
        %v5936 = vunpack.c.l.b16 %v5601
        %v5937 = vunpack.c.h.b16 %v5601
        %v5938 = vunpack.c.l.b16 %v5602
        %v5939 = vunpack.c.h.b16 %v5602
        %v5940 = vunpack.c.l.b16 %v5603
        %v5941 = vunpack.c.h.b16 %v5603
        %v5942 = vunpack.c.l.b16 %v5604
        %v5943 = vunpack.c.h.b16 %v5604
        %v5944 = vunpack.c.l.b16 %v5605
        %v5945 = vunpack.c.h.b16 %v5605
        %v5946 = vunpack.c.l.b16 %v5606
        %v5947 = vunpack.c.h.b16 %v5606
        %v5948 = vunpack.c.l.b16 %v5607
        %v5949 = vunpack.c.h.b16 %v5607
        %v5950 = vunpack.c.l.b16 %v5608
        %v5951 = vunpack.c.h.b16 %v5608
        %v5952 = vunpack.c.l.b16 %v5609
        %v5953 = vunpack.c.h.b16 %v5609
        %v5954 = vunpack.c.l.b16 %v5610
        %v5955 = vunpack.c.h.b16 %v5610
        %v5956 = vunpack.c.l.b16 %v5611
        %v5957 = vunpack.c.h.b16 %v5611
        %v5958 = vunpack.c.l.b16 %v5612
        %v5959 = vunpack.c.h.b16 %v5612
        %v5960 = vunpack.c.l.b16 %v5613
        %v5961 = vunpack.c.h.b16 %v5613
        %v5962 = vunpack.c.l.b16 %v5614
        %v5963 = vunpack.c.h.b16 %v5614
        %v5964 = vunpack.c.l.b16 %v5615
        %v5965 = vunpack.c.h.b16 %v5615
        %v5966 = vunpack.c.l.b16 %v5616
        %v5967 = vunpack.c.h.b16 %v5616
        %v5968 = vunpack.c.l.b16 %v5617
        %v5969 = vunpack.c.h.b16 %v5617
        %v5970 = vunpack.c.l.b16 %v5618
        %v5971 = vunpack.c.h.b16 %v5618
        %v5972 = vunpack.c.l.b16 %v5619
        %v5973 = vunpack.c.h.b16 %v5619
        %v5974 = vunpack.c.l.b16 %v5620
        %v5975 = vunpack.c.h.b16 %v5620
        %v5976 = vunpack.c.l.b16 %v5621
        %v5977 = vunpack.c.h.b16 %v5621
        %v5978 = vunpack.c.l.b16 %v5622
        %v5979 = vunpack.c.h.b16 %v5622
        %v5980 = vunpack.c.l.b16 %v5623
        %v5981 = vunpack.c.h.b16 %v5623
        %v5982 = vunpack.c.l.b16 %v5624
        %v5983 = vunpack.c.h.b16 %v5624
        %v5984 = vunpack.c.l.b16 %v5625
        %v5985 = vunpack.c.h.b16 %v5625
        %v5986 = vunpack.c.l.b16 %v5626
        %v5987 = vunpack.c.h.b16 %v5626
        %v5988 = vunpack.c.l.b16 %v5627
        %v5989 = vunpack.c.h.b16 %v5627
        %v5990 = vunpack.c.l.b16 %v5628
        %v5991 = vunpack.c.h.b16 %v5628
        %v5992 = vunpack.c.l.b16 %v5629
        %v5993 = vunpack.c.h.b16 %v5629
        %v5994 = vunpack.c.l.b16 %v5630
        %v5995 = vunpack.c.h.b16 %v5630
        %v5996 = vunpack.c.l.b16 %v5631
        %v5997 = vunpack.c.h.b16 %v5631
        %v5998 = vunpack.c.l.b16 %v5632
        %v5999 = vunpack.c.h.b16 %v5632
        %v6000 = vunpack.c.l.b16 %v5633
        %v6001 = vunpack.c.h.b16 %v5633
        %v6002 = vunpack.c.l.b16 %v5634
        %v6003 = vunpack.c.h.b16 %v5634
        %v6004 = vunpack.c.l.b16 %v5635
        %v6005 = vunpack.c.h.b16 %v5635
        %v6006 = vunpack.c.l.b16 %v5636
        %v6007 = vunpack.c.h.b16 %v5636
        %v6008 = vunpack.c.l.b16 %v5637
        %v6009 = vunpack.c.h.b16 %v5637
        %v6010 = vunpack.c.l.b16 %v5638
        %v6011 = vunpack.c.h.b16 %v5638
        %v6012 = vunpack.c.l.b16 %v5639
        %v6013 = vunpack.c.h.b16 %v5639
        %v6014 = vunpack.c.l.b16 %v5640
        %v6015 = vunpack.c.h.b16 %v5640
        %v6016 = vunpack.c.l.b16 %v5641
        %v6017 = vunpack.c.h.b16 %v5641
        %v6018 = vunpack.c.l.b16 %v5642
        %v6019 = vunpack.c.h.b16 %v5642
        %v6020 = vunpack.c.l.b16 %v5643
        %v6021 = vunpack.c.h.b16 %v5643
        %v6022 = vunpack.c.l.b16 %v5644
        %v6023 = vunpack.c.h.b16 %v5644
        %v6024 = vunpack.c.l.b16 %v5645
        %v6025 = vunpack.c.h.b16 %v5645
        %v6026 = vunpack.c.l.b16 %v5646
        %v6027 = vunpack.c.h.b16 %v5646
        %v6028 = vunpack.c.l.b16 %v5647
        %v6029 = vunpack.c.h.b16 %v5647
        %v6030 = vunpack.c.l.b16 %v5648
        %v6031 = vunpack.c.h.b16 %v5648
        %v6032 = vunpack.c.l.b16 %v5649
        %v6033 = vunpack.c.h.b16 %v5649
        %v6034 = vunpack.c.l.b16 %v5650
        %v6035 = vunpack.c.h.b16 %v5650
        %v6036 = vunpack.c.l.b16 %v5651
        %v6037 = vunpack.c.h.b16 %v5651
        %v6038 = vunpack.c.l.b16 %v5652
        %v6039 = vunpack.c.h.b16 %v5652
        %v6040 = vunpack.c.l.b16 %v5653
        %v6041 = vunpack.c.h.b16 %v5653
        %v6042 = vunpack.c.l.b16 %v5654
        %v6043 = vunpack.c.h.b16 %v5654
        %v6044 = vunpack.c.l.b16 %v5655
        %v6045 = vunpack.c.h.b16 %v5655
        %v6046 = vunpack.c.l.b16 %v5656
        %v6047 = vunpack.c.h.b16 %v5656
        %v6048 = vunpack.c.l.b16 %v5657
        %v6049 = vunpack.c.h.b16 %v5657
        %v6050 = vunpack.c.l.b16 %v5658
        %v6051 = vunpack.c.h.b16 %v5658
        %v6052 = vunpack.c.l.b16 %v5659
        %v6053 = vunpack.c.h.b16 %v5659
        %v6054 = vunpack.c.l.b16 %v5660
        %v6055 = vunpack.c.h.b16 %v5660
        %v6056 = vunpack.c.l.b16 %v5661
        %v6057 = vunpack.c.h.b16 %v5661
        %v6058 = vunpack.c.l.b16 %v5662
        %v6059 = vunpack.c.h.b16 %v5662
        %v6060 = vunpack.c.l.b16 %v5663
        %v6061 = vunpack.c.h.b16 %v5663
        %v6062 = vunpack.c.l.b16 %v5664
        %v6063 = vunpack.c.h.b16 %v5664
        %v6064 = vunpack.c.l.b16 %v5665
        %v6065 = vunpack.c.h.b16 %v5665
        %v6066 = vunpack.c.l.b16 %v5666
        %v6067 = vunpack.c.h.b16 %v5666
        %v6068 = vunpack.c.l.b16 %v5667
        %v6069 = vunpack.c.h.b16 %v5667
        %v6070 = vunpack.c.l.b16 %v5668
        %v6071 = vunpack.c.h.b16 %v5668
        %v6072 = vunpack.c.l.b16 %v5669
        %v6073 = vunpack.c.h.b16 %v5669
        %v6074 = vunpack.c.l.b16 %v5670
        %v6075 = vunpack.c.h.b16 %v5670
        %v6076 = vunpack.c.l.b16 %v5671
        %v6077 = vunpack.c.h.b16 %v5671
        %v6078 = vunpack.c.l.b16 %v5672
        %v6079 = vunpack.c.h.b16 %v5672
        %v6080 = vunpack.c.l.b16 %v5673
        %v6081 = vunpack.c.h.b16 %v5673
        %v6082 = vunpack.c.l.b16 %v5674
        %v6083 = vunpack.c.h.b16 %v5674
        %v6084 = vunpack.c.l.b16 %v5675
        %v6085 = vunpack.c.h.b16 %v5675
        %v6086 = vunpack.c.l.b16 %v5676
        %v6087 = vunpack.c.h.b16 %v5676
        %v6088 = vunpack.c.l.b16 %v5677
        %v6089 = vunpack.c.h.b16 %v5677
        %v6090 = vunpack.c.l.b16 %v5678
        %v6091 = vunpack.c.h.b16 %v5678
        %v6092 = vunpack.c.l.b16 %v5679
        %v6093 = vunpack.c.h.b16 %v5679
        %v6094 = vunpack.c.l.b16 %v5680
        %v6095 = vunpack.c.h.b16 %v5680
        %v6096 = vunpack.c.l.b16 %v5681
        %v6097 = vunpack.c.h.b16 %v5681
        %v6098 = vunpack.c.l.b16 %v5682
        %v6099 = vunpack.c.h.b16 %v5682
        %v6100 = vunpack.c.l.b16 %v5683
        %v6101 = vunpack.c.h.b16 %v5683
        %v6102 = vunpack.c.l.b16 %v5684
        %v6103 = vunpack.c.h.b16 %v5684
        %v6104 = vunpack.c.l.b16 %v5685
        %v6105 = vunpack.c.h.b16 %v5685
        %v6106 = vunpack.c.l.b16 %v5686
        %v6107 = vunpack.c.h.b16 %v5686
        %v6108 = vunpack.c.l.b16 %v5687
        %v6109 = vunpack.c.h.b16 %v5687
        %v6110 = vunpack.c.l.b16 %v5688
        %v6111 = vunpack.c.h.b16 %v5688
        %v6112 = vunpack.c.l.b16 %v5689
        %v6113 = vunpack.c.h.b16 %v5689
        %v6114 = vunpack.c.l.b16 %v5690
        %v6115 = vunpack.c.h.b16 %v5690
        %v6116 = vunpack.c.l.b16 %v5691
        %v6117 = vunpack.c.h.b16 %v5691
        %v6118 = vunpack.c.l.b16 %v5692
        %v6119 = vunpack.c.h.b16 %v5692
        %v6120 = vpack.c.b16 %v5872, %v5864
        %v6121 = vpack.c.b16 %v5873, %v5865
        %v6122 = vpack.c.b16 %v5874, %v5866
        %v6123 = vpack.c.b16 %v5875, %v5867
        %v6124 = vpack.c.b16 %v5876, %v5868
        %v6125 = vpack.c.b16 %v5877, %v5869
        %v6126 = vpack.c.b16 %v5878, %v5870
        %v6127 = vpack.c.b16 %v5879, %v5871
        %v6128 = vpack.c.b16 %v5888, %v5880
        %v6129 = vpack.c.b16 %v5889, %v5881
        %v6130 = vpack.c.b16 %v5890, %v5882
        %v6131 = vpack.c.b16 %v5891, %v5883
        %v6132 = vpack.c.b16 %v5892, %v5884
        %v6133 = vpack.c.b16 %v5893, %v5885
        %v6134 = vpack.c.b16 %v5894, %v5886
        %v6135 = vpack.c.b16 %v5895, %v5887
        %v6136 = vpack.c.b16 %v5904, %v5896
        %v6137 = vpack.c.b16 %v5905, %v5897
        %v6138 = vpack.c.b16 %v5906, %v5898
        %v6139 = vpack.c.b16 %v5907, %v5899
        %v6140 = vpack.c.b16 %v5908, %v5900
        %v6141 = vpack.c.b16 %v5909, %v5901
        %v6142 = vpack.c.b16 %v5910, %v5902
        %v6143 = vpack.c.b16 %v5911, %v5903
        %v6144 = vpack.c.b16 %v5920, %v5912
        %v6145 = vpack.c.b16 %v5921, %v5913
        %v6146 = vpack.c.b16 %v5922, %v5914
        %v6147 = vpack.c.b16 %v5923, %v5915
        %v6148 = vpack.c.b16 %v5924, %v5916
        %v6149 = vpack.c.b16 %v5925, %v5917
        %v6150 = vpack.c.b16 %v5926, %v5918
        %v6151 = vpack.c.b16 %v5927, %v5919
        %v6152 = vpack.c.b16 %v5936, %v5928
        %v6153 = vpack.c.b16 %v5937, %v5929
        %v6154 = vpack.c.b16 %v5938, %v5930
        %v6155 = vpack.c.b16 %v5939, %v5931
        %v6156 = vpack.c.b16 %v5940, %v5932
        %v6157 = vpack.c.b16 %v5941, %v5933
        %v6158 = vpack.c.b16 %v5942, %v5934
        %v6159 = vpack.c.b16 %v5943, %v5935
        %v6160 = vpack.c.b16 %v5952, %v5944
        %v6161 = vpack.c.b16 %v5953, %v5945
        %v6162 = vpack.c.b16 %v5954, %v5946
        %v6163 = vpack.c.b16 %v5955, %v5947
        %v6164 = vpack.c.b16 %v5956, %v5948
        %v6165 = vpack.c.b16 %v5957, %v5949
        %v6166 = vpack.c.b16 %v5958, %v5950
        %v6167 = vpack.c.b16 %v5959, %v5951
        %v6168 = vpack.c.b16 %v5968, %v5960
        %v6169 = vpack.c.b16 %v5969, %v5961
        %v6170 = vpack.c.b16 %v5970, %v5962
        %v6171 = vpack.c.b16 %v5971, %v5963
        %v6172 = vpack.c.b16 %v5972, %v5964
        %v6173 = vpack.c.b16 %v5973, %v5965
        %v6174 = vpack.c.b16 %v5974, %v5966
        %v6175 = vpack.c.b16 %v5975, %v5967
        %v6176 = vpack.c.b16 %v5984, %v5976
        %v6177 = vpack.c.b16 %v5985, %v5977
        %v6178 = vpack.c.b16 %v5986, %v5978
        %v6179 = vpack.c.b16 %v5987, %v5979
        %v6180 = vpack.c.b16 %v5988, %v5980
        %v6181 = vpack.c.b16 %v5989, %v5981
        %v6182 = vpack.c.b16 %v5990, %v5982
        %v6183 = vpack.c.b16 %v5991, %v5983
        %v6184 = vpack.c.b16 %v6000, %v5992
        %v6185 = vpack.c.b16 %v6001, %v5993
        %v6186 = vpack.c.b16 %v6002, %v5994
        %v6187 = vpack.c.b16 %v6003, %v5995
        %v6188 = vpack.c.b16 %v6004, %v5996
        %v6189 = vpack.c.b16 %v6005, %v5997
        %v6190 = vpack.c.b16 %v6006, %v5998
        %v6191 = vpack.c.b16 %v6007, %v5999
        %v6192 = vpack.c.b16 %v6016, %v6008
        %v6193 = vpack.c.b16 %v6017, %v6009
        %v6194 = vpack.c.b16 %v6018, %v6010
        %v6195 = vpack.c.b16 %v6019, %v6011
        %v6196 = vpack.c.b16 %v6020, %v6012
        %v6197 = vpack.c.b16 %v6021, %v6013
        %v6198 = vpack.c.b16 %v6022, %v6014
        %v6199 = vpack.c.b16 %v6023, %v6015
        %v6200 = vpack.c.b16 %v6032, %v6024
        %v6201 = vpack.c.b16 %v6033, %v6025
        %v6202 = vpack.c.b16 %v6034, %v6026
        %v6203 = vpack.c.b16 %v6035, %v6027
        %v6204 = vpack.c.b16 %v6036, %v6028
        %v6205 = vpack.c.b16 %v6037, %v6029
        %v6206 = vpack.c.b16 %v6038, %v6030
        %v6207 = vpack.c.b16 %v6039, %v6031
        %v6208 = vpack.c.b16 %v6048, %v6040
        %v6209 = vpack.c.b16 %v6049, %v6041
        %v6210 = vpack.c.b16 %v6050, %v6042
        %v6211 = vpack.c.b16 %v6051, %v6043
        %v6212 = vpack.c.b16 %v6052, %v6044
        %v6213 = vpack.c.b16 %v6053, %v6045
        %v6214 = vpack.c.b16 %v6054, %v6046
        %v6215 = vpack.c.b16 %v6055, %v6047
        %v6216 = vpack.c.b16 %v6064, %v6056
        %v6217 = vpack.c.b16 %v6065, %v6057
        %v6218 = vpack.c.b16 %v6066, %v6058
        %v6219 = vpack.c.b16 %v6067, %v6059
        %v6220 = vpack.c.b16 %v6068, %v6060
        %v6221 = vpack.c.b16 %v6069, %v6061
        %v6222 = vpack.c.b16 %v6070, %v6062
        %v6223 = vpack.c.b16 %v6071, %v6063
        %v6224 = vpack.c.b16 %v6080, %v6072
        %v6225 = vpack.c.b16 %v6081, %v6073
        %v6226 = vpack.c.b16 %v6082, %v6074
        %v6227 = vpack.c.b16 %v6083, %v6075
        %v6228 = vpack.c.b16 %v6084, %v6076
        %v6229 = vpack.c.b16 %v6085, %v6077
        %v6230 = vpack.c.b16 %v6086, %v6078
        %v6231 = vpack.c.b16 %v6087, %v6079
        %v6232 = vpack.c.b16 %v6096, %v6088
        %v6233 = vpack.c.b16 %v6097, %v6089
        %v6234 = vpack.c.b16 %v6098, %v6090
        %v6235 = vpack.c.b16 %v6099, %v6091
        %v6236 = vpack.c.b16 %v6100, %v6092
        %v6237 = vpack.c.b16 %v6101, %v6093
        %v6238 = vpack.c.b16 %v6102, %v6094
        %v6239 = vpack.c.b16 %v6103, %v6095
        %v6240 = vpack.c.b16 %v6112, %v6104
        %v6241 = vpack.c.b16 %v6113, %v6105
        %v6242 = vpack.c.b16 %v6114, %v6106
        %v6243 = vpack.c.b16 %v6115, %v6107
        %v6244 = vpack.c.b16 %v6116, %v6108
        %v6245 = vpack.c.b16 %v6117, %v6109
        %v6246 = vpack.c.b16 %v6118, %v6110
        %v6247 = vpack.c.b16 %v6119, %v6111
        %6376 = vmatprep.subr.bf16.mxu0 %v6177
        %6377 = vmatpush1.bf16.msra.mxu0 %v6176
        %6378 = vmatprep.subr.bf16.mxu0 %v6169
        %6379 = vmatpush1.bf16.msra.mxu0 %v6168
        %6380 = vmatprep.subr.bf16.mxu0 %v6161
        %6381 = vmatpush1.bf16.msra.mxu0 %v6160
        %6382 = vmatprep.subr.bf16.mxu0 %v6153
        %6383 = vmatpush1.bf16.msra.mxu0 %v6152
        %6384 = vmatprep.subr.bf16.mxu0 %v6145
        %6385 = vmatpush1.bf16.msra.mxu0 %v6144
        %6386 = vmatprep.subr.bf16.mxu0 %v6137
        %6387 = vmatpush1.bf16.msra.mxu0 %v6136
        %6388 = vmatprep.subr.bf16.mxu0 %v6129
        %6389 = vmatpush1.bf16.msra.mxu0 %v6128
        %6390 = vmatprep.subr.bf16.mxu0 %v6121
        %6391 = vmatpush1.bf16.msra.mxu0 %v6120
        %6392 = vmatprep.subr.bf16.mxu0 %v6241
        %6393 = vmatpush2.bf16.msra.mxu0 %v6240
        %6394 = vmatprep.subr.bf16.mxu0 %v6233
        %6395 = vmatpush2.bf16.msra.mxu0 %v6232
        %6396 = vmatprep.subr.bf16.mxu0 %v6225
        %6397 = vmatpush2.bf16.msra.mxu0 %v6224
        %6398 = vmatprep.subr.bf16.mxu0 %v6217
        %6399 = vmatpush2.bf16.msra.mxu0 %v6216
        %6400 = vmatprep.subr.bf16.mxu0 %v6209
        %6401 = vmatpush2.bf16.msra.mxu0 %v6208
        %6402 = vmatprep.subr.bf16.mxu0 %v6201
        %6403 = vmatpush2.bf16.msra.mxu0 %v6200
        %6404 = vmatprep.subr.bf16.mxu0 %v6193
        %6405 = vmatpush2.bf16.msra.mxu0 %v6192
        %6406 = vmatprep.subr.bf16.mxu0 %v6185
        %6407 = vmatpush2.bf16.msra.mxu0 %v6184
        %6408 = vmatprep.mubr.bf16.mxu0 %v5563
        %6409 = vmatmul.mubr.bf16.gmra.mxu0 %v5562
        %v6410 = vpop.f32.mrf.mxu0
        %v6411 = vadd.f32 %v5699, %v6410
        %v6412 = vpop.f32.mrf.mxu0
        %v6413 = vadd.f32 %v5703, %v6412
        %v6414 = vpop.f32.mrf.mxu0
        %v6415 = vpop.f32.mrf.mxu0
        %6416 = vdwg.mxu0
        %6417 = vmatprep.subr.bf16.mxu0 %v6179
        %6418 = vmatpush1.bf16.msra.mxu0 %v6178
        %6419 = vmatprep.subr.bf16.mxu0 %v6171
        %6420 = vmatpush1.bf16.msra.mxu0 %v6170
        %6421 = vmatprep.subr.bf16.mxu0 %v6163
        %6422 = vmatpush1.bf16.msra.mxu0 %v6162
        %6423 = vmatprep.subr.bf16.mxu0 %v6155
        %6424 = vmatpush1.bf16.msra.mxu0 %v6154
        %6425 = vmatprep.subr.bf16.mxu0 %v6147
        %6426 = vmatpush1.bf16.msra.mxu0 %v6146
        %6427 = vmatprep.subr.bf16.mxu0 %v6139
        %6428 = vmatpush1.bf16.msra.mxu0 %v6138
        %6429 = vmatprep.subr.bf16.mxu0 %v6131
        %6430 = vmatpush1.bf16.msra.mxu0 %v6130
        %6431 = vmatprep.subr.bf16.mxu0 %v6123
        %6432 = vmatpush1.bf16.msra.mxu0 %v6122
        %6433 = vmatprep.subr.bf16.mxu0 %v6243
        %6434 = vmatpush2.bf16.msra.mxu0 %v6242
        %6435 = vmatprep.subr.bf16.mxu0 %v6235
        %6436 = vmatpush2.bf16.msra.mxu0 %v6234
        %6437 = vmatprep.subr.bf16.mxu0 %v6227
        %6438 = vmatpush2.bf16.msra.mxu0 %v6226
        %6439 = vmatprep.subr.bf16.mxu0 %v6219
        %6440 = vmatpush2.bf16.msra.mxu0 %v6218
        %6441 = vmatprep.subr.bf16.mxu0 %v6211
        %6442 = vmatpush2.bf16.msra.mxu0 %v6210
        %6443 = vmatprep.subr.bf16.mxu0 %v6203
        %6444 = vmatpush2.bf16.msra.mxu0 %v6202
        %6445 = vmatprep.subr.bf16.mxu0 %v6195
        %6446 = vmatpush2.bf16.msra.mxu0 %v6194
        %6447 = vmatprep.subr.bf16.mxu0 %v6187
        %6448 = vmatpush2.bf16.msra.mxu0 %v6186
        %6449 = vmatprep.mubr.bf16.mxu0 %v5563
        %6450 = vmatmul.mubr.bf16.gmra.mxu0 %v5562
        %v6451 = vpop.f32.mrf.mxu0
        %v6452 = vadd.f32 %v5707, %v6451
        %v6453 = vpop.f32.mrf.mxu0
        %v6454 = vadd.f32 %v5711, %v6453
        %v6455 = vpop.f32.mrf.mxu0
        %v6456 = vpop.f32.mrf.mxu0
        %6457 = vdwg.mxu0
        %6458 = vmatprep.subr.bf16.mxu0 %v6181
        %6459 = vmatpush1.bf16.msra.mxu0 %v6180
        %6460 = vmatprep.subr.bf16.mxu0 %v6173
        %6461 = vmatpush1.bf16.msra.mxu0 %v6172
        %6462 = vmatprep.subr.bf16.mxu0 %v6165
        %6463 = vmatpush1.bf16.msra.mxu0 %v6164
        %6464 = vmatprep.subr.bf16.mxu0 %v6157
        %6465 = vmatpush1.bf16.msra.mxu0 %v6156
        %6466 = vmatprep.subr.bf16.mxu0 %v6149
        %6467 = vmatpush1.bf16.msra.mxu0 %v6148
        %6468 = vmatprep.subr.bf16.mxu0 %v6141
        %6469 = vmatpush1.bf16.msra.mxu0 %v6140
        %6470 = vmatprep.subr.bf16.mxu0 %v6133
        %6471 = vmatpush1.bf16.msra.mxu0 %v6132
        %6472 = vmatprep.subr.bf16.mxu0 %v6125
        %6473 = vmatpush1.bf16.msra.mxu0 %v6124
        %6474 = vmatprep.subr.bf16.mxu0 %v6245
        %6475 = vmatpush2.bf16.msra.mxu0 %v6244
        %6476 = vmatprep.subr.bf16.mxu0 %v6237
        %6477 = vmatpush2.bf16.msra.mxu0 %v6236
        %6478 = vmatprep.subr.bf16.mxu0 %v6229
        %6479 = vmatpush2.bf16.msra.mxu0 %v6228
        %6480 = vmatprep.subr.bf16.mxu0 %v6221
        %6481 = vmatpush2.bf16.msra.mxu0 %v6220
        %6482 = vmatprep.subr.bf16.mxu0 %v6213
        %6483 = vmatpush2.bf16.msra.mxu0 %v6212
        %6484 = vmatprep.subr.bf16.mxu0 %v6205
        %6485 = vmatpush2.bf16.msra.mxu0 %v6204
        %6486 = vmatprep.subr.bf16.mxu0 %v6197
        %6487 = vmatpush2.bf16.msra.mxu0 %v6196
        %6488 = vmatprep.subr.bf16.mxu0 %v6189
        %6489 = vmatpush2.bf16.msra.mxu0 %v6188
        %6490 = vmatprep.mubr.bf16.mxu0 %v5563
        %6491 = vmatmul.mubr.bf16.gmra.mxu0 %v5562
        %v6492 = vpop.f32.mrf.mxu0
        %v6493 = vadd.f32 %v5715, %v6492
        %v6494 = vpop.f32.mrf.mxu0
        %v6495 = vadd.f32 %v5719, %v6494
        %v6496 = vpop.f32.mrf.mxu0
        %v6497 = vpop.f32.mrf.mxu0
        %6498 = vdwg.mxu0
        %6499 = vmatprep.subr.bf16.mxu0 %v6183
        %6500 = vmatpush1.bf16.msra.mxu0 %v6182
        %6501 = vmatprep.subr.bf16.mxu0 %v6175
        %6502 = vmatpush1.bf16.msra.mxu0 %v6174
        %6503 = vmatprep.subr.bf16.mxu0 %v6167
        %6504 = vmatpush1.bf16.msra.mxu0 %v6166
        %6505 = vmatprep.subr.bf16.mxu0 %v6159
        %6506 = vmatpush1.bf16.msra.mxu0 %v6158
        %6507 = vmatprep.subr.bf16.mxu0 %v6151
        %6508 = vmatpush1.bf16.msra.mxu0 %v6150
        %6509 = vmatprep.subr.bf16.mxu0 %v6143
        %6510 = vmatpush1.bf16.msra.mxu0 %v6142
        %6511 = vmatprep.subr.bf16.mxu0 %v6135
        %6512 = vmatpush1.bf16.msra.mxu0 %v6134
        %6513 = vmatprep.subr.bf16.mxu0 %v6127
        %6514 = vmatpush1.bf16.msra.mxu0 %v6126
        %6515 = vmatprep.subr.bf16.mxu0 %v6247
        %6516 = vmatpush2.bf16.msra.mxu0 %v6246
        %6517 = vmatprep.subr.bf16.mxu0 %v6239
        %6518 = vmatpush2.bf16.msra.mxu0 %v6238
        %6519 = vmatprep.subr.bf16.mxu0 %v6231
        %6520 = vmatpush2.bf16.msra.mxu0 %v6230
        %6521 = vmatprep.subr.bf16.mxu0 %v6223
        %6522 = vmatpush2.bf16.msra.mxu0 %v6222
        %6523 = vmatprep.subr.bf16.mxu0 %v6215
        %6524 = vmatpush2.bf16.msra.mxu0 %v6214
        %6525 = vmatprep.subr.bf16.mxu0 %v6207
        %6526 = vmatpush2.bf16.msra.mxu0 %v6206
        %6527 = vmatprep.subr.bf16.mxu0 %v6199
        %6528 = vmatpush2.bf16.msra.mxu0 %v6198
        %6529 = vmatprep.subr.bf16.mxu0 %v6191
        %6530 = vmatpush2.bf16.msra.mxu0 %v6190
        %6531 = vmatprep.mubr.bf16.mxu0 %v5563
        %6532 = vmatmul.mubr.bf16.gmra.mxu0 %v5562
        %v6533 = vpop.f32.mrf.mxu0
        %v6534 = vadd.f32 %v5723, %v6533
        %v6535 = vpop.f32.mrf.mxu0
        %v6536 = vadd.f32 %v5727, %v6535
        %v6537 = vpop.f32.mrf.mxu0
        %v6538 = vpop.f32.mrf.mxu0
        %6539 = vdwg.mxu0
        %v6540 = vmul.f32 %v6411, %v6411
        %v6541 = vmul.f32 %v6413, %v6413
        %v6542 = vmul.f32 %v6452, %v6452
        %v6543 = vmul.f32 %v6454, %v6454
        %v6544 = vmul.f32 %v6493, %v6493
        %v6545 = vmul.f32 %v6495, %v6495
        %v6546 = vmul.f32 %v6534, %v6534
        %v6547 = vmul.f32 %v6536, %v6536
        %v6548 = vmul.f32 %v6411, %v6540
        %v6549 = vmul.f32 %v6413, %v6541
        %v6550 = vmul.f32 %v6452, %v6542
        %v6551 = vmul.f32 %v6454, %v6543
        %v6552 = vmul.f32 %v6493, %v6544
        %v6553 = vmul.f32 %v6495, %v6545
        %v6554 = vmul.f32 %v6534, %v6546
        %v6555 = vmul.f32 %v6536, %v6547
        %v6556 = vmul.f32 %v6548, 0.044715
        %v6557 = vmul.f32 %v6549, 0.044715
        %v6558 = vmul.f32 %v6550, 0.044715
        %v6559 = vmul.f32 %v6551, 0.044715
        %v6560 = vmul.f32 %v6552, 0.044715
        %v6561 = vmul.f32 %v6553, 0.044715
        %v6562 = vmul.f32 %v6554, 0.044715
        %v6563 = vmul.f32 %v6555, 0.044715
        %v6564 = vadd.f32 %v6411, %v6556
        %v6565 = vadd.f32 %v6413, %v6557
        %v6566 = vadd.f32 %v6452, %v6558
        %v6567 = vadd.f32 %v6454, %v6559
        %v6568 = vadd.f32 %v6493, %v6560
        %v6569 = vadd.f32 %v6495, %v6561
        %v6570 = vadd.f32 %v6534, %v6562
        %v6571 = vadd.f32 %v6536, %v6563
        %v6572 = vmul.f32 %v6564, 0.7978846
        %v6573 = vmul.f32 %v6565, 0.7978846
        %v6574 = vmul.f32 %v6566, 0.7978846
        %v6575 = vmul.f32 %v6567, 0.7978846
        %v6576 = vmul.f32 %v6568, 0.7978846
        %v6577 = vmul.f32 %v6569, 0.7978846
        %v6578 = vmul.f32 %v6570, 0.7978846
        %v6579 = vmul.f32 %v6571, 0.7978846
        %v6580 = vtanh.pop %v6572
        %v6581 = vtanh.pop %v6573
        %v6582 = vtanh.pop %v6574
        %v6583 = vtanh.pop %v6575
        %v6584 = vtanh.pop %v6576
        %v6585 = vtanh.pop %v6577
        %v6586 = vtanh.pop %v6578
        %v6587 = vtanh.pop %v6579
        %v6588 = vadd.f32 %v6580, 1.0
        %v6589 = vadd.f32 %v6581, 1.0
        %v6590 = vadd.f32 %v6582, 1.0
        %v6591 = vadd.f32 %v6583, 1.0
        %v6592 = vadd.f32 %v6584, 1.0
        %v6593 = vadd.f32 %v6585, 1.0
        %v6594 = vadd.f32 %v6586, 1.0
        %v6595 = vadd.f32 %v6587, 1.0
        %v6596 = vmul.f32 %v6588, 0.5
        %v6597 = vmul.f32 %v6589, 0.5
        %v6598 = vmul.f32 %v6590, 0.5
        %v6599 = vmul.f32 %v6591, 0.5
        %v6600 = vmul.f32 %v6592, 0.5
        %v6601 = vmul.f32 %v6593, 0.5
        %v6602 = vmul.f32 %v6594, 0.5
        %v6603 = vmul.f32 %v6595, 0.5
        %v6604 = vmul.f32 %v6411, %v6596
        %v6605 = vmul.f32 %v6413, %v6597
        %v6606 = vmul.f32 %v6452, %v6598
        %v6607 = vmul.f32 %v6454, %v6599
        %v6608 = vmul.f32 %v6493, %v6600
        %v6609 = vmul.f32 %v6495, %v6601
        %v6610 = vmul.f32 %v6534, %v6602
        %v6611 = vmul.f32 %v6536, %v6603
        %v6612 = vpack.c.bf16 %v6604, %v6604
        %v6613 = vpack.c.bf16 %v6605, %v6605
        %v6614 = vpack.c.bf16 %v6606, %v6606
        %v6615 = vpack.c.bf16 %v6607, %v6607
        %v6616 = vpack.c.bf16 %v6608, %v6608
        %v6617 = vpack.c.bf16 %v6609, %v6609
        %v6618 = vpack.c.bf16 %v6610, %v6610
        %v6619 = vpack.c.bf16 %v6611, %v6611
        %s6620 = scalar_lea.vmem [#allocation19], 1024
        %v6621 = vld [vmem:[%s6620] sm:$0xff]
        %v6622 = vld [vmem:[%s6620 + $0x8] sm:$0xff]
        %v6623 = vld [vmem:[%s6620 + $0x10] sm:$0xff]
        %v6624 = vld [vmem:[%s6620 + $0x18] sm:$0xff]
        %v6625 = vld [vmem:[%s6620 + $0x20] sm:$0xff]
        %v6626 = vld [vmem:[%s6620 + $0x28] sm:$0xff]
        %v6627 = vld [vmem:[%s6620 + $0x30] sm:$0xff]
        %v6628 = vld [vmem:[%s6620 + $0x38] sm:$0xff]
        %v6629 = vld [vmem:[%s6620 + $0x40] sm:$0xff]
        %v6630 = vld [vmem:[%s6620 + $0x48] sm:$0xff]
        %v6631 = vld [vmem:[%s6620 + $0x50] sm:$0xff]
        %v6632 = vld [vmem:[%s6620 + $0x58] sm:$0xff]
        %v6633 = vld [vmem:[%s6620 + $0x60] sm:$0xff]
        %v6634 = vld [vmem:[%s6620 + $0x68] sm:$0xff]
        %v6635 = vld [vmem:[%s6620 + $0x70] sm:$0xff]
        %v6636 = vld [vmem:[%s6620 + $0x78] sm:$0xff]
        %v6637 = vld [vmem:[%s6620 + $0x80] sm:$0xff]
        %v6638 = vld [vmem:[%s6620 + $0x88] sm:$0xff]
        %v6639 = vld [vmem:[%s6620 + $0x90] sm:$0xff]
        %v6640 = vld [vmem:[%s6620 + $0x98] sm:$0xff]
        %v6641 = vld [vmem:[%s6620 + $0xa0] sm:$0xff]
        %v6642 = vld [vmem:[%s6620 + $0xa8] sm:$0xff]
        %v6643 = vld [vmem:[%s6620 + $0xb0] sm:$0xff]
        %v6644 = vld [vmem:[%s6620 + $0xb8] sm:$0xff]
        %v6645 = vld [vmem:[%s6620 + $0xc0] sm:$0xff]
        %v6646 = vld [vmem:[%s6620 + $0xc8] sm:$0xff]
        %v6647 = vld [vmem:[%s6620 + $0xd0] sm:$0xff]
        %v6648 = vld [vmem:[%s6620 + $0xd8] sm:$0xff]
        %v6649 = vld [vmem:[%s6620 + $0xe0] sm:$0xff]
        %v6650 = vld [vmem:[%s6620 + $0xe8] sm:$0xff]
        %v6651 = vld [vmem:[%s6620 + $0xf0] sm:$0xff]
        %v6652 = vld [vmem:[%s6620 + $0xf8] sm:$0xff]
        %v6653 = vld [vmem:[%s6620 + $0x100] sm:$0xff]
        %v6654 = vld [vmem:[%s6620 + $0x108] sm:$0xff]
        %v6655 = vld [vmem:[%s6620 + $0x110] sm:$0xff]
        %v6656 = vld [vmem:[%s6620 + $0x118] sm:$0xff]
        %v6657 = vld [vmem:[%s6620 + $0x120] sm:$0xff]
        %v6658 = vld [vmem:[%s6620 + $0x128] sm:$0xff]
        %v6659 = vld [vmem:[%s6620 + $0x130] sm:$0xff]
        %v6660 = vld [vmem:[%s6620 + $0x138] sm:$0xff]
        %v6661 = vld [vmem:[%s6620 + $0x140] sm:$0xff]
        %v6662 = vld [vmem:[%s6620 + $0x148] sm:$0xff]
        %v6663 = vld [vmem:[%s6620 + $0x150] sm:$0xff]
        %v6664 = vld [vmem:[%s6620 + $0x158] sm:$0xff]
        %v6665 = vld [vmem:[%s6620 + $0x160] sm:$0xff]
        %v6666 = vld [vmem:[%s6620 + $0x168] sm:$0xff]
        %v6667 = vld [vmem:[%s6620 + $0x170] sm:$0xff]
        %v6668 = vld [vmem:[%s6620 + $0x178] sm:$0xff]
        %v6669 = vld [vmem:[%s6620 + $0x180] sm:$0xff]
        %v6670 = vld [vmem:[%s6620 + $0x188] sm:$0xff]
        %v6671 = vld [vmem:[%s6620 + $0x190] sm:$0xff]
        %v6672 = vld [vmem:[%s6620 + $0x198] sm:$0xff]
        %v6673 = vld [vmem:[%s6620 + $0x1a0] sm:$0xff]
        %v6674 = vld [vmem:[%s6620 + $0x1a8] sm:$0xff]
        %v6675 = vld [vmem:[%s6620 + $0x1b0] sm:$0xff]
        %v6676 = vld [vmem:[%s6620 + $0x1b8] sm:$0xff]
        %v6677 = vld [vmem:[%s6620 + $0x1c0] sm:$0xff]
        %v6678 = vld [vmem:[%s6620 + $0x1c8] sm:$0xff]
        %v6679 = vld [vmem:[%s6620 + $0x1d0] sm:$0xff]
        %v6680 = vld [vmem:[%s6620 + $0x1d8] sm:$0xff]
        %v6681 = vld [vmem:[%s6620 + $0x1e0] sm:$0xff]
        %v6682 = vld [vmem:[%s6620 + $0x1e8] sm:$0xff]
        %v6683 = vld [vmem:[%s6620 + $0x1f0] sm:$0xff]
        %v6684 = vld [vmem:[%s6620 + $0x1f8] sm:$0xff]
        %v6685 = vld [vmem:[%s6620 + $0x200] sm:$0xff]
        %v6686 = vld [vmem:[%s6620 + $0x208] sm:$0xff]
        %v6687 = vld [vmem:[%s6620 + $0x210] sm:$0xff]
        %v6688 = vld [vmem:[%s6620 + $0x218] sm:$0xff]
        %v6689 = vld [vmem:[%s6620 + $0x220] sm:$0xff]
        %v6690 = vld [vmem:[%s6620 + $0x228] sm:$0xff]
        %v6691 = vld [vmem:[%s6620 + $0x230] sm:$0xff]
        %v6692 = vld [vmem:[%s6620 + $0x238] sm:$0xff]
        %v6693 = vld [vmem:[%s6620 + $0x240] sm:$0xff]
        %v6694 = vld [vmem:[%s6620 + $0x248] sm:$0xff]
        %v6695 = vld [vmem:[%s6620 + $0x250] sm:$0xff]
        %v6696 = vld [vmem:[%s6620 + $0x258] sm:$0xff]
        %v6697 = vld [vmem:[%s6620 + $0x260] sm:$0xff]
        %v6698 = vld [vmem:[%s6620 + $0x268] sm:$0xff]
        %v6699 = vld [vmem:[%s6620 + $0x270] sm:$0xff]
        %v6700 = vld [vmem:[%s6620 + $0x278] sm:$0xff]
        %v6701 = vld [vmem:[%s6620 + $0x280] sm:$0xff]
        %v6702 = vld [vmem:[%s6620 + $0x288] sm:$0xff]
        %v6703 = vld [vmem:[%s6620 + $0x290] sm:$0xff]
        %v6704 = vld [vmem:[%s6620 + $0x298] sm:$0xff]
        %v6705 = vld [vmem:[%s6620 + $0x2a0] sm:$0xff]
        %v6706 = vld [vmem:[%s6620 + $0x2a8] sm:$0xff]
        %v6707 = vld [vmem:[%s6620 + $0x2b0] sm:$0xff]
        %v6708 = vld [vmem:[%s6620 + $0x2b8] sm:$0xff]
        %v6709 = vld [vmem:[%s6620 + $0x2c0] sm:$0xff]
        %v6710 = vld [vmem:[%s6620 + $0x2c8] sm:$0xff]
        %v6711 = vld [vmem:[%s6620 + $0x2d0] sm:$0xff]
        %v6712 = vld [vmem:[%s6620 + $0x2d8] sm:$0xff]
        %v6713 = vld [vmem:[%s6620 + $0x2e0] sm:$0xff]
        %v6714 = vld [vmem:[%s6620 + $0x2e8] sm:$0xff]
        %v6715 = vld [vmem:[%s6620 + $0x2f0] sm:$0xff]
        %v6716 = vld [vmem:[%s6620 + $0x2f8] sm:$0xff]
        %v6717 = vld [vmem:[%s6620 + $0x300] sm:$0xff]
        %v6718 = vld [vmem:[%s6620 + $0x308] sm:$0xff]
        %v6719 = vld [vmem:[%s6620 + $0x310] sm:$0xff]
        %v6720 = vld [vmem:[%s6620 + $0x318] sm:$0xff]
        %v6721 = vld [vmem:[%s6620 + $0x320] sm:$0xff]
        %v6722 = vld [vmem:[%s6620 + $0x328] sm:$0xff]
        %v6723 = vld [vmem:[%s6620 + $0x330] sm:$0xff]
        %v6724 = vld [vmem:[%s6620 + $0x338] sm:$0xff]
        %v6725 = vld [vmem:[%s6620 + $0x340] sm:$0xff]
        %v6726 = vld [vmem:[%s6620 + $0x348] sm:$0xff]
        %v6727 = vld [vmem:[%s6620 + $0x350] sm:$0xff]
        %v6728 = vld [vmem:[%s6620 + $0x358] sm:$0xff]
        %v6729 = vld [vmem:[%s6620 + $0x360] sm:$0xff]
        %v6730 = vld [vmem:[%s6620 + $0x368] sm:$0xff]
        %v6731 = vld [vmem:[%s6620 + $0x370] sm:$0xff]
        %v6732 = vld [vmem:[%s6620 + $0x378] sm:$0xff]
        %v6733 = vld [vmem:[%s6620 + $0x380] sm:$0xff]
        %v6734 = vld [vmem:[%s6620 + $0x388] sm:$0xff]
        %v6735 = vld [vmem:[%s6620 + $0x390] sm:$0xff]
        %v6736 = vld [vmem:[%s6620 + $0x398] sm:$0xff]
        %v6737 = vld [vmem:[%s6620 + $0x3a0] sm:$0xff]
        %v6738 = vld [vmem:[%s6620 + $0x3a8] sm:$0xff]
        %v6739 = vld [vmem:[%s6620 + $0x3b0] sm:$0xff]
        %v6740 = vld [vmem:[%s6620 + $0x3b8] sm:$0xff]
        %v6741 = vld [vmem:[%s6620 + $0x3c0] sm:$0xff]
        %v6742 = vld [vmem:[%s6620 + $0x3c8] sm:$0xff]
        %v6743 = vld [vmem:[%s6620 + $0x3d0] sm:$0xff]
        %v6744 = vld [vmem:[%s6620 + $0x3d8] sm:$0xff]
        %v6745 = vld [vmem:[%s6620 + $0x3e0] sm:$0xff]
        %v6746 = vld [vmem:[%s6620 + $0x3e8] sm:$0xff]
        %v6747 = vld [vmem:[%s6620 + $0x3f0] sm:$0xff]
        %v6748 = vld [vmem:[%s6620 + $0x3f8] sm:$0xff]
        %s6749 = scalar_lea.vmem [#allocation20], 2
        %v6750 = vld [vmem:[%s6749] sm:$0x3]
        %v6752 = vlaneseq
        %v6753 = vshrl.u32 %v6752, 7
        %v6754 = vsub.s32 0, %v6753
        %v6755 = vrot.slane %v6750, %v6754
        %v6756 = vlaneseq
        %v6757 = vshrl.u32 %v6756, 7
        %v6758 = vsub.s32 1, %v6757
        %v6759 = vrot.slane %v6750, %v6758
        %v6890 = vunpack.c.l.b16 %v6621
        %v6891 = vunpack.c.h.b16 %v6621
        %v6892 = vunpack.c.l.b16 %v6622
        %v6893 = vunpack.c.h.b16 %v6622
        %v6894 = vunpack.c.l.b16 %v6623
        %v6895 = vunpack.c.h.b16 %v6623
        %v6896 = vunpack.c.l.b16 %v6624
        %v6897 = vunpack.c.h.b16 %v6624
        %v6898 = vunpack.c.l.b16 %v6625
        %v6899 = vunpack.c.h.b16 %v6625
        %v6900 = vunpack.c.l.b16 %v6626
        %v6901 = vunpack.c.h.b16 %v6626
        %v6902 = vunpack.c.l.b16 %v6627
        %v6903 = vunpack.c.h.b16 %v6627
        %v6904 = vunpack.c.l.b16 %v6628
        %v6905 = vunpack.c.h.b16 %v6628
        %v6906 = vunpack.c.l.b16 %v6629
        %v6907 = vunpack.c.h.b16 %v6629
        %v6908 = vunpack.c.l.b16 %v6630
        %v6909 = vunpack.c.h.b16 %v6630
        %v6910 = vunpack.c.l.b16 %v6631
        %v6911 = vunpack.c.h.b16 %v6631
        %v6912 = vunpack.c.l.b16 %v6632
        %v6913 = vunpack.c.h.b16 %v6632
        %v6914 = vunpack.c.l.b16 %v6633
        %v6915 = vunpack.c.h.b16 %v6633
        %v6916 = vunpack.c.l.b16 %v6634
        %v6917 = vunpack.c.h.b16 %v6634
        %v6918 = vunpack.c.l.b16 %v6635
        %v6919 = vunpack.c.h.b16 %v6635
        %v6920 = vunpack.c.l.b16 %v6636
        %v6921 = vunpack.c.h.b16 %v6636
        %v6922 = vunpack.c.l.b16 %v6637
        %v6923 = vunpack.c.h.b16 %v6637
        %v6924 = vunpack.c.l.b16 %v6638
        %v6925 = vunpack.c.h.b16 %v6638
        %v6926 = vunpack.c.l.b16 %v6639
        %v6927 = vunpack.c.h.b16 %v6639
        %v6928 = vunpack.c.l.b16 %v6640
        %v6929 = vunpack.c.h.b16 %v6640
        %v6930 = vunpack.c.l.b16 %v6641
        %v6931 = vunpack.c.h.b16 %v6641
        %v6932 = vunpack.c.l.b16 %v6642
        %v6933 = vunpack.c.h.b16 %v6642
        %v6934 = vunpack.c.l.b16 %v6643
        %v6935 = vunpack.c.h.b16 %v6643
        %v6936 = vunpack.c.l.b16 %v6644
        %v6937 = vunpack.c.h.b16 %v6644
        %v6938 = vunpack.c.l.b16 %v6645
        %v6939 = vunpack.c.h.b16 %v6645
        %v6940 = vunpack.c.l.b16 %v6646
        %v6941 = vunpack.c.h.b16 %v6646
        %v6942 = vunpack.c.l.b16 %v6647
        %v6943 = vunpack.c.h.b16 %v6647
        %v6944 = vunpack.c.l.b16 %v6648
        %v6945 = vunpack.c.h.b16 %v6648
        %v6946 = vunpack.c.l.b16 %v6649
        %v6947 = vunpack.c.h.b16 %v6649
        %v6948 = vunpack.c.l.b16 %v6650
        %v6949 = vunpack.c.h.b16 %v6650
        %v6950 = vunpack.c.l.b16 %v6651
        %v6951 = vunpack.c.h.b16 %v6651
        %v6952 = vunpack.c.l.b16 %v6652
        %v6953 = vunpack.c.h.b16 %v6652
        %v6954 = vunpack.c.l.b16 %v6653
        %v6955 = vunpack.c.h.b16 %v6653
        %v6956 = vunpack.c.l.b16 %v6654
        %v6957 = vunpack.c.h.b16 %v6654
        %v6958 = vunpack.c.l.b16 %v6655
        %v6959 = vunpack.c.h.b16 %v6655
        %v6960 = vunpack.c.l.b16 %v6656
        %v6961 = vunpack.c.h.b16 %v6656
        %v6962 = vunpack.c.l.b16 %v6657
        %v6963 = vunpack.c.h.b16 %v6657
        %v6964 = vunpack.c.l.b16 %v6658
        %v6965 = vunpack.c.h.b16 %v6658
        %v6966 = vunpack.c.l.b16 %v6659
        %v6967 = vunpack.c.h.b16 %v6659
        %v6968 = vunpack.c.l.b16 %v6660
        %v6969 = vunpack.c.h.b16 %v6660
        %v6970 = vunpack.c.l.b16 %v6661
        %v6971 = vunpack.c.h.b16 %v6661
        %v6972 = vunpack.c.l.b16 %v6662
        %v6973 = vunpack.c.h.b16 %v6662
        %v6974 = vunpack.c.l.b16 %v6663
        %v6975 = vunpack.c.h.b16 %v6663
        %v6976 = vunpack.c.l.b16 %v6664
        %v6977 = vunpack.c.h.b16 %v6664
        %v6978 = vunpack.c.l.b16 %v6665
        %v6979 = vunpack.c.h.b16 %v6665
        %v6980 = vunpack.c.l.b16 %v6666
        %v6981 = vunpack.c.h.b16 %v6666
        %v6982 = vunpack.c.l.b16 %v6667
        %v6983 = vunpack.c.h.b16 %v6667
        %v6984 = vunpack.c.l.b16 %v6668
        %v6985 = vunpack.c.h.b16 %v6668
        %v6986 = vunpack.c.l.b16 %v6669
        %v6987 = vunpack.c.h.b16 %v6669
        %v6988 = vunpack.c.l.b16 %v6670
        %v6989 = vunpack.c.h.b16 %v6670
        %v6990 = vunpack.c.l.b16 %v6671
        %v6991 = vunpack.c.h.b16 %v6671
        %v6992 = vunpack.c.l.b16 %v6672
        %v6993 = vunpack.c.h.b16 %v6672
        %v6994 = vunpack.c.l.b16 %v6673
        %v6995 = vunpack.c.h.b16 %v6673
        %v6996 = vunpack.c.l.b16 %v6674
        %v6997 = vunpack.c.h.b16 %v6674
        %v6998 = vunpack.c.l.b16 %v6675
        %v6999 = vunpack.c.h.b16 %v6675
        %v7000 = vunpack.c.l.b16 %v6676
        %v7001 = vunpack.c.h.b16 %v6676
        %v7002 = vunpack.c.l.b16 %v6677
        %v7003 = vunpack.c.h.b16 %v6677
        %v7004 = vunpack.c.l.b16 %v6678
        %v7005 = vunpack.c.h.b16 %v6678
        %v7006 = vunpack.c.l.b16 %v6679
        %v7007 = vunpack.c.h.b16 %v6679
        %v7008 = vunpack.c.l.b16 %v6680
        %v7009 = vunpack.c.h.b16 %v6680
        %v7010 = vunpack.c.l.b16 %v6681
        %v7011 = vunpack.c.h.b16 %v6681
        %v7012 = vunpack.c.l.b16 %v6682
        %v7013 = vunpack.c.h.b16 %v6682
        %v7014 = vunpack.c.l.b16 %v6683
        %v7015 = vunpack.c.h.b16 %v6683
        %v7016 = vunpack.c.l.b16 %v6684
        %v7017 = vunpack.c.h.b16 %v6684
        %v7018 = vunpack.c.l.b16 %v6685
        %v7019 = vunpack.c.h.b16 %v6685
        %v7020 = vunpack.c.l.b16 %v6686
        %v7021 = vunpack.c.h.b16 %v6686
        %v7022 = vunpack.c.l.b16 %v6687
        %v7023 = vunpack.c.h.b16 %v6687
        %v7024 = vunpack.c.l.b16 %v6688
        %v7025 = vunpack.c.h.b16 %v6688
        %v7026 = vunpack.c.l.b16 %v6689
        %v7027 = vunpack.c.h.b16 %v6689
        %v7028 = vunpack.c.l.b16 %v6690
        %v7029 = vunpack.c.h.b16 %v6690
        %v7030 = vunpack.c.l.b16 %v6691
        %v7031 = vunpack.c.h.b16 %v6691
        %v7032 = vunpack.c.l.b16 %v6692
        %v7033 = vunpack.c.h.b16 %v6692
        %v7034 = vunpack.c.l.b16 %v6693
        %v7035 = vunpack.c.h.b16 %v6693
        %v7036 = vunpack.c.l.b16 %v6694
        %v7037 = vunpack.c.h.b16 %v6694
        %v7038 = vunpack.c.l.b16 %v6695
        %v7039 = vunpack.c.h.b16 %v6695
        %v7040 = vunpack.c.l.b16 %v6696
        %v7041 = vunpack.c.h.b16 %v6696
        %v7042 = vunpack.c.l.b16 %v6697
        %v7043 = vunpack.c.h.b16 %v6697
        %v7044 = vunpack.c.l.b16 %v6698
        %v7045 = vunpack.c.h.b16 %v6698
        %v7046 = vunpack.c.l.b16 %v6699
        %v7047 = vunpack.c.h.b16 %v6699
        %v7048 = vunpack.c.l.b16 %v6700
        %v7049 = vunpack.c.h.b16 %v6700
        %v7050 = vunpack.c.l.b16 %v6701
        %v7051 = vunpack.c.h.b16 %v6701
        %v7052 = vunpack.c.l.b16 %v6702
        %v7053 = vunpack.c.h.b16 %v6702
        %v7054 = vunpack.c.l.b16 %v6703
        %v7055 = vunpack.c.h.b16 %v6703
        %v7056 = vunpack.c.l.b16 %v6704
        %v7057 = vunpack.c.h.b16 %v6704
        %v7058 = vunpack.c.l.b16 %v6705
        %v7059 = vunpack.c.h.b16 %v6705
        %v7060 = vunpack.c.l.b16 %v6706
        %v7061 = vunpack.c.h.b16 %v6706
        %v7062 = vunpack.c.l.b16 %v6707
        %v7063 = vunpack.c.h.b16 %v6707
        %v7064 = vunpack.c.l.b16 %v6708
        %v7065 = vunpack.c.h.b16 %v6708
        %v7066 = vunpack.c.l.b16 %v6709
        %v7067 = vunpack.c.h.b16 %v6709
        %v7068 = vunpack.c.l.b16 %v6710
        %v7069 = vunpack.c.h.b16 %v6710
        %v7070 = vunpack.c.l.b16 %v6711
        %v7071 = vunpack.c.h.b16 %v6711
        %v7072 = vunpack.c.l.b16 %v6712
        %v7073 = vunpack.c.h.b16 %v6712
        %v7074 = vunpack.c.l.b16 %v6713
        %v7075 = vunpack.c.h.b16 %v6713
        %v7076 = vunpack.c.l.b16 %v6714
        %v7077 = vunpack.c.h.b16 %v6714
        %v7078 = vunpack.c.l.b16 %v6715
        %v7079 = vunpack.c.h.b16 %v6715
        %v7080 = vunpack.c.l.b16 %v6716
        %v7081 = vunpack.c.h.b16 %v6716
        %v7082 = vunpack.c.l.b16 %v6717
        %v7083 = vunpack.c.h.b16 %v6717
        %v7084 = vunpack.c.l.b16 %v6718
        %v7085 = vunpack.c.h.b16 %v6718
        %v7086 = vunpack.c.l.b16 %v6719
        %v7087 = vunpack.c.h.b16 %v6719
        %v7088 = vunpack.c.l.b16 %v6720
        %v7089 = vunpack.c.h.b16 %v6720
        %v7090 = vunpack.c.l.b16 %v6721
        %v7091 = vunpack.c.h.b16 %v6721
        %v7092 = vunpack.c.l.b16 %v6722
        %v7093 = vunpack.c.h.b16 %v6722
        %v7094 = vunpack.c.l.b16 %v6723
        %v7095 = vunpack.c.h.b16 %v6723
        %v7096 = vunpack.c.l.b16 %v6724
        %v7097 = vunpack.c.h.b16 %v6724
        %v7098 = vunpack.c.l.b16 %v6725
        %v7099 = vunpack.c.h.b16 %v6725
        %v7100 = vunpack.c.l.b16 %v6726
        %v7101 = vunpack.c.h.b16 %v6726
        %v7102 = vunpack.c.l.b16 %v6727
        %v7103 = vunpack.c.h.b16 %v6727
        %v7104 = vunpack.c.l.b16 %v6728
        %v7105 = vunpack.c.h.b16 %v6728
        %v7106 = vunpack.c.l.b16 %v6729
        %v7107 = vunpack.c.h.b16 %v6729
        %v7108 = vunpack.c.l.b16 %v6730
        %v7109 = vunpack.c.h.b16 %v6730
        %v7110 = vunpack.c.l.b16 %v6731
        %v7111 = vunpack.c.h.b16 %v6731
        %v7112 = vunpack.c.l.b16 %v6732
        %v7113 = vunpack.c.h.b16 %v6732
        %v7114 = vunpack.c.l.b16 %v6733
        %v7115 = vunpack.c.h.b16 %v6733
        %v7116 = vunpack.c.l.b16 %v6734
        %v7117 = vunpack.c.h.b16 %v6734
        %v7118 = vunpack.c.l.b16 %v6735
        %v7119 = vunpack.c.h.b16 %v6735
        %v7120 = vunpack.c.l.b16 %v6736
        %v7121 = vunpack.c.h.b16 %v6736
        %v7122 = vunpack.c.l.b16 %v6737
        %v7123 = vunpack.c.h.b16 %v6737
        %v7124 = vunpack.c.l.b16 %v6738
        %v7125 = vunpack.c.h.b16 %v6738
        %v7126 = vunpack.c.l.b16 %v6739
        %v7127 = vunpack.c.h.b16 %v6739
        %v7128 = vunpack.c.l.b16 %v6740
        %v7129 = vunpack.c.h.b16 %v6740
        %v7130 = vunpack.c.l.b16 %v6741
        %v7131 = vunpack.c.h.b16 %v6741
        %v7132 = vunpack.c.l.b16 %v6742
        %v7133 = vunpack.c.h.b16 %v6742
        %v7134 = vunpack.c.l.b16 %v6743
        %v7135 = vunpack.c.h.b16 %v6743
        %v7136 = vunpack.c.l.b16 %v6744
        %v7137 = vunpack.c.h.b16 %v6744
        %v7138 = vunpack.c.l.b16 %v6745
        %v7139 = vunpack.c.h.b16 %v6745
        %v7140 = vunpack.c.l.b16 %v6746
        %v7141 = vunpack.c.h.b16 %v6746
        %v7142 = vunpack.c.l.b16 %v6747
        %v7143 = vunpack.c.h.b16 %v6747
        %v7144 = vunpack.c.l.b16 %v6748
        %v7145 = vunpack.c.h.b16 %v6748
        %v7146 = vpack.c.b16 %v6892, %v6890
        %v7147 = vpack.c.b16 %v6893, %v6891
        %v7148 = vpack.c.b16 %v6896, %v6894
        %v7149 = vpack.c.b16 %v6897, %v6895
        %v7150 = vpack.c.b16 %v6900, %v6898
        %v7151 = vpack.c.b16 %v6901, %v6899
        %v7152 = vpack.c.b16 %v6904, %v6902
        %v7153 = vpack.c.b16 %v6905, %v6903
        %v7154 = vpack.c.b16 %v6908, %v6906
        %v7155 = vpack.c.b16 %v6909, %v6907
        %v7156 = vpack.c.b16 %v6912, %v6910
        %v7157 = vpack.c.b16 %v6913, %v6911
        %v7158 = vpack.c.b16 %v6916, %v6914
        %v7159 = vpack.c.b16 %v6917, %v6915
        %v7160 = vpack.c.b16 %v6920, %v6918
        %v7161 = vpack.c.b16 %v6921, %v6919
        %v7162 = vpack.c.b16 %v6924, %v6922
        %v7163 = vpack.c.b16 %v6925, %v6923
        %v7164 = vpack.c.b16 %v6928, %v6926
        %v7165 = vpack.c.b16 %v6929, %v6927
        %v7166 = vpack.c.b16 %v6932, %v6930
        %v7167 = vpack.c.b16 %v6933, %v6931
        %v7168 = vpack.c.b16 %v6936, %v6934
        %v7169 = vpack.c.b16 %v6937, %v6935
        %v7170 = vpack.c.b16 %v6940, %v6938
        %v7171 = vpack.c.b16 %v6941, %v6939
        %v7172 = vpack.c.b16 %v6944, %v6942
        %v7173 = vpack.c.b16 %v6945, %v6943
        %v7174 = vpack.c.b16 %v6948, %v6946
        %v7175 = vpack.c.b16 %v6949, %v6947
        %v7176 = vpack.c.b16 %v6952, %v6950
        %v7177 = vpack.c.b16 %v6953, %v6951
        %v7178 = vpack.c.b16 %v6956, %v6954
        %v7179 = vpack.c.b16 %v6957, %v6955
        %v7180 = vpack.c.b16 %v6960, %v6958
        %v7181 = vpack.c.b16 %v6961, %v6959
        %v7182 = vpack.c.b16 %v6964, %v6962
        %v7183 = vpack.c.b16 %v6965, %v6963
        %v7184 = vpack.c.b16 %v6968, %v6966
        %v7185 = vpack.c.b16 %v6969, %v6967
        %v7186 = vpack.c.b16 %v6972, %v6970
        %v7187 = vpack.c.b16 %v6973, %v6971
        %v7188 = vpack.c.b16 %v6976, %v6974
        %v7189 = vpack.c.b16 %v6977, %v6975
        %v7190 = vpack.c.b16 %v6980, %v6978
        %v7191 = vpack.c.b16 %v6981, %v6979
        %v7192 = vpack.c.b16 %v6984, %v6982
        %v7193 = vpack.c.b16 %v6985, %v6983
        %v7194 = vpack.c.b16 %v6988, %v6986
        %v7195 = vpack.c.b16 %v6989, %v6987
        %v7196 = vpack.c.b16 %v6992, %v6990
        %v7197 = vpack.c.b16 %v6993, %v6991
        %v7198 = vpack.c.b16 %v6996, %v6994
        %v7199 = vpack.c.b16 %v6997, %v6995
        %v7200 = vpack.c.b16 %v7000, %v6998
        %v7201 = vpack.c.b16 %v7001, %v6999
        %v7202 = vpack.c.b16 %v7004, %v7002
        %v7203 = vpack.c.b16 %v7005, %v7003
        %v7204 = vpack.c.b16 %v7008, %v7006
        %v7205 = vpack.c.b16 %v7009, %v7007
        %v7206 = vpack.c.b16 %v7012, %v7010
        %v7207 = vpack.c.b16 %v7013, %v7011
        %v7208 = vpack.c.b16 %v7016, %v7014
        %v7209 = vpack.c.b16 %v7017, %v7015
        %v7210 = vpack.c.b16 %v7020, %v7018
        %v7211 = vpack.c.b16 %v7021, %v7019
        %v7212 = vpack.c.b16 %v7024, %v7022
        %v7213 = vpack.c.b16 %v7025, %v7023
        %v7214 = vpack.c.b16 %v7028, %v7026
        %v7215 = vpack.c.b16 %v7029, %v7027
        %v7216 = vpack.c.b16 %v7032, %v7030
        %v7217 = vpack.c.b16 %v7033, %v7031
        %v7218 = vpack.c.b16 %v7036, %v7034
        %v7219 = vpack.c.b16 %v7037, %v7035
        %v7220 = vpack.c.b16 %v7040, %v7038
        %v7221 = vpack.c.b16 %v7041, %v7039
        %v7222 = vpack.c.b16 %v7044, %v7042
        %v7223 = vpack.c.b16 %v7045, %v7043
        %v7224 = vpack.c.b16 %v7048, %v7046
        %v7225 = vpack.c.b16 %v7049, %v7047
        %v7226 = vpack.c.b16 %v7052, %v7050
        %v7227 = vpack.c.b16 %v7053, %v7051
        %v7228 = vpack.c.b16 %v7056, %v7054
        %v7229 = vpack.c.b16 %v7057, %v7055
        %v7230 = vpack.c.b16 %v7060, %v7058
        %v7231 = vpack.c.b16 %v7061, %v7059
        %v7232 = vpack.c.b16 %v7064, %v7062
        %v7233 = vpack.c.b16 %v7065, %v7063
        %v7234 = vpack.c.b16 %v7068, %v7066
        %v7235 = vpack.c.b16 %v7069, %v7067
        %v7236 = vpack.c.b16 %v7072, %v7070
        %v7237 = vpack.c.b16 %v7073, %v7071
        %v7238 = vpack.c.b16 %v7076, %v7074
        %v7239 = vpack.c.b16 %v7077, %v7075
        %v7240 = vpack.c.b16 %v7080, %v7078
        %v7241 = vpack.c.b16 %v7081, %v7079
        %v7242 = vpack.c.b16 %v7084, %v7082
        %v7243 = vpack.c.b16 %v7085, %v7083
        %v7244 = vpack.c.b16 %v7088, %v7086
        %v7245 = vpack.c.b16 %v7089, %v7087
        %v7246 = vpack.c.b16 %v7092, %v7090
        %v7247 = vpack.c.b16 %v7093, %v7091
        %v7248 = vpack.c.b16 %v7096, %v7094
        %v7249 = vpack.c.b16 %v7097, %v7095
        %v7250 = vpack.c.b16 %v7100, %v7098
        %v7251 = vpack.c.b16 %v7101, %v7099
        %v7252 = vpack.c.b16 %v7104, %v7102
        %v7253 = vpack.c.b16 %v7105, %v7103
        %v7254 = vpack.c.b16 %v7108, %v7106
        %v7255 = vpack.c.b16 %v7109, %v7107
        %v7256 = vpack.c.b16 %v7112, %v7110
        %v7257 = vpack.c.b16 %v7113, %v7111
        %v7258 = vpack.c.b16 %v7116, %v7114
        %v7259 = vpack.c.b16 %v7117, %v7115
        %v7260 = vpack.c.b16 %v7120, %v7118
        %v7261 = vpack.c.b16 %v7121, %v7119
        %v7262 = vpack.c.b16 %v7124, %v7122
        %v7263 = vpack.c.b16 %v7125, %v7123
        %v7264 = vpack.c.b16 %v7128, %v7126
        %v7265 = vpack.c.b16 %v7129, %v7127
        %v7266 = vpack.c.b16 %v7132, %v7130
        %v7267 = vpack.c.b16 %v7133, %v7131
        %v7268 = vpack.c.b16 %v7136, %v7134
        %v7269 = vpack.c.b16 %v7137, %v7135
        %v7270 = vpack.c.b16 %v7140, %v7138
        %v7271 = vpack.c.b16 %v7141, %v7139
        %v7272 = vpack.c.b16 %v7144, %v7142
        %v7273 = vpack.c.b16 %v7145, %v7143
        %7402 = vmatprep.subr.bf16.mxu0 %v7161
        %7403 = vmatpush1.bf16.msra.mxu0 %v7160
        %7404 = vmatprep.subr.bf16.mxu0 %v7159
        %7405 = vmatpush1.bf16.msra.mxu0 %v7158
        %7406 = vmatprep.subr.bf16.mxu0 %v7157
        %7407 = vmatpush1.bf16.msra.mxu0 %v7156
        %7408 = vmatprep.subr.bf16.mxu0 %v7155
        %7409 = vmatpush1.bf16.msra.mxu0 %v7154
        %7410 = vmatprep.subr.bf16.mxu0 %v7153
        %7411 = vmatpush1.bf16.msra.mxu0 %v7152
        %7412 = vmatprep.subr.bf16.mxu0 %v7151
        %7413 = vmatpush1.bf16.msra.mxu0 %v7150
        %7414 = vmatprep.subr.bf16.mxu0 %v7149
        %7415 = vmatpush1.bf16.msra.mxu0 %v7148
        %7416 = vmatprep.subr.bf16.mxu0 %v7147
        %7417 = vmatpush1.bf16.msra.mxu0 %v7146
        %7418 = vmatprep.subr.bf16.mxu0 %v7177
        %7419 = vmatpush2.bf16.msra.mxu0 %v7176
        %7420 = vmatprep.subr.bf16.mxu0 %v7175
        %7421 = vmatpush2.bf16.msra.mxu0 %v7174
        %7422 = vmatprep.subr.bf16.mxu0 %v7173
        %7423 = vmatpush2.bf16.msra.mxu0 %v7172
        %7424 = vmatprep.subr.bf16.mxu0 %v7171
        %7425 = vmatpush2.bf16.msra.mxu0 %v7170
        %7426 = vmatprep.subr.bf16.mxu0 %v7169
        %7427 = vmatpush2.bf16.msra.mxu0 %v7168
        %7428 = vmatprep.subr.bf16.mxu0 %v7167
        %7429 = vmatpush2.bf16.msra.mxu0 %v7166
        %7430 = vmatprep.subr.bf16.mxu0 %v7165
        %7431 = vmatpush2.bf16.msra.mxu0 %v7164
        %7432 = vmatprep.subr.bf16.mxu0 %v7163
        %7433 = vmatpush2.bf16.msra.mxu0 %v7162
        %7434 = vmatprep.mubr.bf16.mxu0 %v6613
        %7435 = vmatmul.mubr.bf16.gmra.mxu0 %v6612
        %v7436 = vpop.f32.mrf.mxu0
        %v7437 = vadd.f32 %v6755, %v7436
        %v7438 = vpop.f32.mrf.mxu0
        %v7439 = vadd.f32 %v6759, %v7438
        %v7440 = vpop.f32.mrf.mxu0
        %v7441 = vpop.f32.mrf.mxu0
        %7442 = vdwg.mxu0
        %7443 = vmatprep.subr.bf16.mxu0 %v7193
        %7444 = vmatpush1.bf16.msra.mxu0 %v7192
        %7445 = vmatprep.subr.bf16.mxu0 %v7191
        %7446 = vmatpush1.bf16.msra.mxu0 %v7190
        %7447 = vmatprep.subr.bf16.mxu0 %v7189
        %7448 = vmatpush1.bf16.msra.mxu0 %v7188
        %7449 = vmatprep.subr.bf16.mxu0 %v7187
        %7450 = vmatpush1.bf16.msra.mxu0 %v7186
        %7451 = vmatprep.subr.bf16.mxu0 %v7185
        %7452 = vmatpush1.bf16.msra.mxu0 %v7184
        %7453 = vmatprep.subr.bf16.mxu0 %v7183
        %7454 = vmatpush1.bf16.msra.mxu0 %v7182
        %7455 = vmatprep.subr.bf16.mxu0 %v7181
        %7456 = vmatpush1.bf16.msra.mxu0 %v7180
        %7457 = vmatprep.subr.bf16.mxu0 %v7179
        %7458 = vmatpush1.bf16.msra.mxu0 %v7178
        %7459 = vmatprep.subr.bf16.mxu0 %v7209
        %7460 = vmatpush2.bf16.msra.mxu0 %v7208
        %7461 = vmatprep.subr.bf16.mxu0 %v7207
        %7462 = vmatpush2.bf16.msra.mxu0 %v7206
        %7463 = vmatprep.subr.bf16.mxu0 %v7205
        %7464 = vmatpush2.bf16.msra.mxu0 %v7204
        %7465 = vmatprep.subr.bf16.mxu0 %v7203
        %7466 = vmatpush2.bf16.msra.mxu0 %v7202
        %7467 = vmatprep.subr.bf16.mxu0 %v7201
        %7468 = vmatpush2.bf16.msra.mxu0 %v7200
        %7469 = vmatprep.subr.bf16.mxu0 %v7199
        %7470 = vmatpush2.bf16.msra.mxu0 %v7198
        %7471 = vmatprep.subr.bf16.mxu0 %v7197
        %7472 = vmatpush2.bf16.msra.mxu0 %v7196
        %7473 = vmatprep.subr.bf16.mxu0 %v7195
        %7474 = vmatpush2.bf16.msra.mxu0 %v7194
        %7475 = vmatprep.mubr.bf16.mxu0 %v6615
        %7476 = vmatmul.mubr.bf16.gmra.mxu0 %v6614
        %v7477 = vpop.f32.mrf.mxu0
        %v7478 = vadd.f32 %v7437, %v7477
        %v7479 = vpop.f32.mrf.mxu0
        %v7480 = vadd.f32 %v7439, %v7479
        %v7481 = vpop.f32.mrf.mxu0
        %v7482 = vpop.f32.mrf.mxu0
        %7483 = vdwg.mxu0
        %7484 = vmatprep.subr.bf16.mxu0 %v7225
        %7485 = vmatpush1.bf16.msra.mxu0 %v7224
        %7486 = vmatprep.subr.bf16.mxu0 %v7223
        %7487 = vmatpush1.bf16.msra.mxu0 %v7222
        %7488 = vmatprep.subr.bf16.mxu0 %v7221
        %7489 = vmatpush1.bf16.msra.mxu0 %v7220
        %7490 = vmatprep.subr.bf16.mxu0 %v7219
        %7491 = vmatpush1.bf16.msra.mxu0 %v7218
        %7492 = vmatprep.subr.bf16.mxu0 %v7217
        %7493 = vmatpush1.bf16.msra.mxu0 %v7216
        %7494 = vmatprep.subr.bf16.mxu0 %v7215
        %7495 = vmatpush1.bf16.msra.mxu0 %v7214
        %7496 = vmatprep.subr.bf16.mxu0 %v7213
        %7497 = vmatpush1.bf16.msra.mxu0 %v7212
        %7498 = vmatprep.subr.bf16.mxu0 %v7211
        %7499 = vmatpush1.bf16.msra.mxu0 %v7210
        %7500 = vmatprep.subr.bf16.mxu0 %v7241
        %7501 = vmatpush2.bf16.msra.mxu0 %v7240
        %7502 = vmatprep.subr.bf16.mxu0 %v7239
        %7503 = vmatpush2.bf16.msra.mxu0 %v7238
        %7504 = vmatprep.subr.bf16.mxu0 %v7237
        %7505 = vmatpush2.bf16.msra.mxu0 %v7236
        %7506 = vmatprep.subr.bf16.mxu0 %v7235
        %7507 = vmatpush2.bf16.msra.mxu0 %v7234
        %7508 = vmatprep.subr.bf16.mxu0 %v7233
        %7509 = vmatpush2.bf16.msra.mxu0 %v7232
        %7510 = vmatprep.subr.bf16.mxu0 %v7231
        %7511 = vmatpush2.bf16.msra.mxu0 %v7230
        %7512 = vmatprep.subr.bf16.mxu0 %v7229
        %7513 = vmatpush2.bf16.msra.mxu0 %v7228
        %7514 = vmatprep.subr.bf16.mxu0 %v7227
        %7515 = vmatpush2.bf16.msra.mxu0 %v7226
        %7516 = vmatprep.mubr.bf16.mxu0 %v6617
        %7517 = vmatmul.mubr.bf16.gmra.mxu0 %v6616
        %v7518 = vpop.f32.mrf.mxu0
        %v7519 = vadd.f32 %v7478, %v7518
        %v7520 = vpop.f32.mrf.mxu0
        %v7521 = vadd.f32 %v7480, %v7520
        %v7522 = vpop.f32.mrf.mxu0
        %v7523 = vpop.f32.mrf.mxu0
        %7524 = vdwg.mxu0
        %7525 = vmatprep.subr.bf16.mxu0 %v7257
        %7526 = vmatpush1.bf16.msra.mxu0 %v7256
        %7527 = vmatprep.subr.bf16.mxu0 %v7255
        %7528 = vmatpush1.bf16.msra.mxu0 %v7254
        %7529 = vmatprep.subr.bf16.mxu0 %v7253
        %7530 = vmatpush1.bf16.msra.mxu0 %v7252
        %7531 = vmatprep.subr.bf16.mxu0 %v7251
        %7532 = vmatpush1.bf16.msra.mxu0 %v7250
        %7533 = vmatprep.subr.bf16.mxu0 %v7249
        %7534 = vmatpush1.bf16.msra.mxu0 %v7248
        %7535 = vmatprep.subr.bf16.mxu0 %v7247
        %7536 = vmatpush1.bf16.msra.mxu0 %v7246
        %7537 = vmatprep.subr.bf16.mxu0 %v7245
        %7538 = vmatpush1.bf16.msra.mxu0 %v7244
        %7539 = vmatprep.subr.bf16.mxu0 %v7243
        %7540 = vmatpush1.bf16.msra.mxu0 %v7242
        %7541 = vmatprep.subr.bf16.mxu0 %v7273
        %7542 = vmatpush2.bf16.msra.mxu0 %v7272
        %7543 = vmatprep.subr.bf16.mxu0 %v7271
        %7544 = vmatpush2.bf16.msra.mxu0 %v7270
        %7545 = vmatprep.subr.bf16.mxu0 %v7269
        %7546 = vmatpush2.bf16.msra.mxu0 %v7268
        %7547 = vmatprep.subr.bf16.mxu0 %v7267
        %7548 = vmatpush2.bf16.msra.mxu0 %v7266
        %7549 = vmatprep.subr.bf16.mxu0 %v7265
        %7550 = vmatpush2.bf16.msra.mxu0 %v7264
        %7551 = vmatprep.subr.bf16.mxu0 %v7263
        %7552 = vmatpush2.bf16.msra.mxu0 %v7262
        %7553 = vmatprep.subr.bf16.mxu0 %v7261
        %7554 = vmatpush2.bf16.msra.mxu0 %v7260
        %7555 = vmatprep.subr.bf16.mxu0 %v7259
        %7556 = vmatpush2.bf16.msra.mxu0 %v7258
        %7557 = vmatprep.mubr.bf16.mxu0 %v6619
        %7558 = vmatmul.mubr.bf16.gmra.mxu0 %v6618
        %v7559 = vpop.f32.mrf.mxu0
        %v7560 = vadd.f32 %v7519, %v7559
        %v7561 = vpop.f32.mrf.mxu0
        %v7562 = vadd.f32 %v7521, %v7561
        %v7563 = vpop.f32.mrf.mxu0
        %v7564 = vpop.f32.mrf.mxu0
        %7565 = vdwg.mxu0
        %v7566 = vadd.f32 %v5560, %v7560
        %v7567 = vadd.f32 %v5561, %v7562
        %s7568 = scalar_lea.vmem %s14, 2
        %v7569 = vld [vmem:[%s7568] sm:$0x3]
        %s7570 = scalar_lea.vmem [#allocation22], 2
        %v7571 = vld [vmem:[%s7570] sm:$0x3]
        %v7572 = vadd.f32 %v7566, %v7567
        %7573 = vadd.xlane.f32.xlu0 %v7572
        %v7574 = vpop.xlane.xlu0 %7573
        %v7575 = vmul.f32 %v7574, %v909
        %v7576 = vsub.f32 %v7566, %v7575
        %v7577 = vsub.f32 %v7567, %v7575
        %v7578 = vmul.f32 %v7576, %v7576
        %v7579 = vmul.f32 %v7577, %v7577
        %v7580 = vadd.f32 %v7578, %v7579
        %7581 = vadd.xlane.f32.xlu0 %v7580
        %v7582 = vpop.xlane.xlu0 %7581
        %v7583 = vmul.f32 %v7582, %v909
        %v7584 = vadd.f32 %v7583, 1e-12
        %v7585 = vrsqrt.pop %v7584
        %v7586 = vmul.f32 %v7576, %v7585
        %v7587 = vmul.f32 %v7577, %v7585
        %v7589 = vlaneseq
        %v7590 = vshrl.u32 %v7589, 7
        %v7591 = vsub.s32 0, %v7590
        %v7592 = vrot.slane %v7569, %v7591
        %v7593 = vlaneseq
        %v7594 = vshrl.u32 %v7593, 7
        %v7595 = vsub.s32 1, %v7594
        %v7596 = vrot.slane %v7569, %v7595
        %v7599 = vmul.f32 %v7586, %v7592
        %v7600 = vmul.f32 %v7587, %v7596
        %v7602 = vlaneseq
        %v7603 = vshrl.u32 %v7602, 7
        %v7604 = vsub.s32 0, %v7603
        %v7605 = vrot.slane %v7571, %v7604
        %v7606 = vlaneseq
        %v7607 = vshrl.u32 %v7606, 7
        %v7608 = vsub.s32 1, %v7607
        %v7609 = vrot.slane %v7571, %v7608
        %v7612 = vadd.f32 %v7599, %v7605
        %v7613 = vadd.f32 %v7600, %v7609
        %v7614 = vpack.c.bf16 %v7612, %v7612
        %v7615 = vpack.c.bf16 %v7613, %v7613
        %v7616 = vld [vmem:[#allocation23] sm:$0xff]
        %v7617 = vld [vmem:[#allocation23 + $0x8] sm:$0xff]
        %v7618 = vld [vmem:[#allocation23 + $0x10] sm:$0xff]
        %v7619 = vld [vmem:[#allocation23 + $0x18] sm:$0xff]
        %v7620 = vld [vmem:[#allocation23 + $0x20] sm:$0xff]
        %v7621 = vld [vmem:[#allocation23 + $0x28] sm:$0xff]
        %v7622 = vld [vmem:[#allocation23 + $0x30] sm:$0xff]
        %v7623 = vld [vmem:[#allocation23 + $0x38] sm:$0xff]
        %v7624 = vld [vmem:[#allocation23 + $0x40] sm:$0xff]
        %v7625 = vld [vmem:[#allocation23 + $0x48] sm:$0xff]
        %v7626 = vld [vmem:[#allocation23 + $0x50] sm:$0xff]
        %v7627 = vld [vmem:[#allocation23 + $0x58] sm:$0xff]
        %v7628 = vld [vmem:[#allocation23 + $0x60] sm:$0xff]
        %v7629 = vld [vmem:[#allocation23 + $0x68] sm:$0xff]
        %v7630 = vld [vmem:[#allocation23 + $0x70] sm:$0xff]
        %v7631 = vld [vmem:[#allocation23 + $0x78] sm:$0xff]
        %v7632 = vld [vmem:[#allocation23 + $0x80] sm:$0xff]
        %v7633 = vld [vmem:[#allocation23 + $0x88] sm:$0xff]
        %v7634 = vld [vmem:[#allocation23 + $0x90] sm:$0xff]
        %v7635 = vld [vmem:[#allocation23 + $0x98] sm:$0xff]
        %v7636 = vld [vmem:[#allocation23 + $0xa0] sm:$0xff]
        %v7637 = vld [vmem:[#allocation23 + $0xa8] sm:$0xff]
        %v7638 = vld [vmem:[#allocation23 + $0xb0] sm:$0xff]
        %v7639 = vld [vmem:[#allocation23 + $0xb8] sm:$0xff]
        %v7640 = vld [vmem:[#allocation23 + $0xc0] sm:$0xff]
        %v7641 = vld [vmem:[#allocation23 + $0xc8] sm:$0xff]
        %v7642 = vld [vmem:[#allocation23 + $0xd0] sm:$0xff]
        %v7643 = vld [vmem:[#allocation23 + $0xd8] sm:$0xff]
        %v7644 = vld [vmem:[#allocation23 + $0xe0] sm:$0xff]
        %v7645 = vld [vmem:[#allocation23 + $0xe8] sm:$0xff]
        %v7646 = vld [vmem:[#allocation23 + $0xf0] sm:$0xff]
        %v7647 = vld [vmem:[#allocation23 + $0xf8] sm:$0xff]
        %v7648 = vld [vmem:[%s17] sm:$0x3]
        %v7681 = vunpack.c.l.b16 %v7616
        %v7682 = vunpack.c.h.b16 %v7616
        %v7683 = vunpack.c.l.b16 %v7617
        %v7684 = vunpack.c.h.b16 %v7617
        %v7685 = vunpack.c.l.b16 %v7618
        %v7686 = vunpack.c.h.b16 %v7618
        %v7687 = vunpack.c.l.b16 %v7619
        %v7688 = vunpack.c.h.b16 %v7619
        %v7689 = vunpack.c.l.b16 %v7620
        %v7690 = vunpack.c.h.b16 %v7620
        %v7691 = vunpack.c.l.b16 %v7621
        %v7692 = vunpack.c.h.b16 %v7621
        %v7693 = vunpack.c.l.b16 %v7622
        %v7694 = vunpack.c.h.b16 %v7622
        %v7695 = vunpack.c.l.b16 %v7623
        %v7696 = vunpack.c.h.b16 %v7623
        %v7697 = vunpack.c.l.b16 %v7624
        %v7698 = vunpack.c.h.b16 %v7624
        %v7699 = vunpack.c.l.b16 %v7625
        %v7700 = vunpack.c.h.b16 %v7625
        %v7701 = vunpack.c.l.b16 %v7626
        %v7702 = vunpack.c.h.b16 %v7626
        %v7703 = vunpack.c.l.b16 %v7627
        %v7704 = vunpack.c.h.b16 %v7627
        %v7705 = vunpack.c.l.b16 %v7628
        %v7706 = vunpack.c.h.b16 %v7628
        %v7707 = vunpack.c.l.b16 %v7629
        %v7708 = vunpack.c.h.b16 %v7629
        %v7709 = vunpack.c.l.b16 %v7630
        %v7710 = vunpack.c.h.b16 %v7630
        %v7711 = vunpack.c.l.b16 %v7631
        %v7712 = vunpack.c.h.b16 %v7631
        %v7713 = vunpack.c.l.b16 %v7632
        %v7714 = vunpack.c.h.b16 %v7632
        %v7715 = vunpack.c.l.b16 %v7633
        %v7716 = vunpack.c.h.b16 %v7633
        %v7717 = vunpack.c.l.b16 %v7634
        %v7718 = vunpack.c.h.b16 %v7634
        %v7719 = vunpack.c.l.b16 %v7635
        %v7720 = vunpack.c.h.b16 %v7635
        %v7721 = vunpack.c.l.b16 %v7636
        %v7722 = vunpack.c.h.b16 %v7636
        %v7723 = vunpack.c.l.b16 %v7637
        %v7724 = vunpack.c.h.b16 %v7637
        %v7725 = vunpack.c.l.b16 %v7638
        %v7726 = vunpack.c.h.b16 %v7638
        %v7727 = vunpack.c.l.b16 %v7639
        %v7728 = vunpack.c.h.b16 %v7639
        %v7729 = vunpack.c.l.b16 %v7640
        %v7730 = vunpack.c.h.b16 %v7640
        %v7731 = vunpack.c.l.b16 %v7641
        %v7732 = vunpack.c.h.b16 %v7641
        %v7733 = vunpack.c.l.b16 %v7642
        %v7734 = vunpack.c.h.b16 %v7642
        %v7735 = vunpack.c.l.b16 %v7643
        %v7736 = vunpack.c.h.b16 %v7643
        %v7737 = vunpack.c.l.b16 %v7644
        %v7738 = vunpack.c.h.b16 %v7644
        %v7739 = vunpack.c.l.b16 %v7645
        %v7740 = vunpack.c.h.b16 %v7645
        %v7741 = vunpack.c.l.b16 %v7646
        %v7742 = vunpack.c.h.b16 %v7646
        %v7743 = vunpack.c.l.b16 %v7647
        %v7744 = vunpack.c.h.b16 %v7647
        %v7745 = vpack.c.b16 %v7683, %v7681
        %v7746 = vpack.c.b16 %v7684, %v7682
        %v7747 = vpack.c.b16 %v7687, %v7685
        %v7748 = vpack.c.b16 %v7688, %v7686
        %v7749 = vpack.c.b16 %v7691, %v7689
        %v7750 = vpack.c.b16 %v7692, %v7690
        %v7751 = vpack.c.b16 %v7695, %v7693
        %v7752 = vpack.c.b16 %v7696, %v7694
        %v7753 = vpack.c.b16 %v7699, %v7697
        %v7754 = vpack.c.b16 %v7700, %v7698
        %v7755 = vpack.c.b16 %v7703, %v7701
        %v7756 = vpack.c.b16 %v7704, %v7702
        %v7757 = vpack.c.b16 %v7707, %v7705
        %v7758 = vpack.c.b16 %v7708, %v7706
        %v7759 = vpack.c.b16 %v7711, %v7709
        %v7760 = vpack.c.b16 %v7712, %v7710
        %v7761 = vpack.c.b16 %v7715, %v7713
        %v7762 = vpack.c.b16 %v7716, %v7714
        %v7763 = vpack.c.b16 %v7719, %v7717
        %v7764 = vpack.c.b16 %v7720, %v7718
        %v7765 = vpack.c.b16 %v7723, %v7721
        %v7766 = vpack.c.b16 %v7724, %v7722
        %v7767 = vpack.c.b16 %v7727, %v7725
        %v7768 = vpack.c.b16 %v7728, %v7726
        %v7769 = vpack.c.b16 %v7731, %v7729
        %v7770 = vpack.c.b16 %v7732, %v7730
        %v7771 = vpack.c.b16 %v7735, %v7733
        %v7772 = vpack.c.b16 %v7736, %v7734
        %v7773 = vpack.c.b16 %v7739, %v7737
        %v7774 = vpack.c.b16 %v7740, %v7738
        %v7775 = vpack.c.b16 %v7743, %v7741
        %v7776 = vpack.c.b16 %v7744, %v7742
        %v7810 = vlaneseq
        %v7811 = vshrl.u32 %v7810, 7
        %v7812 = vsub.s32 0, %v7811
        %v7813 = vrot.slane %v7648, %v7812
        %v7814 = vlaneseq
        %v7815 = vshrl.u32 %v7814, 7
        %v7816 = vsub.s32 1, %v7815
        %v7817 = vrot.slane %v7648, %v7816
        %7820 = vmatprep.subr.bf16.mxu0 %v7760
        %7821 = vmatpush1.bf16.msra.mxu0 %v7759
        %7822 = vmatprep.subr.bf16.mxu0 %v7758
        %7823 = vmatpush1.bf16.msra.mxu0 %v7757
        %7824 = vmatprep.subr.bf16.mxu0 %v7756
        %7825 = vmatpush1.bf16.msra.mxu0 %v7755
        %7826 = vmatprep.subr.bf16.mxu0 %v7754
        %7827 = vmatpush1.bf16.msra.mxu0 %v7753
        %7828 = vmatprep.subr.bf16.mxu0 %v7752
        %7829 = vmatpush1.bf16.msra.mxu0 %v7751
        %7830 = vmatprep.subr.bf16.mxu0 %v7750
        %7831 = vmatpush1.bf16.msra.mxu0 %v7749
        %7832 = vmatprep.subr.bf16.mxu0 %v7748
        %7833 = vmatpush1.bf16.msra.mxu0 %v7747
        %7834 = vmatprep.subr.bf16.mxu0 %v7746
        %7835 = vmatpush1.bf16.msra.mxu0 %v7745
        %7836 = vmatprep.subr.bf16.mxu0 %v7776
        %7837 = vmatpush2.bf16.msra.mxu0 %v7775
        %7838 = vmatprep.subr.bf16.mxu0 %v7774
        %7839 = vmatpush2.bf16.msra.mxu0 %v7773
        %7840 = vmatprep.subr.bf16.mxu0 %v7772
        %7841 = vmatpush2.bf16.msra.mxu0 %v7771
        %7842 = vmatprep.subr.bf16.mxu0 %v7770
        %7843 = vmatpush2.bf16.msra.mxu0 %v7769
        %7844 = vmatprep.subr.bf16.mxu0 %v7768
        %7845 = vmatpush2.bf16.msra.mxu0 %v7767
        %7846 = vmatprep.subr.bf16.mxu0 %v7766
        %7847 = vmatpush2.bf16.msra.mxu0 %v7765
        %7848 = vmatprep.subr.bf16.mxu0 %v7764
        %7849 = vmatpush2.bf16.msra.mxu0 %v7763
        %7850 = vmatprep.subr.bf16.mxu0 %v7762
        %7851 = vmatpush2.bf16.msra.mxu0 %v7761
        %7852 = vmatprep.mubr.bf16.mxu0 %v7615
        %7853 = vmatmul.mubr.bf16.gmra.mxu0 %v7614
        %v7854 = vpop.f32.mrf.mxu0
        %v7855 = vadd.f32 %v7813, %v7854
        %v7856 = vpop.f32.mrf.mxu0
        %v7857 = vadd.f32 %v7817, %v7856
        %v7858 = vpop.f32.mrf.mxu0
        %v7859 = vpop.f32.mrf.mxu0
        %7860 = vdwg.mxu0
        %v7861 = vtanh.pop %v7855
        %v7862 = vtanh.pop %v7857
        %v7863 = vpack.c.bf16 %v7861, %v7861
        %v7864 = vpack.c.bf16 %v7862, %v7862
        %v7865 = vld [vmem:[#allocation25] sm:$0xf]
        %v7866 = vld [vmem:[#allocation25 + $0x4] sm:$0xf]
        %v7867 = vld [vmem:[#allocation25 + $0x8] sm:$0xf]
        %v7868 = vld [vmem:[#allocation25 + $0xc] sm:$0xf]
        %v7869 = vld [vmem:[#allocation25 + $0x10] sm:$0xf]
        %v7870 = vld [vmem:[#allocation25 + $0x14] sm:$0xf]
        %v7871 = vld [vmem:[#allocation25 + $0x18] sm:$0xf]
        %v7872 = vld [vmem:[#allocation25 + $0x1c] sm:$0xf]
        %v7873 = vld [vmem:[#allocation25 + $0x20] sm:$0xf]
        %v7874 = vld [vmem:[#allocation25 + $0x24] sm:$0xf]
        %v7875 = vld [vmem:[#allocation25 + $0x28] sm:$0xf]
        %v7876 = vld [vmem:[#allocation25 + $0x2c] sm:$0xf]
        %v7877 = vld [vmem:[#allocation25 + $0x30] sm:$0xf]
        %v7878 = vld [vmem:[#allocation25 + $0x34] sm:$0xf]
        %v7879 = vld [vmem:[#allocation25 + $0x38] sm:$0xf]
        %v7880 = vld [vmem:[#allocation25 + $0x3c] sm:$0xf]
        %v7881 = vld [vmem:[#allocation25 + $0x40] sm:$0xf]
        %v7882 = vld [vmem:[#allocation25 + $0x44] sm:$0xf]
        %v7883 = vld [vmem:[#allocation25 + $0x48] sm:$0xf]
        %v7884 = vld [vmem:[#allocation25 + $0x4c] sm:$0xf]
        %v7885 = vld [vmem:[#allocation25 + $0x50] sm:$0xf]
        %v7886 = vld [vmem:[#allocation25 + $0x54] sm:$0xf]
        %v7887 = vld [vmem:[#allocation25 + $0x58] sm:$0xf]
        %v7888 = vld [vmem:[#allocation25 + $0x5c] sm:$0xf]
        %v7889 = vld [vmem:[#allocation25 + $0x60] sm:$0xf]
        %v7890 = vld [vmem:[#allocation25 + $0x64] sm:$0xf]
        %v7891 = vld [vmem:[#allocation25 + $0x68] sm:$0xf]
        %v7892 = vld [vmem:[#allocation25 + $0x6c] sm:$0xf]
        %v7893 = vld [vmem:[#allocation25 + $0x70] sm:$0xf]
        %v7894 = vld [vmem:[#allocation25 + $0x74] sm:$0xf]
        %v7895 = vld [vmem:[#allocation25 + $0x78] sm:$0xf]
        %v7896 = vld [vmem:[#allocation25 + $0x7c] sm:$0xf]
        %v7897 = vld [vmem:[%s19] sm:$0x1]
        %v7930 = vunpack.c.l.b16 %v7865
        %v7931 = vunpack.c.l.b16 %v7866
        %v7932 = vunpack.c.l.b16 %v7867
        %v7933 = vunpack.c.l.b16 %v7868
        %v7934 = vunpack.c.l.b16 %v7869
        %v7935 = vunpack.c.l.b16 %v7870
        %v7936 = vunpack.c.l.b16 %v7871
        %v7937 = vunpack.c.l.b16 %v7872
        %v7938 = vunpack.c.l.b16 %v7873
        %v7939 = vunpack.c.l.b16 %v7874
        %v7940 = vunpack.c.l.b16 %v7875
        %v7941 = vunpack.c.l.b16 %v7876
        %v7942 = vunpack.c.l.b16 %v7877
        %v7943 = vunpack.c.l.b16 %v7878
        %v7944 = vunpack.c.l.b16 %v7879
        %v7945 = vunpack.c.l.b16 %v7880
        %v7946 = vunpack.c.l.b16 %v7881
        %v7947 = vunpack.c.l.b16 %v7882
        %v7948 = vunpack.c.l.b16 %v7883
        %v7949 = vunpack.c.l.b16 %v7884
        %v7950 = vunpack.c.l.b16 %v7885
        %v7951 = vunpack.c.l.b16 %v7886
        %v7952 = vunpack.c.l.b16 %v7887
        %v7953 = vunpack.c.l.b16 %v7888
        %v7954 = vunpack.c.l.b16 %v7889
        %v7955 = vunpack.c.l.b16 %v7890
        %v7956 = vunpack.c.l.b16 %v7891
        %v7957 = vunpack.c.l.b16 %v7892
        %v7958 = vunpack.c.l.b16 %v7893
        %v7959 = vunpack.c.l.b16 %v7894
        %v7960 = vunpack.c.l.b16 %v7895
        %v7961 = vunpack.c.l.b16 %v7896
        %v7962 = vpack.c.b16 %v7931, %v7930
        %v7963 = vpack.c.b16 %v7933, %v7932
        %v7964 = vpack.c.b16 %v7935, %v7934
        %v7965 = vpack.c.b16 %v7937, %v7936
        %v7966 = vpack.c.b16 %v7939, %v7938
        %v7967 = vpack.c.b16 %v7941, %v7940
        %v7968 = vpack.c.b16 %v7943, %v7942
        %v7969 = vpack.c.b16 %v7945, %v7944
        %v7970 = vpack.c.b16 %v7947, %v7946
        %v7971 = vpack.c.b16 %v7949, %v7948
        %v7972 = vpack.c.b16 %v7951, %v7950
        %v7973 = vpack.c.b16 %v7953, %v7952
        %v7974 = vpack.c.b16 %v7955, %v7954
        %v7975 = vpack.c.b16 %v7957, %v7956
        %v7976 = vpack.c.b16 %v7959, %v7958
        %v7977 = vpack.c.b16 %v7961, %v7960
        %7994 = vmatprep.subr.bf16.mxu0 0
        %7995 = vmatpush1.bf16.msra.mxu0 %v7969
        %7996 = vmatprep.subr.bf16.mxu0 0
        %7997 = vmatpush1.bf16.msra.mxu0 %v7968
        %7998 = vmatprep.subr.bf16.mxu0 0
        %7999 = vmatpush1.bf16.msra.mxu0 %v7967
        %8000 = vmatprep.subr.bf16.mxu0 0
        %8001 = vmatpush1.bf16.msra.mxu0 %v7966
        %8002 = vmatprep.subr.bf16.mxu0 0
        %8003 = vmatpush1.bf16.msra.mxu0 %v7965
        %8004 = vmatprep.subr.bf16.mxu0 0
        %8005 = vmatpush1.bf16.msra.mxu0 %v7964
        %8006 = vmatprep.subr.bf16.mxu0 0
        %8007 = vmatpush1.bf16.msra.mxu0 %v7963
        %8008 = vmatprep.subr.bf16.mxu0 0
        %8009 = vmatpush1.bf16.msra.mxu0 %v7962
        %8010 = vmatprep.subr.bf16.mxu0 0
        %8011 = vmatpush2.bf16.msra.mxu0 %v7977
        %8012 = vmatprep.subr.bf16.mxu0 0
        %8013 = vmatpush2.bf16.msra.mxu0 %v7976
        %8014 = vmatprep.subr.bf16.mxu0 0
        %8015 = vmatpush2.bf16.msra.mxu0 %v7975
        %8016 = vmatprep.subr.bf16.mxu0 0
        %8017 = vmatpush2.bf16.msra.mxu0 %v7974
        %8018 = vmatprep.subr.bf16.mxu0 0
        %8019 = vmatpush2.bf16.msra.mxu0 %v7973
        %8020 = vmatprep.subr.bf16.mxu0 0
        %8021 = vmatpush2.bf16.msra.mxu0 %v7972
        %8022 = vmatprep.subr.bf16.mxu0 0
        %8023 = vmatpush2.bf16.msra.mxu0 %v7971
        %8024 = vmatprep.subr.bf16.mxu0 0
        %8025 = vmatpush2.bf16.msra.mxu0 %v7970
        %8026 = vmatprep.mubr.bf16.mxu0 %v7864
        %8027 = vmatmul.mubr.bf16.gmra.mxu0 %v7863
        %v8028 = vpop.f32.mrf.mxu0
        %v8029 = vadd.f32 %v7897, %v8028
        %v8030 = vpop.f32.mrf.mxu0
        %v8031 = vpop.f32.mrf.mxu0
        %v8032 = vpop.f32.mrf.mxu0
        %8033 = vdwg.mxu0
        %v8036 = vcombine.low %v7861, %v7862
        %v8038 = vunpack.c.l.s4 1966171168
        %v8039 = vunpack.c.0.s8 %v8038
        %v8040 = vlaneseq
        %v8041 = vshrl.u32 %v8040, 7
        %v8042 = vsub.s32 %v8039, %v8041
        %v8043 = vrot.slane %v8036, %v8042
        %v8045 = vunpack.c.l.s4 1966171168
        %v8046 = vunpack.c.0.s8 %v8045
        %v8047 = vlaneseq
        %v8048 = vshrl.u32 %v8047, 7
        %v8049 = vsub.s32 %v8046, %v8048
        %v8050 = vrot.slane %v8043, %v8049
        %v8052 = vlaneseq
        %vm8053 = vcmp.ge.s32.totalorder %v8052, 0
        %vm8054 = vcmp.lt.s32.totalorder %v8052, 256
        %vm8055 = vmand %vm8053, %vm8054
        %8056 = vst.msk [vmem:[%s900] sm:$0x3] %vm8055, %v8050
        %8057 = vst [vmem:[%s893] sm:$0x1] %v8029
        %s8058 = sand.u32 %s489, 1
        %s8059 = scalar_lea.sflag [#allocation4], %s8058
        %s8060 = sand.u32 %s489, 1
        %s8061 = scalar_lea.vmem [#allocation26], %s8060
        %s8062 = sand.u32 %s515, 1
        %s8063 = scalar_lea.sflag [#allocation28], %s8062
        %s8064 = sand.u32 %s515, 1
        %s8065 = smul.addr %s8064, 2
        %s8066 = scalar_lea.vmem [#allocation27], %s8065
        // Predicated region
        $region161: #{tpu_custom_call.1} parent=99 // pred_check
          %p8067 = pneg %p499
        $region162: #{tpu_custom_call.1} parent=99 // pred_check_branch
          %8069 = sbr.rel (%p8067) target = $region164
        $region163: #{tpu_custom_call.1} parent=99 // pred_region
          %s8071 = ssub.s32 16, 16
          %8072 = vsyncadd %s8059, %s8071
          %s8073 = smul.addr %s51, 16
          %s8074 = scalar_lea.hbm %s20, %s8073
          %s8076 = sshll.u32 %s8061, 4
          %s8077 = int_to_ptr.vmem [resolvable:$true] %s8076
          %8079 = dma.vmem_to_hbm [thread:$0]  %s8077, 16, %s8074, %s8059
        $region164: #{tpu_custom_call.1} parent=99 // pred_fallthru
          _
        // Predicated region
        $region165: #{tpu_custom_call.1} parent=99 // pred_check
          %p8080 = pneg %p525
        $region166: #{tpu_custom_call.1} parent=99 // pred_check_branch
          %8082 = sbr.rel (%p8080) target = $region168
        $region167: #{tpu_custom_call.1} parent=99 // pred_region
          %s8084 = ssub.s32 32, 32
          %8085 = vsyncadd %s8063, %s8084
          %s8086 = smul.addr %s51, 2
          %s8087 = smul.addr %s8086, 16
          %s8088 = scalar_lea.hbm %s21, %s8087
          %s8090 = sshll.u32 %s8066, 4
          %s8091 = int_to_ptr.vmem [resolvable:$true] %s8090
          %8093 = dma.vmem_to_hbm [thread:$0]  %s8091, 32, %s8088, %s8063
        $region168: #{tpu_custom_call.1} parent=99 // pred_fallthru
          _
      $region100: #{tpu_custom_call.1} parent=5 // pred_fallthru
        _
      %p8094 = scmp.le.s32.totalorder 2, %s46
      // Predicated region
      $region169: #{tpu_custom_call.1} parent=5 // pred_check
        %p8095 = pneg %p8094
      $region170: #{tpu_custom_call.1} parent=5 // pred_check_branch
        %8097 = sbr.rel (%p8095) target = $region172
      $region171: #{tpu_custom_call.1} parent=5 // pred_region
        %s8098 = ssub.s32 %s46, 2
        // Predicated region
        $region173: #{tpu_custom_call.1} parent=171 // pred_check
          %p8099 = pneg %p505
        $region174: #{tpu_custom_call.1} parent=171 // pred_check_branch
          %8101 = sbr.rel (%p8099) target = $region176
        $region175: #{tpu_custom_call.1} parent=171 // pred_region
          %s8102 = sand.u32 %s490, 1
          %s8103 = scalar_lea.sflag [#allocation4], %s8102
          %s8104 = sand.u32 %s490, 1
          %s8105 = scalar_lea.vmem [#allocation26], %s8104
          %8106 = dma.done %s8103, 16
        $region176: #{tpu_custom_call.1} parent=171 // pred_fallthru
          _
        // Predicated region
        $region177: #{tpu_custom_call.1} parent=171 // pred_check
          %p8107 = pneg %p531
        $region178: #{tpu_custom_call.1} parent=171 // pred_check_branch
          %8109 = sbr.rel (%p8107) target = $region180
        $region179: #{tpu_custom_call.1} parent=171 // pred_region
          %s8110 = sand.u32 %s516, 1
          %s8111 = scalar_lea.sflag [#allocation28], %s8110
          %s8112 = sand.u32 %s516, 1
          %s8113 = smul.addr %s8112, 2
          %s8114 = scalar_lea.vmem [#allocation27], %s8113
          %8115 = dma.done %s8111, 32
        $region180: #{tpu_custom_call.1} parent=171 // pred_fallthru
          _
      $region172: #{tpu_custom_call.1} parent=5 // pred_fallthru
        _
    $region6: #{tpu_custom_call.1} parent=1 // loop_footer
      %s50 = sadd.s32 1, %s46
    $region7: #{tpu_custom_call.1} parent=1 // loop_footer_branch
      %45 = sbr.rel target = $region3
    $region8: #{tpu_custom_call.1} parent=1 // loop_exit
      _
    %8116 = vsyncpa [#allocation3], 1
    %s8117 = scalar_lea.sflag [#allocation3], 1
    %8118 = vsyncpa %s8117, 1
    %8119 = vsyncpa [#allocation6], 1
    %s8120 = scalar_lea.sflag [#allocation6], 1
    %8121 = vsyncpa %s8120, 1
    %8122 = vsyncpa [#allocation9], 1
    %8123 = vsyncpa [#allocation12], 1
    %8124 = vsyncpa [#allocation15], 1
    %8125 = vsyncpa [#allocation18], 1
    %8126 = vsyncpa [#allocation21], 1
    %8127 = vsyncpa [#allocation24], 1
    %8128 = vsyncpa [#allocation4], 1
    %s8129 = scalar_lea.sflag [#allocation4], 1
    %8130 = vsyncpa %s8129, 1
    %8131 = vsyncpa [#allocation28], 1
    %s8132 = scalar_lea.sflag [#allocation28], 1
    %8133 = vsyncpa %s8132, 1

</llo_original>
